<compile_context>
chip_gen: v7x
topology: tpu7x:2x2x1
jax: 0.10.0
libtpu: 0.0.40
codegen_flags: <defaults>
</compile_context>

<pallas_src>
import functools

import jax
import jax.numpy as jnp
from jax import lax
from jax.experimental import pallas as pl
from jax.experimental.pallas import tpu as pltpu


def _shift_flat(x2d, off):
    """Return y with y[:, p] = x2d[:, (p + off) mod n] (circular lane shift).

    Wrapped / out-of-row positions are zeroed by the caller via the
    per-(kh, kw) validity mask, so the circular wrap is harmless.
    """
    if off == 0:
        return x2d
    n = x2d.shape[1]
    k = off % n
    return jnp.concatenate([x2d[:, k:], x2d[:, :k]], axis=1)


def _resblock3d_kernel(x_ref, m_ref, w0_ref, b0_ref, w1_ref, b1_ref,
                       o_ref, x1p_ref, *, nf, D, W, HW):
    """One batch sample per grid step.

    x_ref  : (1, D+2, HW)   depth-padded input, (H, W) flattened (lane-dense)
    m_ref  : (9, 1, HW)     per-(kh,kw) validity masks (0/1 f32)
    w0_ref : (nf*27,) SMEM  conv0 weights, flat index f*27 + kd*9 + kh*3 + kw
    b0_ref : (nf,)    SMEM
    w1_ref : (nf*27,) SMEM  conv1 weights, flat index c*27 + kd*9 + kh*3 + kw
    b1_ref : (1,)     SMEM
    o_ref  : (1, D, HW)
    x1p_ref: (nf, D+2, HW)  VMEM scratch -- depth-padded intermediate x1
    """
    Dp = D + 2
    x = x_ref[0]                                   # (Dp, HW), f32

    # ---- conv0 (1 -> nf) + LeakyReLU(0.1): tap-outer, filter-vectorized -----
    # Each (kh, kw)-shifted slab is built once and reused by all nf filters.
    acc0 = [jnp.full((D, HW), b0_ref[f], dtype=jnp.float32) for f in range(nf)]
    for kh in range(3):
        for kw in range(3):
            t = kh * 3 + kw
            off = (kh - 1) * W + (kw - 1)
            sh = _shift_flat(x, off)
            if off != 0:
                sh = sh * m_ref[t]                 # zero invalid (wrapped) taps
            for kd in range(3):
                slab = sh[kd:kd + D, :]            # (D, HW)
                for f in range(nf):
                    acc0[f] = acc0[f] + w0_ref[f * 27 + kd * 9 + t] * slab

    zrow = jnp.zeros((1, HW), dtype=jnp.float32)
    for f in range(nf):
        a = acc0[f]
        a = jnp.where(a >= 0.0, a, 0.1 * a)        # LeakyReLU(0.1)
        # Store depth-padded (zero top/bottom depth rows) as one aligned slab.
        x1p_ref[f] = jnp.concatenate([zrow, a, zrow], axis=0)

    # ---- conv1 (nf -> 1) + bias + residual: 4-way partial accumulators ------
    n_acc = 4 if nf >= 4 else nf
    accs = [jnp.zeros((D, HW), dtype=jnp.float32) for _ in range(n_acc)]
    tap = 0
    for c in range(nf):
        slab_c = x1p_ref[c]                        # (Dp, HW), loaded once per c
        for kh in range(3):
            for kw in range(3):
                t = kh * 3 + kw
                off = (kh - 1) * W + (kw - 1)
                sh = _shift_flat(slab_c, off)
                if off != 0:
                    sh = sh * m_ref[t]
                for kd in range(3):
                    p = tap % n_acc
                    accs[p] = accs[p] + (w1_ref[c * 27 + kd * 9 + t] *
                                         sh[kd:kd + D, :])
                    tap += 1
    acc2 = accs[0]
    for p in range(1, n_acc):
        acc2 = acc2 + accs[p]

    x0 = x[1:1 + D, :]                             # original input (residual)
    o_ref[0] = (acc2 + b1_ref[0] + x0).astype(o_ref.dtype)


@jax.jit
def resblock_3d(x, w0, b0, w1, b1):
    """Forward pass of ResBlock_3d.

    x  : (N, C, H, W)          (C is the depth axis of the 3D conv)
    w0 : (nf, 1, 3, 3, 3), b0 : (nf,)
    w1 : (1, nf, 3, 3, 3), b1 : (1,)
    returns (N, C, H, W), same dtype as x
    """
    N, C, H, W = x.shape
    D = C
    HW = H * W
    nf = w0.shape[0]
    assert w0.shape == (nf, 1, 3, 3, 3)
    assert w1.shape == (1, nf, 3, 3, 3)
    assert b0.shape == (nf,) and b1.shape == (1,)
    out_dtype = x.dtype

    # Depth-pad by 1 and flatten (H, W) into a lane-dense minor axis.
    xf = x.astype(jnp.float32)
    x_dp = jnp.pad(xf, ((0, 0), (1, 1), (0, 0), (0, 0))).reshape(N, D + 2, HW)

    # 9 validity masks over the flattened HW axis: mask[t=kh*3+kw][h*W+w] = 1
    # iff (h + kh - 1, w + kw - 1) lies inside the HxW image (zero-padding).
    hh = jnp.arange(HW, dtype=jnp.int32) // W
    ww = jnp.arange(HW, dtype=jnp.int32) % W
    masks = []
    for dy in (-1, 0, 1):
        for dx in (-1, 0, 1):
            valid = ((hh + dy >= 0) & (hh + dy < H) &
                     (ww + dx >= 0) & (ww + dx < W))
            masks.append(valid.astype(jnp.float32))
    masks = jnp.stack(masks, axis=0).reshape(9, 1, HW)

    w0_flat = w0.astype(jnp.float32).reshape(nf * 27)
    w1_flat = w1.astype(jnp.float32).reshape(nf * 27)
    b0f = b0.astype(jnp.float32)
    b1f = b1.astype(jnp.float32)

    kernel = functools.partial(_resblock3d_kernel, nf=nf, D=D, W=W, HW=HW)

    macs = N * nf * 27 * D * HW * 2            # conv0 + conv1
    cost = pl.CostEstimate(
        flops=2 * macs,
        transcendentals=0,
        bytes_accessed=(x_dp.size + N * D * HW + masks.size
                        + 2 * nf * 27 + nf + 1) * 4,
    )

    out = pl.pallas_call(
        kernel,
        out_shape=jax.ShapeDtypeStruct((N, D, HW), out_dtype),
        grid=(N,),
        in_specs=[
            pl.BlockSpec((1, D + 2, HW), lambda n: (n, 0, 0)),
            pl.BlockSpec((9, 1, HW), lambda n: (0, 0, 0)),   # resident masks
            pl.BlockSpec(memory_space=pltpu.MemorySpace.SMEM),
            pl.BlockSpec(memory_space=pltpu.MemorySpace.SMEM),
            pl.BlockSpec(memory_space=pltpu.MemorySpace.SMEM),
            pl.BlockSpec(memory_space=pltpu.MemorySpace.SMEM),
        ],
        out_specs=pl.BlockSpec((1, D, HW), lambda n: (n, 0, 0)),
        scratch_shapes=[
            pltpu.VMEM((nf, D + 2, HW), jnp.float32),
        ],
        compiler_params=pltpu.CompilerParams(
            dimension_semantics=("parallel",),
        ),
        cost_estimate=cost,
    )(x_dp, masks, w0_flat, b0f, w1_flat, b1f)

    return out.reshape(N, C, H, W)


def _resblock3d_reference(x, w0, b0, w1, b1):
    """Pure-JAX reference (matches the PyTorch module)."""
    dn = ('NCDHW', 'OIDHW', 'NCDHW')
    x0 = x.astype(jnp.float32)[:, None]                      # (N, 1, D, H, W)
    y = lax.conv_general_dilated(x0, w0.astype(jnp.float32), (1, 1, 1),
                                 [(1, 1)] * 3, dimension_numbers=dn,
                                 precision=lax.Precision.HIGHEST)
    y = y + b0[None, :, None, None, None]
    y = jnp.where(y >= 0, y, 0.1 * y)
    z = lax.conv_general_dilated(y, w1.astype(jnp.float32), (1, 1, 1),
                                 [(1, 1)] * 3, dimension_numbers=dn,
                                 precision=lax.Precision.HIGHEST)
    z = z + b1[None, :, None, None, None]
    out = z + x0
    return out.reshape(x.shape)


if __name__ == "__main__":
    key = jax.random.PRNGKey(0)
    k_x, k_w0, k_b0, k_w1, k_b1 = jax.random.split(key, 5)

    N, C, H, W = 2, 4, 16, 16
    nf = 8

    x = jax.random.normal(k_x, (N, C, H, W), dtype=jnp.float32)
    w0 = jax.random.normal(k_w0, (nf, 1, 3, 3, 3), dtype=jnp.float32) * 0.1
    b0 = jax.random.normal(k_b0, (nf,), dtype=jnp.float32) * 0.1
    w1 = jax.random.normal(k_w1, (1, nf, 3, 3, 3), dtype=jnp.float32) * 0.1
    b1 = jax.random.normal(k_b1, (1,), dtype=jnp.float32) * 0.1

    out = resblock_3d(x, w0, b0, w1, b1)
    out = jax.block_until_ready(out)

    ref = _resblock3d_reference(x, w0, b0, w1, b1)
    ref = jax.block_until_ready(ref)

    assert out.shape == x.shape, (out.shape, x.shape)
    assert out.dtype == x.dtype, (out.dtype, x.dtype)
    max_err = float(jnp.max(jnp.abs(out.astype(jnp.float32) - ref)))
    assert max_err < 1e-3, f"max abs error vs reference: {max_err}"

    print("KERNEL_OK")
</pallas_src>

<mosaic_0001>
module attributes {stable_mosaic.version = 11 : i64} {
  func.func @_resblock3d_kernel(%arg0: i32, %arg1: memref<1x6x256xf32, #tpu.memory_space<vmem>>, %arg2: memref<9x1x256xf32, #tpu.memory_space<vmem>>, %arg3: memref<216xf32, #tpu.memory_space<smem>>, %arg4: memref<8xf32, #tpu.memory_space<smem>>, %arg5: memref<216xf32, #tpu.memory_space<smem>>, %arg6: memref<1xf32, #tpu.memory_space<smem>>, %arg7: memref<1x4x256xf32, #tpu.memory_space<vmem>>, %arg8: memref<8x6x256xf32, #tpu.memory_space<vmem>>) attributes {dimension_semantics = [#tpu.dimension_semantics<parallel>], iteration_bounds = array<i64: 2>, scalar_prefetch = 0 : i64, scratch_operands = 1 : i64, tpu.core_type = #tpu.core_type<tc>, window_params = [{transform_indices = @transform_0, window_bounds = array<i64: 1, 6, 256>}, {pipeline_mode = #tpu.pipeline_mode<synchronous>, transform_indices = @transform_1, window_bounds = array<i64: 9, 1, 256>}, {transform_indices = @transform_2, window_bounds = array<i64: 216>}, {transform_indices = @transform_3, window_bounds = array<i64: 8>}, {transform_indices = @transform_4, window_bounds = array<i64: 216>}, {transform_indices = @transform_5, window_bounds = array<i64: 1>}, {transform_indices = @transform_6, window_bounds = array<i64: 1, 4, 256>}]} {
    %c0 = arith.constant 0 : index
    %c0_0 = arith.constant 0 : index
    %c0_1 = arith.constant 0 : index
    %0 = vector.load %arg1[%c0, %c0_0, %c0_1] : memref<1x6x256xf32, #tpu.memory_space<vmem>>, vector<1x6x256xf32>
    %1 = vector.shape_cast %0 : vector<1x6x256xf32> to vector<6x256xf32>
    %c0_2 = arith.constant 0 : index
    %2 = memref.load %arg4[%c0_2] : memref<8xf32, #tpu.memory_space<smem>>
    %3 = vector.broadcast %2 : f32 to vector<4x256xf32>
    %c1 = arith.constant 1 : index
    %4 = memref.load %arg4[%c1] : memref<8xf32, #tpu.memory_space<smem>>
    %5 = vector.broadcast %4 : f32 to vector<4x256xf32>
    %c2 = arith.constant 2 : index
    %6 = memref.load %arg4[%c2] : memref<8xf32, #tpu.memory_space<smem>>
    %7 = vector.broadcast %6 : f32 to vector<4x256xf32>
    %c3 = arith.constant 3 : index
    %8 = memref.load %arg4[%c3] : memref<8xf32, #tpu.memory_space<smem>>
    %9 = vector.broadcast %8 : f32 to vector<4x256xf32>
    %c4 = arith.constant 4 : index
    %10 = memref.load %arg4[%c4] : memref<8xf32, #tpu.memory_space<smem>>
    %11 = vector.broadcast %10 : f32 to vector<4x256xf32>
    %c5 = arith.constant 5 : index
    %12 = memref.load %arg4[%c5] : memref<8xf32, #tpu.memory_space<smem>>
    %13 = vector.broadcast %12 : f32 to vector<4x256xf32>
    %c6 = arith.constant 6 : index
    %14 = memref.load %arg4[%c6] : memref<8xf32, #tpu.memory_space<smem>>
    %15 = vector.broadcast %14 : f32 to vector<4x256xf32>
    %c7 = arith.constant 7 : index
    %16 = memref.load %arg4[%c7] : memref<8xf32, #tpu.memory_space<smem>>
    %17 = vector.broadcast %16 : f32 to vector<4x256xf32>
    %18 = vector.extract_strided_slice %1 {offsets = [0, 239], sizes = [6, 17], strides = [1, 1]} : vector<6x256xf32> to vector<6x17xf32>
    %19 = vector.extract_strided_slice %1 {offsets = [0, 0], sizes = [6, 239], strides = [1, 1]} : vector<6x256xf32> to vector<6x239xf32>
    %20 = tpu.concatenate %18, %19 in 1 : vector<6x17xf32>, vector<6x239xf32> -> vector<6x256xf32>
    %c0_3 = arith.constant 0 : index
    %c0_4 = arith.constant 0 : index
    %c0_5 = arith.constant 0 : index
    %21 = vector.load %arg2[%c0_3, %c0_4, %c0_5] : memref<9x1x256xf32, #tpu.memory_space<vmem>>, vector<1x1x256xf32>
    %22 = vector.shape_cast %21 : vector<1x1x256xf32> to vector<1x256xf32>
    %23 = vector.broadcast %22 : vector<1x256xf32> to vector<6x256xf32>
    %24 = arith.mulf %20, %23 : vector<6x256xf32>
    %25 = vector.extract_strided_slice %24 {offsets = [0, 0], sizes = [4, 256], strides = [1, 1]} : vector<6x256xf32> to vector<4x256xf32>
    %c0_6 = arith.constant 0 : index
    %26 = memref.load %arg3[%c0_6] : memref<216xf32, #tpu.memory_space<smem>>
    %27 = vector.broadcast %26 : f32 to vector<4x256xf32>
    %28 = arith.mulf %27, %25 : vector<4x256xf32>
    %29 = arith.addf %3, %28 : vector<4x256xf32>
    %c27 = arith.constant 27 : index
    %30 = memref.load %arg3[%c27] : memref<216xf32, #tpu.memory_space<smem>>
    %31 = vector.broadcast %30 : f32 to vector<4x256xf32>
    %32 = arith.mulf %31, %25 : vector<4x256xf32>
    %33 = arith.addf %5, %32 : vector<4x256xf32>
    %c54 = arith.constant 54 : index
    %34 = memref.load %arg3[%c54] : memref<216xf32, #tpu.memory_space<smem>>
    %35 = vector.broadcast %34 : f32 to vector<4x256xf32>
    %36 = arith.mulf %35, %25 : vector<4x256xf32>
    %37 = arith.addf %7, %36 : vector<4x256xf32>
    %c81 = arith.constant 81 : index
    %38 = memref.load %arg3[%c81] : memref<216xf32, #tpu.memory_space<smem>>
    %39 = vector.broadcast %38 : f32 to vector<4x256xf32>
    %40 = arith.mulf %39, %25 : vector<4x256xf32>
    %41 = arith.addf %9, %40 : vector<4x256xf32>
    %c108 = arith.constant 108 : index
    %42 = memref.load %arg3[%c108] : memref<216xf32, #tpu.memory_space<smem>>
    %43 = vector.broadcast %42 : f32 to vector<4x256xf32>
    %44 = arith.mulf %43, %25 : vector<4x256xf32>
    %45 = arith.addf %11, %44 : vector<4x256xf32>
    %c135 = arith.constant 135 : index
    %46 = memref.load %arg3[%c135] : memref<216xf32, #tpu.memory_space<smem>>
    %47 = vector.broadcast %46 : f32 to vector<4x256xf32>
    %48 = arith.mulf %47, %25 : vector<4x256xf32>
    %49 = arith.addf %13, %48 : vector<4x256xf32>
    %c162 = arith.constant 162 : index
    %50 = memref.load %arg3[%c162] : memref<216xf32, #tpu.memory_space<smem>>
    %51 = vector.broadcast %50 : f32 to vector<4x256xf32>
    %52 = arith.mulf %51, %25 : vector<4x256xf32>
    %53 = arith.addf %15, %52 : vector<4x256xf32>
    %c189 = arith.constant 189 : index
    %54 = memref.load %arg3[%c189] : memref<216xf32, #tpu.memory_space<smem>>
    %55 = vector.broadcast %54 : f32 to vector<4x256xf32>
    %56 = arith.mulf %55, %25 : vector<4x256xf32>
    %57 = arith.addf %17, %56 : vector<4x256xf32>
    %58 = vector.extract_strided_slice %24 {offsets = [1, 0], sizes = [4, 256], strides = [1, 1]} : vector<6x256xf32> to vector<4x256xf32>
    %c9 = arith.constant 9 : index
    %59 = memref.load %arg3[%c9] : memref<216xf32, #tpu.memory_space<smem>>
    %60 = vector.broadcast %59 : f32 to vector<4x256xf32>
    %61 = arith.mulf %60, %58 : vector<4x256xf32>
    %62 = arith.addf %29, %61 : vector<4x256xf32>
    %c36 = arith.constant 36 : index
    %63 = memref.load %arg3[%c36] : memref<216xf32, #tpu.memory_space<smem>>
    %64 = vector.broadcast %63 : f32 to vector<4x256xf32>
    %65 = arith.mulf %64, %58 : vector<4x256xf32>
    %66 = arith.addf %33, %65 : vector<4x256xf32>
    %c63 = arith.constant 63 : index
    %67 = memref.load %arg3[%c63] : memref<216xf32, #tpu.memory_space<smem>>
    %68 = vector.broadcast %67 : f32 to vector<4x256xf32>
    %69 = arith.mulf %68, %58 : vector<4x256xf32>
    %70 = arith.addf %37, %69 : vector<4x256xf32>
    %c90 = arith.constant 90 : index
    %71 = memref.load %arg3[%c90] : memref<216xf32, #tpu.memory_space<smem>>
    %72 = vector.broadcast %71 : f32 to vector<4x256xf32>
    %73 = arith.mulf %72, %58 : vector<4x256xf32>
    %74 = arith.addf %41, %73 : vector<4x256xf32>
    %c117 = arith.constant 117 : index
    %75 = memref.load %arg3[%c117] : memref<216xf32, #tpu.memory_space<smem>>
    %76 = vector.broadcast %75 : f32 to vector<4x256xf32>
    %77 = arith.mulf %76, %58 : vector<4x256xf32>
    %78 = arith.addf %45, %77 : vector<4x256xf32>
    %c144 = arith.constant 144 : index
    %79 = memref.load %arg3[%c144] : memref<216xf32, #tpu.memory_space<smem>>
    %80 = vector.broadcast %79 : f32 to vector<4x256xf32>
    %81 = arith.mulf %80, %58 : vector<4x256xf32>
    %82 = arith.addf %49, %81 : vector<4x256xf32>
    %c171 = arith.constant 171 : index
    %83 = memref.load %arg3[%c171] : memref<216xf32, #tpu.memory_space<smem>>
    %84 = vector.broadcast %83 : f32 to vector<4x256xf32>
    %85 = arith.mulf %84, %58 : vector<4x256xf32>
    %86 = arith.addf %53, %85 : vector<4x256xf32>
    %c198 = arith.constant 198 : index
    %87 = memref.load %arg3[%c198] : memref<216xf32, #tpu.memory_space<smem>>
    %88 = vector.broadcast %87 : f32 to vector<4x256xf32>
    %89 = arith.mulf %88, %58 : vector<4x256xf32>
    %90 = arith.addf %57, %89 : vector<4x256xf32>
    %91 = vector.extract_strided_slice %24 {offsets = [2, 0], sizes = [4, 256], strides = [1, 1]} : vector<6x256xf32> to vector<4x256xf32>
    %c18 = arith.constant 18 : index
    %92 = memref.load %arg3[%c18] : memref<216xf32, #tpu.memory_space<smem>>
    %93 = vector.broadcast %92 : f32 to vector<4x256xf32>
    %94 = arith.mulf %93, %91 : vector<4x256xf32>
    %95 = arith.addf %62, %94 : vector<4x256xf32>
    %c45 = arith.constant 45 : index
    %96 = memref.load %arg3[%c45] : memref<216xf32, #tpu.memory_space<smem>>
    %97 = vector.broadcast %96 : f32 to vector<4x256xf32>
    %98 = arith.mulf %97, %91 : vector<4x256xf32>
    %99 = arith.addf %66, %98 : vector<4x256xf32>
    %c72 = arith.constant 72 : index
    %100 = memref.load %arg3[%c72] : memref<216xf32, #tpu.memory_space<smem>>
    %101 = vector.broadcast %100 : f32 to vector<4x256xf32>
    %102 = arith.mulf %101, %91 : vector<4x256xf32>
    %103 = arith.addf %70, %102 : vector<4x256xf32>
    %c99 = arith.constant 99 : index
    %104 = memref.load %arg3[%c99] : memref<216xf32, #tpu.memory_space<smem>>
    %105 = vector.broadcast %104 : f32 to vector<4x256xf32>
    %106 = arith.mulf %105, %91 : vector<4x256xf32>
    %107 = arith.addf %74, %106 : vector<4x256xf32>
    %c126 = arith.constant 126 : index
    %108 = memref.load %arg3[%c126] : memref<216xf32, #tpu.memory_space<smem>>
    %109 = vector.broadcast %108 : f32 to vector<4x256xf32>
    %110 = arith.mulf %109, %91 : vector<4x256xf32>
    %111 = arith.addf %78, %110 : vector<4x256xf32>
    %c153 = arith.constant 153 : index
    %112 = memref.load %arg3[%c153] : memref<216xf32, #tpu.memory_space<smem>>
    %113 = vector.broadcast %112 : f32 to vector<4x256xf32>
    %114 = arith.mulf %113, %91 : vector<4x256xf32>
    %115 = arith.addf %82, %114 : vector<4x256xf32>
    %c180 = arith.constant 180 : index
    %116 = memref.load %arg3[%c180] : memref<216xf32, #tpu.memory_space<smem>>
    %117 = vector.broadcast %116 : f32 to vector<4x256xf32>
    %118 = arith.mulf %117, %91 : vector<4x256xf32>
    %119 = arith.addf %86, %118 : vector<4x256xf32>
    %c207 = arith.constant 207 : index
    %120 = memref.load %arg3[%c207] : memref<216xf32, #tpu.memory_space<smem>>
    %121 = vector.broadcast %120 : f32 to vector<4x256xf32>
    %122 = arith.mulf %121, %91 : vector<4x256xf32>
    %123 = arith.addf %90, %122 : vector<4x256xf32>
    %124 = vector.extract_strided_slice %1 {offsets = [0, 240], sizes = [6, 16], strides = [1, 1]} : vector<6x256xf32> to vector<6x16xf32>
    %125 = vector.extract_strided_slice %1 {offsets = [0, 0], sizes = [6, 240], strides = [1, 1]} : vector<6x256xf32> to vector<6x240xf32>
    %126 = tpu.concatenate %124, %125 in 1 : vector<6x16xf32>, vector<6x240xf32> -> vector<6x256xf32>
    %c1_7 = arith.constant 1 : index
    %c0_8 = arith.constant 0 : index
    %c0_9 = arith.constant 0 : index
    %127 = vector.load %arg2[%c1_7, %c0_8, %c0_9] : memref<9x1x256xf32, #tpu.memory_space<vmem>>, vector<1x1x256xf32>
    %128 = vector.shape_cast %127 : vector<1x1x256xf32> to vector<1x256xf32>
    %129 = vector.broadcast %128 : vector<1x256xf32> to vector<6x256xf32>
    %130 = arith.mulf %126, %129 : vector<6x256xf32>
    %131 = vector.extract_strided_slice %130 {offsets = [0, 0], sizes = [4, 256], strides = [1, 1]} : vector<6x256xf32> to vector<4x256xf32>
    %c1_10 = arith.constant 1 : index
    %132 = memref.load %arg3[%c1_10] : memref<216xf32, #tpu.memory_space<smem>>
    %133 = vector.broadcast %132 : f32 to vector<4x256xf32>
    %134 = arith.mulf %133, %131 : vector<4x256xf32>
    %135 = arith.addf %95, %134 : vector<4x256xf32>
    %c28 = arith.constant 28 : index
    %136 = memref.load %arg3[%c28] : memref<216xf32, #tpu.memory_space<smem>>
    %137 = vector.broadcast %136 : f32 to vector<4x256xf32>
    %138 = arith.mulf %137, %131 : vector<4x256xf32>
    %139 = arith.addf %99, %138 : vector<4x256xf32>
    %c55 = arith.constant 55 : index
    %140 = memref.load %arg3[%c55] : memref<216xf32, #tpu.memory_space<smem>>
    %141 = vector.broadcast %140 : f32 to vector<4x256xf32>
    %142 = arith.mulf %141, %131 : vector<4x256xf32>
    %143 = arith.addf %103, %142 : vector<4x256xf32>
    %c82 = arith.constant 82 : index
    %144 = memref.load %arg3[%c82] : memref<216xf32, #tpu.memory_space<smem>>
    %145 = vector.broadcast %144 : f32 to vector<4x256xf32>
    %146 = arith.mulf %145, %131 : vector<4x256xf32>
    %147 = arith.addf %107, %146 : vector<4x256xf32>
    %c109 = arith.constant 109 : index
    %148 = memref.load %arg3[%c109] : memref<216xf32, #tpu.memory_space<smem>>
    %149 = vector.broadcast %148 : f32 to vector<4x256xf32>
    %150 = arith.mulf %149, %131 : vector<4x256xf32>
    %151 = arith.addf %111, %150 : vector<4x256xf32>
    %c136 = arith.constant 136 : index
    %152 = memref.load %arg3[%c136] : memref<216xf32, #tpu.memory_space<smem>>
    %153 = vector.broadcast %152 : f32 to vector<4x256xf32>
    %154 = arith.mulf %153, %131 : vector<4x256xf32>
    %155 = arith.addf %115, %154 : vector<4x256xf32>
    %c163 = arith.constant 163 : index
    %156 = memref.load %arg3[%c163] : memref<216xf32, #tpu.memory_space<smem>>
    %157 = vector.broadcast %156 : f32 to vector<4x256xf32>
    %158 = arith.mulf %157, %131 : vector<4x256xf32>
    %159 = arith.addf %119, %158 : vector<4x256xf32>
    %c190 = arith.constant 190 : index
    %160 = memref.load %arg3[%c190] : memref<216xf32, #tpu.memory_space<smem>>
    %161 = vector.broadcast %160 : f32 to vector<4x256xf32>
    %162 = arith.mulf %161, %131 : vector<4x256xf32>
    %163 = arith.addf %123, %162 : vector<4x256xf32>
    %164 = vector.extract_strided_slice %130 {offsets = [1, 0], sizes = [4, 256], strides = [1, 1]} : vector<6x256xf32> to vector<4x256xf32>
    %c10 = arith.constant 10 : index
    %165 = memref.load %arg3[%c10] : memref<216xf32, #tpu.memory_space<smem>>
    %166 = vector.broadcast %165 : f32 to vector<4x256xf32>
    %167 = arith.mulf %166, %164 : vector<4x256xf32>
    %168 = arith.addf %135, %167 : vector<4x256xf32>
    %c37 = arith.constant 37 : index
    %169 = memref.load %arg3[%c37] : memref<216xf32, #tpu.memory_space<smem>>
    %170 = vector.broadcast %169 : f32 to vector<4x256xf32>
    %171 = arith.mulf %170, %164 : vector<4x256xf32>
    %172 = arith.addf %139, %171 : vector<4x256xf32>
    %c64 = arith.constant 64 : index
    %173 = memref.load %arg3[%c64] : memref<216xf32, #tpu.memory_space<smem>>
    %174 = vector.broadcast %173 : f32 to vector<4x256xf32>
    %175 = arith.mulf %174, %164 : vector<4x256xf32>
    %176 = arith.addf %143, %175 : vector<4x256xf32>
    %c91 = arith.constant 91 : index
    %177 = memref.load %arg3[%c91] : memref<216xf32, #tpu.memory_space<smem>>
    %178 = vector.broadcast %177 : f32 to vector<4x256xf32>
    %179 = arith.mulf %178, %164 : vector<4x256xf32>
    %180 = arith.addf %147, %179 : vector<4x256xf32>
    %c118 = arith.constant 118 : index
    %181 = memref.load %arg3[%c118] : memref<216xf32, #tpu.memory_space<smem>>
    %182 = vector.broadcast %181 : f32 to vector<4x256xf32>
    %183 = arith.mulf %182, %164 : vector<4x256xf32>
    %184 = arith.addf %151, %183 : vector<4x256xf32>
    %c145 = arith.constant 145 : index
    %185 = memref.load %arg3[%c145] : memref<216xf32, #tpu.memory_space<smem>>
    %186 = vector.broadcast %185 : f32 to vector<4x256xf32>
    %187 = arith.mulf %186, %164 : vector<4x256xf32>
    %188 = arith.addf %155, %187 : vector<4x256xf32>
    %c172 = arith.constant 172 : index
    %189 = memref.load %arg3[%c172] : memref<216xf32, #tpu.memory_space<smem>>
    %190 = vector.broadcast %189 : f32 to vector<4x256xf32>
    %191 = arith.mulf %190, %164 : vector<4x256xf32>
    %192 = arith.addf %159, %191 : vector<4x256xf32>
    %c199 = arith.constant 199 : index
    %193 = memref.load %arg3[%c199] : memref<216xf32, #tpu.memory_space<smem>>
    %194 = vector.broadcast %193 : f32 to vector<4x256xf32>
    %195 = arith.mulf %194, %164 : vector<4x256xf32>
    %196 = arith.addf %163, %195 : vector<4x256xf32>
    %197 = vector.extract_strided_slice %130 {offsets = [2, 0], sizes = [4, 256], strides = [1, 1]} : vector<6x256xf32> to vector<4x256xf32>
    %c19 = arith.constant 19 : index
    %198 = memref.load %arg3[%c19] : memref<216xf32, #tpu.memory_space<smem>>
    %199 = vector.broadcast %198 : f32 to vector<4x256xf32>
    %200 = arith.mulf %199, %197 : vector<4x256xf32>
    %201 = arith.addf %168, %200 : vector<4x256xf32>
    %c46 = arith.constant 46 : index
    %202 = memref.load %arg3[%c46] : memref<216xf32, #tpu.memory_space<smem>>
    %203 = vector.broadcast %202 : f32 to vector<4x256xf32>
    %204 = arith.mulf %203, %197 : vector<4x256xf32>
    %205 = arith.addf %172, %204 : vector<4x256xf32>
    %c73 = arith.constant 73 : index
    %206 = memref.load %arg3[%c73] : memref<216xf32, #tpu.memory_space<smem>>
    %207 = vector.broadcast %206 : f32 to vector<4x256xf32>
    %208 = arith.mulf %207, %197 : vector<4x256xf32>
    %209 = arith.addf %176, %208 : vector<4x256xf32>
    %c100 = arith.constant 100 : index
    %210 = memref.load %arg3[%c100] : memref<216xf32, #tpu.memory_space<smem>>
    %211 = vector.broadcast %210 : f32 to vector<4x256xf32>
    %212 = arith.mulf %211, %197 : vector<4x256xf32>
    %213 = arith.addf %180, %212 : vector<4x256xf32>
    %c127 = arith.constant 127 : index
    %214 = memref.load %arg3[%c127] : memref<216xf32, #tpu.memory_space<smem>>
    %215 = vector.broadcast %214 : f32 to vector<4x256xf32>
    %216 = arith.mulf %215, %197 : vector<4x256xf32>
    %217 = arith.addf %184, %216 : vector<4x256xf32>
    %c154 = arith.constant 154 : index
    %218 = memref.load %arg3[%c154] : memref<216xf32, #tpu.memory_space<smem>>
    %219 = vector.broadcast %218 : f32 to vector<4x256xf32>
    %220 = arith.mulf %219, %197 : vector<4x256xf32>
    %221 = arith.addf %188, %220 : vector<4x256xf32>
    %c181 = arith.constant 181 : index
    %222 = memref.load %arg3[%c181] : memref<216xf32, #tpu.memory_space<smem>>
    %223 = vector.broadcast %222 : f32 to vector<4x256xf32>
    %224 = arith.mulf %223, %197 : vector<4x256xf32>
    %225 = arith.addf %192, %224 : vector<4x256xf32>
    %c208 = arith.constant 208 : index
    %226 = memref.load %arg3[%c208] : memref<216xf32, #tpu.memory_space<smem>>
    %227 = vector.broadcast %226 : f32 to vector<4x256xf32>
    %228 = arith.mulf %227, %197 : vector<4x256xf32>
    %229 = arith.addf %196, %228 : vector<4x256xf32>
    %230 = vector.extract_strided_slice %1 {offsets = [0, 241], sizes = [6, 15], strides = [1, 1]} : vector<6x256xf32> to vector<6x15xf32>
    %231 = vector.extract_strided_slice %1 {offsets = [0, 0], sizes = [6, 241], strides = [1, 1]} : vector<6x256xf32> to vector<6x241xf32>
    %232 = tpu.concatenate %230, %231 in 1 : vector<6x15xf32>, vector<6x241xf32> -> vector<6x256xf32>
    %c2_11 = arith.constant 2 : index
    %c0_12 = arith.constant 0 : index
    %c0_13 = arith.constant 0 : index
    %233 = vector.load %arg2[%c2_11, %c0_12, %c0_13] : memref<9x1x256xf32, #tpu.memory_space<vmem>>, vector<1x1x256xf32>
    %234 = vector.shape_cast %233 : vector<1x1x256xf32> to vector<1x256xf32>
    %235 = vector.broadcast %234 : vector<1x256xf32> to vector<6x256xf32>
    %236 = arith.mulf %232, %235 : vector<6x256xf32>
    %237 = vector.extract_strided_slice %236 {offsets = [0, 0], sizes = [4, 256], strides = [1, 1]} : vector<6x256xf32> to vector<4x256xf32>
    %c2_14 = arith.constant 2 : index
    %238 = memref.load %arg3[%c2_14] : memref<216xf32, #tpu.memory_space<smem>>
    %239 = vector.broadcast %238 : f32 to vector<4x256xf32>
    %240 = arith.mulf %239, %237 : vector<4x256xf32>
    %241 = arith.addf %201, %240 : vector<4x256xf32>
    %c29 = arith.constant 29 : index
    %242 = memref.load %arg3[%c29] : memref<216xf32, #tpu.memory_space<smem>>
    %243 = vector.broadcast %242 : f32 to vector<4x256xf32>
    %244 = arith.mulf %243, %237 : vector<4x256xf32>
    %245 = arith.addf %205, %244 : vector<4x256xf32>
    %c56 = arith.constant 56 : index
    %246 = memref.load %arg3[%c56] : memref<216xf32, #tpu.memory_space<smem>>
    %247 = vector.broadcast %246 : f32 to vector<4x256xf32>
    %248 = arith.mulf %247, %237 : vector<4x256xf32>
    %249 = arith.addf %209, %248 : vector<4x256xf32>
    %c83 = arith.constant 83 : index
    %250 = memref.load %arg3[%c83] : memref<216xf32, #tpu.memory_space<smem>>
    %251 = vector.broadcast %250 : f32 to vector<4x256xf32>
    %252 = arith.mulf %251, %237 : vector<4x256xf32>
    %253 = arith.addf %213, %252 : vector<4x256xf32>
    %c110 = arith.constant 110 : index
    %254 = memref.load %arg3[%c110] : memref<216xf32, #tpu.memory_space<smem>>
    %255 = vector.broadcast %254 : f32 to vector<4x256xf32>
    %256 = arith.mulf %255, %237 : vector<4x256xf32>
    %257 = arith.addf %217, %256 : vector<4x256xf32>
    %c137 = arith.constant 137 : index
    %258 = memref.load %arg3[%c137] : memref<216xf32, #tpu.memory_space<smem>>
    %259 = vector.broadcast %258 : f32 to vector<4x256xf32>
    %260 = arith.mulf %259, %237 : vector<4x256xf32>
    %261 = arith.addf %221, %260 : vector<4x256xf32>
    %c164 = arith.constant 164 : index
    %262 = memref.load %arg3[%c164] : memref<216xf32, #tpu.memory_space<smem>>
    %263 = vector.broadcast %262 : f32 to vector<4x256xf32>
    %264 = arith.mulf %263, %237 : vector<4x256xf32>
    %265 = arith.addf %225, %264 : vector<4x256xf32>
    %c191 = arith.constant 191 : index
    %266 = memref.load %arg3[%c191] : memref<216xf32, #tpu.memory_space<smem>>
    %267 = vector.broadcast %266 : f32 to vector<4x256xf32>
    %268 = arith.mulf %267, %237 : vector<4x256xf32>
    %269 = arith.addf %229, %268 : vector<4x256xf32>
    %270 = vector.extract_strided_slice %236 {offsets = [1, 0], sizes = [4, 256], strides = [1, 1]} : vector<6x256xf32> to vector<4x256xf32>
    %c11 = arith.constant 11 : index
    %271 = memref.load %arg3[%c11] : memref<216xf32, #tpu.memory_space<smem>>
    %272 = vector.broadcast %271 : f32 to vector<4x256xf32>
    %273 = arith.mulf %272, %270 : vector<4x256xf32>
    %274 = arith.addf %241, %273 : vector<4x256xf32>
    %c38 = arith.constant 38 : index
    %275 = memref.load %arg3[%c38] : memref<216xf32, #tpu.memory_space<smem>>
    %276 = vector.broadcast %275 : f32 to vector<4x256xf32>
    %277 = arith.mulf %276, %270 : vector<4x256xf32>
    %278 = arith.addf %245, %277 : vector<4x256xf32>
    %c65 = arith.constant 65 : index
    %279 = memref.load %arg3[%c65] : memref<216xf32, #tpu.memory_space<smem>>
    %280 = vector.broadcast %279 : f32 to vector<4x256xf32>
    %281 = arith.mulf %280, %270 : vector<4x256xf32>
    %282 = arith.addf %249, %281 : vector<4x256xf32>
    %c92 = arith.constant 92 : index
    %283 = memref.load %arg3[%c92] : memref<216xf32, #tpu.memory_space<smem>>
    %284 = vector.broadcast %283 : f32 to vector<4x256xf32>
    %285 = arith.mulf %284, %270 : vector<4x256xf32>
    %286 = arith.addf %253, %285 : vector<4x256xf32>
    %c119 = arith.constant 119 : index
    %287 = memref.load %arg3[%c119] : memref<216xf32, #tpu.memory_space<smem>>
    %288 = vector.broadcast %287 : f32 to vector<4x256xf32>
    %289 = arith.mulf %288, %270 : vector<4x256xf32>
    %290 = arith.addf %257, %289 : vector<4x256xf32>
    %c146 = arith.constant 146 : index
    %291 = memref.load %arg3[%c146] : memref<216xf32, #tpu.memory_space<smem>>
    %292 = vector.broadcast %291 : f32 to vector<4x256xf32>
    %293 = arith.mulf %292, %270 : vector<4x256xf32>
    %294 = arith.addf %261, %293 : vector<4x256xf32>
    %c173 = arith.constant 173 : index
    %295 = memref.load %arg3[%c173] : memref<216xf32, #tpu.memory_space<smem>>
    %296 = vector.broadcast %295 : f32 to vector<4x256xf32>
    %297 = arith.mulf %296, %270 : vector<4x256xf32>
    %298 = arith.addf %265, %297 : vector<4x256xf32>
    %c200 = arith.constant 200 : index
    %299 = memref.load %arg3[%c200] : memref<216xf32, #tpu.memory_space<smem>>
    %300 = vector.broadcast %299 : f32 to vector<4x256xf32>
    %301 = arith.mulf %300, %270 : vector<4x256xf32>
    %302 = arith.addf %269, %301 : vector<4x256xf32>
    %303 = vector.extract_strided_slice %236 {offsets = [2, 0], sizes = [4, 256], strides = [1, 1]} : vector<6x256xf32> to vector<4x256xf32>
    %c20 = arith.constant 20 : index
    %304 = memref.load %arg3[%c20] : memref<216xf32, #tpu.memory_space<smem>>
    %305 = vector.broadcast %304 : f32 to vector<4x256xf32>
    %306 = arith.mulf %305, %303 : vector<4x256xf32>
    %307 = arith.addf %274, %306 : vector<4x256xf32>
    %c47 = arith.constant 47 : index
    %308 = memref.load %arg3[%c47] : memref<216xf32, #tpu.memory_space<smem>>
    %309 = vector.broadcast %308 : f32 to vector<4x256xf32>
    %310 = arith.mulf %309, %303 : vector<4x256xf32>
    %311 = arith.addf %278, %310 : vector<4x256xf32>
    %c74 = arith.constant 74 : index
    %312 = memref.load %arg3[%c74] : memref<216xf32, #tpu.memory_space<smem>>
    %313 = vector.broadcast %312 : f32 to vector<4x256xf32>
    %314 = arith.mulf %313, %303 : vector<4x256xf32>
    %315 = arith.addf %282, %314 : vector<4x256xf32>
    %c101 = arith.constant 101 : index
    %316 = memref.load %arg3[%c101] : memref<216xf32, #tpu.memory_space<smem>>
    %317 = vector.broadcast %316 : f32 to vector<4x256xf32>
    %318 = arith.mulf %317, %303 : vector<4x256xf32>
    %319 = arith.addf %286, %318 : vector<4x256xf32>
    %c128 = arith.constant 128 : index
    %320 = memref.load %arg3[%c128] : memref<216xf32, #tpu.memory_space<smem>>
    %321 = vector.broadcast %320 : f32 to vector<4x256xf32>
    %322 = arith.mulf %321, %303 : vector<4x256xf32>
    %323 = arith.addf %290, %322 : vector<4x256xf32>
    %c155 = arith.constant 155 : index
    %324 = memref.load %arg3[%c155] : memref<216xf32, #tpu.memory_space<smem>>
    %325 = vector.broadcast %324 : f32 to vector<4x256xf32>
    %326 = arith.mulf %325, %303 : vector<4x256xf32>
    %327 = arith.addf %294, %326 : vector<4x256xf32>
    %c182 = arith.constant 182 : index
    %328 = memref.load %arg3[%c182] : memref<216xf32, #tpu.memory_space<smem>>
    %329 = vector.broadcast %328 : f32 to vector<4x256xf32>
    %330 = arith.mulf %329, %303 : vector<4x256xf32>
    %331 = arith.addf %298, %330 : vector<4x256xf32>
    %c209 = arith.constant 209 : index
    %332 = memref.load %arg3[%c209] : memref<216xf32, #tpu.memory_space<smem>>
    %333 = vector.broadcast %332 : f32 to vector<4x256xf32>
    %334 = arith.mulf %333, %303 : vector<4x256xf32>
    %335 = arith.addf %302, %334 : vector<4x256xf32>
    %336 = vector.extract_strided_slice %1 {offsets = [0, 255], sizes = [6, 1], strides = [1, 1]} : vector<6x256xf32> to vector<6x1xf32>
    %337 = vector.extract_strided_slice %1 {offsets = [0, 0], sizes = [6, 255], strides = [1, 1]} : vector<6x256xf32> to vector<6x255xf32>
    %338 = tpu.concatenate %336, %337 in 1 : vector<6x1xf32>, vector<6x255xf32> -> vector<6x256xf32>
    %c3_15 = arith.constant 3 : index
    %c0_16 = arith.constant 0 : index
    %c0_17 = arith.constant 0 : index
    %339 = vector.load %arg2[%c3_15, %c0_16, %c0_17] : memref<9x1x256xf32, #tpu.memory_space<vmem>>, vector<1x1x256xf32>
    %340 = vector.shape_cast %339 : vector<1x1x256xf32> to vector<1x256xf32>
    %341 = vector.broadcast %340 : vector<1x256xf32> to vector<6x256xf32>
    %342 = arith.mulf %338, %341 : vector<6x256xf32>
    %343 = vector.extract_strided_slice %342 {offsets = [0, 0], sizes = [4, 256], strides = [1, 1]} : vector<6x256xf32> to vector<4x256xf32>
    %c3_18 = arith.constant 3 : index
    %344 = memref.load %arg3[%c3_18] : memref<216xf32, #tpu.memory_space<smem>>
    %345 = vector.broadcast %344 : f32 to vector<4x256xf32>
    %346 = arith.mulf %345, %343 : vector<4x256xf32>
    %347 = arith.addf %307, %346 : vector<4x256xf32>
    %c30 = arith.constant 30 : index
    %348 = memref.load %arg3[%c30] : memref<216xf32, #tpu.memory_space<smem>>
    %349 = vector.broadcast %348 : f32 to vector<4x256xf32>
    %350 = arith.mulf %349, %343 : vector<4x256xf32>
    %351 = arith.addf %311, %350 : vector<4x256xf32>
    %c57 = arith.constant 57 : index
    %352 = memref.load %arg3[%c57] : memref<216xf32, #tpu.memory_space<smem>>
    %353 = vector.broadcast %352 : f32 to vector<4x256xf32>
    %354 = arith.mulf %353, %343 : vector<4x256xf32>
    %355 = arith.addf %315, %354 : vector<4x256xf32>
    %c84 = arith.constant 84 : index
    %356 = memref.load %arg3[%c84] : memref<216xf32, #tpu.memory_space<smem>>
    %357 = vector.broadcast %356 : f32 to vector<4x256xf32>
    %358 = arith.mulf %357, %343 : vector<4x256xf32>
    %359 = arith.addf %319, %358 : vector<4x256xf32>
    %c111 = arith.constant 111 : index
    %360 = memref.load %arg3[%c111] : memref<216xf32, #tpu.memory_space<smem>>
    %361 = vector.broadcast %360 : f32 to vector<4x256xf32>
    %362 = arith.mulf %361, %343 : vector<4x256xf32>
    %363 = arith.addf %323, %362 : vector<4x256xf32>
    %c138 = arith.constant 138 : index
    %364 = memref.load %arg3[%c138] : memref<216xf32, #tpu.memory_space<smem>>
    %365 = vector.broadcast %364 : f32 to vector<4x256xf32>
    %366 = arith.mulf %365, %343 : vector<4x256xf32>
    %367 = arith.addf %327, %366 : vector<4x256xf32>
    %c165 = arith.constant 165 : index
    %368 = memref.load %arg3[%c165] : memref<216xf32, #tpu.memory_space<smem>>
    %369 = vector.broadcast %368 : f32 to vector<4x256xf32>
    %370 = arith.mulf %369, %343 : vector<4x256xf32>
    %371 = arith.addf %331, %370 : vector<4x256xf32>
    %c192 = arith.constant 192 : index
    %372 = memref.load %arg3[%c192] : memref<216xf32, #tpu.memory_space<smem>>
    %373 = vector.broadcast %372 : f32 to vector<4x256xf32>
    %374 = arith.mulf %373, %343 : vector<4x256xf32>
    %375 = arith.addf %335, %374 : vector<4x256xf32>
    %376 = vector.extract_strided_slice %342 {offsets = [1, 0], sizes = [4, 256], strides = [1, 1]} : vector<6x256xf32> to vector<4x256xf32>
    %c12 = arith.constant 12 : index
    %377 = memref.load %arg3[%c12] : memref<216xf32, #tpu.memory_space<smem>>
    %378 = vector.broadcast %377 : f32 to vector<4x256xf32>
    %379 = arith.mulf %378, %376 : vector<4x256xf32>
    %380 = arith.addf %347, %379 : vector<4x256xf32>
    %c39 = arith.constant 39 : index
    %381 = memref.load %arg3[%c39] : memref<216xf32, #tpu.memory_space<smem>>
    %382 = vector.broadcast %381 : f32 to vector<4x256xf32>
    %383 = arith.mulf %382, %376 : vector<4x256xf32>
    %384 = arith.addf %351, %383 : vector<4x256xf32>
    %c66 = arith.constant 66 : index
    %385 = memref.load %arg3[%c66] : memref<216xf32, #tpu.memory_space<smem>>
    %386 = vector.broadcast %385 : f32 to vector<4x256xf32>
    %387 = arith.mulf %386, %376 : vector<4x256xf32>
    %388 = arith.addf %355, %387 : vector<4x256xf32>
    %c93 = arith.constant 93 : index
    %389 = memref.load %arg3[%c93] : memref<216xf32, #tpu.memory_space<smem>>
    %390 = vector.broadcast %389 : f32 to vector<4x256xf32>
    %391 = arith.mulf %390, %376 : vector<4x256xf32>
    %392 = arith.addf %359, %391 : vector<4x256xf32>
    %c120 = arith.constant 120 : index
    %393 = memref.load %arg3[%c120] : memref<216xf32, #tpu.memory_space<smem>>
    %394 = vector.broadcast %393 : f32 to vector<4x256xf32>
    %395 = arith.mulf %394, %376 : vector<4x256xf32>
    %396 = arith.addf %363, %395 : vector<4x256xf32>
    %c147 = arith.constant 147 : index
    %397 = memref.load %arg3[%c147] : memref<216xf32, #tpu.memory_space<smem>>
    %398 = vector.broadcast %397 : f32 to vector<4x256xf32>
    %399 = arith.mulf %398, %376 : vector<4x256xf32>
    %400 = arith.addf %367, %399 : vector<4x256xf32>
    %c174 = arith.constant 174 : index
    %401 = memref.load %arg3[%c174] : memref<216xf32, #tpu.memory_space<smem>>
    %402 = vector.broadcast %401 : f32 to vector<4x256xf32>
    %403 = arith.mulf %402, %376 : vector<4x256xf32>
    %404 = arith.addf %371, %403 : vector<4x256xf32>
    %c201 = arith.constant 201 : index
    %405 = memref.load %arg3[%c201] : memref<216xf32, #tpu.memory_space<smem>>
    %406 = vector.broadcast %405 : f32 to vector<4x256xf32>
    %407 = arith.mulf %406, %376 : vector<4x256xf32>
    %408 = arith.addf %375, %407 : vector<4x256xf32>
    %409 = vector.extract_strided_slice %342 {offsets = [2, 0], sizes = [4, 256], strides = [1, 1]} : vector<6x256xf32> to vector<4x256xf32>
    %c21 = arith.constant 21 : index
    %410 = memref.load %arg3[%c21] : memref<216xf32, #tpu.memory_space<smem>>
    %411 = vector.broadcast %410 : f32 to vector<4x256xf32>
    %412 = arith.mulf %411, %409 : vector<4x256xf32>
    %413 = arith.addf %380, %412 : vector<4x256xf32>
    %c48 = arith.constant 48 : index
    %414 = memref.load %arg3[%c48] : memref<216xf32, #tpu.memory_space<smem>>
    %415 = vector.broadcast %414 : f32 to vector<4x256xf32>
    %416 = arith.mulf %415, %409 : vector<4x256xf32>
    %417 = arith.addf %384, %416 : vector<4x256xf32>
    %c75 = arith.constant 75 : index
    %418 = memref.load %arg3[%c75] : memref<216xf32, #tpu.memory_space<smem>>
    %419 = vector.broadcast %418 : f32 to vector<4x256xf32>
    %420 = arith.mulf %419, %409 : vector<4x256xf32>
    %421 = arith.addf %388, %420 : vector<4x256xf32>
    %c102 = arith.constant 102 : index
    %422 = memref.load %arg3[%c102] : memref<216xf32, #tpu.memory_space<smem>>
    %423 = vector.broadcast %422 : f32 to vector<4x256xf32>
    %424 = arith.mulf %423, %409 : vector<4x256xf32>
    %425 = arith.addf %392, %424 : vector<4x256xf32>
    %c129 = arith.constant 129 : index
    %426 = memref.load %arg3[%c129] : memref<216xf32, #tpu.memory_space<smem>>
    %427 = vector.broadcast %426 : f32 to vector<4x256xf32>
    %428 = arith.mulf %427, %409 : vector<4x256xf32>
    %429 = arith.addf %396, %428 : vector<4x256xf32>
    %c156 = arith.constant 156 : index
    %430 = memref.load %arg3[%c156] : memref<216xf32, #tpu.memory_space<smem>>
    %431 = vector.broadcast %430 : f32 to vector<4x256xf32>
    %432 = arith.mulf %431, %409 : vector<4x256xf32>
    %433 = arith.addf %400, %432 : vector<4x256xf32>
    %c183 = arith.constant 183 : index
    %434 = memref.load %arg3[%c183] : memref<216xf32, #tpu.memory_space<smem>>
    %435 = vector.broadcast %434 : f32 to vector<4x256xf32>
    %436 = arith.mulf %435, %409 : vector<4x256xf32>
    %437 = arith.addf %404, %436 : vector<4x256xf32>
    %c210 = arith.constant 210 : index
    %438 = memref.load %arg3[%c210] : memref<216xf32, #tpu.memory_space<smem>>
    %439 = vector.broadcast %438 : f32 to vector<4x256xf32>
    %440 = arith.mulf %439, %409 : vector<4x256xf32>
    %441 = arith.addf %408, %440 : vector<4x256xf32>
    %442 = vector.extract_strided_slice %1 {offsets = [0, 0], sizes = [4, 256], strides = [1, 1]} : vector<6x256xf32> to vector<4x256xf32>
    %c4_19 = arith.constant 4 : index
    %443 = memref.load %arg3[%c4_19] : memref<216xf32, #tpu.memory_space<smem>>
    %444 = vector.broadcast %443 : f32 to vector<4x256xf32>
    %445 = arith.mulf %444, %442 : vector<4x256xf32>
    %446 = arith.addf %413, %445 : vector<4x256xf32>
    %c31 = arith.constant 31 : index
    %447 = memref.load %arg3[%c31] : memref<216xf32, #tpu.memory_space<smem>>
    %448 = vector.broadcast %447 : f32 to vector<4x256xf32>
    %449 = arith.mulf %448, %442 : vector<4x256xf32>
    %450 = arith.addf %417, %449 : vector<4x256xf32>
    %c58 = arith.constant 58 : index
    %451 = memref.load %arg3[%c58] : memref<216xf32, #tpu.memory_space<smem>>
    %452 = vector.broadcast %451 : f32 to vector<4x256xf32>
    %453 = arith.mulf %452, %442 : vector<4x256xf32>
    %454 = arith.addf %421, %453 : vector<4x256xf32>
    %c85 = arith.constant 85 : index
    %455 = memref.load %arg3[%c85] : memref<216xf32, #tpu.memory_space<smem>>
    %456 = vector.broadcast %455 : f32 to vector<4x256xf32>
    %457 = arith.mulf %456, %442 : vector<4x256xf32>
    %458 = arith.addf %425, %457 : vector<4x256xf32>
    %c112 = arith.constant 112 : index
    %459 = memref.load %arg3[%c112] : memref<216xf32, #tpu.memory_space<smem>>
    %460 = vector.broadcast %459 : f32 to vector<4x256xf32>
    %461 = arith.mulf %460, %442 : vector<4x256xf32>
    %462 = arith.addf %429, %461 : vector<4x256xf32>
    %c139 = arith.constant 139 : index
    %463 = memref.load %arg3[%c139] : memref<216xf32, #tpu.memory_space<smem>>
    %464 = vector.broadcast %463 : f32 to vector<4x256xf32>
    %465 = arith.mulf %464, %442 : vector<4x256xf32>
    %466 = arith.addf %433, %465 : vector<4x256xf32>
    %c166 = arith.constant 166 : index
    %467 = memref.load %arg3[%c166] : memref<216xf32, #tpu.memory_space<smem>>
    %468 = vector.broadcast %467 : f32 to vector<4x256xf32>
    %469 = arith.mulf %468, %442 : vector<4x256xf32>
    %470 = arith.addf %437, %469 : vector<4x256xf32>
    %c193 = arith.constant 193 : index
    %471 = memref.load %arg3[%c193] : memref<216xf32, #tpu.memory_space<smem>>
    %472 = vector.broadcast %471 : f32 to vector<4x256xf32>
    %473 = arith.mulf %472, %442 : vector<4x256xf32>
    %474 = arith.addf %441, %473 : vector<4x256xf32>
    %475 = vector.extract_strided_slice %1 {offsets = [1, 0], sizes = [4, 256], strides = [1, 1]} : vector<6x256xf32> to vector<4x256xf32>
    %c13 = arith.constant 13 : index
    %476 = memref.load %arg3[%c13] : memref<216xf32, #tpu.memory_space<smem>>
    %477 = vector.broadcast %476 : f32 to vector<4x256xf32>
    %478 = arith.mulf %477, %475 : vector<4x256xf32>
    %479 = arith.addf %446, %478 : vector<4x256xf32>
    %c40 = arith.constant 40 : index
    %480 = memref.load %arg3[%c40] : memref<216xf32, #tpu.memory_space<smem>>
    %481 = vector.broadcast %480 : f32 to vector<4x256xf32>
    %482 = arith.mulf %481, %475 : vector<4x256xf32>
    %483 = arith.addf %450, %482 : vector<4x256xf32>
    %c67 = arith.constant 67 : index
    %484 = memref.load %arg3[%c67] : memref<216xf32, #tpu.memory_space<smem>>
    %485 = vector.broadcast %484 : f32 to vector<4x256xf32>
    %486 = arith.mulf %485, %475 : vector<4x256xf32>
    %487 = arith.addf %454, %486 : vector<4x256xf32>
    %c94 = arith.constant 94 : index
    %488 = memref.load %arg3[%c94] : memref<216xf32, #tpu.memory_space<smem>>
    %489 = vector.broadcast %488 : f32 to vector<4x256xf32>
    %490 = arith.mulf %489, %475 : vector<4x256xf32>
    %491 = arith.addf %458, %490 : vector<4x256xf32>
    %c121 = arith.constant 121 : index
    %492 = memref.load %arg3[%c121] : memref<216xf32, #tpu.memory_space<smem>>
    %493 = vector.broadcast %492 : f32 to vector<4x256xf32>
    %494 = arith.mulf %493, %475 : vector<4x256xf32>
    %495 = arith.addf %462, %494 : vector<4x256xf32>
    %c148 = arith.constant 148 : index
    %496 = memref.load %arg3[%c148] : memref<216xf32, #tpu.memory_space<smem>>
    %497 = vector.broadcast %496 : f32 to vector<4x256xf32>
    %498 = arith.mulf %497, %475 : vector<4x256xf32>
    %499 = arith.addf %466, %498 : vector<4x256xf32>
    %c175 = arith.constant 175 : index
    %500 = memref.load %arg3[%c175] : memref<216xf32, #tpu.memory_space<smem>>
    %501 = vector.broadcast %500 : f32 to vector<4x256xf32>
    %502 = arith.mulf %501, %475 : vector<4x256xf32>
    %503 = arith.addf %470, %502 : vector<4x256xf32>
    %c202 = arith.constant 202 : index
    %504 = memref.load %arg3[%c202] : memref<216xf32, #tpu.memory_space<smem>>
    %505 = vector.broadcast %504 : f32 to vector<4x256xf32>
    %506 = arith.mulf %505, %475 : vector<4x256xf32>
    %507 = arith.addf %474, %506 : vector<4x256xf32>
    %508 = vector.extract_strided_slice %1 {offsets = [2, 0], sizes = [4, 256], strides = [1, 1]} : vector<6x256xf32> to vector<4x256xf32>
    %c22 = arith.constant 22 : index
    %509 = memref.load %arg3[%c22] : memref<216xf32, #tpu.memory_space<smem>>
    %510 = vector.broadcast %509 : f32 to vector<4x256xf32>
    %511 = arith.mulf %510, %508 : vector<4x256xf32>
    %512 = arith.addf %479, %511 : vector<4x256xf32>
    %c49 = arith.constant 49 : index
    %513 = memref.load %arg3[%c49] : memref<216xf32, #tpu.memory_space<smem>>
    %514 = vector.broadcast %513 : f32 to vector<4x256xf32>
    %515 = arith.mulf %514, %508 : vector<4x256xf32>
    %516 = arith.addf %483, %515 : vector<4x256xf32>
    %c76 = arith.constant 76 : index
    %517 = memref.load %arg3[%c76] : memref<216xf32, #tpu.memory_space<smem>>
    %518 = vector.broadcast %517 : f32 to vector<4x256xf32>
    %519 = arith.mulf %518, %508 : vector<4x256xf32>
    %520 = arith.addf %487, %519 : vector<4x256xf32>
    %c103 = arith.constant 103 : index
    %521 = memref.load %arg3[%c103] : memref<216xf32, #tpu.memory_space<smem>>
    %522 = vector.broadcast %521 : f32 to vector<4x256xf32>
    %523 = arith.mulf %522, %508 : vector<4x256xf32>
    %524 = arith.addf %491, %523 : vector<4x256xf32>
    %c130 = arith.constant 130 : index
    %525 = memref.load %arg3[%c130] : memref<216xf32, #tpu.memory_space<smem>>
    %526 = vector.broadcast %525 : f32 to vector<4x256xf32>
    %527 = arith.mulf %526, %508 : vector<4x256xf32>
    %528 = arith.addf %495, %527 : vector<4x256xf32>
    %c157 = arith.constant 157 : index
    %529 = memref.load %arg3[%c157] : memref<216xf32, #tpu.memory_space<smem>>
    %530 = vector.broadcast %529 : f32 to vector<4x256xf32>
    %531 = arith.mulf %530, %508 : vector<4x256xf32>
    %532 = arith.addf %499, %531 : vector<4x256xf32>
    %c184 = arith.constant 184 : index
    %533 = memref.load %arg3[%c184] : memref<216xf32, #tpu.memory_space<smem>>
    %534 = vector.broadcast %533 : f32 to vector<4x256xf32>
    %535 = arith.mulf %534, %508 : vector<4x256xf32>
    %536 = arith.addf %503, %535 : vector<4x256xf32>
    %c211 = arith.constant 211 : index
    %537 = memref.load %arg3[%c211] : memref<216xf32, #tpu.memory_space<smem>>
    %538 = vector.broadcast %537 : f32 to vector<4x256xf32>
    %539 = arith.mulf %538, %508 : vector<4x256xf32>
    %540 = arith.addf %507, %539 : vector<4x256xf32>
    %541 = vector.extract_strided_slice %1 {offsets = [0, 1], sizes = [6, 255], strides = [1, 1]} : vector<6x256xf32> to vector<6x255xf32>
    %542 = vector.extract_strided_slice %1 {offsets = [0, 0], sizes = [6, 1], strides = [1, 1]} : vector<6x256xf32> to vector<6x1xf32>
    %543 = tpu.concatenate %541, %542 in 1 : vector<6x255xf32>, vector<6x1xf32> -> vector<6x256xf32>
    %c5_20 = arith.constant 5 : index
    %c0_21 = arith.constant 0 : index
    %c0_22 = arith.constant 0 : index
    %544 = vector.load %arg2[%c5_20, %c0_21, %c0_22] : memref<9x1x256xf32, #tpu.memory_space<vmem>>, vector<1x1x256xf32>
    %545 = vector.shape_cast %544 : vector<1x1x256xf32> to vector<1x256xf32>
    %546 = vector.broadcast %545 : vector<1x256xf32> to vector<6x256xf32>
    %547 = arith.mulf %543, %546 : vector<6x256xf32>
    %548 = vector.extract_strided_slice %547 {offsets = [0, 0], sizes = [4, 256], strides = [1, 1]} : vector<6x256xf32> to vector<4x256xf32>
    %c5_23 = arith.constant 5 : index
    %549 = memref.load %arg3[%c5_23] : memref<216xf32, #tpu.memory_space<smem>>
    %550 = vector.broadcast %549 : f32 to vector<4x256xf32>
    %551 = arith.mulf %550, %548 : vector<4x256xf32>
    %552 = arith.addf %512, %551 : vector<4x256xf32>
    %c32 = arith.constant 32 : index
    %553 = memref.load %arg3[%c32] : memref<216xf32, #tpu.memory_space<smem>>
    %554 = vector.broadcast %553 : f32 to vector<4x256xf32>
    %555 = arith.mulf %554, %548 : vector<4x256xf32>
    %556 = arith.addf %516, %555 : vector<4x256xf32>
    %c59 = arith.constant 59 : index
    %557 = memref.load %arg3[%c59] : memref<216xf32, #tpu.memory_space<smem>>
    %558 = vector.broadcast %557 : f32 to vector<4x256xf32>
    %559 = arith.mulf %558, %548 : vector<4x256xf32>
    %560 = arith.addf %520, %559 : vector<4x256xf32>
    %c86 = arith.constant 86 : index
    %561 = memref.load %arg3[%c86] : memref<216xf32, #tpu.memory_space<smem>>
    %562 = vector.broadcast %561 : f32 to vector<4x256xf32>
    %563 = arith.mulf %562, %548 : vector<4x256xf32>
    %564 = arith.addf %524, %563 : vector<4x256xf32>
    %c113 = arith.constant 113 : index
    %565 = memref.load %arg3[%c113] : memref<216xf32, #tpu.memory_space<smem>>
    %566 = vector.broadcast %565 : f32 to vector<4x256xf32>
    %567 = arith.mulf %566, %548 : vector<4x256xf32>
    %568 = arith.addf %528, %567 : vector<4x256xf32>
    %c140 = arith.constant 140 : index
    %569 = memref.load %arg3[%c140] : memref<216xf32, #tpu.memory_space<smem>>
    %570 = vector.broadcast %569 : f32 to vector<4x256xf32>
    %571 = arith.mulf %570, %548 : vector<4x256xf32>
    %572 = arith.addf %532, %571 : vector<4x256xf32>
    %c167 = arith.constant 167 : index
    %573 = memref.load %arg3[%c167] : memref<216xf32, #tpu.memory_space<smem>>
    %574 = vector.broadcast %573 : f32 to vector<4x256xf32>
    %575 = arith.mulf %574, %548 : vector<4x256xf32>
    %576 = arith.addf %536, %575 : vector<4x256xf32>
    %c194 = arith.constant 194 : index
    %577 = memref.load %arg3[%c194] : memref<216xf32, #tpu.memory_space<smem>>
    %578 = vector.broadcast %577 : f32 to vector<4x256xf32>
    %579 = arith.mulf %578, %548 : vector<4x256xf32>
    %580 = arith.addf %540, %579 : vector<4x256xf32>
    %581 = vector.extract_strided_slice %547 {offsets = [1, 0], sizes = [4, 256], strides = [1, 1]} : vector<6x256xf32> to vector<4x256xf32>
    %c14 = arith.constant 14 : index
    %582 = memref.load %arg3[%c14] : memref<216xf32, #tpu.memory_space<smem>>
    %583 = vector.broadcast %582 : f32 to vector<4x256xf32>
    %584 = arith.mulf %583, %581 : vector<4x256xf32>
    %585 = arith.addf %552, %584 : vector<4x256xf32>
    %c41 = arith.constant 41 : index
    %586 = memref.load %arg3[%c41] : memref<216xf32, #tpu.memory_space<smem>>
    %587 = vector.broadcast %586 : f32 to vector<4x256xf32>
    %588 = arith.mulf %587, %581 : vector<4x256xf32>
    %589 = arith.addf %556, %588 : vector<4x256xf32>
    %c68 = arith.constant 68 : index
    %590 = memref.load %arg3[%c68] : memref<216xf32, #tpu.memory_space<smem>>
    %591 = vector.broadcast %590 : f32 to vector<4x256xf32>
    %592 = arith.mulf %591, %581 : vector<4x256xf32>
    %593 = arith.addf %560, %592 : vector<4x256xf32>
    %c95 = arith.constant 95 : index
    %594 = memref.load %arg3[%c95] : memref<216xf32, #tpu.memory_space<smem>>
    %595 = vector.broadcast %594 : f32 to vector<4x256xf32>
    %596 = arith.mulf %595, %581 : vector<4x256xf32>
    %597 = arith.addf %564, %596 : vector<4x256xf32>
    %c122 = arith.constant 122 : index
    %598 = memref.load %arg3[%c122] : memref<216xf32, #tpu.memory_space<smem>>
    %599 = vector.broadcast %598 : f32 to vector<4x256xf32>
    %600 = arith.mulf %599, %581 : vector<4x256xf32>
    %601 = arith.addf %568, %600 : vector<4x256xf32>
    %c149 = arith.constant 149 : index
    %602 = memref.load %arg3[%c149] : memref<216xf32, #tpu.memory_space<smem>>
    %603 = vector.broadcast %602 : f32 to vector<4x256xf32>
    %604 = arith.mulf %603, %581 : vector<4x256xf32>
    %605 = arith.addf %572, %604 : vector<4x256xf32>
    %c176 = arith.constant 176 : index
    %606 = memref.load %arg3[%c176] : memref<216xf32, #tpu.memory_space<smem>>
    %607 = vector.broadcast %606 : f32 to vector<4x256xf32>
    %608 = arith.mulf %607, %581 : vector<4x256xf32>
    %609 = arith.addf %576, %608 : vector<4x256xf32>
    %c203 = arith.constant 203 : index
    %610 = memref.load %arg3[%c203] : memref<216xf32, #tpu.memory_space<smem>>
    %611 = vector.broadcast %610 : f32 to vector<4x256xf32>
    %612 = arith.mulf %611, %581 : vector<4x256xf32>
    %613 = arith.addf %580, %612 : vector<4x256xf32>
    %614 = vector.extract_strided_slice %547 {offsets = [2, 0], sizes = [4, 256], strides = [1, 1]} : vector<6x256xf32> to vector<4x256xf32>
    %c23 = arith.constant 23 : index
    %615 = memref.load %arg3[%c23] : memref<216xf32, #tpu.memory_space<smem>>
    %616 = vector.broadcast %615 : f32 to vector<4x256xf32>
    %617 = arith.mulf %616, %614 : vector<4x256xf32>
    %618 = arith.addf %585, %617 : vector<4x256xf32>
    %c50 = arith.constant 50 : index
    %619 = memref.load %arg3[%c50] : memref<216xf32, #tpu.memory_space<smem>>
    %620 = vector.broadcast %619 : f32 to vector<4x256xf32>
    %621 = arith.mulf %620, %614 : vector<4x256xf32>
    %622 = arith.addf %589, %621 : vector<4x256xf32>
    %c77 = arith.constant 77 : index
    %623 = memref.load %arg3[%c77] : memref<216xf32, #tpu.memory_space<smem>>
    %624 = vector.broadcast %623 : f32 to vector<4x256xf32>
    %625 = arith.mulf %624, %614 : vector<4x256xf32>
    %626 = arith.addf %593, %625 : vector<4x256xf32>
    %c104 = arith.constant 104 : index
    %627 = memref.load %arg3[%c104] : memref<216xf32, #tpu.memory_space<smem>>
    %628 = vector.broadcast %627 : f32 to vector<4x256xf32>
    %629 = arith.mulf %628, %614 : vector<4x256xf32>
    %630 = arith.addf %597, %629 : vector<4x256xf32>
    %c131 = arith.constant 131 : index
    %631 = memref.load %arg3[%c131] : memref<216xf32, #tpu.memory_space<smem>>
    %632 = vector.broadcast %631 : f32 to vector<4x256xf32>
    %633 = arith.mulf %632, %614 : vector<4x256xf32>
    %634 = arith.addf %601, %633 : vector<4x256xf32>
    %c158 = arith.constant 158 : index
    %635 = memref.load %arg3[%c158] : memref<216xf32, #tpu.memory_space<smem>>
    %636 = vector.broadcast %635 : f32 to vector<4x256xf32>
    %637 = arith.mulf %636, %614 : vector<4x256xf32>
    %638 = arith.addf %605, %637 : vector<4x256xf32>
    %c185 = arith.constant 185 : index
    %639 = memref.load %arg3[%c185] : memref<216xf32, #tpu.memory_space<smem>>
    %640 = vector.broadcast %639 : f32 to vector<4x256xf32>
    %641 = arith.mulf %640, %614 : vector<4x256xf32>
    %642 = arith.addf %609, %641 : vector<4x256xf32>
    %c212 = arith.constant 212 : index
    %643 = memref.load %arg3[%c212] : memref<216xf32, #tpu.memory_space<smem>>
    %644 = vector.broadcast %643 : f32 to vector<4x256xf32>
    %645 = arith.mulf %644, %614 : vector<4x256xf32>
    %646 = arith.addf %613, %645 : vector<4x256xf32>
    %647 = vector.extract_strided_slice %1 {offsets = [0, 15], sizes = [6, 241], strides = [1, 1]} : vector<6x256xf32> to vector<6x241xf32>
    %648 = vector.extract_strided_slice %1 {offsets = [0, 0], sizes = [6, 15], strides = [1, 1]} : vector<6x256xf32> to vector<6x15xf32>
    %649 = tpu.concatenate %647, %648 in 1 : vector<6x241xf32>, vector<6x15xf32> -> vector<6x256xf32>
    %c6_24 = arith.constant 6 : index
    %c0_25 = arith.constant 0 : index
    %c0_26 = arith.constant 0 : index
    %650 = vector.load %arg2[%c6_24, %c0_25, %c0_26] : memref<9x1x256xf32, #tpu.memory_space<vmem>>, vector<1x1x256xf32>
    %651 = vector.shape_cast %650 : vector<1x1x256xf32> to vector<1x256xf32>
    %652 = vector.broadcast %651 : vector<1x256xf32> to vector<6x256xf32>
    %653 = arith.mulf %649, %652 : vector<6x256xf32>
    %654 = vector.extract_strided_slice %653 {offsets = [0, 0], sizes = [4, 256], strides = [1, 1]} : vector<6x256xf32> to vector<4x256xf32>
    %c6_27 = arith.constant 6 : index
    %655 = memref.load %arg3[%c6_27] : memref<216xf32, #tpu.memory_space<smem>>
    %656 = vector.broadcast %655 : f32 to vector<4x256xf32>
    %657 = arith.mulf %656, %654 : vector<4x256xf32>
    %658 = arith.addf %618, %657 : vector<4x256xf32>
    %c33 = arith.constant 33 : index
    %659 = memref.load %arg3[%c33] : memref<216xf32, #tpu.memory_space<smem>>
    %660 = vector.broadcast %659 : f32 to vector<4x256xf32>
    %661 = arith.mulf %660, %654 : vector<4x256xf32>
    %662 = arith.addf %622, %661 : vector<4x256xf32>
    %c60 = arith.constant 60 : index
    %663 = memref.load %arg3[%c60] : memref<216xf32, #tpu.memory_space<smem>>
    %664 = vector.broadcast %663 : f32 to vector<4x256xf32>
    %665 = arith.mulf %664, %654 : vector<4x256xf32>
    %666 = arith.addf %626, %665 : vector<4x256xf32>
    %c87 = arith.constant 87 : index
    %667 = memref.load %arg3[%c87] : memref<216xf32, #tpu.memory_space<smem>>
    %668 = vector.broadcast %667 : f32 to vector<4x256xf32>
    %669 = arith.mulf %668, %654 : vector<4x256xf32>
    %670 = arith.addf %630, %669 : vector<4x256xf32>
    %c114 = arith.constant 114 : index
    %671 = memref.load %arg3[%c114] : memref<216xf32, #tpu.memory_space<smem>>
    %672 = vector.broadcast %671 : f32 to vector<4x256xf32>
    %673 = arith.mulf %672, %654 : vector<4x256xf32>
    %674 = arith.addf %634, %673 : vector<4x256xf32>
    %c141 = arith.constant 141 : index
    %675 = memref.load %arg3[%c141] : memref<216xf32, #tpu.memory_space<smem>>
    %676 = vector.broadcast %675 : f32 to vector<4x256xf32>
    %677 = arith.mulf %676, %654 : vector<4x256xf32>
    %678 = arith.addf %638, %677 : vector<4x256xf32>
    %c168 = arith.constant 168 : index
    %679 = memref.load %arg3[%c168] : memref<216xf32, #tpu.memory_space<smem>>
    %680 = vector.broadcast %679 : f32 to vector<4x256xf32>
    %681 = arith.mulf %680, %654 : vector<4x256xf32>
    %682 = arith.addf %642, %681 : vector<4x256xf32>
    %c195 = arith.constant 195 : index
    %683 = memref.load %arg3[%c195] : memref<216xf32, #tpu.memory_space<smem>>
    %684 = vector.broadcast %683 : f32 to vector<4x256xf32>
    %685 = arith.mulf %684, %654 : vector<4x256xf32>
    %686 = arith.addf %646, %685 : vector<4x256xf32>
    %687 = vector.extract_strided_slice %653 {offsets = [1, 0], sizes = [4, 256], strides = [1, 1]} : vector<6x256xf32> to vector<4x256xf32>
    %c15 = arith.constant 15 : index
    %688 = memref.load %arg3[%c15] : memref<216xf32, #tpu.memory_space<smem>>
    %689 = vector.broadcast %688 : f32 to vector<4x256xf32>
    %690 = arith.mulf %689, %687 : vector<4x256xf32>
    %691 = arith.addf %658, %690 : vector<4x256xf32>
    %c42 = arith.constant 42 : index
    %692 = memref.load %arg3[%c42] : memref<216xf32, #tpu.memory_space<smem>>
    %693 = vector.broadcast %692 : f32 to vector<4x256xf32>
    %694 = arith.mulf %693, %687 : vector<4x256xf32>
    %695 = arith.addf %662, %694 : vector<4x256xf32>
    %c69 = arith.constant 69 : index
    %696 = memref.load %arg3[%c69] : memref<216xf32, #tpu.memory_space<smem>>
    %697 = vector.broadcast %696 : f32 to vector<4x256xf32>
    %698 = arith.mulf %697, %687 : vector<4x256xf32>
    %699 = arith.addf %666, %698 : vector<4x256xf32>
    %c96 = arith.constant 96 : index
    %700 = memref.load %arg3[%c96] : memref<216xf32, #tpu.memory_space<smem>>
    %701 = vector.broadcast %700 : f32 to vector<4x256xf32>
    %702 = arith.mulf %701, %687 : vector<4x256xf32>
    %703 = arith.addf %670, %702 : vector<4x256xf32>
    %c123 = arith.constant 123 : index
    %704 = memref.load %arg3[%c123] : memref<216xf32, #tpu.memory_space<smem>>
    %705 = vector.broadcast %704 : f32 to vector<4x256xf32>
    %706 = arith.mulf %705, %687 : vector<4x256xf32>
    %707 = arith.addf %674, %706 : vector<4x256xf32>
    %c150 = arith.constant 150 : index
    %708 = memref.load %arg3[%c150] : memref<216xf32, #tpu.memory_space<smem>>
    %709 = vector.broadcast %708 : f32 to vector<4x256xf32>
    %710 = arith.mulf %709, %687 : vector<4x256xf32>
    %711 = arith.addf %678, %710 : vector<4x256xf32>
    %c177 = arith.constant 177 : index
    %712 = memref.load %arg3[%c177] : memref<216xf32, #tpu.memory_space<smem>>
    %713 = vector.broadcast %712 : f32 to vector<4x256xf32>
    %714 = arith.mulf %713, %687 : vector<4x256xf32>
    %715 = arith.addf %682, %714 : vector<4x256xf32>
    %c204 = arith.constant 204 : index
    %716 = memref.load %arg3[%c204] : memref<216xf32, #tpu.memory_space<smem>>
    %717 = vector.broadcast %716 : f32 to vector<4x256xf32>
    %718 = arith.mulf %717, %687 : vector<4x256xf32>
    %719 = arith.addf %686, %718 : vector<4x256xf32>
    %720 = vector.extract_strided_slice %653 {offsets = [2, 0], sizes = [4, 256], strides = [1, 1]} : vector<6x256xf32> to vector<4x256xf32>
    %c24 = arith.constant 24 : index
    %721 = memref.load %arg3[%c24] : memref<216xf32, #tpu.memory_space<smem>>
    %722 = vector.broadcast %721 : f32 to vector<4x256xf32>
    %723 = arith.mulf %722, %720 : vector<4x256xf32>
    %724 = arith.addf %691, %723 : vector<4x256xf32>
    %c51 = arith.constant 51 : index
    %725 = memref.load %arg3[%c51] : memref<216xf32, #tpu.memory_space<smem>>
    %726 = vector.broadcast %725 : f32 to vector<4x256xf32>
    %727 = arith.mulf %726, %720 : vector<4x256xf32>
    %728 = arith.addf %695, %727 : vector<4x256xf32>
    %c78 = arith.constant 78 : index
    %729 = memref.load %arg3[%c78] : memref<216xf32, #tpu.memory_space<smem>>
    %730 = vector.broadcast %729 : f32 to vector<4x256xf32>
    %731 = arith.mulf %730, %720 : vector<4x256xf32>
    %732 = arith.addf %699, %731 : vector<4x256xf32>
    %c105 = arith.constant 105 : index
    %733 = memref.load %arg3[%c105] : memref<216xf32, #tpu.memory_space<smem>>
    %734 = vector.broadcast %733 : f32 to vector<4x256xf32>
    %735 = arith.mulf %734, %720 : vector<4x256xf32>
    %736 = arith.addf %703, %735 : vector<4x256xf32>
    %c132 = arith.constant 132 : index
    %737 = memref.load %arg3[%c132] : memref<216xf32, #tpu.memory_space<smem>>
    %738 = vector.broadcast %737 : f32 to vector<4x256xf32>
    %739 = arith.mulf %738, %720 : vector<4x256xf32>
    %740 = arith.addf %707, %739 : vector<4x256xf32>
    %c159 = arith.constant 159 : index
    %741 = memref.load %arg3[%c159] : memref<216xf32, #tpu.memory_space<smem>>
    %742 = vector.broadcast %741 : f32 to vector<4x256xf32>
    %743 = arith.mulf %742, %720 : vector<4x256xf32>
    %744 = arith.addf %711, %743 : vector<4x256xf32>
    %c186 = arith.constant 186 : index
    %745 = memref.load %arg3[%c186] : memref<216xf32, #tpu.memory_space<smem>>
    %746 = vector.broadcast %745 : f32 to vector<4x256xf32>
    %747 = arith.mulf %746, %720 : vector<4x256xf32>
    %748 = arith.addf %715, %747 : vector<4x256xf32>
    %c213 = arith.constant 213 : index
    %749 = memref.load %arg3[%c213] : memref<216xf32, #tpu.memory_space<smem>>
    %750 = vector.broadcast %749 : f32 to vector<4x256xf32>
    %751 = arith.mulf %750, %720 : vector<4x256xf32>
    %752 = arith.addf %719, %751 : vector<4x256xf32>
    %753 = vector.extract_strided_slice %1 {offsets = [0, 16], sizes = [6, 240], strides = [1, 1]} : vector<6x256xf32> to vector<6x240xf32>
    %754 = vector.extract_strided_slice %1 {offsets = [0, 0], sizes = [6, 16], strides = [1, 1]} : vector<6x256xf32> to vector<6x16xf32>
    %755 = tpu.concatenate %753, %754 in 1 : vector<6x240xf32>, vector<6x16xf32> -> vector<6x256xf32>
    %c7_28 = arith.constant 7 : index
    %c0_29 = arith.constant 0 : index
    %c0_30 = arith.constant 0 : index
    %756 = vector.load %arg2[%c7_28, %c0_29, %c0_30] : memref<9x1x256xf32, #tpu.memory_space<vmem>>, vector<1x1x256xf32>
    %757 = vector.shape_cast %756 : vector<1x1x256xf32> to vector<1x256xf32>
    %758 = vector.broadcast %757 : vector<1x256xf32> to vector<6x256xf32>
    %759 = arith.mulf %755, %758 : vector<6x256xf32>
    %760 = vector.extract_strided_slice %759 {offsets = [0, 0], sizes = [4, 256], strides = [1, 1]} : vector<6x256xf32> to vector<4x256xf32>
    %c7_31 = arith.constant 7 : index
    %761 = memref.load %arg3[%c7_31] : memref<216xf32, #tpu.memory_space<smem>>
    %762 = vector.broadcast %761 : f32 to vector<4x256xf32>
    %763 = arith.mulf %762, %760 : vector<4x256xf32>
    %764 = arith.addf %724, %763 : vector<4x256xf32>
    %c34 = arith.constant 34 : index
    %765 = memref.load %arg3[%c34] : memref<216xf32, #tpu.memory_space<smem>>
    %766 = vector.broadcast %765 : f32 to vector<4x256xf32>
    %767 = arith.mulf %766, %760 : vector<4x256xf32>
    %768 = arith.addf %728, %767 : vector<4x256xf32>
    %c61 = arith.constant 61 : index
    %769 = memref.load %arg3[%c61] : memref<216xf32, #tpu.memory_space<smem>>
    %770 = vector.broadcast %769 : f32 to vector<4x256xf32>
    %771 = arith.mulf %770, %760 : vector<4x256xf32>
    %772 = arith.addf %732, %771 : vector<4x256xf32>
    %c88 = arith.constant 88 : index
    %773 = memref.load %arg3[%c88] : memref<216xf32, #tpu.memory_space<smem>>
    %774 = vector.broadcast %773 : f32 to vector<4x256xf32>
    %775 = arith.mulf %774, %760 : vector<4x256xf32>
    %776 = arith.addf %736, %775 : vector<4x256xf32>
    %c115 = arith.constant 115 : index
    %777 = memref.load %arg3[%c115] : memref<216xf32, #tpu.memory_space<smem>>
    %778 = vector.broadcast %777 : f32 to vector<4x256xf32>
    %779 = arith.mulf %778, %760 : vector<4x256xf32>
    %780 = arith.addf %740, %779 : vector<4x256xf32>
    %c142 = arith.constant 142 : index
    %781 = memref.load %arg3[%c142] : memref<216xf32, #tpu.memory_space<smem>>
    %782 = vector.broadcast %781 : f32 to vector<4x256xf32>
    %783 = arith.mulf %782, %760 : vector<4x256xf32>
    %784 = arith.addf %744, %783 : vector<4x256xf32>
    %c169 = arith.constant 169 : index
    %785 = memref.load %arg3[%c169] : memref<216xf32, #tpu.memory_space<smem>>
    %786 = vector.broadcast %785 : f32 to vector<4x256xf32>
    %787 = arith.mulf %786, %760 : vector<4x256xf32>
    %788 = arith.addf %748, %787 : vector<4x256xf32>
    %c196 = arith.constant 196 : index
    %789 = memref.load %arg3[%c196] : memref<216xf32, #tpu.memory_space<smem>>
    %790 = vector.broadcast %789 : f32 to vector<4x256xf32>
    %791 = arith.mulf %790, %760 : vector<4x256xf32>
    %792 = arith.addf %752, %791 : vector<4x256xf32>
    %793 = vector.extract_strided_slice %759 {offsets = [1, 0], sizes = [4, 256], strides = [1, 1]} : vector<6x256xf32> to vector<4x256xf32>
    %c16 = arith.constant 16 : index
    %794 = memref.load %arg3[%c16] : memref<216xf32, #tpu.memory_space<smem>>
    %795 = vector.broadcast %794 : f32 to vector<4x256xf32>
    %796 = arith.mulf %795, %793 : vector<4x256xf32>
    %797 = arith.addf %764, %796 : vector<4x256xf32>
    %c43 = arith.constant 43 : index
    %798 = memref.load %arg3[%c43] : memref<216xf32, #tpu.memory_space<smem>>
    %799 = vector.broadcast %798 : f32 to vector<4x256xf32>
    %800 = arith.mulf %799, %793 : vector<4x256xf32>
    %801 = arith.addf %768, %800 : vector<4x256xf32>
    %c70 = arith.constant 70 : index
    %802 = memref.load %arg3[%c70] : memref<216xf32, #tpu.memory_space<smem>>
    %803 = vector.broadcast %802 : f32 to vector<4x256xf32>
    %804 = arith.mulf %803, %793 : vector<4x256xf32>
    %805 = arith.addf %772, %804 : vector<4x256xf32>
    %c97 = arith.constant 97 : index
    %806 = memref.load %arg3[%c97] : memref<216xf32, #tpu.memory_space<smem>>
    %807 = vector.broadcast %806 : f32 to vector<4x256xf32>
    %808 = arith.mulf %807, %793 : vector<4x256xf32>
    %809 = arith.addf %776, %808 : vector<4x256xf32>
    %c124 = arith.constant 124 : index
    %810 = memref.load %arg3[%c124] : memref<216xf32, #tpu.memory_space<smem>>
    %811 = vector.broadcast %810 : f32 to vector<4x256xf32>
    %812 = arith.mulf %811, %793 : vector<4x256xf32>
    %813 = arith.addf %780, %812 : vector<4x256xf32>
    %c151 = arith.constant 151 : index
    %814 = memref.load %arg3[%c151] : memref<216xf32, #tpu.memory_space<smem>>
    %815 = vector.broadcast %814 : f32 to vector<4x256xf32>
    %816 = arith.mulf %815, %793 : vector<4x256xf32>
    %817 = arith.addf %784, %816 : vector<4x256xf32>
    %c178 = arith.constant 178 : index
    %818 = memref.load %arg3[%c178] : memref<216xf32, #tpu.memory_space<smem>>
    %819 = vector.broadcast %818 : f32 to vector<4x256xf32>
    %820 = arith.mulf %819, %793 : vector<4x256xf32>
    %821 = arith.addf %788, %820 : vector<4x256xf32>
    %c205 = arith.constant 205 : index
    %822 = memref.load %arg3[%c205] : memref<216xf32, #tpu.memory_space<smem>>
    %823 = vector.broadcast %822 : f32 to vector<4x256xf32>
    %824 = arith.mulf %823, %793 : vector<4x256xf32>
    %825 = arith.addf %792, %824 : vector<4x256xf32>
    %826 = vector.extract_strided_slice %759 {offsets = [2, 0], sizes = [4, 256], strides = [1, 1]} : vector<6x256xf32> to vector<4x256xf32>
    %c25 = arith.constant 25 : index
    %827 = memref.load %arg3[%c25] : memref<216xf32, #tpu.memory_space<smem>>
    %828 = vector.broadcast %827 : f32 to vector<4x256xf32>
    %829 = arith.mulf %828, %826 : vector<4x256xf32>
    %830 = arith.addf %797, %829 : vector<4x256xf32>
    %c52 = arith.constant 52 : index
    %831 = memref.load %arg3[%c52] : memref<216xf32, #tpu.memory_space<smem>>
    %832 = vector.broadcast %831 : f32 to vector<4x256xf32>
    %833 = arith.mulf %832, %826 : vector<4x256xf32>
    %834 = arith.addf %801, %833 : vector<4x256xf32>
    %c79 = arith.constant 79 : index
    %835 = memref.load %arg3[%c79] : memref<216xf32, #tpu.memory_space<smem>>
    %836 = vector.broadcast %835 : f32 to vector<4x256xf32>
    %837 = arith.mulf %836, %826 : vector<4x256xf32>
    %838 = arith.addf %805, %837 : vector<4x256xf32>
    %c106 = arith.constant 106 : index
    %839 = memref.load %arg3[%c106] : memref<216xf32, #tpu.memory_space<smem>>
    %840 = vector.broadcast %839 : f32 to vector<4x256xf32>
    %841 = arith.mulf %840, %826 : vector<4x256xf32>
    %842 = arith.addf %809, %841 : vector<4x256xf32>
    %c133 = arith.constant 133 : index
    %843 = memref.load %arg3[%c133] : memref<216xf32, #tpu.memory_space<smem>>
    %844 = vector.broadcast %843 : f32 to vector<4x256xf32>
    %845 = arith.mulf %844, %826 : vector<4x256xf32>
    %846 = arith.addf %813, %845 : vector<4x256xf32>
    %c160 = arith.constant 160 : index
    %847 = memref.load %arg3[%c160] : memref<216xf32, #tpu.memory_space<smem>>
    %848 = vector.broadcast %847 : f32 to vector<4x256xf32>
    %849 = arith.mulf %848, %826 : vector<4x256xf32>
    %850 = arith.addf %817, %849 : vector<4x256xf32>
    %c187 = arith.constant 187 : index
    %851 = memref.load %arg3[%c187] : memref<216xf32, #tpu.memory_space<smem>>
    %852 = vector.broadcast %851 : f32 to vector<4x256xf32>
    %853 = arith.mulf %852, %826 : vector<4x256xf32>
    %854 = arith.addf %821, %853 : vector<4x256xf32>
    %c214 = arith.constant 214 : index
    %855 = memref.load %arg3[%c214] : memref<216xf32, #tpu.memory_space<smem>>
    %856 = vector.broadcast %855 : f32 to vector<4x256xf32>
    %857 = arith.mulf %856, %826 : vector<4x256xf32>
    %858 = arith.addf %825, %857 : vector<4x256xf32>
    %859 = vector.extract_strided_slice %1 {offsets = [0, 17], sizes = [6, 239], strides = [1, 1]} : vector<6x256xf32> to vector<6x239xf32>
    %860 = vector.extract_strided_slice %1 {offsets = [0, 0], sizes = [6, 17], strides = [1, 1]} : vector<6x256xf32> to vector<6x17xf32>
    %861 = tpu.concatenate %859, %860 in 1 : vector<6x239xf32>, vector<6x17xf32> -> vector<6x256xf32>
    %c8 = arith.constant 8 : index
    %c0_32 = arith.constant 0 : index
    %c0_33 = arith.constant 0 : index
    %862 = vector.load %arg2[%c8, %c0_32, %c0_33] : memref<9x1x256xf32, #tpu.memory_space<vmem>>, vector<1x1x256xf32>
    %863 = vector.shape_cast %862 : vector<1x1x256xf32> to vector<1x256xf32>
    %864 = vector.broadcast %863 : vector<1x256xf32> to vector<6x256xf32>
    %865 = arith.mulf %861, %864 : vector<6x256xf32>
    %866 = vector.extract_strided_slice %865 {offsets = [0, 0], sizes = [4, 256], strides = [1, 1]} : vector<6x256xf32> to vector<4x256xf32>
    %c8_34 = arith.constant 8 : index
    %867 = memref.load %arg3[%c8_34] : memref<216xf32, #tpu.memory_space<smem>>
    %868 = vector.broadcast %867 : f32 to vector<4x256xf32>
    %869 = arith.mulf %868, %866 : vector<4x256xf32>
    %870 = arith.addf %830, %869 : vector<4x256xf32>
    %c35 = arith.constant 35 : index
    %871 = memref.load %arg3[%c35] : memref<216xf32, #tpu.memory_space<smem>>
    %872 = vector.broadcast %871 : f32 to vector<4x256xf32>
    %873 = arith.mulf %872, %866 : vector<4x256xf32>
    %874 = arith.addf %834, %873 : vector<4x256xf32>
    %c62 = arith.constant 62 : index
    %875 = memref.load %arg3[%c62] : memref<216xf32, #tpu.memory_space<smem>>
    %876 = vector.broadcast %875 : f32 to vector<4x256xf32>
    %877 = arith.mulf %876, %866 : vector<4x256xf32>
    %878 = arith.addf %838, %877 : vector<4x256xf32>
    %c89 = arith.constant 89 : index
    %879 = memref.load %arg3[%c89] : memref<216xf32, #tpu.memory_space<smem>>
    %880 = vector.broadcast %879 : f32 to vector<4x256xf32>
    %881 = arith.mulf %880, %866 : vector<4x256xf32>
    %882 = arith.addf %842, %881 : vector<4x256xf32>
    %c116 = arith.constant 116 : index
    %883 = memref.load %arg3[%c116] : memref<216xf32, #tpu.memory_space<smem>>
    %884 = vector.broadcast %883 : f32 to vector<4x256xf32>
    %885 = arith.mulf %884, %866 : vector<4x256xf32>
    %886 = arith.addf %846, %885 : vector<4x256xf32>
    %c143 = arith.constant 143 : index
    %887 = memref.load %arg3[%c143] : memref<216xf32, #tpu.memory_space<smem>>
    %888 = vector.broadcast %887 : f32 to vector<4x256xf32>
    %889 = arith.mulf %888, %866 : vector<4x256xf32>
    %890 = arith.addf %850, %889 : vector<4x256xf32>
    %c170 = arith.constant 170 : index
    %891 = memref.load %arg3[%c170] : memref<216xf32, #tpu.memory_space<smem>>
    %892 = vector.broadcast %891 : f32 to vector<4x256xf32>
    %893 = arith.mulf %892, %866 : vector<4x256xf32>
    %894 = arith.addf %854, %893 : vector<4x256xf32>
    %c197 = arith.constant 197 : index
    %895 = memref.load %arg3[%c197] : memref<216xf32, #tpu.memory_space<smem>>
    %896 = vector.broadcast %895 : f32 to vector<4x256xf32>
    %897 = arith.mulf %896, %866 : vector<4x256xf32>
    %898 = arith.addf %858, %897 : vector<4x256xf32>
    %899 = vector.extract_strided_slice %865 {offsets = [1, 0], sizes = [4, 256], strides = [1, 1]} : vector<6x256xf32> to vector<4x256xf32>
    %c17 = arith.constant 17 : index
    %900 = memref.load %arg3[%c17] : memref<216xf32, #tpu.memory_space<smem>>
    %901 = vector.broadcast %900 : f32 to vector<4x256xf32>
    %902 = arith.mulf %901, %899 : vector<4x256xf32>
    %903 = arith.addf %870, %902 : vector<4x256xf32>
    %c44 = arith.constant 44 : index
    %904 = memref.load %arg3[%c44] : memref<216xf32, #tpu.memory_space<smem>>
    %905 = vector.broadcast %904 : f32 to vector<4x256xf32>
    %906 = arith.mulf %905, %899 : vector<4x256xf32>
    %907 = arith.addf %874, %906 : vector<4x256xf32>
    %c71 = arith.constant 71 : index
    %908 = memref.load %arg3[%c71] : memref<216xf32, #tpu.memory_space<smem>>
    %909 = vector.broadcast %908 : f32 to vector<4x256xf32>
    %910 = arith.mulf %909, %899 : vector<4x256xf32>
    %911 = arith.addf %878, %910 : vector<4x256xf32>
    %c98 = arith.constant 98 : index
    %912 = memref.load %arg3[%c98] : memref<216xf32, #tpu.memory_space<smem>>
    %913 = vector.broadcast %912 : f32 to vector<4x256xf32>
    %914 = arith.mulf %913, %899 : vector<4x256xf32>
    %915 = arith.addf %882, %914 : vector<4x256xf32>
    %c125 = arith.constant 125 : index
    %916 = memref.load %arg3[%c125] : memref<216xf32, #tpu.memory_space<smem>>
    %917 = vector.broadcast %916 : f32 to vector<4x256xf32>
    %918 = arith.mulf %917, %899 : vector<4x256xf32>
    %919 = arith.addf %886, %918 : vector<4x256xf32>
    %c152 = arith.constant 152 : index
    %920 = memref.load %arg3[%c152] : memref<216xf32, #tpu.memory_space<smem>>
    %921 = vector.broadcast %920 : f32 to vector<4x256xf32>
    %922 = arith.mulf %921, %899 : vector<4x256xf32>
    %923 = arith.addf %890, %922 : vector<4x256xf32>
    %c179 = arith.constant 179 : index
    %924 = memref.load %arg3[%c179] : memref<216xf32, #tpu.memory_space<smem>>
    %925 = vector.broadcast %924 : f32 to vector<4x256xf32>
    %926 = arith.mulf %925, %899 : vector<4x256xf32>
    %927 = arith.addf %894, %926 : vector<4x256xf32>
    %c206 = arith.constant 206 : index
    %928 = memref.load %arg3[%c206] : memref<216xf32, #tpu.memory_space<smem>>
    %929 = vector.broadcast %928 : f32 to vector<4x256xf32>
    %930 = arith.mulf %929, %899 : vector<4x256xf32>
    %931 = arith.addf %898, %930 : vector<4x256xf32>
    %932 = vector.extract_strided_slice %865 {offsets = [2, 0], sizes = [4, 256], strides = [1, 1]} : vector<6x256xf32> to vector<4x256xf32>
    %c26 = arith.constant 26 : index
    %933 = memref.load %arg3[%c26] : memref<216xf32, #tpu.memory_space<smem>>
    %934 = vector.broadcast %933 : f32 to vector<4x256xf32>
    %935 = arith.mulf %934, %932 : vector<4x256xf32>
    %936 = arith.addf %903, %935 : vector<4x256xf32>
    %c53 = arith.constant 53 : index
    %937 = memref.load %arg3[%c53] : memref<216xf32, #tpu.memory_space<smem>>
    %938 = vector.broadcast %937 : f32 to vector<4x256xf32>
    %939 = arith.mulf %938, %932 : vector<4x256xf32>
    %940 = arith.addf %907, %939 : vector<4x256xf32>
    %c80 = arith.constant 80 : index
    %941 = memref.load %arg3[%c80] : memref<216xf32, #tpu.memory_space<smem>>
    %942 = vector.broadcast %941 : f32 to vector<4x256xf32>
    %943 = arith.mulf %942, %932 : vector<4x256xf32>
    %944 = arith.addf %911, %943 : vector<4x256xf32>
    %c107 = arith.constant 107 : index
    %945 = memref.load %arg3[%c107] : memref<216xf32, #tpu.memory_space<smem>>
    %946 = vector.broadcast %945 : f32 to vector<4x256xf32>
    %947 = arith.mulf %946, %932 : vector<4x256xf32>
    %948 = arith.addf %915, %947 : vector<4x256xf32>
    %c134 = arith.constant 134 : index
    %949 = memref.load %arg3[%c134] : memref<216xf32, #tpu.memory_space<smem>>
    %950 = vector.broadcast %949 : f32 to vector<4x256xf32>
    %951 = arith.mulf %950, %932 : vector<4x256xf32>
    %952 = arith.addf %919, %951 : vector<4x256xf32>
    %c161 = arith.constant 161 : index
    %953 = memref.load %arg3[%c161] : memref<216xf32, #tpu.memory_space<smem>>
    %954 = vector.broadcast %953 : f32 to vector<4x256xf32>
    %955 = arith.mulf %954, %932 : vector<4x256xf32>
    %956 = arith.addf %923, %955 : vector<4x256xf32>
    %c188 = arith.constant 188 : index
    %957 = memref.load %arg3[%c188] : memref<216xf32, #tpu.memory_space<smem>>
    %958 = vector.broadcast %957 : f32 to vector<4x256xf32>
    %959 = arith.mulf %958, %932 : vector<4x256xf32>
    %960 = arith.addf %927, %959 : vector<4x256xf32>
    %c215 = arith.constant 215 : index
    %961 = memref.load %arg3[%c215] : memref<216xf32, #tpu.memory_space<smem>>
    %962 = vector.broadcast %961 : f32 to vector<4x256xf32>
    %963 = arith.mulf %962, %932 : vector<4x256xf32>
    %964 = arith.addf %931, %963 : vector<4x256xf32>
    %cst = arith.constant 0.000000e+00 : f32
    %965 = vector.broadcast %cst : f32 to vector<1x256xf32>
    %cst_35 = arith.constant 0.000000e+00 : f32
    %966 = vector.broadcast %cst_35 : f32 to vector<4x256xf32>
    %967 = arith.cmpf oge, %936, %966 : vector<4x256xf32>
    %cst_36 = arith.constant 1.000000e-01 : f32
    %968 = vector.broadcast %cst_36 : f32 to vector<4x256xf32>
    %969 = arith.mulf %968, %936 : vector<4x256xf32>
    %970 = arith.select %967, %936, %969 : vector<4x256xi1>, vector<4x256xf32>
    %971 = tpu.concatenate %965, %970, %965 in 0 : vector<1x256xf32>, vector<4x256xf32>, vector<1x256xf32> -> vector<6x256xf32>
    %c0_37 = arith.constant 0 : index
    %c0_38 = arith.constant 0 : index
    %c0_39 = arith.constant 0 : index
    %972 = vector.load %arg8[%c0_37, %c0_38, %c0_39] : memref<8x6x256xf32, #tpu.memory_space<vmem>>, vector<1x6x256xf32>
    %973 = vector.shape_cast %972 : vector<1x6x256xf32> to vector<6x256xf32>
    %974 = vector.shape_cast %971 : vector<6x256xf32> to vector<1x6x256xf32>
    tpu.vector_store %arg8[%c0_37, %c0_38, %c0_39], %974 {strides = array<i32>} : memref<8x6x256xf32, #tpu.memory_space<vmem>>, vector<1x6x256xf32>,
    %cst_40 = arith.constant 0.000000e+00 : f32
    %975 = vector.broadcast %cst_40 : f32 to vector<4x256xf32>
    %976 = arith.cmpf oge, %940, %975 : vector<4x256xf32>
    %cst_41 = arith.constant 1.000000e-01 : f32
    %977 = vector.broadcast %cst_41 : f32 to vector<4x256xf32>
    %978 = arith.mulf %977, %940 : vector<4x256xf32>
    %979 = arith.select %976, %940, %978 : vector<4x256xi1>, vector<4x256xf32>
    %980 = tpu.concatenate %965, %979, %965 in 0 : vector<1x256xf32>, vector<4x256xf32>, vector<1x256xf32> -> vector<6x256xf32>
    %c1_42 = arith.constant 1 : index
    %c0_43 = arith.constant 0 : index
    %c0_44 = arith.constant 0 : index
    %981 = vector.load %arg8[%c1_42, %c0_43, %c0_44] : memref<8x6x256xf32, #tpu.memory_space<vmem>>, vector<1x6x256xf32>
    %982 = vector.shape_cast %981 : vector<1x6x256xf32> to vector<6x256xf32>
    %983 = vector.shape_cast %980 : vector<6x256xf32> to vector<1x6x256xf32>
    tpu.vector_store %arg8[%c1_42, %c0_43, %c0_44], %983 {strides = array<i32>} : memref<8x6x256xf32, #tpu.memory_space<vmem>>, vector<1x6x256xf32>,
    %cst_45 = arith.constant 0.000000e+00 : f32
    %984 = vector.broadcast %cst_45 : f32 to vector<4x256xf32>
    %985 = arith.cmpf oge, %944, %984 : vector<4x256xf32>
    %cst_46 = arith.constant 1.000000e-01 : f32
    %986 = vector.broadcast %cst_46 : f32 to vector<4x256xf32>
    %987 = arith.mulf %986, %944 : vector<4x256xf32>
    %988 = arith.select %985, %944, %987 : vector<4x256xi1>, vector<4x256xf32>
    %989 = tpu.concatenate %965, %988, %965 in 0 : vector<1x256xf32>, vector<4x256xf32>, vector<1x256xf32> -> vector<6x256xf32>
    %c2_47 = arith.constant 2 : index
    %c0_48 = arith.constant 0 : index
    %c0_49 = arith.constant 0 : index
    %990 = vector.load %arg8[%c2_47, %c0_48, %c0_49] : memref<8x6x256xf32, #tpu.memory_space<vmem>>, vector<1x6x256xf32>
    %991 = vector.shape_cast %990 : vector<1x6x256xf32> to vector<6x256xf32>
    %992 = vector.shape_cast %989 : vector<6x256xf32> to vector<1x6x256xf32>
    tpu.vector_store %arg8[%c2_47, %c0_48, %c0_49], %992 {strides = array<i32>} : memref<8x6x256xf32, #tpu.memory_space<vmem>>, vector<1x6x256xf32>,
    %cst_50 = arith.constant 0.000000e+00 : f32
    %993 = vector.broadcast %cst_50 : f32 to vector<4x256xf32>
    %994 = arith.cmpf oge, %948, %993 : vector<4x256xf32>
    %cst_51 = arith.constant 1.000000e-01 : f32
    %995 = vector.broadcast %cst_51 : f32 to vector<4x256xf32>
    %996 = arith.mulf %995, %948 : vector<4x256xf32>
    %997 = arith.select %994, %948, %996 : vector<4x256xi1>, vector<4x256xf32>
    %998 = tpu.concatenate %965, %997, %965 in 0 : vector<1x256xf32>, vector<4x256xf32>, vector<1x256xf32> -> vector<6x256xf32>
    %c3_52 = arith.constant 3 : index
    %c0_53 = arith.constant 0 : index
    %c0_54 = arith.constant 0 : index
    %999 = vector.load %arg8[%c3_52, %c0_53, %c0_54] : memref<8x6x256xf32, #tpu.memory_space<vmem>>, vector<1x6x256xf32>
    %1000 = vector.shape_cast %999 : vector<1x6x256xf32> to vector<6x256xf32>
    %1001 = vector.shape_cast %998 : vector<6x256xf32> to vector<1x6x256xf32>
    tpu.vector_store %arg8[%c3_52, %c0_53, %c0_54], %1001 {strides = array<i32>} : memref<8x6x256xf32, #tpu.memory_space<vmem>>, vector<1x6x256xf32>,
    %cst_55 = arith.constant 0.000000e+00 : f32
    %1002 = vector.broadcast %cst_55 : f32 to vector<4x256xf32>
    %1003 = arith.cmpf oge, %952, %1002 : vector<4x256xf32>
    %cst_56 = arith.constant 1.000000e-01 : f32
    %1004 = vector.broadcast %cst_56 : f32 to vector<4x256xf32>
    %1005 = arith.mulf %1004, %952 : vector<4x256xf32>
    %1006 = arith.select %1003, %952, %1005 : vector<4x256xi1>, vector<4x256xf32>
    %1007 = tpu.concatenate %965, %1006, %965 in 0 : vector<1x256xf32>, vector<4x256xf32>, vector<1x256xf32> -> vector<6x256xf32>
    %c4_57 = arith.constant 4 : index
    %c0_58 = arith.constant 0 : index
    %c0_59 = arith.constant 0 : index
    %1008 = vector.load %arg8[%c4_57, %c0_58, %c0_59] : memref<8x6x256xf32, #tpu.memory_space<vmem>>, vector<1x6x256xf32>
    %1009 = vector.shape_cast %1008 : vector<1x6x256xf32> to vector<6x256xf32>
    %1010 = vector.shape_cast %1007 : vector<6x256xf32> to vector<1x6x256xf32>
    tpu.vector_store %arg8[%c4_57, %c0_58, %c0_59], %1010 {strides = array<i32>} : memref<8x6x256xf32, #tpu.memory_space<vmem>>, vector<1x6x256xf32>,
    %cst_60 = arith.constant 0.000000e+00 : f32
    %1011 = vector.broadcast %cst_60 : f32 to vector<4x256xf32>
    %1012 = arith.cmpf oge, %956, %1011 : vector<4x256xf32>
    %cst_61 = arith.constant 1.000000e-01 : f32
    %1013 = vector.broadcast %cst_61 : f32 to vector<4x256xf32>
    %1014 = arith.mulf %1013, %956 : vector<4x256xf32>
    %1015 = arith.select %1012, %956, %1014 : vector<4x256xi1>, vector<4x256xf32>
    %1016 = tpu.concatenate %965, %1015, %965 in 0 : vector<1x256xf32>, vector<4x256xf32>, vector<1x256xf32> -> vector<6x256xf32>
    %c5_62 = arith.constant 5 : index
    %c0_63 = arith.constant 0 : index
    %c0_64 = arith.constant 0 : index
    %1017 = vector.load %arg8[%c5_62, %c0_63, %c0_64] : memref<8x6x256xf32, #tpu.memory_space<vmem>>, vector<1x6x256xf32>
    %1018 = vector.shape_cast %1017 : vector<1x6x256xf32> to vector<6x256xf32>
    %1019 = vector.shape_cast %1016 : vector<6x256xf32> to vector<1x6x256xf32>
    tpu.vector_store %arg8[%c5_62, %c0_63, %c0_64], %1019 {strides = array<i32>} : memref<8x6x256xf32, #tpu.memory_space<vmem>>, vector<1x6x256xf32>,
    %cst_65 = arith.constant 0.000000e+00 : f32
    %1020 = vector.broadcast %cst_65 : f32 to vector<4x256xf32>
    %1021 = arith.cmpf oge, %960, %1020 : vector<4x256xf32>
    %cst_66 = arith.constant 1.000000e-01 : f32
    %1022 = vector.broadcast %cst_66 : f32 to vector<4x256xf32>
    %1023 = arith.mulf %1022, %960 : vector<4x256xf32>
    %1024 = arith.select %1021, %960, %1023 : vector<4x256xi1>, vector<4x256xf32>
    %1025 = tpu.concatenate %965, %1024, %965 in 0 : vector<1x256xf32>, vector<4x256xf32>, vector<1x256xf32> -> vector<6x256xf32>
    %c6_67 = arith.constant 6 : index
    %c0_68 = arith.constant 0 : index
    %c0_69 = arith.constant 0 : index
    %1026 = vector.load %arg8[%c6_67, %c0_68, %c0_69] : memref<8x6x256xf32, #tpu.memory_space<vmem>>, vector<1x6x256xf32>
    %1027 = vector.shape_cast %1026 : vector<1x6x256xf32> to vector<6x256xf32>
    %1028 = vector.shape_cast %1025 : vector<6x256xf32> to vector<1x6x256xf32>
    tpu.vector_store %arg8[%c6_67, %c0_68, %c0_69], %1028 {strides = array<i32>} : memref<8x6x256xf32, #tpu.memory_space<vmem>>, vector<1x6x256xf32>,
    %cst_70 = arith.constant 0.000000e+00 : f32
    %1029 = vector.broadcast %cst_70 : f32 to vector<4x256xf32>
    %1030 = arith.cmpf oge, %964, %1029 : vector<4x256xf32>
    %cst_71 = arith.constant 1.000000e-01 : f32
    %1031 = vector.broadcast %cst_71 : f32 to vector<4x256xf32>
    %1032 = arith.mulf %1031, %964 : vector<4x256xf32>
    %1033 = arith.select %1030, %964, %1032 : vector<4x256xi1>, vector<4x256xf32>
    %1034 = tpu.concatenate %965, %1033, %965 in 0 : vector<1x256xf32>, vector<4x256xf32>, vector<1x256xf32> -> vector<6x256xf32>
    %c7_72 = arith.constant 7 : index
    %c0_73 = arith.constant 0 : index
    %c0_74 = arith.constant 0 : index
    %1035 = vector.load %arg8[%c7_72, %c0_73, %c0_74] : memref<8x6x256xf32, #tpu.memory_space<vmem>>, vector<1x6x256xf32>
    %1036 = vector.shape_cast %1035 : vector<1x6x256xf32> to vector<6x256xf32>
    %1037 = vector.shape_cast %1034 : vector<6x256xf32> to vector<1x6x256xf32>
    tpu.vector_store %arg8[%c7_72, %c0_73, %c0_74], %1037 {strides = array<i32>} : memref<8x6x256xf32, #tpu.memory_space<vmem>>, vector<1x6x256xf32>,
    %cst_75 = arith.constant 0.000000e+00 : f32
    %1038 = vector.broadcast %cst_75 : f32 to vector<4x256xf32>
    %cst_76 = arith.constant 0.000000e+00 : f32
    %1039 = vector.broadcast %cst_76 : f32 to vector<4x256xf32>
    %cst_77 = arith.constant 0.000000e+00 : f32
    %1040 = vector.broadcast %cst_77 : f32 to vector<4x256xf32>
    %cst_78 = arith.constant 0.000000e+00 : f32
    %1041 = vector.broadcast %cst_78 : f32 to vector<4x256xf32>
    %c0_79 = arith.constant 0 : index
    %c0_80 = arith.constant 0 : index
    %c0_81 = arith.constant 0 : index
    %1042 = vector.load %arg8[%c0_79, %c0_80, %c0_81] : memref<8x6x256xf32, #tpu.memory_space<vmem>>, vector<1x6x256xf32>
    %1043 = vector.shape_cast %1042 : vector<1x6x256xf32> to vector<6x256xf32>
    %1044 = vector.extract_strided_slice %1043 {offsets = [0, 239], sizes = [6, 17], strides = [1, 1]} : vector<6x256xf32> to vector<6x17xf32>
    %1045 = vector.extract_strided_slice %1043 {offsets = [0, 0], sizes = [6, 239], strides = [1, 1]} : vector<6x256xf32> to vector<6x239xf32>
    %1046 = tpu.concatenate %1044, %1045 in 1 : vector<6x17xf32>, vector<6x239xf32> -> vector<6x256xf32>
    %c0_82 = arith.constant 0 : index
    %c0_83 = arith.constant 0 : index
    %c0_84 = arith.constant 0 : index
    %1047 = vector.load %arg2[%c0_82, %c0_83, %c0_84] : memref<9x1x256xf32, #tpu.memory_space<vmem>>, vector<1x1x256xf32>
    %1048 = vector.shape_cast %1047 : vector<1x1x256xf32> to vector<1x256xf32>
    %1049 = vector.broadcast %1048 : vector<1x256xf32> to vector<6x256xf32>
    %1050 = arith.mulf %1046, %1049 : vector<6x256xf32>
    %c0_85 = arith.constant 0 : index
    %1051 = memref.load %arg5[%c0_85] : memref<216xf32, #tpu.memory_space<smem>>
    %1052 = vector.extract_strided_slice %1050 {offsets = [0, 0], sizes = [4, 256], strides = [1, 1]} : vector<6x256xf32> to vector<4x256xf32>
    %1053 = vector.broadcast %1051 : f32 to vector<4x256xf32>
    %1054 = arith.mulf %1053, %1052 : vector<4x256xf32>
    %1055 = arith.addf %1038, %1054 : vector<4x256xf32>
    %c9_86 = arith.constant 9 : index
    %1056 = memref.load %arg5[%c9_86] : memref<216xf32, #tpu.memory_space<smem>>
    %1057 = vector.extract_strided_slice %1050 {offsets = [1, 0], sizes = [4, 256], strides = [1, 1]} : vector<6x256xf32> to vector<4x256xf32>
    %1058 = vector.broadcast %1056 : f32 to vector<4x256xf32>
    %1059 = arith.mulf %1058, %1057 : vector<4x256xf32>
    %1060 = arith.addf %1039, %1059 : vector<4x256xf32>
    %c18_87 = arith.constant 18 : index
    %1061 = memref.load %arg5[%c18_87] : memref<216xf32, #tpu.memory_space<smem>>
    %1062 = vector.extract_strided_slice %1050 {offsets = [2, 0], sizes = [4, 256], strides = [1, 1]} : vector<6x256xf32> to vector<4x256xf32>
    %1063 = vector.broadcast %1061 : f32 to vector<4x256xf32>
    %1064 = arith.mulf %1063, %1062 : vector<4x256xf32>
    %1065 = arith.addf %1040, %1064 : vector<4x256xf32>
    %1066 = vector.extract_strided_slice %1043 {offsets = [0, 240], sizes = [6, 16], strides = [1, 1]} : vector<6x256xf32> to vector<6x16xf32>
    %1067 = vector.extract_strided_slice %1043 {offsets = [0, 0], sizes = [6, 240], strides = [1, 1]} : vector<6x256xf32> to vector<6x240xf32>
    %1068 = tpu.concatenate %1066, %1067 in 1 : vector<6x16xf32>, vector<6x240xf32> -> vector<6x256xf32>
    %c1_88 = arith.constant 1 : index
    %c0_89 = arith.constant 0 : index
    %c0_90 = arith.constant 0 : index
    %1069 = vector.load %arg2[%c1_88, %c0_89, %c0_90] : memref<9x1x256xf32, #tpu.memory_space<vmem>>, vector<1x1x256xf32>
    %1070 = vector.shape_cast %1069 : vector<1x1x256xf32> to vector<1x256xf32>
    %1071 = vector.broadcast %1070 : vector<1x256xf32> to vector<6x256xf32>
    %1072 = arith.mulf %1068, %1071 : vector<6x256xf32>
    %c1_91 = arith.constant 1 : index
    %1073 = memref.load %arg5[%c1_91] : memref<216xf32, #tpu.memory_space<smem>>
    %1074 = vector.extract_strided_slice %1072 {offsets = [0, 0], sizes = [4, 256], strides = [1, 1]} : vector<6x256xf32> to vector<4x256xf32>
    %1075 = vector.broadcast %1073 : f32 to vector<4x256xf32>
    %1076 = arith.mulf %1075, %1074 : vector<4x256xf32>
    %1077 = arith.addf %1041, %1076 : vector<4x256xf32>
    %c10_92 = arith.constant 10 : index
    %1078 = memref.load %arg5[%c10_92] : memref<216xf32, #tpu.memory_space<smem>>
    %1079 = vector.extract_strided_slice %1072 {offsets = [1, 0], sizes = [4, 256], strides = [1, 1]} : vector<6x256xf32> to vector<4x256xf32>
    %1080 = vector.broadcast %1078 : f32 to vector<4x256xf32>
    %1081 = arith.mulf %1080, %1079 : vector<4x256xf32>
    %1082 = arith.addf %1055, %1081 : vector<4x256xf32>
    %c19_93 = arith.constant 19 : index
    %1083 = memref.load %arg5[%c19_93] : memref<216xf32, #tpu.memory_space<smem>>
    %1084 = vector.extract_strided_slice %1072 {offsets = [2, 0], sizes = [4, 256], strides = [1, 1]} : vector<6x256xf32> to vector<4x256xf32>
    %1085 = vector.broadcast %1083 : f32 to vector<4x256xf32>
    %1086 = arith.mulf %1085, %1084 : vector<4x256xf32>
    %1087 = arith.addf %1060, %1086 : vector<4x256xf32>
    %1088 = vector.extract_strided_slice %1043 {offsets = [0, 241], sizes = [6, 15], strides = [1, 1]} : vector<6x256xf32> to vector<6x15xf32>
    %1089 = vector.extract_strided_slice %1043 {offsets = [0, 0], sizes = [6, 241], strides = [1, 1]} : vector<6x256xf32> to vector<6x241xf32>
    %1090 = tpu.concatenate %1088, %1089 in 1 : vector<6x15xf32>, vector<6x241xf32> -> vector<6x256xf32>
    %c2_94 = arith.constant 2 : index
    %c0_95 = arith.constant 0 : index
    %c0_96 = arith.constant 0 : index
    %1091 = vector.load %arg2[%c2_94, %c0_95, %c0_96] : memref<9x1x256xf32, #tpu.memory_space<vmem>>, vector<1x1x256xf32>
    %1092 = vector.shape_cast %1091 : vector<1x1x256xf32> to vector<1x256xf32>
    %1093 = vector.broadcast %1092 : vector<1x256xf32> to vector<6x256xf32>
    %1094 = arith.mulf %1090, %1093 : vector<6x256xf32>
    %c2_97 = arith.constant 2 : index
    %1095 = memref.load %arg5[%c2_97] : memref<216xf32, #tpu.memory_space<smem>>
    %1096 = vector.extract_strided_slice %1094 {offsets = [0, 0], sizes = [4, 256], strides = [1, 1]} : vector<6x256xf32> to vector<4x256xf32>
    %1097 = vector.broadcast %1095 : f32 to vector<4x256xf32>
    %1098 = arith.mulf %1097, %1096 : vector<4x256xf32>
    %1099 = arith.addf %1065, %1098 : vector<4x256xf32>
    %c11_98 = arith.constant 11 : index
    %1100 = memref.load %arg5[%c11_98] : memref<216xf32, #tpu.memory_space<smem>>
    %1101 = vector.extract_strided_slice %1094 {offsets = [1, 0], sizes = [4, 256], strides = [1, 1]} : vector<6x256xf32> to vector<4x256xf32>
    %1102 = vector.broadcast %1100 : f32 to vector<4x256xf32>
    %1103 = arith.mulf %1102, %1101 : vector<4x256xf32>
    %1104 = arith.addf %1077, %1103 : vector<4x256xf32>
    %c20_99 = arith.constant 20 : index
    %1105 = memref.load %arg5[%c20_99] : memref<216xf32, #tpu.memory_space<smem>>
    %1106 = vector.extract_strided_slice %1094 {offsets = [2, 0], sizes = [4, 256], strides = [1, 1]} : vector<6x256xf32> to vector<4x256xf32>
    %1107 = vector.broadcast %1105 : f32 to vector<4x256xf32>
    %1108 = arith.mulf %1107, %1106 : vector<4x256xf32>
    %1109 = arith.addf %1082, %1108 : vector<4x256xf32>
    %1110 = vector.extract_strided_slice %1043 {offsets = [0, 255], sizes = [6, 1], strides = [1, 1]} : vector<6x256xf32> to vector<6x1xf32>
    %1111 = vector.extract_strided_slice %1043 {offsets = [0, 0], sizes = [6, 255], strides = [1, 1]} : vector<6x256xf32> to vector<6x255xf32>
    %1112 = tpu.concatenate %1110, %1111 in 1 : vector<6x1xf32>, vector<6x255xf32> -> vector<6x256xf32>
    %c3_100 = arith.constant 3 : index
    %c0_101 = arith.constant 0 : index
    %c0_102 = arith.constant 0 : index
    %1113 = vector.load %arg2[%c3_100, %c0_101, %c0_102] : memref<9x1x256xf32, #tpu.memory_space<vmem>>, vector<1x1x256xf32>
    %1114 = vector.shape_cast %1113 : vector<1x1x256xf32> to vector<1x256xf32>
    %1115 = vector.broadcast %1114 : vector<1x256xf32> to vector<6x256xf32>
    %1116 = arith.mulf %1112, %1115 : vector<6x256xf32>
    %c3_103 = arith.constant 3 : index
    %1117 = memref.load %arg5[%c3_103] : memref<216xf32, #tpu.memory_space<smem>>
    %1118 = vector.extract_strided_slice %1116 {offsets = [0, 0], sizes = [4, 256], strides = [1, 1]} : vector<6x256xf32> to vector<4x256xf32>
    %1119 = vector.broadcast %1117 : f32 to vector<4x256xf32>
    %1120 = arith.mulf %1119, %1118 : vector<4x256xf32>
    %1121 = arith.addf %1087, %1120 : vector<4x256xf32>
    %c12_104 = arith.constant 12 : index
    %1122 = memref.load %arg5[%c12_104] : memref<216xf32, #tpu.memory_space<smem>>
    %1123 = vector.extract_strided_slice %1116 {offsets = [1, 0], sizes = [4, 256], strides = [1, 1]} : vector<6x256xf32> to vector<4x256xf32>
    %1124 = vector.broadcast %1122 : f32 to vector<4x256xf32>
    %1125 = arith.mulf %1124, %1123 : vector<4x256xf32>
    %1126 = arith.addf %1099, %1125 : vector<4x256xf32>
    %c21_105 = arith.constant 21 : index
    %1127 = memref.load %arg5[%c21_105] : memref<216xf32, #tpu.memory_space<smem>>
    %1128 = vector.extract_strided_slice %1116 {offsets = [2, 0], sizes = [4, 256], strides = [1, 1]} : vector<6x256xf32> to vector<4x256xf32>
    %1129 = vector.broadcast %1127 : f32 to vector<4x256xf32>
    %1130 = arith.mulf %1129, %1128 : vector<4x256xf32>
    %1131 = arith.addf %1104, %1130 : vector<4x256xf32>
    %c4_106 = arith.constant 4 : index
    %1132 = memref.load %arg5[%c4_106] : memref<216xf32, #tpu.memory_space<smem>>
    %1133 = vector.extract_strided_slice %1043 {offsets = [0, 0], sizes = [4, 256], strides = [1, 1]} : vector<6x256xf32> to vector<4x256xf32>
    %1134 = vector.broadcast %1132 : f32 to vector<4x256xf32>
    %1135 = arith.mulf %1134, %1133 : vector<4x256xf32>
    %1136 = arith.addf %1109, %1135 : vector<4x256xf32>
    %c13_107 = arith.constant 13 : index
    %1137 = memref.load %arg5[%c13_107] : memref<216xf32, #tpu.memory_space<smem>>
    %1138 = vector.extract_strided_slice %1043 {offsets = [1, 0], sizes = [4, 256], strides = [1, 1]} : vector<6x256xf32> to vector<4x256xf32>
    %1139 = vector.broadcast %1137 : f32 to vector<4x256xf32>
    %1140 = arith.mulf %1139, %1138 : vector<4x256xf32>
    %1141 = arith.addf %1121, %1140 : vector<4x256xf32>
    %c22_108 = arith.constant 22 : index
    %1142 = memref.load %arg5[%c22_108] : memref<216xf32, #tpu.memory_space<smem>>
    %1143 = vector.extract_strided_slice %1043 {offsets = [2, 0], sizes = [4, 256], strides = [1, 1]} : vector<6x256xf32> to vector<4x256xf32>
    %1144 = vector.broadcast %1142 : f32 to vector<4x256xf32>
    %1145 = arith.mulf %1144, %1143 : vector<4x256xf32>
    %1146 = arith.addf %1126, %1145 : vector<4x256xf32>
    %1147 = vector.extract_strided_slice %1043 {offsets = [0, 1], sizes = [6, 255], strides = [1, 1]} : vector<6x256xf32> to vector<6x255xf32>
    %1148 = vector.extract_strided_slice %1043 {offsets = [0, 0], sizes = [6, 1], strides = [1, 1]} : vector<6x256xf32> to vector<6x1xf32>
    %1149 = tpu.concatenate %1147, %1148 in 1 : vector<6x255xf32>, vector<6x1xf32> -> vector<6x256xf32>
    %c5_109 = arith.constant 5 : index
    %c0_110 = arith.constant 0 : index
    %c0_111 = arith.constant 0 : index
    %1150 = vector.load %arg2[%c5_109, %c0_110, %c0_111] : memref<9x1x256xf32, #tpu.memory_space<vmem>>, vector<1x1x256xf32>
    %1151 = vector.shape_cast %1150 : vector<1x1x256xf32> to vector<1x256xf32>
    %1152 = vector.broadcast %1151 : vector<1x256xf32> to vector<6x256xf32>
    %1153 = arith.mulf %1149, %1152 : vector<6x256xf32>
    %c5_112 = arith.constant 5 : index
    %1154 = memref.load %arg5[%c5_112] : memref<216xf32, #tpu.memory_space<smem>>
    %1155 = vector.extract_strided_slice %1153 {offsets = [0, 0], sizes = [4, 256], strides = [1, 1]} : vector<6x256xf32> to vector<4x256xf32>
    %1156 = vector.broadcast %1154 : f32 to vector<4x256xf32>
    %1157 = arith.mulf %1156, %1155 : vector<4x256xf32>
    %1158 = arith.addf %1131, %1157 : vector<4x256xf32>
    %c14_113 = arith.constant 14 : index
    %1159 = memref.load %arg5[%c14_113] : memref<216xf32, #tpu.memory_space<smem>>
    %1160 = vector.extract_strided_slice %1153 {offsets = [1, 0], sizes = [4, 256], strides = [1, 1]} : vector<6x256xf32> to vector<4x256xf32>
    %1161 = vector.broadcast %1159 : f32 to vector<4x256xf32>
    %1162 = arith.mulf %1161, %1160 : vector<4x256xf32>
    %1163 = arith.addf %1136, %1162 : vector<4x256xf32>
    %c23_114 = arith.constant 23 : index
    %1164 = memref.load %arg5[%c23_114] : memref<216xf32, #tpu.memory_space<smem>>
    %1165 = vector.extract_strided_slice %1153 {offsets = [2, 0], sizes = [4, 256], strides = [1, 1]} : vector<6x256xf32> to vector<4x256xf32>
    %1166 = vector.broadcast %1164 : f32 to vector<4x256xf32>
    %1167 = arith.mulf %1166, %1165 : vector<4x256xf32>
    %1168 = arith.addf %1141, %1167 : vector<4x256xf32>
    %1169 = vector.extract_strided_slice %1043 {offsets = [0, 15], sizes = [6, 241], strides = [1, 1]} : vector<6x256xf32> to vector<6x241xf32>
    %1170 = vector.extract_strided_slice %1043 {offsets = [0, 0], sizes = [6, 15], strides = [1, 1]} : vector<6x256xf32> to vector<6x15xf32>
    %1171 = tpu.concatenate %1169, %1170 in 1 : vector<6x241xf32>, vector<6x15xf32> -> vector<6x256xf32>
    %c6_115 = arith.constant 6 : index
    %c0_116 = arith.constant 0 : index
    %c0_117 = arith.constant 0 : index
    %1172 = vector.load %arg2[%c6_115, %c0_116, %c0_117] : memref<9x1x256xf32, #tpu.memory_space<vmem>>, vector<1x1x256xf32>
    %1173 = vector.shape_cast %1172 : vector<1x1x256xf32> to vector<1x256xf32>
    %1174 = vector.broadcast %1173 : vector<1x256xf32> to vector<6x256xf32>
    %1175 = arith.mulf %1171, %1174 : vector<6x256xf32>
    %c6_118 = arith.constant 6 : index
    %1176 = memref.load %arg5[%c6_118] : memref<216xf32, #tpu.memory_space<smem>>
    %1177 = vector.extract_strided_slice %1175 {offsets = [0, 0], sizes = [4, 256], strides = [1, 1]} : vector<6x256xf32> to vector<4x256xf32>
    %1178 = vector.broadcast %1176 : f32 to vector<4x256xf32>
    %1179 = arith.mulf %1178, %1177 : vector<4x256xf32>
    %1180 = arith.addf %1146, %1179 : vector<4x256xf32>
    %c15_119 = arith.constant 15 : index
    %1181 = memref.load %arg5[%c15_119] : memref<216xf32, #tpu.memory_space<smem>>
    %1182 = vector.extract_strided_slice %1175 {offsets = [1, 0], sizes = [4, 256], strides = [1, 1]} : vector<6x256xf32> to vector<4x256xf32>
    %1183 = vector.broadcast %1181 : f32 to vector<4x256xf32>
    %1184 = arith.mulf %1183, %1182 : vector<4x256xf32>
    %1185 = arith.addf %1158, %1184 : vector<4x256xf32>
    %c24_120 = arith.constant 24 : index
    %1186 = memref.load %arg5[%c24_120] : memref<216xf32, #tpu.memory_space<smem>>
    %1187 = vector.extract_strided_slice %1175 {offsets = [2, 0], sizes = [4, 256], strides = [1, 1]} : vector<6x256xf32> to vector<4x256xf32>
    %1188 = vector.broadcast %1186 : f32 to vector<4x256xf32>
    %1189 = arith.mulf %1188, %1187 : vector<4x256xf32>
    %1190 = arith.addf %1163, %1189 : vector<4x256xf32>
    %1191 = vector.extract_strided_slice %1043 {offsets = [0, 16], sizes = [6, 240], strides = [1, 1]} : vector<6x256xf32> to vector<6x240xf32>
    %1192 = vector.extract_strided_slice %1043 {offsets = [0, 0], sizes = [6, 16], strides = [1, 1]} : vector<6x256xf32> to vector<6x16xf32>
    %1193 = tpu.concatenate %1191, %1192 in 1 : vector<6x240xf32>, vector<6x16xf32> -> vector<6x256xf32>
    %c7_121 = arith.constant 7 : index
    %c0_122 = arith.constant 0 : index
    %c0_123 = arith.constant 0 : index
    %1194 = vector.load %arg2[%c7_121, %c0_122, %c0_123] : memref<9x1x256xf32, #tpu.memory_space<vmem>>, vector<1x1x256xf32>
    %1195 = vector.shape_cast %1194 : vector<1x1x256xf32> to vector<1x256xf32>
    %1196 = vector.broadcast %1195 : vector<1x256xf32> to vector<6x256xf32>
    %1197 = arith.mulf %1193, %1196 : vector<6x256xf32>
    %c7_124 = arith.constant 7 : index
    %1198 = memref.load %arg5[%c7_124] : memref<216xf32, #tpu.memory_space<smem>>
    %1199 = vector.extract_strided_slice %1197 {offsets = [0, 0], sizes = [4, 256], strides = [1, 1]} : vector<6x256xf32> to vector<4x256xf32>
    %1200 = vector.broadcast %1198 : f32 to vector<4x256xf32>
    %1201 = arith.mulf %1200, %1199 : vector<4x256xf32>
    %1202 = arith.addf %1168, %1201 : vector<4x256xf32>
    %c16_125 = arith.constant 16 : index
    %1203 = memref.load %arg5[%c16_125] : memref<216xf32, #tpu.memory_space<smem>>
    %1204 = vector.extract_strided_slice %1197 {offsets = [1, 0], sizes = [4, 256], strides = [1, 1]} : vector<6x256xf32> to vector<4x256xf32>
    %1205 = vector.broadcast %1203 : f32 to vector<4x256xf32>
    %1206 = arith.mulf %1205, %1204 : vector<4x256xf32>
    %1207 = arith.addf %1180, %1206 : vector<4x256xf32>
    %c25_126 = arith.constant 25 : index
    %1208 = memref.load %arg5[%c25_126] : memref<216xf32, #tpu.memory_space<smem>>
    %1209 = vector.extract_strided_slice %1197 {offsets = [2, 0], sizes = [4, 256], strides = [1, 1]} : vector<6x256xf32> to vector<4x256xf32>
    %1210 = vector.broadcast %1208 : f32 to vector<4x256xf32>
    %1211 = arith.mulf %1210, %1209 : vector<4x256xf32>
    %1212 = arith.addf %1185, %1211 : vector<4x256xf32>
    %1213 = vector.extract_strided_slice %1043 {offsets = [0, 17], sizes = [6, 239], strides = [1, 1]} : vector<6x256xf32> to vector<6x239xf32>
    %1214 = vector.extract_strided_slice %1043 {offsets = [0, 0], sizes = [6, 17], strides = [1, 1]} : vector<6x256xf32> to vector<6x17xf32>
    %1215 = tpu.concatenate %1213, %1214 in 1 : vector<6x239xf32>, vector<6x17xf32> -> vector<6x256xf32>
    %c8_127 = arith.constant 8 : index
    %c0_128 = arith.constant 0 : index
    %c0_129 = arith.constant 0 : index
    %1216 = vector.load %arg2[%c8_127, %c0_128, %c0_129] : memref<9x1x256xf32, #tpu.memory_space<vmem>>, vector<1x1x256xf32>
    %1217 = vector.shape_cast %1216 : vector<1x1x256xf32> to vector<1x256xf32>
    %1218 = vector.broadcast %1217 : vector<1x256xf32> to vector<6x256xf32>
    %1219 = arith.mulf %1215, %1218 : vector<6x256xf32>
    %c8_130 = arith.constant 8 : index
    %1220 = memref.load %arg5[%c8_130] : memref<216xf32, #tpu.memory_space<smem>>
    %1221 = vector.extract_strided_slice %1219 {offsets = [0, 0], sizes = [4, 256], strides = [1, 1]} : vector<6x256xf32> to vector<4x256xf32>
    %1222 = vector.broadcast %1220 : f32 to vector<4x256xf32>
    %1223 = arith.mulf %1222, %1221 : vector<4x256xf32>
    %1224 = arith.addf %1190, %1223 : vector<4x256xf32>
    %c17_131 = arith.constant 17 : index
    %1225 = memref.load %arg5[%c17_131] : memref<216xf32, #tpu.memory_space<smem>>
    %1226 = vector.extract_strided_slice %1219 {offsets = [1, 0], sizes = [4, 256], strides = [1, 1]} : vector<6x256xf32> to vector<4x256xf32>
    %1227 = vector.broadcast %1225 : f32 to vector<4x256xf32>
    %1228 = arith.mulf %1227, %1226 : vector<4x256xf32>
    %1229 = arith.addf %1202, %1228 : vector<4x256xf32>
    %c26_132 = arith.constant 26 : index
    %1230 = memref.load %arg5[%c26_132] : memref<216xf32, #tpu.memory_space<smem>>
    %1231 = vector.extract_strided_slice %1219 {offsets = [2, 0], sizes = [4, 256], strides = [1, 1]} : vector<6x256xf32> to vector<4x256xf32>
    %1232 = vector.broadcast %1230 : f32 to vector<4x256xf32>
    %1233 = arith.mulf %1232, %1231 : vector<4x256xf32>
    %1234 = arith.addf %1207, %1233 : vector<4x256xf32>
    %c1_133 = arith.constant 1 : index
    %c0_134 = arith.constant 0 : index
    %c0_135 = arith.constant 0 : index
    %1235 = vector.load %arg8[%c1_133, %c0_134, %c0_135] : memref<8x6x256xf32, #tpu.memory_space<vmem>>, vector<1x6x256xf32>
    %1236 = vector.shape_cast %1235 : vector<1x6x256xf32> to vector<6x256xf32>
    %1237 = vector.extract_strided_slice %1236 {offsets = [0, 239], sizes = [6, 17], strides = [1, 1]} : vector<6x256xf32> to vector<6x17xf32>
    %1238 = vector.extract_strided_slice %1236 {offsets = [0, 0], sizes = [6, 239], strides = [1, 1]} : vector<6x256xf32> to vector<6x239xf32>
    %1239 = tpu.concatenate %1237, %1238 in 1 : vector<6x17xf32>, vector<6x239xf32> -> vector<6x256xf32>
    %c0_136 = arith.constant 0 : index
    %c0_137 = arith.constant 0 : index
    %c0_138 = arith.constant 0 : index
    %1240 = vector.load %arg2[%c0_136, %c0_137, %c0_138] : memref<9x1x256xf32, #tpu.memory_space<vmem>>, vector<1x1x256xf32>
    %1241 = vector.shape_cast %1240 : vector<1x1x256xf32> to vector<1x256xf32>
    %1242 = vector.broadcast %1241 : vector<1x256xf32> to vector<6x256xf32>
    %1243 = arith.mulf %1239, %1242 : vector<6x256xf32>
    %c27_139 = arith.constant 27 : index
    %1244 = memref.load %arg5[%c27_139] : memref<216xf32, #tpu.memory_space<smem>>
    %1245 = vector.extract_strided_slice %1243 {offsets = [0, 0], sizes = [4, 256], strides = [1, 1]} : vector<6x256xf32> to vector<4x256xf32>
    %1246 = vector.broadcast %1244 : f32 to vector<4x256xf32>
    %1247 = arith.mulf %1246, %1245 : vector<4x256xf32>
    %1248 = arith.addf %1212, %1247 : vector<4x256xf32>
    %c36_140 = arith.constant 36 : index
    %1249 = memref.load %arg5[%c36_140] : memref<216xf32, #tpu.memory_space<smem>>
    %1250 = vector.extract_strided_slice %1243 {offsets = [1, 0], sizes = [4, 256], strides = [1, 1]} : vector<6x256xf32> to vector<4x256xf32>
    %1251 = vector.broadcast %1249 : f32 to vector<4x256xf32>
    %1252 = arith.mulf %1251, %1250 : vector<4x256xf32>
    %1253 = arith.addf %1224, %1252 : vector<4x256xf32>
    %c45_141 = arith.constant 45 : index
    %1254 = memref.load %arg5[%c45_141] : memref<216xf32, #tpu.memory_space<smem>>
    %1255 = vector.extract_strided_slice %1243 {offsets = [2, 0], sizes = [4, 256], strides = [1, 1]} : vector<6x256xf32> to vector<4x256xf32>
    %1256 = vector.broadcast %1254 : f32 to vector<4x256xf32>
    %1257 = arith.mulf %1256, %1255 : vector<4x256xf32>
    %1258 = arith.addf %1229, %1257 : vector<4x256xf32>
    %1259 = vector.extract_strided_slice %1236 {offsets = [0, 240], sizes = [6, 16], strides = [1, 1]} : vector<6x256xf32> to vector<6x16xf32>
    %1260 = vector.extract_strided_slice %1236 {offsets = [0, 0], sizes = [6, 240], strides = [1, 1]} : vector<6x256xf32> to vector<6x240xf32>
    %1261 = tpu.concatenate %1259, %1260 in 1 : vector<6x16xf32>, vector<6x240xf32> -> vector<6x256xf32>
    %c1_142 = arith.constant 1 : index
    %c0_143 = arith.constant 0 : index
    %c0_144 = arith.constant 0 : index
    %1262 = vector.load %arg2[%c1_142, %c0_143, %c0_144] : memref<9x1x256xf32, #tpu.memory_space<vmem>>, vector<1x1x256xf32>
    %1263 = vector.shape_cast %1262 : vector<1x1x256xf32> to vector<1x256xf32>
    %1264 = vector.broadcast %1263 : vector<1x256xf32> to vector<6x256xf32>
    %1265 = arith.mulf %1261, %1264 : vector<6x256xf32>
    %c28_145 = arith.constant 28 : index
    %1266 = memref.load %arg5[%c28_145] : memref<216xf32, #tpu.memory_space<smem>>
    %1267 = vector.extract_strided_slice %1265 {offsets = [0, 0], sizes = [4, 256], strides = [1, 1]} : vector<6x256xf32> to vector<4x256xf32>
    %1268 = vector.broadcast %1266 : f32 to vector<4x256xf32>
    %1269 = arith.mulf %1268, %1267 : vector<4x256xf32>
    %1270 = arith.addf %1234, %1269 : vector<4x256xf32>
    %c37_146 = arith.constant 37 : index
    %1271 = memref.load %arg5[%c37_146] : memref<216xf32, #tpu.memory_space<smem>>
    %1272 = vector.extract_strided_slice %1265 {offsets = [1, 0], sizes = [4, 256], strides = [1, 1]} : vector<6x256xf32> to vector<4x256xf32>
    %1273 = vector.broadcast %1271 : f32 to vector<4x256xf32>
    %1274 = arith.mulf %1273, %1272 : vector<4x256xf32>
    %1275 = arith.addf %1248, %1274 : vector<4x256xf32>
    %c46_147 = arith.constant 46 : index
    %1276 = memref.load %arg5[%c46_147] : memref<216xf32, #tpu.memory_space<smem>>
    %1277 = vector.extract_strided_slice %1265 {offsets = [2, 0], sizes = [4, 256], strides = [1, 1]} : vector<6x256xf32> to vector<4x256xf32>
    %1278 = vector.broadcast %1276 : f32 to vector<4x256xf32>
    %1279 = arith.mulf %1278, %1277 : vector<4x256xf32>
    %1280 = arith.addf %1253, %1279 : vector<4x256xf32>
    %1281 = vector.extract_strided_slice %1236 {offsets = [0, 241], sizes = [6, 15], strides = [1, 1]} : vector<6x256xf32> to vector<6x15xf32>
    %1282 = vector.extract_strided_slice %1236 {offsets = [0, 0], sizes = [6, 241], strides = [1, 1]} : vector<6x256xf32> to vector<6x241xf32>
    %1283 = tpu.concatenate %1281, %1282 in 1 : vector<6x15xf32>, vector<6x241xf32> -> vector<6x256xf32>
    %c2_148 = arith.constant 2 : index
    %c0_149 = arith.constant 0 : index
    %c0_150 = arith.constant 0 : index
    %1284 = vector.load %arg2[%c2_148, %c0_149, %c0_150] : memref<9x1x256xf32, #tpu.memory_space<vmem>>, vector<1x1x256xf32>
    %1285 = vector.shape_cast %1284 : vector<1x1x256xf32> to vector<1x256xf32>
    %1286 = vector.broadcast %1285 : vector<1x256xf32> to vector<6x256xf32>
    %1287 = arith.mulf %1283, %1286 : vector<6x256xf32>
    %c29_151 = arith.constant 29 : index
    %1288 = memref.load %arg5[%c29_151] : memref<216xf32, #tpu.memory_space<smem>>
    %1289 = vector.extract_strided_slice %1287 {offsets = [0, 0], sizes = [4, 256], strides = [1, 1]} : vector<6x256xf32> to vector<4x256xf32>
    %1290 = vector.broadcast %1288 : f32 to vector<4x256xf32>
    %1291 = arith.mulf %1290, %1289 : vector<4x256xf32>
    %1292 = arith.addf %1258, %1291 : vector<4x256xf32>
    %c38_152 = arith.constant 38 : index
    %1293 = memref.load %arg5[%c38_152] : memref<216xf32, #tpu.memory_space<smem>>
    %1294 = vector.extract_strided_slice %1287 {offsets = [1, 0], sizes = [4, 256], strides = [1, 1]} : vector<6x256xf32> to vector<4x256xf32>
    %1295 = vector.broadcast %1293 : f32 to vector<4x256xf32>
    %1296 = arith.mulf %1295, %1294 : vector<4x256xf32>
    %1297 = arith.addf %1270, %1296 : vector<4x256xf32>
    %c47_153 = arith.constant 47 : index
    %1298 = memref.load %arg5[%c47_153] : memref<216xf32, #tpu.memory_space<smem>>
    %1299 = vector.extract_strided_slice %1287 {offsets = [2, 0], sizes = [4, 256], strides = [1, 1]} : vector<6x256xf32> to vector<4x256xf32>
    %1300 = vector.broadcast %1298 : f32 to vector<4x256xf32>
    %1301 = arith.mulf %1300, %1299 : vector<4x256xf32>
    %1302 = arith.addf %1275, %1301 : vector<4x256xf32>
    %1303 = vector.extract_strided_slice %1236 {offsets = [0, 255], sizes = [6, 1], strides = [1, 1]} : vector<6x256xf32> to vector<6x1xf32>
    %1304 = vector.extract_strided_slice %1236 {offsets = [0, 0], sizes = [6, 255], strides = [1, 1]} : vector<6x256xf32> to vector<6x255xf32>
    %1305 = tpu.concatenate %1303, %1304 in 1 : vector<6x1xf32>, vector<6x255xf32> -> vector<6x256xf32>
    %c3_154 = arith.constant 3 : index
    %c0_155 = arith.constant 0 : index
    %c0_156 = arith.constant 0 : index
    %1306 = vector.load %arg2[%c3_154, %c0_155, %c0_156] : memref<9x1x256xf32, #tpu.memory_space<vmem>>, vector<1x1x256xf32>
    %1307 = vector.shape_cast %1306 : vector<1x1x256xf32> to vector<1x256xf32>
    %1308 = vector.broadcast %1307 : vector<1x256xf32> to vector<6x256xf32>
    %1309 = arith.mulf %1305, %1308 : vector<6x256xf32>
    %c30_157 = arith.constant 30 : index
    %1310 = memref.load %arg5[%c30_157] : memref<216xf32, #tpu.memory_space<smem>>
    %1311 = vector.extract_strided_slice %1309 {offsets = [0, 0], sizes = [4, 256], strides = [1, 1]} : vector<6x256xf32> to vector<4x256xf32>
    %1312 = vector.broadcast %1310 : f32 to vector<4x256xf32>
    %1313 = arith.mulf %1312, %1311 : vector<4x256xf32>
    %1314 = arith.addf %1280, %1313 : vector<4x256xf32>
    %c39_158 = arith.constant 39 : index
    %1315 = memref.load %arg5[%c39_158] : memref<216xf32, #tpu.memory_space<smem>>
    %1316 = vector.extract_strided_slice %1309 {offsets = [1, 0], sizes = [4, 256], strides = [1, 1]} : vector<6x256xf32> to vector<4x256xf32>
    %1317 = vector.broadcast %1315 : f32 to vector<4x256xf32>
    %1318 = arith.mulf %1317, %1316 : vector<4x256xf32>
    %1319 = arith.addf %1292, %1318 : vector<4x256xf32>
    %c48_159 = arith.constant 48 : index
    %1320 = memref.load %arg5[%c48_159] : memref<216xf32, #tpu.memory_space<smem>>
    %1321 = vector.extract_strided_slice %1309 {offsets = [2, 0], sizes = [4, 256], strides = [1, 1]} : vector<6x256xf32> to vector<4x256xf32>
    %1322 = vector.broadcast %1320 : f32 to vector<4x256xf32>
    %1323 = arith.mulf %1322, %1321 : vector<4x256xf32>
    %1324 = arith.addf %1297, %1323 : vector<4x256xf32>
    %c31_160 = arith.constant 31 : index
    %1325 = memref.load %arg5[%c31_160] : memref<216xf32, #tpu.memory_space<smem>>
    %1326 = vector.extract_strided_slice %1236 {offsets = [0, 0], sizes = [4, 256], strides = [1, 1]} : vector<6x256xf32> to vector<4x256xf32>
    %1327 = vector.broadcast %1325 : f32 to vector<4x256xf32>
    %1328 = arith.mulf %1327, %1326 : vector<4x256xf32>
    %1329 = arith.addf %1302, %1328 : vector<4x256xf32>
    %c40_161 = arith.constant 40 : index
    %1330 = memref.load %arg5[%c40_161] : memref<216xf32, #tpu.memory_space<smem>>
    %1331 = vector.extract_strided_slice %1236 {offsets = [1, 0], sizes = [4, 256], strides = [1, 1]} : vector<6x256xf32> to vector<4x256xf32>
    %1332 = vector.broadcast %1330 : f32 to vector<4x256xf32>
    %1333 = arith.mulf %1332, %1331 : vector<4x256xf32>
    %1334 = arith.addf %1314, %1333 : vector<4x256xf32>
    %c49_162 = arith.constant 49 : index
    %1335 = memref.load %arg5[%c49_162] : memref<216xf32, #tpu.memory_space<smem>>
    %1336 = vector.extract_strided_slice %1236 {offsets = [2, 0], sizes = [4, 256], strides = [1, 1]} : vector<6x256xf32> to vector<4x256xf32>
    %1337 = vector.broadcast %1335 : f32 to vector<4x256xf32>
    %1338 = arith.mulf %1337, %1336 : vector<4x256xf32>
    %1339 = arith.addf %1319, %1338 : vector<4x256xf32>
    %1340 = vector.extract_strided_slice %1236 {offsets = [0, 1], sizes = [6, 255], strides = [1, 1]} : vector<6x256xf32> to vector<6x255xf32>
    %1341 = vector.extract_strided_slice %1236 {offsets = [0, 0], sizes = [6, 1], strides = [1, 1]} : vector<6x256xf32> to vector<6x1xf32>
    %1342 = tpu.concatenate %1340, %1341 in 1 : vector<6x255xf32>, vector<6x1xf32> -> vector<6x256xf32>
    %c5_163 = arith.constant 5 : index
    %c0_164 = arith.constant 0 : index
    %c0_165 = arith.constant 0 : index
    %1343 = vector.load %arg2[%c5_163, %c0_164, %c0_165] : memref<9x1x256xf32, #tpu.memory_space<vmem>>, vector<1x1x256xf32>
    %1344 = vector.shape_cast %1343 : vector<1x1x256xf32> to vector<1x256xf32>
    %1345 = vector.broadcast %1344 : vector<1x256xf32> to vector<6x256xf32>
    %1346 = arith.mulf %1342, %1345 : vector<6x256xf32>
    %c32_166 = arith.constant 32 : index
    %1347 = memref.load %arg5[%c32_166] : memref<216xf32, #tpu.memory_space<smem>>
    %1348 = vector.extract_strided_slice %1346 {offsets = [0, 0], sizes = [4, 256], strides = [1, 1]} : vector<6x256xf32> to vector<4x256xf32>
    %1349 = vector.broadcast %1347 : f32 to vector<4x256xf32>
    %1350 = arith.mulf %1349, %1348 : vector<4x256xf32>
    %1351 = arith.addf %1324, %1350 : vector<4x256xf32>
    %c41_167 = arith.constant 41 : index
    %1352 = memref.load %arg5[%c41_167] : memref<216xf32, #tpu.memory_space<smem>>
    %1353 = vector.extract_strided_slice %1346 {offsets = [1, 0], sizes = [4, 256], strides = [1, 1]} : vector<6x256xf32> to vector<4x256xf32>
    %1354 = vector.broadcast %1352 : f32 to vector<4x256xf32>
    %1355 = arith.mulf %1354, %1353 : vector<4x256xf32>
    %1356 = arith.addf %1329, %1355 : vector<4x256xf32>
    %c50_168 = arith.constant 50 : index
    %1357 = memref.load %arg5[%c50_168] : memref<216xf32, #tpu.memory_space<smem>>
    %1358 = vector.extract_strided_slice %1346 {offsets = [2, 0], sizes = [4, 256], strides = [1, 1]} : vector<6x256xf32> to vector<4x256xf32>
    %1359 = vector.broadcast %1357 : f32 to vector<4x256xf32>
    %1360 = arith.mulf %1359, %1358 : vector<4x256xf32>
    %1361 = arith.addf %1334, %1360 : vector<4x256xf32>
    %1362 = vector.extract_strided_slice %1236 {offsets = [0, 15], sizes = [6, 241], strides = [1, 1]} : vector<6x256xf32> to vector<6x241xf32>
    %1363 = vector.extract_strided_slice %1236 {offsets = [0, 0], sizes = [6, 15], strides = [1, 1]} : vector<6x256xf32> to vector<6x15xf32>
    %1364 = tpu.concatenate %1362, %1363 in 1 : vector<6x241xf32>, vector<6x15xf32> -> vector<6x256xf32>
    %c6_169 = arith.constant 6 : index
    %c0_170 = arith.constant 0 : index
    %c0_171 = arith.constant 0 : index
    %1365 = vector.load %arg2[%c6_169, %c0_170, %c0_171] : memref<9x1x256xf32, #tpu.memory_space<vmem>>, vector<1x1x256xf32>
    %1366 = vector.shape_cast %1365 : vector<1x1x256xf32> to vector<1x256xf32>
    %1367 = vector.broadcast %1366 : vector<1x256xf32> to vector<6x256xf32>
    %1368 = arith.mulf %1364, %1367 : vector<6x256xf32>
    %c33_172 = arith.constant 33 : index
    %1369 = memref.load %arg5[%c33_172] : memref<216xf32, #tpu.memory_space<smem>>
    %1370 = vector.extract_strided_slice %1368 {offsets = [0, 0], sizes = [4, 256], strides = [1, 1]} : vector<6x256xf32> to vector<4x256xf32>
    %1371 = vector.broadcast %1369 : f32 to vector<4x256xf32>
    %1372 = arith.mulf %1371, %1370 : vector<4x256xf32>
    %1373 = arith.addf %1339, %1372 : vector<4x256xf32>
    %c42_173 = arith.constant 42 : index
    %1374 = memref.load %arg5[%c42_173] : memref<216xf32, #tpu.memory_space<smem>>
    %1375 = vector.extract_strided_slice %1368 {offsets = [1, 0], sizes = [4, 256], strides = [1, 1]} : vector<6x256xf32> to vector<4x256xf32>
    %1376 = vector.broadcast %1374 : f32 to vector<4x256xf32>
    %1377 = arith.mulf %1376, %1375 : vector<4x256xf32>
    %1378 = arith.addf %1351, %1377 : vector<4x256xf32>
    %c51_174 = arith.constant 51 : index
    %1379 = memref.load %arg5[%c51_174] : memref<216xf32, #tpu.memory_space<smem>>
    %1380 = vector.extract_strided_slice %1368 {offsets = [2, 0], sizes = [4, 256], strides = [1, 1]} : vector<6x256xf32> to vector<4x256xf32>
    %1381 = vector.broadcast %1379 : f32 to vector<4x256xf32>
    %1382 = arith.mulf %1381, %1380 : vector<4x256xf32>
    %1383 = arith.addf %1356, %1382 : vector<4x256xf32>
    %1384 = vector.extract_strided_slice %1236 {offsets = [0, 16], sizes = [6, 240], strides = [1, 1]} : vector<6x256xf32> to vector<6x240xf32>
    %1385 = vector.extract_strided_slice %1236 {offsets = [0, 0], sizes = [6, 16], strides = [1, 1]} : vector<6x256xf32> to vector<6x16xf32>
    %1386 = tpu.concatenate %1384, %1385 in 1 : vector<6x240xf32>, vector<6x16xf32> -> vector<6x256xf32>
    %c7_175 = arith.constant 7 : index
    %c0_176 = arith.constant 0 : index
    %c0_177 = arith.constant 0 : index
    %1387 = vector.load %arg2[%c7_175, %c0_176, %c0_177] : memref<9x1x256xf32, #tpu.memory_space<vmem>>, vector<1x1x256xf32>
    %1388 = vector.shape_cast %1387 : vector<1x1x256xf32> to vector<1x256xf32>
    %1389 = vector.broadcast %1388 : vector<1x256xf32> to vector<6x256xf32>
    %1390 = arith.mulf %1386, %1389 : vector<6x256xf32>
    %c34_178 = arith.constant 34 : index
    %1391 = memref.load %arg5[%c34_178] : memref<216xf32, #tpu.memory_space<smem>>
    %1392 = vector.extract_strided_slice %1390 {offsets = [0, 0], sizes = [4, 256], strides = [1, 1]} : vector<6x256xf32> to vector<4x256xf32>
    %1393 = vector.broadcast %1391 : f32 to vector<4x256xf32>
    %1394 = arith.mulf %1393, %1392 : vector<4x256xf32>
    %1395 = arith.addf %1361, %1394 : vector<4x256xf32>
    %c43_179 = arith.constant 43 : index
    %1396 = memref.load %arg5[%c43_179] : memref<216xf32, #tpu.memory_space<smem>>
    %1397 = vector.extract_strided_slice %1390 {offsets = [1, 0], sizes = [4, 256], strides = [1, 1]} : vector<6x256xf32> to vector<4x256xf32>
    %1398 = vector.broadcast %1396 : f32 to vector<4x256xf32>
    %1399 = arith.mulf %1398, %1397 : vector<4x256xf32>
    %1400 = arith.addf %1373, %1399 : vector<4x256xf32>
    %c52_180 = arith.constant 52 : index
    %1401 = memref.load %arg5[%c52_180] : memref<216xf32, #tpu.memory_space<smem>>
    %1402 = vector.extract_strided_slice %1390 {offsets = [2, 0], sizes = [4, 256], strides = [1, 1]} : vector<6x256xf32> to vector<4x256xf32>
    %1403 = vector.broadcast %1401 : f32 to vector<4x256xf32>
    %1404 = arith.mulf %1403, %1402 : vector<4x256xf32>
    %1405 = arith.addf %1378, %1404 : vector<4x256xf32>
    %1406 = vector.extract_strided_slice %1236 {offsets = [0, 17], sizes = [6, 239], strides = [1, 1]} : vector<6x256xf32> to vector<6x239xf32>
    %1407 = vector.extract_strided_slice %1236 {offsets = [0, 0], sizes = [6, 17], strides = [1, 1]} : vector<6x256xf32> to vector<6x17xf32>
    %1408 = tpu.concatenate %1406, %1407 in 1 : vector<6x239xf32>, vector<6x17xf32> -> vector<6x256xf32>
    %c8_181 = arith.constant 8 : index
    %c0_182 = arith.constant 0 : index
    %c0_183 = arith.constant 0 : index
    %1409 = vector.load %arg2[%c8_181, %c0_182, %c0_183] : memref<9x1x256xf32, #tpu.memory_space<vmem>>, vector<1x1x256xf32>
    %1410 = vector.shape_cast %1409 : vector<1x1x256xf32> to vector<1x256xf32>
    %1411 = vector.broadcast %1410 : vector<1x256xf32> to vector<6x256xf32>
    %1412 = arith.mulf %1408, %1411 : vector<6x256xf32>
    %c35_184 = arith.constant 35 : index
    %1413 = memref.load %arg5[%c35_184] : memref<216xf32, #tpu.memory_space<smem>>
    %1414 = vector.extract_strided_slice %1412 {offsets = [0, 0], sizes = [4, 256], strides = [1, 1]} : vector<6x256xf32> to vector<4x256xf32>
    %1415 = vector.broadcast %1413 : f32 to vector<4x256xf32>
    %1416 = arith.mulf %1415, %1414 : vector<4x256xf32>
    %1417 = arith.addf %1383, %1416 : vector<4x256xf32>
    %c44_185 = arith.constant 44 : index
    %1418 = memref.load %arg5[%c44_185] : memref<216xf32, #tpu.memory_space<smem>>
    %1419 = vector.extract_strided_slice %1412 {offsets = [1, 0], sizes = [4, 256], strides = [1, 1]} : vector<6x256xf32> to vector<4x256xf32>
    %1420 = vector.broadcast %1418 : f32 to vector<4x256xf32>
    %1421 = arith.mulf %1420, %1419 : vector<4x256xf32>
    %1422 = arith.addf %1395, %1421 : vector<4x256xf32>
    %c53_186 = arith.constant 53 : index
    %1423 = memref.load %arg5[%c53_186] : memref<216xf32, #tpu.memory_space<smem>>
    %1424 = vector.extract_strided_slice %1412 {offsets = [2, 0], sizes = [4, 256], strides = [1, 1]} : vector<6x256xf32> to vector<4x256xf32>
    %1425 = vector.broadcast %1423 : f32 to vector<4x256xf32>
    %1426 = arith.mulf %1425, %1424 : vector<4x256xf32>
    %1427 = arith.addf %1400, %1426 : vector<4x256xf32>
    %c2_187 = arith.constant 2 : index
    %c0_188 = arith.constant 0 : index
    %c0_189 = arith.constant 0 : index
    %1428 = vector.load %arg8[%c2_187, %c0_188, %c0_189] : memref<8x6x256xf32, #tpu.memory_space<vmem>>, vector<1x6x256xf32>
    %1429 = vector.shape_cast %1428 : vector<1x6x256xf32> to vector<6x256xf32>
    %1430 = vector.extract_strided_slice %1429 {offsets = [0, 239], sizes = [6, 17], strides = [1, 1]} : vector<6x256xf32> to vector<6x17xf32>
    %1431 = vector.extract_strided_slice %1429 {offsets = [0, 0], sizes = [6, 239], strides = [1, 1]} : vector<6x256xf32> to vector<6x239xf32>
    %1432 = tpu.concatenate %1430, %1431 in 1 : vector<6x17xf32>, vector<6x239xf32> -> vector<6x256xf32>
    %c0_190 = arith.constant 0 : index
    %c0_191 = arith.constant 0 : index
    %c0_192 = arith.constant 0 : index
    %1433 = vector.load %arg2[%c0_190, %c0_191, %c0_192] : memref<9x1x256xf32, #tpu.memory_space<vmem>>, vector<1x1x256xf32>
    %1434 = vector.shape_cast %1433 : vector<1x1x256xf32> to vector<1x256xf32>
    %1435 = vector.broadcast %1434 : vector<1x256xf32> to vector<6x256xf32>
    %1436 = arith.mulf %1432, %1435 : vector<6x256xf32>
    %c54_193 = arith.constant 54 : index
    %1437 = memref.load %arg5[%c54_193] : memref<216xf32, #tpu.memory_space<smem>>
    %1438 = vector.extract_strided_slice %1436 {offsets = [0, 0], sizes = [4, 256], strides = [1, 1]} : vector<6x256xf32> to vector<4x256xf32>
    %1439 = vector.broadcast %1437 : f32 to vector<4x256xf32>
    %1440 = arith.mulf %1439, %1438 : vector<4x256xf32>
    %1441 = arith.addf %1405, %1440 : vector<4x256xf32>
    %c63_194 = arith.constant 63 : index
    %1442 = memref.load %arg5[%c63_194] : memref<216xf32, #tpu.memory_space<smem>>
    %1443 = vector.extract_strided_slice %1436 {offsets = [1, 0], sizes = [4, 256], strides = [1, 1]} : vector<6x256xf32> to vector<4x256xf32>
    %1444 = vector.broadcast %1442 : f32 to vector<4x256xf32>
    %1445 = arith.mulf %1444, %1443 : vector<4x256xf32>
    %1446 = arith.addf %1417, %1445 : vector<4x256xf32>
    %c72_195 = arith.constant 72 : index
    %1447 = memref.load %arg5[%c72_195] : memref<216xf32, #tpu.memory_space<smem>>
    %1448 = vector.extract_strided_slice %1436 {offsets = [2, 0], sizes = [4, 256], strides = [1, 1]} : vector<6x256xf32> to vector<4x256xf32>
    %1449 = vector.broadcast %1447 : f32 to vector<4x256xf32>
    %1450 = arith.mulf %1449, %1448 : vector<4x256xf32>
    %1451 = arith.addf %1422, %1450 : vector<4x256xf32>
    %1452 = vector.extract_strided_slice %1429 {offsets = [0, 240], sizes = [6, 16], strides = [1, 1]} : vector<6x256xf32> to vector<6x16xf32>
    %1453 = vector.extract_strided_slice %1429 {offsets = [0, 0], sizes = [6, 240], strides = [1, 1]} : vector<6x256xf32> to vector<6x240xf32>
    %1454 = tpu.concatenate %1452, %1453 in 1 : vector<6x16xf32>, vector<6x240xf32> -> vector<6x256xf32>
    %c1_196 = arith.constant 1 : index
    %c0_197 = arith.constant 0 : index
    %c0_198 = arith.constant 0 : index
    %1455 = vector.load %arg2[%c1_196, %c0_197, %c0_198] : memref<9x1x256xf32, #tpu.memory_space<vmem>>, vector<1x1x256xf32>
    %1456 = vector.shape_cast %1455 : vector<1x1x256xf32> to vector<1x256xf32>
    %1457 = vector.broadcast %1456 : vector<1x256xf32> to vector<6x256xf32>
    %1458 = arith.mulf %1454, %1457 : vector<6x256xf32>
    %c55_199 = arith.constant 55 : index
    %1459 = memref.load %arg5[%c55_199] : memref<216xf32, #tpu.memory_space<smem>>
    %1460 = vector.extract_strided_slice %1458 {offsets = [0, 0], sizes = [4, 256], strides = [1, 1]} : vector<6x256xf32> to vector<4x256xf32>
    %1461 = vector.broadcast %1459 : f32 to vector<4x256xf32>
    %1462 = arith.mulf %1461, %1460 : vector<4x256xf32>
    %1463 = arith.addf %1427, %1462 : vector<4x256xf32>
    %c64_200 = arith.constant 64 : index
    %1464 = memref.load %arg5[%c64_200] : memref<216xf32, #tpu.memory_space<smem>>
    %1465 = vector.extract_strided_slice %1458 {offsets = [1, 0], sizes = [4, 256], strides = [1, 1]} : vector<6x256xf32> to vector<4x256xf32>
    %1466 = vector.broadcast %1464 : f32 to vector<4x256xf32>
    %1467 = arith.mulf %1466, %1465 : vector<4x256xf32>
    %1468 = arith.addf %1441, %1467 : vector<4x256xf32>
    %c73_201 = arith.constant 73 : index
    %1469 = memref.load %arg5[%c73_201] : memref<216xf32, #tpu.memory_space<smem>>
    %1470 = vector.extract_strided_slice %1458 {offsets = [2, 0], sizes = [4, 256], strides = [1, 1]} : vector<6x256xf32> to vector<4x256xf32>
    %1471 = vector.broadcast %1469 : f32 to vector<4x256xf32>
    %1472 = arith.mulf %1471, %1470 : vector<4x256xf32>
    %1473 = arith.addf %1446, %1472 : vector<4x256xf32>
    %1474 = vector.extract_strided_slice %1429 {offsets = [0, 241], sizes = [6, 15], strides = [1, 1]} : vector<6x256xf32> to vector<6x15xf32>
    %1475 = vector.extract_strided_slice %1429 {offsets = [0, 0], sizes = [6, 241], strides = [1, 1]} : vector<6x256xf32> to vector<6x241xf32>
    %1476 = tpu.concatenate %1474, %1475 in 1 : vector<6x15xf32>, vector<6x241xf32> -> vector<6x256xf32>
    %c2_202 = arith.constant 2 : index
    %c0_203 = arith.constant 0 : index
    %c0_204 = arith.constant 0 : index
    %1477 = vector.load %arg2[%c2_202, %c0_203, %c0_204] : memref<9x1x256xf32, #tpu.memory_space<vmem>>, vector<1x1x256xf32>
    %1478 = vector.shape_cast %1477 : vector<1x1x256xf32> to vector<1x256xf32>
    %1479 = vector.broadcast %1478 : vector<1x256xf32> to vector<6x256xf32>
    %1480 = arith.mulf %1476, %1479 : vector<6x256xf32>
    %c56_205 = arith.constant 56 : index
    %1481 = memref.load %arg5[%c56_205] : memref<216xf32, #tpu.memory_space<smem>>
    %1482 = vector.extract_strided_slice %1480 {offsets = [0, 0], sizes = [4, 256], strides = [1, 1]} : vector<6x256xf32> to vector<4x256xf32>
    %1483 = vector.broadcast %1481 : f32 to vector<4x256xf32>
    %1484 = arith.mulf %1483, %1482 : vector<4x256xf32>
    %1485 = arith.addf %1451, %1484 : vector<4x256xf32>
    %c65_206 = arith.constant 65 : index
    %1486 = memref.load %arg5[%c65_206] : memref<216xf32, #tpu.memory_space<smem>>
    %1487 = vector.extract_strided_slice %1480 {offsets = [1, 0], sizes = [4, 256], strides = [1, 1]} : vector<6x256xf32> to vector<4x256xf32>
    %1488 = vector.broadcast %1486 : f32 to vector<4x256xf32>
    %1489 = arith.mulf %1488, %1487 : vector<4x256xf32>
    %1490 = arith.addf %1463, %1489 : vector<4x256xf32>
    %c74_207 = arith.constant 74 : index
    %1491 = memref.load %arg5[%c74_207] : memref<216xf32, #tpu.memory_space<smem>>
    %1492 = vector.extract_strided_slice %1480 {offsets = [2, 0], sizes = [4, 256], strides = [1, 1]} : vector<6x256xf32> to vector<4x256xf32>
    %1493 = vector.broadcast %1491 : f32 to vector<4x256xf32>
    %1494 = arith.mulf %1493, %1492 : vector<4x256xf32>
    %1495 = arith.addf %1468, %1494 : vector<4x256xf32>
    %1496 = vector.extract_strided_slice %1429 {offsets = [0, 255], sizes = [6, 1], strides = [1, 1]} : vector<6x256xf32> to vector<6x1xf32>
    %1497 = vector.extract_strided_slice %1429 {offsets = [0, 0], sizes = [6, 255], strides = [1, 1]} : vector<6x256xf32> to vector<6x255xf32>
    %1498 = tpu.concatenate %1496, %1497 in 1 : vector<6x1xf32>, vector<6x255xf32> -> vector<6x256xf32>
    %c3_208 = arith.constant 3 : index
    %c0_209 = arith.constant 0 : index
    %c0_210 = arith.constant 0 : index
    %1499 = vector.load %arg2[%c3_208, %c0_209, %c0_210] : memref<9x1x256xf32, #tpu.memory_space<vmem>>, vector<1x1x256xf32>
    %1500 = vector.shape_cast %1499 : vector<1x1x256xf32> to vector<1x256xf32>
    %1501 = vector.broadcast %1500 : vector<1x256xf32> to vector<6x256xf32>
    %1502 = arith.mulf %1498, %1501 : vector<6x256xf32>
    %c57_211 = arith.constant 57 : index
    %1503 = memref.load %arg5[%c57_211] : memref<216xf32, #tpu.memory_space<smem>>
    %1504 = vector.extract_strided_slice %1502 {offsets = [0, 0], sizes = [4, 256], strides = [1, 1]} : vector<6x256xf32> to vector<4x256xf32>
    %1505 = vector.broadcast %1503 : f32 to vector<4x256xf32>
    %1506 = arith.mulf %1505, %1504 : vector<4x256xf32>
    %1507 = arith.addf %1473, %1506 : vector<4x256xf32>
    %c66_212 = arith.constant 66 : index
    %1508 = memref.load %arg5[%c66_212] : memref<216xf32, #tpu.memory_space<smem>>
    %1509 = vector.extract_strided_slice %1502 {offsets = [1, 0], sizes = [4, 256], strides = [1, 1]} : vector<6x256xf32> to vector<4x256xf32>
    %1510 = vector.broadcast %1508 : f32 to vector<4x256xf32>
    %1511 = arith.mulf %1510, %1509 : vector<4x256xf32>
    %1512 = arith.addf %1485, %1511 : vector<4x256xf32>
    %c75_213 = arith.constant 75 : index
    %1513 = memref.load %arg5[%c75_213] : memref<216xf32, #tpu.memory_space<smem>>
    %1514 = vector.extract_strided_slice %1502 {offsets = [2, 0], sizes = [4, 256], strides = [1, 1]} : vector<6x256xf32> to vector<4x256xf32>
    %1515 = vector.broadcast %1513 : f32 to vector<4x256xf32>
    %1516 = arith.mulf %1515, %1514 : vector<4x256xf32>
    %1517 = arith.addf %1490, %1516 : vector<4x256xf32>
    %c58_214 = arith.constant 58 : index
    %1518 = memref.load %arg5[%c58_214] : memref<216xf32, #tpu.memory_space<smem>>
    %1519 = vector.extract_strided_slice %1429 {offsets = [0, 0], sizes = [4, 256], strides = [1, 1]} : vector<6x256xf32> to vector<4x256xf32>
    %1520 = vector.broadcast %1518 : f32 to vector<4x256xf32>
    %1521 = arith.mulf %1520, %1519 : vector<4x256xf32>
    %1522 = arith.addf %1495, %1521 : vector<4x256xf32>
    %c67_215 = arith.constant 67 : index
    %1523 = memref.load %arg5[%c67_215] : memref<216xf32, #tpu.memory_space<smem>>
    %1524 = vector.extract_strided_slice %1429 {offsets = [1, 0], sizes = [4, 256], strides = [1, 1]} : vector<6x256xf32> to vector<4x256xf32>
    %1525 = vector.broadcast %1523 : f32 to vector<4x256xf32>
    %1526 = arith.mulf %1525, %1524 : vector<4x256xf32>
    %1527 = arith.addf %1507, %1526 : vector<4x256xf32>
    %c76_216 = arith.constant 76 : index
    %1528 = memref.load %arg5[%c76_216] : memref<216xf32, #tpu.memory_space<smem>>
    %1529 = vector.extract_strided_slice %1429 {offsets = [2, 0], sizes = [4, 256], strides = [1, 1]} : vector<6x256xf32> to vector<4x256xf32>
    %1530 = vector.broadcast %1528 : f32 to vector<4x256xf32>
    %1531 = arith.mulf %1530, %1529 : vector<4x256xf32>
    %1532 = arith.addf %1512, %1531 : vector<4x256xf32>
    %1533 = vector.extract_strided_slice %1429 {offsets = [0, 1], sizes = [6, 255], strides = [1, 1]} : vector<6x256xf32> to vector<6x255xf32>
    %1534 = vector.extract_strided_slice %1429 {offsets = [0, 0], sizes = [6, 1], strides = [1, 1]} : vector<6x256xf32> to vector<6x1xf32>
    %1535 = tpu.concatenate %1533, %1534 in 1 : vector<6x255xf32>, vector<6x1xf32> -> vector<6x256xf32>
    %c5_217 = arith.constant 5 : index
    %c0_218 = arith.constant 0 : index
    %c0_219 = arith.constant 0 : index
    %1536 = vector.load %arg2[%c5_217, %c0_218, %c0_219] : memref<9x1x256xf32, #tpu.memory_space<vmem>>, vector<1x1x256xf32>
    %1537 = vector.shape_cast %1536 : vector<1x1x256xf32> to vector<1x256xf32>
    %1538 = vector.broadcast %1537 : vector<1x256xf32> to vector<6x256xf32>
    %1539 = arith.mulf %1535, %1538 : vector<6x256xf32>
    %c59_220 = arith.constant 59 : index
    %1540 = memref.load %arg5[%c59_220] : memref<216xf32, #tpu.memory_space<smem>>
    %1541 = vector.extract_strided_slice %1539 {offsets = [0, 0], sizes = [4, 256], strides = [1, 1]} : vector<6x256xf32> to vector<4x256xf32>
    %1542 = vector.broadcast %1540 : f32 to vector<4x256xf32>
    %1543 = arith.mulf %1542, %1541 : vector<4x256xf32>
    %1544 = arith.addf %1517, %1543 : vector<4x256xf32>
    %c68_221 = arith.constant 68 : index
    %1545 = memref.load %arg5[%c68_221] : memref<216xf32, #tpu.memory_space<smem>>
    %1546 = vector.extract_strided_slice %1539 {offsets = [1, 0], sizes = [4, 256], strides = [1, 1]} : vector<6x256xf32> to vector<4x256xf32>
    %1547 = vector.broadcast %1545 : f32 to vector<4x256xf32>
    %1548 = arith.mulf %1547, %1546 : vector<4x256xf32>
    %1549 = arith.addf %1522, %1548 : vector<4x256xf32>
    %c77_222 = arith.constant 77 : index
    %1550 = memref.load %arg5[%c77_222] : memref<216xf32, #tpu.memory_space<smem>>
    %1551 = vector.extract_strided_slice %1539 {offsets = [2, 0], sizes = [4, 256], strides = [1, 1]} : vector<6x256xf32> to vector<4x256xf32>
    %1552 = vector.broadcast %1550 : f32 to vector<4x256xf32>
    %1553 = arith.mulf %1552, %1551 : vector<4x256xf32>
    %1554 = arith.addf %1527, %1553 : vector<4x256xf32>
    %1555 = vector.extract_strided_slice %1429 {offsets = [0, 15], sizes = [6, 241], strides = [1, 1]} : vector<6x256xf32> to vector<6x241xf32>
    %1556 = vector.extract_strided_slice %1429 {offsets = [0, 0], sizes = [6, 15], strides = [1, 1]} : vector<6x256xf32> to vector<6x15xf32>
    %1557 = tpu.concatenate %1555, %1556 in 1 : vector<6x241xf32>, vector<6x15xf32> -> vector<6x256xf32>
    %c6_223 = arith.constant 6 : index
    %c0_224 = arith.constant 0 : index
    %c0_225 = arith.constant 0 : index
    %1558 = vector.load %arg2[%c6_223, %c0_224, %c0_225] : memref<9x1x256xf32, #tpu.memory_space<vmem>>, vector<1x1x256xf32>
    %1559 = vector.shape_cast %1558 : vector<1x1x256xf32> to vector<1x256xf32>
    %1560 = vector.broadcast %1559 : vector<1x256xf32> to vector<6x256xf32>
    %1561 = arith.mulf %1557, %1560 : vector<6x256xf32>
    %c60_226 = arith.constant 60 : index
    %1562 = memref.load %arg5[%c60_226] : memref<216xf32, #tpu.memory_space<smem>>
    %1563 = vector.extract_strided_slice %1561 {offsets = [0, 0], sizes = [4, 256], strides = [1, 1]} : vector<6x256xf32> to vector<4x256xf32>
    %1564 = vector.broadcast %1562 : f32 to vector<4x256xf32>
    %1565 = arith.mulf %1564, %1563 : vector<4x256xf32>
    %1566 = arith.addf %1532, %1565 : vector<4x256xf32>
    %c69_227 = arith.constant 69 : index
    %1567 = memref.load %arg5[%c69_227] : memref<216xf32, #tpu.memory_space<smem>>
    %1568 = vector.extract_strided_slice %1561 {offsets = [1, 0], sizes = [4, 256], strides = [1, 1]} : vector<6x256xf32> to vector<4x256xf32>
    %1569 = vector.broadcast %1567 : f32 to vector<4x256xf32>
    %1570 = arith.mulf %1569, %1568 : vector<4x256xf32>
    %1571 = arith.addf %1544, %1570 : vector<4x256xf32>
    %c78_228 = arith.constant 78 : index
    %1572 = memref.load %arg5[%c78_228] : memref<216xf32, #tpu.memory_space<smem>>
    %1573 = vector.extract_strided_slice %1561 {offsets = [2, 0], sizes = [4, 256], strides = [1, 1]} : vector<6x256xf32> to vector<4x256xf32>
    %1574 = vector.broadcast %1572 : f32 to vector<4x256xf32>
    %1575 = arith.mulf %1574, %1573 : vector<4x256xf32>
    %1576 = arith.addf %1549, %1575 : vector<4x256xf32>
    %1577 = vector.extract_strided_slice %1429 {offsets = [0, 16], sizes = [6, 240], strides = [1, 1]} : vector<6x256xf32> to vector<6x240xf32>
    %1578 = vector.extract_strided_slice %1429 {offsets = [0, 0], sizes = [6, 16], strides = [1, 1]} : vector<6x256xf32> to vector<6x16xf32>
    %1579 = tpu.concatenate %1577, %1578 in 1 : vector<6x240xf32>, vector<6x16xf32> -> vector<6x256xf32>
    %c7_229 = arith.constant 7 : index
    %c0_230 = arith.constant 0 : index
    %c0_231 = arith.constant 0 : index
    %1580 = vector.load %arg2[%c7_229, %c0_230, %c0_231] : memref<9x1x256xf32, #tpu.memory_space<vmem>>, vector<1x1x256xf32>
    %1581 = vector.shape_cast %1580 : vector<1x1x256xf32> to vector<1x256xf32>
    %1582 = vector.broadcast %1581 : vector<1x256xf32> to vector<6x256xf32>
    %1583 = arith.mulf %1579, %1582 : vector<6x256xf32>
    %c61_232 = arith.constant 61 : index
    %1584 = memref.load %arg5[%c61_232] : memref<216xf32, #tpu.memory_space<smem>>
    %1585 = vector.extract_strided_slice %1583 {offsets = [0, 0], sizes = [4, 256], strides = [1, 1]} : vector<6x256xf32> to vector<4x256xf32>
    %1586 = vector.broadcast %1584 : f32 to vector<4x256xf32>
    %1587 = arith.mulf %1586, %1585 : vector<4x256xf32>
    %1588 = arith.addf %1554, %1587 : vector<4x256xf32>
    %c70_233 = arith.constant 70 : index
    %1589 = memref.load %arg5[%c70_233] : memref<216xf32, #tpu.memory_space<smem>>
    %1590 = vector.extract_strided_slice %1583 {offsets = [1, 0], sizes = [4, 256], strides = [1, 1]} : vector<6x256xf32> to vector<4x256xf32>
    %1591 = vector.broadcast %1589 : f32 to vector<4x256xf32>
    %1592 = arith.mulf %1591, %1590 : vector<4x256xf32>
    %1593 = arith.addf %1566, %1592 : vector<4x256xf32>
    %c79_234 = arith.constant 79 : index
    %1594 = memref.load %arg5[%c79_234] : memref<216xf32, #tpu.memory_space<smem>>
    %1595 = vector.extract_strided_slice %1583 {offsets = [2, 0], sizes = [4, 256], strides = [1, 1]} : vector<6x256xf32> to vector<4x256xf32>
    %1596 = vector.broadcast %1594 : f32 to vector<4x256xf32>
    %1597 = arith.mulf %1596, %1595 : vector<4x256xf32>
    %1598 = arith.addf %1571, %1597 : vector<4x256xf32>
    %1599 = vector.extract_strided_slice %1429 {offsets = [0, 17], sizes = [6, 239], strides = [1, 1]} : vector<6x256xf32> to vector<6x239xf32>
    %1600 = vector.extract_strided_slice %1429 {offsets = [0, 0], sizes = [6, 17], strides = [1, 1]} : vector<6x256xf32> to vector<6x17xf32>
    %1601 = tpu.concatenate %1599, %1600 in 1 : vector<6x239xf32>, vector<6x17xf32> -> vector<6x256xf32>
    %c8_235 = arith.constant 8 : index
    %c0_236 = arith.constant 0 : index
    %c0_237 = arith.constant 0 : index
    %1602 = vector.load %arg2[%c8_235, %c0_236, %c0_237] : memref<9x1x256xf32, #tpu.memory_space<vmem>>, vector<1x1x256xf32>
    %1603 = vector.shape_cast %1602 : vector<1x1x256xf32> to vector<1x256xf32>
    %1604 = vector.broadcast %1603 : vector<1x256xf32> to vector<6x256xf32>
    %1605 = arith.mulf %1601, %1604 : vector<6x256xf32>
    %c62_238 = arith.constant 62 : index
    %1606 = memref.load %arg5[%c62_238] : memref<216xf32, #tpu.memory_space<smem>>
    %1607 = vector.extract_strided_slice %1605 {offsets = [0, 0], sizes = [4, 256], strides = [1, 1]} : vector<6x256xf32> to vector<4x256xf32>
    %1608 = vector.broadcast %1606 : f32 to vector<4x256xf32>
    %1609 = arith.mulf %1608, %1607 : vector<4x256xf32>
    %1610 = arith.addf %1576, %1609 : vector<4x256xf32>
    %c71_239 = arith.constant 71 : index
    %1611 = memref.load %arg5[%c71_239] : memref<216xf32, #tpu.memory_space<smem>>
    %1612 = vector.extract_strided_slice %1605 {offsets = [1, 0], sizes = [4, 256], strides = [1, 1]} : vector<6x256xf32> to vector<4x256xf32>
    %1613 = vector.broadcast %1611 : f32 to vector<4x256xf32>
    %1614 = arith.mulf %1613, %1612 : vector<4x256xf32>
    %1615 = arith.addf %1588, %1614 : vector<4x256xf32>
    %c80_240 = arith.constant 80 : index
    %1616 = memref.load %arg5[%c80_240] : memref<216xf32, #tpu.memory_space<smem>>
    %1617 = vector.extract_strided_slice %1605 {offsets = [2, 0], sizes = [4, 256], strides = [1, 1]} : vector<6x256xf32> to vector<4x256xf32>
    %1618 = vector.broadcast %1616 : f32 to vector<4x256xf32>
    %1619 = arith.mulf %1618, %1617 : vector<4x256xf32>
    %1620 = arith.addf %1593, %1619 : vector<4x256xf32>
    %c3_241 = arith.constant 3 : index
    %c0_242 = arith.constant 0 : index
    %c0_243 = arith.constant 0 : index
    %1621 = vector.load %arg8[%c3_241, %c0_242, %c0_243] : memref<8x6x256xf32, #tpu.memory_space<vmem>>, vector<1x6x256xf32>
    %1622 = vector.shape_cast %1621 : vector<1x6x256xf32> to vector<6x256xf32>
    %1623 = vector.extract_strided_slice %1622 {offsets = [0, 239], sizes = [6, 17], strides = [1, 1]} : vector<6x256xf32> to vector<6x17xf32>
    %1624 = vector.extract_strided_slice %1622 {offsets = [0, 0], sizes = [6, 239], strides = [1, 1]} : vector<6x256xf32> to vector<6x239xf32>
    %1625 = tpu.concatenate %1623, %1624 in 1 : vector<6x17xf32>, vector<6x239xf32> -> vector<6x256xf32>
    %c0_244 = arith.constant 0 : index
    %c0_245 = arith.constant 0 : index
    %c0_246 = arith.constant 0 : index
    %1626 = vector.load %arg2[%c0_244, %c0_245, %c0_246] : memref<9x1x256xf32, #tpu.memory_space<vmem>>, vector<1x1x256xf32>
    %1627 = vector.shape_cast %1626 : vector<1x1x256xf32> to vector<1x256xf32>
    %1628 = vector.broadcast %1627 : vector<1x256xf32> to vector<6x256xf32>
    %1629 = arith.mulf %1625, %1628 : vector<6x256xf32>
    %c81_247 = arith.constant 81 : index
    %1630 = memref.load %arg5[%c81_247] : memref<216xf32, #tpu.memory_space<smem>>
    %1631 = vector.extract_strided_slice %1629 {offsets = [0, 0], sizes = [4, 256], strides = [1, 1]} : vector<6x256xf32> to vector<4x256xf32>
    %1632 = vector.broadcast %1630 : f32 to vector<4x256xf32>
    %1633 = arith.mulf %1632, %1631 : vector<4x256xf32>
    %1634 = arith.addf %1598, %1633 : vector<4x256xf32>
    %c90_248 = arith.constant 90 : index
    %1635 = memref.load %arg5[%c90_248] : memref<216xf32, #tpu.memory_space<smem>>
    %1636 = vector.extract_strided_slice %1629 {offsets = [1, 0], sizes = [4, 256], strides = [1, 1]} : vector<6x256xf32> to vector<4x256xf32>
    %1637 = vector.broadcast %1635 : f32 to vector<4x256xf32>
    %1638 = arith.mulf %1637, %1636 : vector<4x256xf32>
    %1639 = arith.addf %1610, %1638 : vector<4x256xf32>
    %c99_249 = arith.constant 99 : index
    %1640 = memref.load %arg5[%c99_249] : memref<216xf32, #tpu.memory_space<smem>>
    %1641 = vector.extract_strided_slice %1629 {offsets = [2, 0], sizes = [4, 256], strides = [1, 1]} : vector<6x256xf32> to vector<4x256xf32>
    %1642 = vector.broadcast %1640 : f32 to vector<4x256xf32>
    %1643 = arith.mulf %1642, %1641 : vector<4x256xf32>
    %1644 = arith.addf %1615, %1643 : vector<4x256xf32>
    %1645 = vector.extract_strided_slice %1622 {offsets = [0, 240], sizes = [6, 16], strides = [1, 1]} : vector<6x256xf32> to vector<6x16xf32>
    %1646 = vector.extract_strided_slice %1622 {offsets = [0, 0], sizes = [6, 240], strides = [1, 1]} : vector<6x256xf32> to vector<6x240xf32>
    %1647 = tpu.concatenate %1645, %1646 in 1 : vector<6x16xf32>, vector<6x240xf32> -> vector<6x256xf32>
    %c1_250 = arith.constant 1 : index
    %c0_251 = arith.constant 0 : index
    %c0_252 = arith.constant 0 : index
    %1648 = vector.load %arg2[%c1_250, %c0_251, %c0_252] : memref<9x1x256xf32, #tpu.memory_space<vmem>>, vector<1x1x256xf32>
    %1649 = vector.shape_cast %1648 : vector<1x1x256xf32> to vector<1x256xf32>
    %1650 = vector.broadcast %1649 : vector<1x256xf32> to vector<6x256xf32>
    %1651 = arith.mulf %1647, %1650 : vector<6x256xf32>
    %c82_253 = arith.constant 82 : index
    %1652 = memref.load %arg5[%c82_253] : memref<216xf32, #tpu.memory_space<smem>>
    %1653 = vector.extract_strided_slice %1651 {offsets = [0, 0], sizes = [4, 256], strides = [1, 1]} : vector<6x256xf32> to vector<4x256xf32>
    %1654 = vector.broadcast %1652 : f32 to vector<4x256xf32>
    %1655 = arith.mulf %1654, %1653 : vector<4x256xf32>
    %1656 = arith.addf %1620, %1655 : vector<4x256xf32>
    %c91_254 = arith.constant 91 : index
    %1657 = memref.load %arg5[%c91_254] : memref<216xf32, #tpu.memory_space<smem>>
    %1658 = vector.extract_strided_slice %1651 {offsets = [1, 0], sizes = [4, 256], strides = [1, 1]} : vector<6x256xf32> to vector<4x256xf32>
    %1659 = vector.broadcast %1657 : f32 to vector<4x256xf32>
    %1660 = arith.mulf %1659, %1658 : vector<4x256xf32>
    %1661 = arith.addf %1634, %1660 : vector<4x256xf32>
    %c100_255 = arith.constant 100 : index
    %1662 = memref.load %arg5[%c100_255] : memref<216xf32, #tpu.memory_space<smem>>
    %1663 = vector.extract_strided_slice %1651 {offsets = [2, 0], sizes = [4, 256], strides = [1, 1]} : vector<6x256xf32> to vector<4x256xf32>
    %1664 = vector.broadcast %1662 : f32 to vector<4x256xf32>
    %1665 = arith.mulf %1664, %1663 : vector<4x256xf32>
    %1666 = arith.addf %1639, %1665 : vector<4x256xf32>
    %1667 = vector.extract_strided_slice %1622 {offsets = [0, 241], sizes = [6, 15], strides = [1, 1]} : vector<6x256xf32> to vector<6x15xf32>
    %1668 = vector.extract_strided_slice %1622 {offsets = [0, 0], sizes = [6, 241], strides = [1, 1]} : vector<6x256xf32> to vector<6x241xf32>
    %1669 = tpu.concatenate %1667, %1668 in 1 : vector<6x15xf32>, vector<6x241xf32> -> vector<6x256xf32>
    %c2_256 = arith.constant 2 : index
    %c0_257 = arith.constant 0 : index
    %c0_258 = arith.constant 0 : index
    %1670 = vector.load %arg2[%c2_256, %c0_257, %c0_258] : memref<9x1x256xf32, #tpu.memory_space<vmem>>, vector<1x1x256xf32>
    %1671 = vector.shape_cast %1670 : vector<1x1x256xf32> to vector<1x256xf32>
    %1672 = vector.broadcast %1671 : vector<1x256xf32> to vector<6x256xf32>
    %1673 = arith.mulf %1669, %1672 : vector<6x256xf32>
    %c83_259 = arith.constant 83 : index
    %1674 = memref.load %arg5[%c83_259] : memref<216xf32, #tpu.memory_space<smem>>
    %1675 = vector.extract_strided_slice %1673 {offsets = [0, 0], sizes = [4, 256], strides = [1, 1]} : vector<6x256xf32> to vector<4x256xf32>
    %1676 = vector.broadcast %1674 : f32 to vector<4x256xf32>
    %1677 = arith.mulf %1676, %1675 : vector<4x256xf32>
    %1678 = arith.addf %1644, %1677 : vector<4x256xf32>
    %c92_260 = arith.constant 92 : index
    %1679 = memref.load %arg5[%c92_260] : memref<216xf32, #tpu.memory_space<smem>>
    %1680 = vector.extract_strided_slice %1673 {offsets = [1, 0], sizes = [4, 256], strides = [1, 1]} : vector<6x256xf32> to vector<4x256xf32>
    %1681 = vector.broadcast %1679 : f32 to vector<4x256xf32>
    %1682 = arith.mulf %1681, %1680 : vector<4x256xf32>
    %1683 = arith.addf %1656, %1682 : vector<4x256xf32>
    %c101_261 = arith.constant 101 : index
    %1684 = memref.load %arg5[%c101_261] : memref<216xf32, #tpu.memory_space<smem>>
    %1685 = vector.extract_strided_slice %1673 {offsets = [2, 0], sizes = [4, 256], strides = [1, 1]} : vector<6x256xf32> to vector<4x256xf32>
    %1686 = vector.broadcast %1684 : f32 to vector<4x256xf32>
    %1687 = arith.mulf %1686, %1685 : vector<4x256xf32>
    %1688 = arith.addf %1661, %1687 : vector<4x256xf32>
    %1689 = vector.extract_strided_slice %1622 {offsets = [0, 255], sizes = [6, 1], strides = [1, 1]} : vector<6x256xf32> to vector<6x1xf32>
    %1690 = vector.extract_strided_slice %1622 {offsets = [0, 0], sizes = [6, 255], strides = [1, 1]} : vector<6x256xf32> to vector<6x255xf32>
    %1691 = tpu.concatenate %1689, %1690 in 1 : vector<6x1xf32>, vector<6x255xf32> -> vector<6x256xf32>
    %c3_262 = arith.constant 3 : index
    %c0_263 = arith.constant 0 : index
    %c0_264 = arith.constant 0 : index
    %1692 = vector.load %arg2[%c3_262, %c0_263, %c0_264] : memref<9x1x256xf32, #tpu.memory_space<vmem>>, vector<1x1x256xf32>
    %1693 = vector.shape_cast %1692 : vector<1x1x256xf32> to vector<1x256xf32>
    %1694 = vector.broadcast %1693 : vector<1x256xf32> to vector<6x256xf32>
    %1695 = arith.mulf %1691, %1694 : vector<6x256xf32>
    %c84_265 = arith.constant 84 : index
    %1696 = memref.load %arg5[%c84_265] : memref<216xf32, #tpu.memory_space<smem>>
    %1697 = vector.extract_strided_slice %1695 {offsets = [0, 0], sizes = [4, 256], strides = [1, 1]} : vector<6x256xf32> to vector<4x256xf32>
    %1698 = vector.broadcast %1696 : f32 to vector<4x256xf32>
    %1699 = arith.mulf %1698, %1697 : vector<4x256xf32>
    %1700 = arith.addf %1666, %1699 : vector<4x256xf32>
    %c93_266 = arith.constant 93 : index
    %1701 = memref.load %arg5[%c93_266] : memref<216xf32, #tpu.memory_space<smem>>
    %1702 = vector.extract_strided_slice %1695 {offsets = [1, 0], sizes = [4, 256], strides = [1, 1]} : vector<6x256xf32> to vector<4x256xf32>
    %1703 = vector.broadcast %1701 : f32 to vector<4x256xf32>
    %1704 = arith.mulf %1703, %1702 : vector<4x256xf32>
    %1705 = arith.addf %1678, %1704 : vector<4x256xf32>
    %c102_267 = arith.constant 102 : index
    %1706 = memref.load %arg5[%c102_267] : memref<216xf32, #tpu.memory_space<smem>>
    %1707 = vector.extract_strided_slice %1695 {offsets = [2, 0], sizes = [4, 256], strides = [1, 1]} : vector<6x256xf32> to vector<4x256xf32>
    %1708 = vector.broadcast %1706 : f32 to vector<4x256xf32>
    %1709 = arith.mulf %1708, %1707 : vector<4x256xf32>
    %1710 = arith.addf %1683, %1709 : vector<4x256xf32>
    %c85_268 = arith.constant 85 : index
    %1711 = memref.load %arg5[%c85_268] : memref<216xf32, #tpu.memory_space<smem>>
    %1712 = vector.extract_strided_slice %1622 {offsets = [0, 0], sizes = [4, 256], strides = [1, 1]} : vector<6x256xf32> to vector<4x256xf32>
    %1713 = vector.broadcast %1711 : f32 to vector<4x256xf32>
    %1714 = arith.mulf %1713, %1712 : vector<4x256xf32>
    %1715 = arith.addf %1688, %1714 : vector<4x256xf32>
    %c94_269 = arith.constant 94 : index
    %1716 = memref.load %arg5[%c94_269] : memref<216xf32, #tpu.memory_space<smem>>
    %1717 = vector.extract_strided_slice %1622 {offsets = [1, 0], sizes = [4, 256], strides = [1, 1]} : vector<6x256xf32> to vector<4x256xf32>
    %1718 = vector.broadcast %1716 : f32 to vector<4x256xf32>
    %1719 = arith.mulf %1718, %1717 : vector<4x256xf32>
    %1720 = arith.addf %1700, %1719 : vector<4x256xf32>
    %c103_270 = arith.constant 103 : index
    %1721 = memref.load %arg5[%c103_270] : memref<216xf32, #tpu.memory_space<smem>>
    %1722 = vector.extract_strided_slice %1622 {offsets = [2, 0], sizes = [4, 256], strides = [1, 1]} : vector<6x256xf32> to vector<4x256xf32>
    %1723 = vector.broadcast %1721 : f32 to vector<4x256xf32>
    %1724 = arith.mulf %1723, %1722 : vector<4x256xf32>
    %1725 = arith.addf %1705, %1724 : vector<4x256xf32>
    %1726 = vector.extract_strided_slice %1622 {offsets = [0, 1], sizes = [6, 255], strides = [1, 1]} : vector<6x256xf32> to vector<6x255xf32>
    %1727 = vector.extract_strided_slice %1622 {offsets = [0, 0], sizes = [6, 1], strides = [1, 1]} : vector<6x256xf32> to vector<6x1xf32>
    %1728 = tpu.concatenate %1726, %1727 in 1 : vector<6x255xf32>, vector<6x1xf32> -> vector<6x256xf32>
    %c5_271 = arith.constant 5 : index
    %c0_272 = arith.constant 0 : index
    %c0_273 = arith.constant 0 : index
    %1729 = vector.load %arg2[%c5_271, %c0_272, %c0_273] : memref<9x1x256xf32, #tpu.memory_space<vmem>>, vector<1x1x256xf32>
    %1730 = vector.shape_cast %1729 : vector<1x1x256xf32> to vector<1x256xf32>
    %1731 = vector.broadcast %1730 : vector<1x256xf32> to vector<6x256xf32>
    %1732 = arith.mulf %1728, %1731 : vector<6x256xf32>
    %c86_274 = arith.constant 86 : index
    %1733 = memref.load %arg5[%c86_274] : memref<216xf32, #tpu.memory_space<smem>>
    %1734 = vector.extract_strided_slice %1732 {offsets = [0, 0], sizes = [4, 256], strides = [1, 1]} : vector<6x256xf32> to vector<4x256xf32>
    %1735 = vector.broadcast %1733 : f32 to vector<4x256xf32>
    %1736 = arith.mulf %1735, %1734 : vector<4x256xf32>
    %1737 = arith.addf %1710, %1736 : vector<4x256xf32>
    %c95_275 = arith.constant 95 : index
    %1738 = memref.load %arg5[%c95_275] : memref<216xf32, #tpu.memory_space<smem>>
    %1739 = vector.extract_strided_slice %1732 {offsets = [1, 0], sizes = [4, 256], strides = [1, 1]} : vector<6x256xf32> to vector<4x256xf32>
    %1740 = vector.broadcast %1738 : f32 to vector<4x256xf32>
    %1741 = arith.mulf %1740, %1739 : vector<4x256xf32>
    %1742 = arith.addf %1715, %1741 : vector<4x256xf32>
    %c104_276 = arith.constant 104 : index
    %1743 = memref.load %arg5[%c104_276] : memref<216xf32, #tpu.memory_space<smem>>
    %1744 = vector.extract_strided_slice %1732 {offsets = [2, 0], sizes = [4, 256], strides = [1, 1]} : vector<6x256xf32> to vector<4x256xf32>
    %1745 = vector.broadcast %1743 : f32 to vector<4x256xf32>
    %1746 = arith.mulf %1745, %1744 : vector<4x256xf32>
    %1747 = arith.addf %1720, %1746 : vector<4x256xf32>
    %1748 = vector.extract_strided_slice %1622 {offsets = [0, 15], sizes = [6, 241], strides = [1, 1]} : vector<6x256xf32> to vector<6x241xf32>
    %1749 = vector.extract_strided_slice %1622 {offsets = [0, 0], sizes = [6, 15], strides = [1, 1]} : vector<6x256xf32> to vector<6x15xf32>
    %1750 = tpu.concatenate %1748, %1749 in 1 : vector<6x241xf32>, vector<6x15xf32> -> vector<6x256xf32>
    %c6_277 = arith.constant 6 : index
    %c0_278 = arith.constant 0 : index
    %c0_279 = arith.constant 0 : index
    %1751 = vector.load %arg2[%c6_277, %c0_278, %c0_279] : memref<9x1x256xf32, #tpu.memory_space<vmem>>, vector<1x1x256xf32>
    %1752 = vector.shape_cast %1751 : vector<1x1x256xf32> to vector<1x256xf32>
    %1753 = vector.broadcast %1752 : vector<1x256xf32> to vector<6x256xf32>
    %1754 = arith.mulf %1750, %1753 : vector<6x256xf32>
    %c87_280 = arith.constant 87 : index
    %1755 = memref.load %arg5[%c87_280] : memref<216xf32, #tpu.memory_space<smem>>
    %1756 = vector.extract_strided_slice %1754 {offsets = [0, 0], sizes = [4, 256], strides = [1, 1]} : vector<6x256xf32> to vector<4x256xf32>
    %1757 = vector.broadcast %1755 : f32 to vector<4x256xf32>
    %1758 = arith.mulf %1757, %1756 : vector<4x256xf32>
    %1759 = arith.addf %1725, %1758 : vector<4x256xf32>
    %c96_281 = arith.constant 96 : index
    %1760 = memref.load %arg5[%c96_281] : memref<216xf32, #tpu.memory_space<smem>>
    %1761 = vector.extract_strided_slice %1754 {offsets = [1, 0], sizes = [4, 256], strides = [1, 1]} : vector<6x256xf32> to vector<4x256xf32>
    %1762 = vector.broadcast %1760 : f32 to vector<4x256xf32>
    %1763 = arith.mulf %1762, %1761 : vector<4x256xf32>
    %1764 = arith.addf %1737, %1763 : vector<4x256xf32>
    %c105_282 = arith.constant 105 : index
    %1765 = memref.load %arg5[%c105_282] : memref<216xf32, #tpu.memory_space<smem>>
    %1766 = vector.extract_strided_slice %1754 {offsets = [2, 0], sizes = [4, 256], strides = [1, 1]} : vector<6x256xf32> to vector<4x256xf32>
    %1767 = vector.broadcast %1765 : f32 to vector<4x256xf32>
    %1768 = arith.mulf %1767, %1766 : vector<4x256xf32>
    %1769 = arith.addf %1742, %1768 : vector<4x256xf32>
    %1770 = vector.extract_strided_slice %1622 {offsets = [0, 16], sizes = [6, 240], strides = [1, 1]} : vector<6x256xf32> to vector<6x240xf32>
    %1771 = vector.extract_strided_slice %1622 {offsets = [0, 0], sizes = [6, 16], strides = [1, 1]} : vector<6x256xf32> to vector<6x16xf32>
    %1772 = tpu.concatenate %1770, %1771 in 1 : vector<6x240xf32>, vector<6x16xf32> -> vector<6x256xf32>
    %c7_283 = arith.constant 7 : index
    %c0_284 = arith.constant 0 : index
    %c0_285 = arith.constant 0 : index
    %1773 = vector.load %arg2[%c7_283, %c0_284, %c0_285] : memref<9x1x256xf32, #tpu.memory_space<vmem>>, vector<1x1x256xf32>
    %1774 = vector.shape_cast %1773 : vector<1x1x256xf32> to vector<1x256xf32>
    %1775 = vector.broadcast %1774 : vector<1x256xf32> to vector<6x256xf32>
    %1776 = arith.mulf %1772, %1775 : vector<6x256xf32>
    %c88_286 = arith.constant 88 : index
    %1777 = memref.load %arg5[%c88_286] : memref<216xf32, #tpu.memory_space<smem>>
    %1778 = vector.extract_strided_slice %1776 {offsets = [0, 0], sizes = [4, 256], strides = [1, 1]} : vector<6x256xf32> to vector<4x256xf32>
    %1779 = vector.broadcast %1777 : f32 to vector<4x256xf32>
    %1780 = arith.mulf %1779, %1778 : vector<4x256xf32>
    %1781 = arith.addf %1747, %1780 : vector<4x256xf32>
    %c97_287 = arith.constant 97 : index
    %1782 = memref.load %arg5[%c97_287] : memref<216xf32, #tpu.memory_space<smem>>
    %1783 = vector.extract_strided_slice %1776 {offsets = [1, 0], sizes = [4, 256], strides = [1, 1]} : vector<6x256xf32> to vector<4x256xf32>
    %1784 = vector.broadcast %1782 : f32 to vector<4x256xf32>
    %1785 = arith.mulf %1784, %1783 : vector<4x256xf32>
    %1786 = arith.addf %1759, %1785 : vector<4x256xf32>
    %c106_288 = arith.constant 106 : index
    %1787 = memref.load %arg5[%c106_288] : memref<216xf32, #tpu.memory_space<smem>>
    %1788 = vector.extract_strided_slice %1776 {offsets = [2, 0], sizes = [4, 256], strides = [1, 1]} : vector<6x256xf32> to vector<4x256xf32>
    %1789 = vector.broadcast %1787 : f32 to vector<4x256xf32>
    %1790 = arith.mulf %1789, %1788 : vector<4x256xf32>
    %1791 = arith.addf %1764, %1790 : vector<4x256xf32>
    %1792 = vector.extract_strided_slice %1622 {offsets = [0, 17], sizes = [6, 239], strides = [1, 1]} : vector<6x256xf32> to vector<6x239xf32>
    %1793 = vector.extract_strided_slice %1622 {offsets = [0, 0], sizes = [6, 17], strides = [1, 1]} : vector<6x256xf32> to vector<6x17xf32>
    %1794 = tpu.concatenate %1792, %1793 in 1 : vector<6x239xf32>, vector<6x17xf32> -> vector<6x256xf32>
    %c8_289 = arith.constant 8 : index
    %c0_290 = arith.constant 0 : index
    %c0_291 = arith.constant 0 : index
    %1795 = vector.load %arg2[%c8_289, %c0_290, %c0_291] : memref<9x1x256xf32, #tpu.memory_space<vmem>>, vector<1x1x256xf32>
    %1796 = vector.shape_cast %1795 : vector<1x1x256xf32> to vector<1x256xf32>
    %1797 = vector.broadcast %1796 : vector<1x256xf32> to vector<6x256xf32>
    %1798 = arith.mulf %1794, %1797 : vector<6x256xf32>
    %c89_292 = arith.constant 89 : index
    %1799 = memref.load %arg5[%c89_292] : memref<216xf32, #tpu.memory_space<smem>>
    %1800 = vector.extract_strided_slice %1798 {offsets = [0, 0], sizes = [4, 256], strides = [1, 1]} : vector<6x256xf32> to vector<4x256xf32>
    %1801 = vector.broadcast %1799 : f32 to vector<4x256xf32>
    %1802 = arith.mulf %1801, %1800 : vector<4x256xf32>
    %1803 = arith.addf %1769, %1802 : vector<4x256xf32>
    %c98_293 = arith.constant 98 : index
    %1804 = memref.load %arg5[%c98_293] : memref<216xf32, #tpu.memory_space<smem>>
    %1805 = vector.extract_strided_slice %1798 {offsets = [1, 0], sizes = [4, 256], strides = [1, 1]} : vector<6x256xf32> to vector<4x256xf32>
    %1806 = vector.broadcast %1804 : f32 to vector<4x256xf32>
    %1807 = arith.mulf %1806, %1805 : vector<4x256xf32>
    %1808 = arith.addf %1781, %1807 : vector<4x256xf32>
    %c107_294 = arith.constant 107 : index
    %1809 = memref.load %arg5[%c107_294] : memref<216xf32, #tpu.memory_space<smem>>
    %1810 = vector.extract_strided_slice %1798 {offsets = [2, 0], sizes = [4, 256], strides = [1, 1]} : vector<6x256xf32> to vector<4x256xf32>
    %1811 = vector.broadcast %1809 : f32 to vector<4x256xf32>
    %1812 = arith.mulf %1811, %1810 : vector<4x256xf32>
    %1813 = arith.addf %1786, %1812 : vector<4x256xf32>
    %c4_295 = arith.constant 4 : index
    %c0_296 = arith.constant 0 : index
    %c0_297 = arith.constant 0 : index
    %1814 = vector.load %arg8[%c4_295, %c0_296, %c0_297] : memref<8x6x256xf32, #tpu.memory_space<vmem>>, vector<1x6x256xf32>
    %1815 = vector.shape_cast %1814 : vector<1x6x256xf32> to vector<6x256xf32>
    %1816 = vector.extract_strided_slice %1815 {offsets = [0, 239], sizes = [6, 17], strides = [1, 1]} : vector<6x256xf32> to vector<6x17xf32>
    %1817 = vector.extract_strided_slice %1815 {offsets = [0, 0], sizes = [6, 239], strides = [1, 1]} : vector<6x256xf32> to vector<6x239xf32>
    %1818 = tpu.concatenate %1816, %1817 in 1 : vector<6x17xf32>, vector<6x239xf32> -> vector<6x256xf32>
    %c0_298 = arith.constant 0 : index
    %c0_299 = arith.constant 0 : index
    %c0_300 = arith.constant 0 : index
    %1819 = vector.load %arg2[%c0_298, %c0_299, %c0_300] : memref<9x1x256xf32, #tpu.memory_space<vmem>>, vector<1x1x256xf32>
    %1820 = vector.shape_cast %1819 : vector<1x1x256xf32> to vector<1x256xf32>
    %1821 = vector.broadcast %1820 : vector<1x256xf32> to vector<6x256xf32>
    %1822 = arith.mulf %1818, %1821 : vector<6x256xf32>
    %c108_301 = arith.constant 108 : index
    %1823 = memref.load %arg5[%c108_301] : memref<216xf32, #tpu.memory_space<smem>>
    %1824 = vector.extract_strided_slice %1822 {offsets = [0, 0], sizes = [4, 256], strides = [1, 1]} : vector<6x256xf32> to vector<4x256xf32>
    %1825 = vector.broadcast %1823 : f32 to vector<4x256xf32>
    %1826 = arith.mulf %1825, %1824 : vector<4x256xf32>
    %1827 = arith.addf %1791, %1826 : vector<4x256xf32>
    %c117_302 = arith.constant 117 : index
    %1828 = memref.load %arg5[%c117_302] : memref<216xf32, #tpu.memory_space<smem>>
    %1829 = vector.extract_strided_slice %1822 {offsets = [1, 0], sizes = [4, 256], strides = [1, 1]} : vector<6x256xf32> to vector<4x256xf32>
    %1830 = vector.broadcast %1828 : f32 to vector<4x256xf32>
    %1831 = arith.mulf %1830, %1829 : vector<4x256xf32>
    %1832 = arith.addf %1803, %1831 : vector<4x256xf32>
    %c126_303 = arith.constant 126 : index
    %1833 = memref.load %arg5[%c126_303] : memref<216xf32, #tpu.memory_space<smem>>
    %1834 = vector.extract_strided_slice %1822 {offsets = [2, 0], sizes = [4, 256], strides = [1, 1]} : vector<6x256xf32> to vector<4x256xf32>
    %1835 = vector.broadcast %1833 : f32 to vector<4x256xf32>
    %1836 = arith.mulf %1835, %1834 : vector<4x256xf32>
    %1837 = arith.addf %1808, %1836 : vector<4x256xf32>
    %1838 = vector.extract_strided_slice %1815 {offsets = [0, 240], sizes = [6, 16], strides = [1, 1]} : vector<6x256xf32> to vector<6x16xf32>
    %1839 = vector.extract_strided_slice %1815 {offsets = [0, 0], sizes = [6, 240], strides = [1, 1]} : vector<6x256xf32> to vector<6x240xf32>
    %1840 = tpu.concatenate %1838, %1839 in 1 : vector<6x16xf32>, vector<6x240xf32> -> vector<6x256xf32>
    %c1_304 = arith.constant 1 : index
    %c0_305 = arith.constant 0 : index
    %c0_306 = arith.constant 0 : index
    %1841 = vector.load %arg2[%c1_304, %c0_305, %c0_306] : memref<9x1x256xf32, #tpu.memory_space<vmem>>, vector<1x1x256xf32>
    %1842 = vector.shape_cast %1841 : vector<1x1x256xf32> to vector<1x256xf32>
    %1843 = vector.broadcast %1842 : vector<1x256xf32> to vector<6x256xf32>
    %1844 = arith.mulf %1840, %1843 : vector<6x256xf32>
    %c109_307 = arith.constant 109 : index
    %1845 = memref.load %arg5[%c109_307] : memref<216xf32, #tpu.memory_space<smem>>
    %1846 = vector.extract_strided_slice %1844 {offsets = [0, 0], sizes = [4, 256], strides = [1, 1]} : vector<6x256xf32> to vector<4x256xf32>
    %1847 = vector.broadcast %1845 : f32 to vector<4x256xf32>
    %1848 = arith.mulf %1847, %1846 : vector<4x256xf32>
    %1849 = arith.addf %1813, %1848 : vector<4x256xf32>
    %c118_308 = arith.constant 118 : index
    %1850 = memref.load %arg5[%c118_308] : memref<216xf32, #tpu.memory_space<smem>>
    %1851 = vector.extract_strided_slice %1844 {offsets = [1, 0], sizes = [4, 256], strides = [1, 1]} : vector<6x256xf32> to vector<4x256xf32>
    %1852 = vector.broadcast %1850 : f32 to vector<4x256xf32>
    %1853 = arith.mulf %1852, %1851 : vector<4x256xf32>
    %1854 = arith.addf %1827, %1853 : vector<4x256xf32>
    %c127_309 = arith.constant 127 : index
    %1855 = memref.load %arg5[%c127_309] : memref<216xf32, #tpu.memory_space<smem>>
    %1856 = vector.extract_strided_slice %1844 {offsets = [2, 0], sizes = [4, 256], strides = [1, 1]} : vector<6x256xf32> to vector<4x256xf32>
    %1857 = vector.broadcast %1855 : f32 to vector<4x256xf32>
    %1858 = arith.mulf %1857, %1856 : vector<4x256xf32>
    %1859 = arith.addf %1832, %1858 : vector<4x256xf32>
    %1860 = vector.extract_strided_slice %1815 {offsets = [0, 241], sizes = [6, 15], strides = [1, 1]} : vector<6x256xf32> to vector<6x15xf32>
    %1861 = vector.extract_strided_slice %1815 {offsets = [0, 0], sizes = [6, 241], strides = [1, 1]} : vector<6x256xf32> to vector<6x241xf32>
    %1862 = tpu.concatenate %1860, %1861 in 1 : vector<6x15xf32>, vector<6x241xf32> -> vector<6x256xf32>
    %c2_310 = arith.constant 2 : index
    %c0_311 = arith.constant 0 : index
    %c0_312 = arith.constant 0 : index
    %1863 = vector.load %arg2[%c2_310, %c0_311, %c0_312] : memref<9x1x256xf32, #tpu.memory_space<vmem>>, vector<1x1x256xf32>
    %1864 = vector.shape_cast %1863 : vector<1x1x256xf32> to vector<1x256xf32>
    %1865 = vector.broadcast %1864 : vector<1x256xf32> to vector<6x256xf32>
    %1866 = arith.mulf %1862, %1865 : vector<6x256xf32>
    %c110_313 = arith.constant 110 : index
    %1867 = memref.load %arg5[%c110_313] : memref<216xf32, #tpu.memory_space<smem>>
    %1868 = vector.extract_strided_slice %1866 {offsets = [0, 0], sizes = [4, 256], strides = [1, 1]} : vector<6x256xf32> to vector<4x256xf32>
    %1869 = vector.broadcast %1867 : f32 to vector<4x256xf32>
    %1870 = arith.mulf %1869, %1868 : vector<4x256xf32>
    %1871 = arith.addf %1837, %1870 : vector<4x256xf32>
    %c119_314 = arith.constant 119 : index
    %1872 = memref.load %arg5[%c119_314] : memref<216xf32, #tpu.memory_space<smem>>
    %1873 = vector.extract_strided_slice %1866 {offsets = [1, 0], sizes = [4, 256], strides = [1, 1]} : vector<6x256xf32> to vector<4x256xf32>
    %1874 = vector.broadcast %1872 : f32 to vector<4x256xf32>
    %1875 = arith.mulf %1874, %1873 : vector<4x256xf32>
    %1876 = arith.addf %1849, %1875 : vector<4x256xf32>
    %c128_315 = arith.constant 128 : index
    %1877 = memref.load %arg5[%c128_315] : memref<216xf32, #tpu.memory_space<smem>>
    %1878 = vector.extract_strided_slice %1866 {offsets = [2, 0], sizes = [4, 256], strides = [1, 1]} : vector<6x256xf32> to vector<4x256xf32>
    %1879 = vector.broadcast %1877 : f32 to vector<4x256xf32>
    %1880 = arith.mulf %1879, %1878 : vector<4x256xf32>
    %1881 = arith.addf %1854, %1880 : vector<4x256xf32>
    %1882 = vector.extract_strided_slice %1815 {offsets = [0, 255], sizes = [6, 1], strides = [1, 1]} : vector<6x256xf32> to vector<6x1xf32>
    %1883 = vector.extract_strided_slice %1815 {offsets = [0, 0], sizes = [6, 255], strides = [1, 1]} : vector<6x256xf32> to vector<6x255xf32>
    %1884 = tpu.concatenate %1882, %1883 in 1 : vector<6x1xf32>, vector<6x255xf32> -> vector<6x256xf32>
    %c3_316 = arith.constant 3 : index
    %c0_317 = arith.constant 0 : index
    %c0_318 = arith.constant 0 : index
    %1885 = vector.load %arg2[%c3_316, %c0_317, %c0_318] : memref<9x1x256xf32, #tpu.memory_space<vmem>>, vector<1x1x256xf32>
    %1886 = vector.shape_cast %1885 : vector<1x1x256xf32> to vector<1x256xf32>
    %1887 = vector.broadcast %1886 : vector<1x256xf32> to vector<6x256xf32>
    %1888 = arith.mulf %1884, %1887 : vector<6x256xf32>
    %c111_319 = arith.constant 111 : index
    %1889 = memref.load %arg5[%c111_319] : memref<216xf32, #tpu.memory_space<smem>>
    %1890 = vector.extract_strided_slice %1888 {offsets = [0, 0], sizes = [4, 256], strides = [1, 1]} : vector<6x256xf32> to vector<4x256xf32>
    %1891 = vector.broadcast %1889 : f32 to vector<4x256xf32>
    %1892 = arith.mulf %1891, %1890 : vector<4x256xf32>
    %1893 = arith.addf %1859, %1892 : vector<4x256xf32>
    %c120_320 = arith.constant 120 : index
    %1894 = memref.load %arg5[%c120_320] : memref<216xf32, #tpu.memory_space<smem>>
    %1895 = vector.extract_strided_slice %1888 {offsets = [1, 0], sizes = [4, 256], strides = [1, 1]} : vector<6x256xf32> to vector<4x256xf32>
    %1896 = vector.broadcast %1894 : f32 to vector<4x256xf32>
    %1897 = arith.mulf %1896, %1895 : vector<4x256xf32>
    %1898 = arith.addf %1871, %1897 : vector<4x256xf32>
    %c129_321 = arith.constant 129 : index
    %1899 = memref.load %arg5[%c129_321] : memref<216xf32, #tpu.memory_space<smem>>
    %1900 = vector.extract_strided_slice %1888 {offsets = [2, 0], sizes = [4, 256], strides = [1, 1]} : vector<6x256xf32> to vector<4x256xf32>
    %1901 = vector.broadcast %1899 : f32 to vector<4x256xf32>
    %1902 = arith.mulf %1901, %1900 : vector<4x256xf32>
    %1903 = arith.addf %1876, %1902 : vector<4x256xf32>
    %c112_322 = arith.constant 112 : index
    %1904 = memref.load %arg5[%c112_322] : memref<216xf32, #tpu.memory_space<smem>>
    %1905 = vector.extract_strided_slice %1815 {offsets = [0, 0], sizes = [4, 256], strides = [1, 1]} : vector<6x256xf32> to vector<4x256xf32>
    %1906 = vector.broadcast %1904 : f32 to vector<4x256xf32>
    %1907 = arith.mulf %1906, %1905 : vector<4x256xf32>
    %1908 = arith.addf %1881, %1907 : vector<4x256xf32>
    %c121_323 = arith.constant 121 : index
    %1909 = memref.load %arg5[%c121_323] : memref<216xf32, #tpu.memory_space<smem>>
    %1910 = vector.extract_strided_slice %1815 {offsets = [1, 0], sizes = [4, 256], strides = [1, 1]} : vector<6x256xf32> to vector<4x256xf32>
    %1911 = vector.broadcast %1909 : f32 to vector<4x256xf32>
    %1912 = arith.mulf %1911, %1910 : vector<4x256xf32>
    %1913 = arith.addf %1893, %1912 : vector<4x256xf32>
    %c130_324 = arith.constant 130 : index
    %1914 = memref.load %arg5[%c130_324] : memref<216xf32, #tpu.memory_space<smem>>
    %1915 = vector.extract_strided_slice %1815 {offsets = [2, 0], sizes = [4, 256], strides = [1, 1]} : vector<6x256xf32> to vector<4x256xf32>
    %1916 = vector.broadcast %1914 : f32 to vector<4x256xf32>
    %1917 = arith.mulf %1916, %1915 : vector<4x256xf32>
    %1918 = arith.addf %1898, %1917 : vector<4x256xf32>
    %1919 = vector.extract_strided_slice %1815 {offsets = [0, 1], sizes = [6, 255], strides = [1, 1]} : vector<6x256xf32> to vector<6x255xf32>
    %1920 = vector.extract_strided_slice %1815 {offsets = [0, 0], sizes = [6, 1], strides = [1, 1]} : vector<6x256xf32> to vector<6x1xf32>
    %1921 = tpu.concatenate %1919, %1920 in 1 : vector<6x255xf32>, vector<6x1xf32> -> vector<6x256xf32>
    %c5_325 = arith.constant 5 : index
    %c0_326 = arith.constant 0 : index
    %c0_327 = arith.constant 0 : index
    %1922 = vector.load %arg2[%c5_325, %c0_326, %c0_327] : memref<9x1x256xf32, #tpu.memory_space<vmem>>, vector<1x1x256xf32>
    %1923 = vector.shape_cast %1922 : vector<1x1x256xf32> to vector<1x256xf32>
    %1924 = vector.broadcast %1923 : vector<1x256xf32> to vector<6x256xf32>
    %1925 = arith.mulf %1921, %1924 : vector<6x256xf32>
    %c113_328 = arith.constant 113 : index
    %1926 = memref.load %arg5[%c113_328] : memref<216xf32, #tpu.memory_space<smem>>
    %1927 = vector.extract_strided_slice %1925 {offsets = [0, 0], sizes = [4, 256], strides = [1, 1]} : vector<6x256xf32> to vector<4x256xf32>
    %1928 = vector.broadcast %1926 : f32 to vector<4x256xf32>
    %1929 = arith.mulf %1928, %1927 : vector<4x256xf32>
    %1930 = arith.addf %1903, %1929 : vector<4x256xf32>
    %c122_329 = arith.constant 122 : index
    %1931 = memref.load %arg5[%c122_329] : memref<216xf32, #tpu.memory_space<smem>>
    %1932 = vector.extract_strided_slice %1925 {offsets = [1, 0], sizes = [4, 256], strides = [1, 1]} : vector<6x256xf32> to vector<4x256xf32>
    %1933 = vector.broadcast %1931 : f32 to vector<4x256xf32>
    %1934 = arith.mulf %1933, %1932 : vector<4x256xf32>
    %1935 = arith.addf %1908, %1934 : vector<4x256xf32>
    %c131_330 = arith.constant 131 : index
    %1936 = memref.load %arg5[%c131_330] : memref<216xf32, #tpu.memory_space<smem>>
    %1937 = vector.extract_strided_slice %1925 {offsets = [2, 0], sizes = [4, 256], strides = [1, 1]} : vector<6x256xf32> to vector<4x256xf32>
    %1938 = vector.broadcast %1936 : f32 to vector<4x256xf32>
    %1939 = arith.mulf %1938, %1937 : vector<4x256xf32>
    %1940 = arith.addf %1913, %1939 : vector<4x256xf32>
    %1941 = vector.extract_strided_slice %1815 {offsets = [0, 15], sizes = [6, 241], strides = [1, 1]} : vector<6x256xf32> to vector<6x241xf32>
    %1942 = vector.extract_strided_slice %1815 {offsets = [0, 0], sizes = [6, 15], strides = [1, 1]} : vector<6x256xf32> to vector<6x15xf32>
    %1943 = tpu.concatenate %1941, %1942 in 1 : vector<6x241xf32>, vector<6x15xf32> -> vector<6x256xf32>
    %c6_331 = arith.constant 6 : index
    %c0_332 = arith.constant 0 : index
    %c0_333 = arith.constant 0 : index
    %1944 = vector.load %arg2[%c6_331, %c0_332, %c0_333] : memref<9x1x256xf32, #tpu.memory_space<vmem>>, vector<1x1x256xf32>
    %1945 = vector.shape_cast %1944 : vector<1x1x256xf32> to vector<1x256xf32>
    %1946 = vector.broadcast %1945 : vector<1x256xf32> to vector<6x256xf32>
    %1947 = arith.mulf %1943, %1946 : vector<6x256xf32>
    %c114_334 = arith.constant 114 : index
    %1948 = memref.load %arg5[%c114_334] : memref<216xf32, #tpu.memory_space<smem>>
    %1949 = vector.extract_strided_slice %1947 {offsets = [0, 0], sizes = [4, 256], strides = [1, 1]} : vector<6x256xf32> to vector<4x256xf32>
    %1950 = vector.broadcast %1948 : f32 to vector<4x256xf32>
    %1951 = arith.mulf %1950, %1949 : vector<4x256xf32>
    %1952 = arith.addf %1918, %1951 : vector<4x256xf32>
    %c123_335 = arith.constant 123 : index
    %1953 = memref.load %arg5[%c123_335] : memref<216xf32, #tpu.memory_space<smem>>
    %1954 = vector.extract_strided_slice %1947 {offsets = [1, 0], sizes = [4, 256], strides = [1, 1]} : vector<6x256xf32> to vector<4x256xf32>
    %1955 = vector.broadcast %1953 : f32 to vector<4x256xf32>
    %1956 = arith.mulf %1955, %1954 : vector<4x256xf32>
    %1957 = arith.addf %1930, %1956 : vector<4x256xf32>
    %c132_336 = arith.constant 132 : index
    %1958 = memref.load %arg5[%c132_336] : memref<216xf32, #tpu.memory_space<smem>>
    %1959 = vector.extract_strided_slice %1947 {offsets = [2, 0], sizes = [4, 256], strides = [1, 1]} : vector<6x256xf32> to vector<4x256xf32>
    %1960 = vector.broadcast %1958 : f32 to vector<4x256xf32>
    %1961 = arith.mulf %1960, %1959 : vector<4x256xf32>
    %1962 = arith.addf %1935, %1961 : vector<4x256xf32>
    %1963 = vector.extract_strided_slice %1815 {offsets = [0, 16], sizes = [6, 240], strides = [1, 1]} : vector<6x256xf32> to vector<6x240xf32>
    %1964 = vector.extract_strided_slice %1815 {offsets = [0, 0], sizes = [6, 16], strides = [1, 1]} : vector<6x256xf32> to vector<6x16xf32>
    %1965 = tpu.concatenate %1963, %1964 in 1 : vector<6x240xf32>, vector<6x16xf32> -> vector<6x256xf32>
    %c7_337 = arith.constant 7 : index
    %c0_338 = arith.constant 0 : index
    %c0_339 = arith.constant 0 : index
    %1966 = vector.load %arg2[%c7_337, %c0_338, %c0_339] : memref<9x1x256xf32, #tpu.memory_space<vmem>>, vector<1x1x256xf32>
    %1967 = vector.shape_cast %1966 : vector<1x1x256xf32> to vector<1x256xf32>
    %1968 = vector.broadcast %1967 : vector<1x256xf32> to vector<6x256xf32>
    %1969 = arith.mulf %1965, %1968 : vector<6x256xf32>
    %c115_340 = arith.constant 115 : index
    %1970 = memref.load %arg5[%c115_340] : memref<216xf32, #tpu.memory_space<smem>>
    %1971 = vector.extract_strided_slice %1969 {offsets = [0, 0], sizes = [4, 256], strides = [1, 1]} : vector<6x256xf32> to vector<4x256xf32>
    %1972 = vector.broadcast %1970 : f32 to vector<4x256xf32>
    %1973 = arith.mulf %1972, %1971 : vector<4x256xf32>
    %1974 = arith.addf %1940, %1973 : vector<4x256xf32>
    %c124_341 = arith.constant 124 : index
    %1975 = memref.load %arg5[%c124_341] : memref<216xf32, #tpu.memory_space<smem>>
    %1976 = vector.extract_strided_slice %1969 {offsets = [1, 0], sizes = [4, 256], strides = [1, 1]} : vector<6x256xf32> to vector<4x256xf32>
    %1977 = vector.broadcast %1975 : f32 to vector<4x256xf32>
    %1978 = arith.mulf %1977, %1976 : vector<4x256xf32>
    %1979 = arith.addf %1952, %1978 : vector<4x256xf32>
    %c133_342 = arith.constant 133 : index
    %1980 = memref.load %arg5[%c133_342] : memref<216xf32, #tpu.memory_space<smem>>
    %1981 = vector.extract_strided_slice %1969 {offsets = [2, 0], sizes = [4, 256], strides = [1, 1]} : vector<6x256xf32> to vector<4x256xf32>
    %1982 = vector.broadcast %1980 : f32 to vector<4x256xf32>
    %1983 = arith.mulf %1982, %1981 : vector<4x256xf32>
    %1984 = arith.addf %1957, %1983 : vector<4x256xf32>
    %1985 = vector.extract_strided_slice %1815 {offsets = [0, 17], sizes = [6, 239], strides = [1, 1]} : vector<6x256xf32> to vector<6x239xf32>
    %1986 = vector.extract_strided_slice %1815 {offsets = [0, 0], sizes = [6, 17], strides = [1, 1]} : vector<6x256xf32> to vector<6x17xf32>
    %1987 = tpu.concatenate %1985, %1986 in 1 : vector<6x239xf32>, vector<6x17xf32> -> vector<6x256xf32>
    %c8_343 = arith.constant 8 : index
    %c0_344 = arith.constant 0 : index
    %c0_345 = arith.constant 0 : index
    %1988 = vector.load %arg2[%c8_343, %c0_344, %c0_345] : memref<9x1x256xf32, #tpu.memory_space<vmem>>, vector<1x1x256xf32>
    %1989 = vector.shape_cast %1988 : vector<1x1x256xf32> to vector<1x256xf32>
    %1990 = vector.broadcast %1989 : vector<1x256xf32> to vector<6x256xf32>
    %1991 = arith.mulf %1987, %1990 : vector<6x256xf32>
    %c116_346 = arith.constant 116 : index
    %1992 = memref.load %arg5[%c116_346] : memref<216xf32, #tpu.memory_space<smem>>
    %1993 = vector.extract_strided_slice %1991 {offsets = [0, 0], sizes = [4, 256], strides = [1, 1]} : vector<6x256xf32> to vector<4x256xf32>
    %1994 = vector.broadcast %1992 : f32 to vector<4x256xf32>
    %1995 = arith.mulf %1994, %1993 : vector<4x256xf32>
    %1996 = arith.addf %1962, %1995 : vector<4x256xf32>
    %c125_347 = arith.constant 125 : index
    %1997 = memref.load %arg5[%c125_347] : memref<216xf32, #tpu.memory_space<smem>>
    %1998 = vector.extract_strided_slice %1991 {offsets = [1, 0], sizes = [4, 256], strides = [1, 1]} : vector<6x256xf32> to vector<4x256xf32>
    %1999 = vector.broadcast %1997 : f32 to vector<4x256xf32>
    %2000 = arith.mulf %1999, %1998 : vector<4x256xf32>
    %2001 = arith.addf %1974, %2000 : vector<4x256xf32>
    %c134_348 = arith.constant 134 : index
    %2002 = memref.load %arg5[%c134_348] : memref<216xf32, #tpu.memory_space<smem>>
    %2003 = vector.extract_strided_slice %1991 {offsets = [2, 0], sizes = [4, 256], strides = [1, 1]} : vector<6x256xf32> to vector<4x256xf32>
    %2004 = vector.broadcast %2002 : f32 to vector<4x256xf32>
    %2005 = arith.mulf %2004, %2003 : vector<4x256xf32>
    %2006 = arith.addf %1979, %2005 : vector<4x256xf32>
    %c5_349 = arith.constant 5 : index
    %c0_350 = arith.constant 0 : index
    %c0_351 = arith.constant 0 : index
    %2007 = vector.load %arg8[%c5_349, %c0_350, %c0_351] : memref<8x6x256xf32, #tpu.memory_space<vmem>>, vector<1x6x256xf32>
    %2008 = vector.shape_cast %2007 : vector<1x6x256xf32> to vector<6x256xf32>
    %2009 = vector.extract_strided_slice %2008 {offsets = [0, 239], sizes = [6, 17], strides = [1, 1]} : vector<6x256xf32> to vector<6x17xf32>
    %2010 = vector.extract_strided_slice %2008 {offsets = [0, 0], sizes = [6, 239], strides = [1, 1]} : vector<6x256xf32> to vector<6x239xf32>
    %2011 = tpu.concatenate %2009, %2010 in 1 : vector<6x17xf32>, vector<6x239xf32> -> vector<6x256xf32>
    %c0_352 = arith.constant 0 : index
    %c0_353 = arith.constant 0 : index
    %c0_354 = arith.constant 0 : index
    %2012 = vector.load %arg2[%c0_352, %c0_353, %c0_354] : memref<9x1x256xf32, #tpu.memory_space<vmem>>, vector<1x1x256xf32>
    %2013 = vector.shape_cast %2012 : vector<1x1x256xf32> to vector<1x256xf32>
    %2014 = vector.broadcast %2013 : vector<1x256xf32> to vector<6x256xf32>
    %2015 = arith.mulf %2011, %2014 : vector<6x256xf32>
    %c135_355 = arith.constant 135 : index
    %2016 = memref.load %arg5[%c135_355] : memref<216xf32, #tpu.memory_space<smem>>
    %2017 = vector.extract_strided_slice %2015 {offsets = [0, 0], sizes = [4, 256], strides = [1, 1]} : vector<6x256xf32> to vector<4x256xf32>
    %2018 = vector.broadcast %2016 : f32 to vector<4x256xf32>
    %2019 = arith.mulf %2018, %2017 : vector<4x256xf32>
    %2020 = arith.addf %1984, %2019 : vector<4x256xf32>
    %c144_356 = arith.constant 144 : index
    %2021 = memref.load %arg5[%c144_356] : memref<216xf32, #tpu.memory_space<smem>>
    %2022 = vector.extract_strided_slice %2015 {offsets = [1, 0], sizes = [4, 256], strides = [1, 1]} : vector<6x256xf32> to vector<4x256xf32>
    %2023 = vector.broadcast %2021 : f32 to vector<4x256xf32>
    %2024 = arith.mulf %2023, %2022 : vector<4x256xf32>
    %2025 = arith.addf %1996, %2024 : vector<4x256xf32>
    %c153_357 = arith.constant 153 : index
    %2026 = memref.load %arg5[%c153_357] : memref<216xf32, #tpu.memory_space<smem>>
    %2027 = vector.extract_strided_slice %2015 {offsets = [2, 0], sizes = [4, 256], strides = [1, 1]} : vector<6x256xf32> to vector<4x256xf32>
    %2028 = vector.broadcast %2026 : f32 to vector<4x256xf32>
    %2029 = arith.mulf %2028, %2027 : vector<4x256xf32>
    %2030 = arith.addf %2001, %2029 : vector<4x256xf32>
    %2031 = vector.extract_strided_slice %2008 {offsets = [0, 240], sizes = [6, 16], strides = [1, 1]} : vector<6x256xf32> to vector<6x16xf32>
    %2032 = vector.extract_strided_slice %2008 {offsets = [0, 0], sizes = [6, 240], strides = [1, 1]} : vector<6x256xf32> to vector<6x240xf32>
    %2033 = tpu.concatenate %2031, %2032 in 1 : vector<6x16xf32>, vector<6x240xf32> -> vector<6x256xf32>
    %c1_358 = arith.constant 1 : index
    %c0_359 = arith.constant 0 : index
    %c0_360 = arith.constant 0 : index
    %2034 = vector.load %arg2[%c1_358, %c0_359, %c0_360] : memref<9x1x256xf32, #tpu.memory_space<vmem>>, vector<1x1x256xf32>
    %2035 = vector.shape_cast %2034 : vector<1x1x256xf32> to vector<1x256xf32>
    %2036 = vector.broadcast %2035 : vector<1x256xf32> to vector<6x256xf32>
    %2037 = arith.mulf %2033, %2036 : vector<6x256xf32>
    %c136_361 = arith.constant 136 : index
    %2038 = memref.load %arg5[%c136_361] : memref<216xf32, #tpu.memory_space<smem>>
    %2039 = vector.extract_strided_slice %2037 {offsets = [0, 0], sizes = [4, 256], strides = [1, 1]} : vector<6x256xf32> to vector<4x256xf32>
    %2040 = vector.broadcast %2038 : f32 to vector<4x256xf32>
    %2041 = arith.mulf %2040, %2039 : vector<4x256xf32>
    %2042 = arith.addf %2006, %2041 : vector<4x256xf32>
    %c145_362 = arith.constant 145 : index
    %2043 = memref.load %arg5[%c145_362] : memref<216xf32, #tpu.memory_space<smem>>
    %2044 = vector.extract_strided_slice %2037 {offsets = [1, 0], sizes = [4, 256], strides = [1, 1]} : vector<6x256xf32> to vector<4x256xf32>
    %2045 = vector.broadcast %2043 : f32 to vector<4x256xf32>
    %2046 = arith.mulf %2045, %2044 : vector<4x256xf32>
    %2047 = arith.addf %2020, %2046 : vector<4x256xf32>
    %c154_363 = arith.constant 154 : index
    %2048 = memref.load %arg5[%c154_363] : memref<216xf32, #tpu.memory_space<smem>>
    %2049 = vector.extract_strided_slice %2037 {offsets = [2, 0], sizes = [4, 256], strides = [1, 1]} : vector<6x256xf32> to vector<4x256xf32>
    %2050 = vector.broadcast %2048 : f32 to vector<4x256xf32>
    %2051 = arith.mulf %2050, %2049 : vector<4x256xf32>
    %2052 = arith.addf %2025, %2051 : vector<4x256xf32>
    %2053 = vector.extract_strided_slice %2008 {offsets = [0, 241], sizes = [6, 15], strides = [1, 1]} : vector<6x256xf32> to vector<6x15xf32>
    %2054 = vector.extract_strided_slice %2008 {offsets = [0, 0], sizes = [6, 241], strides = [1, 1]} : vector<6x256xf32> to vector<6x241xf32>
    %2055 = tpu.concatenate %2053, %2054 in 1 : vector<6x15xf32>, vector<6x241xf32> -> vector<6x256xf32>
    %c2_364 = arith.constant 2 : index
    %c0_365 = arith.constant 0 : index
    %c0_366 = arith.constant 0 : index
    %2056 = vector.load %arg2[%c2_364, %c0_365, %c0_366] : memref<9x1x256xf32, #tpu.memory_space<vmem>>, vector<1x1x256xf32>
    %2057 = vector.shape_cast %2056 : vector<1x1x256xf32> to vector<1x256xf32>
    %2058 = vector.broadcast %2057 : vector<1x256xf32> to vector<6x256xf32>
    %2059 = arith.mulf %2055, %2058 : vector<6x256xf32>
    %c137_367 = arith.constant 137 : index
    %2060 = memref.load %arg5[%c137_367] : memref<216xf32, #tpu.memory_space<smem>>
    %2061 = vector.extract_strided_slice %2059 {offsets = [0, 0], sizes = [4, 256], strides = [1, 1]} : vector<6x256xf32> to vector<4x256xf32>
    %2062 = vector.broadcast %2060 : f32 to vector<4x256xf32>
    %2063 = arith.mulf %2062, %2061 : vector<4x256xf32>
    %2064 = arith.addf %2030, %2063 : vector<4x256xf32>
    %c146_368 = arith.constant 146 : index
    %2065 = memref.load %arg5[%c146_368] : memref<216xf32, #tpu.memory_space<smem>>
    %2066 = vector.extract_strided_slice %2059 {offsets = [1, 0], sizes = [4, 256], strides = [1, 1]} : vector<6x256xf32> to vector<4x256xf32>
    %2067 = vector.broadcast %2065 : f32 to vector<4x256xf32>
    %2068 = arith.mulf %2067, %2066 : vector<4x256xf32>
    %2069 = arith.addf %2042, %2068 : vector<4x256xf32>
    %c155_369 = arith.constant 155 : index
    %2070 = memref.load %arg5[%c155_369] : memref<216xf32, #tpu.memory_space<smem>>
    %2071 = vector.extract_strided_slice %2059 {offsets = [2, 0], sizes = [4, 256], strides = [1, 1]} : vector<6x256xf32> to vector<4x256xf32>
    %2072 = vector.broadcast %2070 : f32 to vector<4x256xf32>
    %2073 = arith.mulf %2072, %2071 : vector<4x256xf32>
    %2074 = arith.addf %2047, %2073 : vector<4x256xf32>
    %2075 = vector.extract_strided_slice %2008 {offsets = [0, 255], sizes = [6, 1], strides = [1, 1]} : vector<6x256xf32> to vector<6x1xf32>
    %2076 = vector.extract_strided_slice %2008 {offsets = [0, 0], sizes = [6, 255], strides = [1, 1]} : vector<6x256xf32> to vector<6x255xf32>
    %2077 = tpu.concatenate %2075, %2076 in 1 : vector<6x1xf32>, vector<6x255xf32> -> vector<6x256xf32>
    %c3_370 = arith.constant 3 : index
    %c0_371 = arith.constant 0 : index
    %c0_372 = arith.constant 0 : index
    %2078 = vector.load %arg2[%c3_370, %c0_371, %c0_372] : memref<9x1x256xf32, #tpu.memory_space<vmem>>, vector<1x1x256xf32>
    %2079 = vector.shape_cast %2078 : vector<1x1x256xf32> to vector<1x256xf32>
    %2080 = vector.broadcast %2079 : vector<1x256xf32> to vector<6x256xf32>
    %2081 = arith.mulf %2077, %2080 : vector<6x256xf32>
    %c138_373 = arith.constant 138 : index
    %2082 = memref.load %arg5[%c138_373] : memref<216xf32, #tpu.memory_space<smem>>
    %2083 = vector.extract_strided_slice %2081 {offsets = [0, 0], sizes = [4, 256], strides = [1, 1]} : vector<6x256xf32> to vector<4x256xf32>
    %2084 = vector.broadcast %2082 : f32 to vector<4x256xf32>
    %2085 = arith.mulf %2084, %2083 : vector<4x256xf32>
    %2086 = arith.addf %2052, %2085 : vector<4x256xf32>
    %c147_374 = arith.constant 147 : index
    %2087 = memref.load %arg5[%c147_374] : memref<216xf32, #tpu.memory_space<smem>>
    %2088 = vector.extract_strided_slice %2081 {offsets = [1, 0], sizes = [4, 256], strides = [1, 1]} : vector<6x256xf32> to vector<4x256xf32>
    %2089 = vector.broadcast %2087 : f32 to vector<4x256xf32>
    %2090 = arith.mulf %2089, %2088 : vector<4x256xf32>
    %2091 = arith.addf %2064, %2090 : vector<4x256xf32>
    %c156_375 = arith.constant 156 : index
    %2092 = memref.load %arg5[%c156_375] : memref<216xf32, #tpu.memory_space<smem>>
    %2093 = vector.extract_strided_slice %2081 {offsets = [2, 0], sizes = [4, 256], strides = [1, 1]} : vector<6x256xf32> to vector<4x256xf32>
    %2094 = vector.broadcast %2092 : f32 to vector<4x256xf32>
    %2095 = arith.mulf %2094, %2093 : vector<4x256xf32>
    %2096 = arith.addf %2069, %2095 : vector<4x256xf32>
    %c139_376 = arith.constant 139 : index
    %2097 = memref.load %arg5[%c139_376] : memref<216xf32, #tpu.memory_space<smem>>
    %2098 = vector.extract_strided_slice %2008 {offsets = [0, 0], sizes = [4, 256], strides = [1, 1]} : vector<6x256xf32> to vector<4x256xf32>
    %2099 = vector.broadcast %2097 : f32 to vector<4x256xf32>
    %2100 = arith.mulf %2099, %2098 : vector<4x256xf32>
    %2101 = arith.addf %2074, %2100 : vector<4x256xf32>
    %c148_377 = arith.constant 148 : index
    %2102 = memref.load %arg5[%c148_377] : memref<216xf32, #tpu.memory_space<smem>>
    %2103 = vector.extract_strided_slice %2008 {offsets = [1, 0], sizes = [4, 256], strides = [1, 1]} : vector<6x256xf32> to vector<4x256xf32>
    %2104 = vector.broadcast %2102 : f32 to vector<4x256xf32>
    %2105 = arith.mulf %2104, %2103 : vector<4x256xf32>
    %2106 = arith.addf %2086, %2105 : vector<4x256xf32>
    %c157_378 = arith.constant 157 : index
    %2107 = memref.load %arg5[%c157_378] : memref<216xf32, #tpu.memory_space<smem>>
    %2108 = vector.extract_strided_slice %2008 {offsets = [2, 0], sizes = [4, 256], strides = [1, 1]} : vector<6x256xf32> to vector<4x256xf32>
    %2109 = vector.broadcast %2107 : f32 to vector<4x256xf32>
    %2110 = arith.mulf %2109, %2108 : vector<4x256xf32>
    %2111 = arith.addf %2091, %2110 : vector<4x256xf32>
    %2112 = vector.extract_strided_slice %2008 {offsets = [0, 1], sizes = [6, 255], strides = [1, 1]} : vector<6x256xf32> to vector<6x255xf32>
    %2113 = vector.extract_strided_slice %2008 {offsets = [0, 0], sizes = [6, 1], strides = [1, 1]} : vector<6x256xf32> to vector<6x1xf32>
    %2114 = tpu.concatenate %2112, %2113 in 1 : vector<6x255xf32>, vector<6x1xf32> -> vector<6x256xf32>
    %c5_379 = arith.constant 5 : index
    %c0_380 = arith.constant 0 : index
    %c0_381 = arith.constant 0 : index
    %2115 = vector.load %arg2[%c5_379, %c0_380, %c0_381] : memref<9x1x256xf32, #tpu.memory_space<vmem>>, vector<1x1x256xf32>
    %2116 = vector.shape_cast %2115 : vector<1x1x256xf32> to vector<1x256xf32>
    %2117 = vector.broadcast %2116 : vector<1x256xf32> to vector<6x256xf32>
    %2118 = arith.mulf %2114, %2117 : vector<6x256xf32>
    %c140_382 = arith.constant 140 : index
    %2119 = memref.load %arg5[%c140_382] : memref<216xf32, #tpu.memory_space<smem>>
    %2120 = vector.extract_strided_slice %2118 {offsets = [0, 0], sizes = [4, 256], strides = [1, 1]} : vector<6x256xf32> to vector<4x256xf32>
    %2121 = vector.broadcast %2119 : f32 to vector<4x256xf32>
    %2122 = arith.mulf %2121, %2120 : vector<4x256xf32>
    %2123 = arith.addf %2096, %2122 : vector<4x256xf32>
    %c149_383 = arith.constant 149 : index
    %2124 = memref.load %arg5[%c149_383] : memref<216xf32, #tpu.memory_space<smem>>
    %2125 = vector.extract_strided_slice %2118 {offsets = [1, 0], sizes = [4, 256], strides = [1, 1]} : vector<6x256xf32> to vector<4x256xf32>
    %2126 = vector.broadcast %2124 : f32 to vector<4x256xf32>
    %2127 = arith.mulf %2126, %2125 : vector<4x256xf32>
    %2128 = arith.addf %2101, %2127 : vector<4x256xf32>
    %c158_384 = arith.constant 158 : index
    %2129 = memref.load %arg5[%c158_384] : memref<216xf32, #tpu.memory_space<smem>>
    %2130 = vector.extract_strided_slice %2118 {offsets = [2, 0], sizes = [4, 256], strides = [1, 1]} : vector<6x256xf32> to vector<4x256xf32>
    %2131 = vector.broadcast %2129 : f32 to vector<4x256xf32>
    %2132 = arith.mulf %2131, %2130 : vector<4x256xf32>
    %2133 = arith.addf %2106, %2132 : vector<4x256xf32>
    %2134 = vector.extract_strided_slice %2008 {offsets = [0, 15], sizes = [6, 241], strides = [1, 1]} : vector<6x256xf32> to vector<6x241xf32>
    %2135 = vector.extract_strided_slice %2008 {offsets = [0, 0], sizes = [6, 15], strides = [1, 1]} : vector<6x256xf32> to vector<6x15xf32>
    %2136 = tpu.concatenate %2134, %2135 in 1 : vector<6x241xf32>, vector<6x15xf32> -> vector<6x256xf32>
    %c6_385 = arith.constant 6 : index
    %c0_386 = arith.constant 0 : index
    %c0_387 = arith.constant 0 : index
    %2137 = vector.load %arg2[%c6_385, %c0_386, %c0_387] : memref<9x1x256xf32, #tpu.memory_space<vmem>>, vector<1x1x256xf32>
    %2138 = vector.shape_cast %2137 : vector<1x1x256xf32> to vector<1x256xf32>
    %2139 = vector.broadcast %2138 : vector<1x256xf32> to vector<6x256xf32>
    %2140 = arith.mulf %2136, %2139 : vector<6x256xf32>
    %c141_388 = arith.constant 141 : index
    %2141 = memref.load %arg5[%c141_388] : memref<216xf32, #tpu.memory_space<smem>>
    %2142 = vector.extract_strided_slice %2140 {offsets = [0, 0], sizes = [4, 256], strides = [1, 1]} : vector<6x256xf32> to vector<4x256xf32>
    %2143 = vector.broadcast %2141 : f32 to vector<4x256xf32>
    %2144 = arith.mulf %2143, %2142 : vector<4x256xf32>
    %2145 = arith.addf %2111, %2144 : vector<4x256xf32>
    %c150_389 = arith.constant 150 : index
    %2146 = memref.load %arg5[%c150_389] : memref<216xf32, #tpu.memory_space<smem>>
    %2147 = vector.extract_strided_slice %2140 {offsets = [1, 0], sizes = [4, 256], strides = [1, 1]} : vector<6x256xf32> to vector<4x256xf32>
    %2148 = vector.broadcast %2146 : f32 to vector<4x256xf32>
    %2149 = arith.mulf %2148, %2147 : vector<4x256xf32>
    %2150 = arith.addf %2123, %2149 : vector<4x256xf32>
    %c159_390 = arith.constant 159 : index
    %2151 = memref.load %arg5[%c159_390] : memref<216xf32, #tpu.memory_space<smem>>
    %2152 = vector.extract_strided_slice %2140 {offsets = [2, 0], sizes = [4, 256], strides = [1, 1]} : vector<6x256xf32> to vector<4x256xf32>
    %2153 = vector.broadcast %2151 : f32 to vector<4x256xf32>
    %2154 = arith.mulf %2153, %2152 : vector<4x256xf32>
    %2155 = arith.addf %2128, %2154 : vector<4x256xf32>
    %2156 = vector.extract_strided_slice %2008 {offsets = [0, 16], sizes = [6, 240], strides = [1, 1]} : vector<6x256xf32> to vector<6x240xf32>
    %2157 = vector.extract_strided_slice %2008 {offsets = [0, 0], sizes = [6, 16], strides = [1, 1]} : vector<6x256xf32> to vector<6x16xf32>
    %2158 = tpu.concatenate %2156, %2157 in 1 : vector<6x240xf32>, vector<6x16xf32> -> vector<6x256xf32>
    %c7_391 = arith.constant 7 : index
    %c0_392 = arith.constant 0 : index
    %c0_393 = arith.constant 0 : index
    %2159 = vector.load %arg2[%c7_391, %c0_392, %c0_393] : memref<9x1x256xf32, #tpu.memory_space<vmem>>, vector<1x1x256xf32>
    %2160 = vector.shape_cast %2159 : vector<1x1x256xf32> to vector<1x256xf32>
    %2161 = vector.broadcast %2160 : vector<1x256xf32> to vector<6x256xf32>
    %2162 = arith.mulf %2158, %2161 : vector<6x256xf32>
    %c142_394 = arith.constant 142 : index
    %2163 = memref.load %arg5[%c142_394] : memref<216xf32, #tpu.memory_space<smem>>
    %2164 = vector.extract_strided_slice %2162 {offsets = [0, 0], sizes = [4, 256], strides = [1, 1]} : vector<6x256xf32> to vector<4x256xf32>
    %2165 = vector.broadcast %2163 : f32 to vector<4x256xf32>
    %2166 = arith.mulf %2165, %2164 : vector<4x256xf32>
    %2167 = arith.addf %2133, %2166 : vector<4x256xf32>
    %c151_395 = arith.constant 151 : index
    %2168 = memref.load %arg5[%c151_395] : memref<216xf32, #tpu.memory_space<smem>>
    %2169 = vector.extract_strided_slice %2162 {offsets = [1, 0], sizes = [4, 256], strides = [1, 1]} : vector<6x256xf32> to vector<4x256xf32>
    %2170 = vector.broadcast %2168 : f32 to vector<4x256xf32>
    %2171 = arith.mulf %2170, %2169 : vector<4x256xf32>
    %2172 = arith.addf %2145, %2171 : vector<4x256xf32>
    %c160_396 = arith.constant 160 : index
    %2173 = memref.load %arg5[%c160_396] : memref<216xf32, #tpu.memory_space<smem>>
    %2174 = vector.extract_strided_slice %2162 {offsets = [2, 0], sizes = [4, 256], strides = [1, 1]} : vector<6x256xf32> to vector<4x256xf32>
    %2175 = vector.broadcast %2173 : f32 to vector<4x256xf32>
    %2176 = arith.mulf %2175, %2174 : vector<4x256xf32>
    %2177 = arith.addf %2150, %2176 : vector<4x256xf32>
    %2178 = vector.extract_strided_slice %2008 {offsets = [0, 17], sizes = [6, 239], strides = [1, 1]} : vector<6x256xf32> to vector<6x239xf32>
    %2179 = vector.extract_strided_slice %2008 {offsets = [0, 0], sizes = [6, 17], strides = [1, 1]} : vector<6x256xf32> to vector<6x17xf32>
    %2180 = tpu.concatenate %2178, %2179 in 1 : vector<6x239xf32>, vector<6x17xf32> -> vector<6x256xf32>
    %c8_397 = arith.constant 8 : index
    %c0_398 = arith.constant 0 : index
    %c0_399 = arith.constant 0 : index
    %2181 = vector.load %arg2[%c8_397, %c0_398, %c0_399] : memref<9x1x256xf32, #tpu.memory_space<vmem>>, vector<1x1x256xf32>
    %2182 = vector.shape_cast %2181 : vector<1x1x256xf32> to vector<1x256xf32>
    %2183 = vector.broadcast %2182 : vector<1x256xf32> to vector<6x256xf32>
    %2184 = arith.mulf %2180, %2183 : vector<6x256xf32>
    %c143_400 = arith.constant 143 : index
    %2185 = memref.load %arg5[%c143_400] : memref<216xf32, #tpu.memory_space<smem>>
    %2186 = vector.extract_strided_slice %2184 {offsets = [0, 0], sizes = [4, 256], strides = [1, 1]} : vector<6x256xf32> to vector<4x256xf32>
    %2187 = vector.broadcast %2185 : f32 to vector<4x256xf32>
    %2188 = arith.mulf %2187, %2186 : vector<4x256xf32>
    %2189 = arith.addf %2155, %2188 : vector<4x256xf32>
    %c152_401 = arith.constant 152 : index
    %2190 = memref.load %arg5[%c152_401] : memref<216xf32, #tpu.memory_space<smem>>
    %2191 = vector.extract_strided_slice %2184 {offsets = [1, 0], sizes = [4, 256], strides = [1, 1]} : vector<6x256xf32> to vector<4x256xf32>
    %2192 = vector.broadcast %2190 : f32 to vector<4x256xf32>
    %2193 = arith.mulf %2192, %2191 : vector<4x256xf32>
    %2194 = arith.addf %2167, %2193 : vector<4x256xf32>
    %c161_402 = arith.constant 161 : index
    %2195 = memref.load %arg5[%c161_402] : memref<216xf32, #tpu.memory_space<smem>>
    %2196 = vector.extract_strided_slice %2184 {offsets = [2, 0], sizes = [4, 256], strides = [1, 1]} : vector<6x256xf32> to vector<4x256xf32>
    %2197 = vector.broadcast %2195 : f32 to vector<4x256xf32>
    %2198 = arith.mulf %2197, %2196 : vector<4x256xf32>
    %2199 = arith.addf %2172, %2198 : vector<4x256xf32>
    %c6_403 = arith.constant 6 : index
    %c0_404 = arith.constant 0 : index
    %c0_405 = arith.constant 0 : index
    %2200 = vector.load %arg8[%c6_403, %c0_404, %c0_405] : memref<8x6x256xf32, #tpu.memory_space<vmem>>, vector<1x6x256xf32>
    %2201 = vector.shape_cast %2200 : vector<1x6x256xf32> to vector<6x256xf32>
    %2202 = vector.extract_strided_slice %2201 {offsets = [0, 239], sizes = [6, 17], strides = [1, 1]} : vector<6x256xf32> to vector<6x17xf32>
    %2203 = vector.extract_strided_slice %2201 {offsets = [0, 0], sizes = [6, 239], strides = [1, 1]} : vector<6x256xf32> to vector<6x239xf32>
    %2204 = tpu.concatenate %2202, %2203 in 1 : vector<6x17xf32>, vector<6x239xf32> -> vector<6x256xf32>
    %c0_406 = arith.constant 0 : index
    %c0_407 = arith.constant 0 : index
    %c0_408 = arith.constant 0 : index
    %2205 = vector.load %arg2[%c0_406, %c0_407, %c0_408] : memref<9x1x256xf32, #tpu.memory_space<vmem>>, vector<1x1x256xf32>
    %2206 = vector.shape_cast %2205 : vector<1x1x256xf32> to vector<1x256xf32>
    %2207 = vector.broadcast %2206 : vector<1x256xf32> to vector<6x256xf32>
    %2208 = arith.mulf %2204, %2207 : vector<6x256xf32>
    %c162_409 = arith.constant 162 : index
    %2209 = memref.load %arg5[%c162_409] : memref<216xf32, #tpu.memory_space<smem>>
    %2210 = vector.extract_strided_slice %2208 {offsets = [0, 0], sizes = [4, 256], strides = [1, 1]} : vector<6x256xf32> to vector<4x256xf32>
    %2211 = vector.broadcast %2209 : f32 to vector<4x256xf32>
    %2212 = arith.mulf %2211, %2210 : vector<4x256xf32>
    %2213 = arith.addf %2177, %2212 : vector<4x256xf32>
    %c171_410 = arith.constant 171 : index
    %2214 = memref.load %arg5[%c171_410] : memref<216xf32, #tpu.memory_space<smem>>
    %2215 = vector.extract_strided_slice %2208 {offsets = [1, 0], sizes = [4, 256], strides = [1, 1]} : vector<6x256xf32> to vector<4x256xf32>
    %2216 = vector.broadcast %2214 : f32 to vector<4x256xf32>
    %2217 = arith.mulf %2216, %2215 : vector<4x256xf32>
    %2218 = arith.addf %2189, %2217 : vector<4x256xf32>
    %c180_411 = arith.constant 180 : index
    %2219 = memref.load %arg5[%c180_411] : memref<216xf32, #tpu.memory_space<smem>>
    %2220 = vector.extract_strided_slice %2208 {offsets = [2, 0], sizes = [4, 256], strides = [1, 1]} : vector<6x256xf32> to vector<4x256xf32>
    %2221 = vector.broadcast %2219 : f32 to vector<4x256xf32>
    %2222 = arith.mulf %2221, %2220 : vector<4x256xf32>
    %2223 = arith.addf %2194, %2222 : vector<4x256xf32>
    %2224 = vector.extract_strided_slice %2201 {offsets = [0, 240], sizes = [6, 16], strides = [1, 1]} : vector<6x256xf32> to vector<6x16xf32>
    %2225 = vector.extract_strided_slice %2201 {offsets = [0, 0], sizes = [6, 240], strides = [1, 1]} : vector<6x256xf32> to vector<6x240xf32>
    %2226 = tpu.concatenate %2224, %2225 in 1 : vector<6x16xf32>, vector<6x240xf32> -> vector<6x256xf32>
    %c1_412 = arith.constant 1 : index
    %c0_413 = arith.constant 0 : index
    %c0_414 = arith.constant 0 : index
    %2227 = vector.load %arg2[%c1_412, %c0_413, %c0_414] : memref<9x1x256xf32, #tpu.memory_space<vmem>>, vector<1x1x256xf32>
    %2228 = vector.shape_cast %2227 : vector<1x1x256xf32> to vector<1x256xf32>
    %2229 = vector.broadcast %2228 : vector<1x256xf32> to vector<6x256xf32>
    %2230 = arith.mulf %2226, %2229 : vector<6x256xf32>
    %c163_415 = arith.constant 163 : index
    %2231 = memref.load %arg5[%c163_415] : memref<216xf32, #tpu.memory_space<smem>>
    %2232 = vector.extract_strided_slice %2230 {offsets = [0, 0], sizes = [4, 256], strides = [1, 1]} : vector<6x256xf32> to vector<4x256xf32>
    %2233 = vector.broadcast %2231 : f32 to vector<4x256xf32>
    %2234 = arith.mulf %2233, %2232 : vector<4x256xf32>
    %2235 = arith.addf %2199, %2234 : vector<4x256xf32>
    %c172_416 = arith.constant 172 : index
    %2236 = memref.load %arg5[%c172_416] : memref<216xf32, #tpu.memory_space<smem>>
    %2237 = vector.extract_strided_slice %2230 {offsets = [1, 0], sizes = [4, 256], strides = [1, 1]} : vector<6x256xf32> to vector<4x256xf32>
    %2238 = vector.broadcast %2236 : f32 to vector<4x256xf32>
    %2239 = arith.mulf %2238, %2237 : vector<4x256xf32>
    %2240 = arith.addf %2213, %2239 : vector<4x256xf32>
    %c181_417 = arith.constant 181 : index
    %2241 = memref.load %arg5[%c181_417] : memref<216xf32, #tpu.memory_space<smem>>
    %2242 = vector.extract_strided_slice %2230 {offsets = [2, 0], sizes = [4, 256], strides = [1, 1]} : vector<6x256xf32> to vector<4x256xf32>
    %2243 = vector.broadcast %2241 : f32 to vector<4x256xf32>
    %2244 = arith.mulf %2243, %2242 : vector<4x256xf32>
    %2245 = arith.addf %2218, %2244 : vector<4x256xf32>
    %2246 = vector.extract_strided_slice %2201 {offsets = [0, 241], sizes = [6, 15], strides = [1, 1]} : vector<6x256xf32> to vector<6x15xf32>
    %2247 = vector.extract_strided_slice %2201 {offsets = [0, 0], sizes = [6, 241], strides = [1, 1]} : vector<6x256xf32> to vector<6x241xf32>
    %2248 = tpu.concatenate %2246, %2247 in 1 : vector<6x15xf32>, vector<6x241xf32> -> vector<6x256xf32>
    %c2_418 = arith.constant 2 : index
    %c0_419 = arith.constant 0 : index
    %c0_420 = arith.constant 0 : index
    %2249 = vector.load %arg2[%c2_418, %c0_419, %c0_420] : memref<9x1x256xf32, #tpu.memory_space<vmem>>, vector<1x1x256xf32>
    %2250 = vector.shape_cast %2249 : vector<1x1x256xf32> to vector<1x256xf32>
    %2251 = vector.broadcast %2250 : vector<1x256xf32> to vector<6x256xf32>
    %2252 = arith.mulf %2248, %2251 : vector<6x256xf32>
    %c164_421 = arith.constant 164 : index
    %2253 = memref.load %arg5[%c164_421] : memref<216xf32, #tpu.memory_space<smem>>
    %2254 = vector.extract_strided_slice %2252 {offsets = [0, 0], sizes = [4, 256], strides = [1, 1]} : vector<6x256xf32> to vector<4x256xf32>
    %2255 = vector.broadcast %2253 : f32 to vector<4x256xf32>
    %2256 = arith.mulf %2255, %2254 : vector<4x256xf32>
    %2257 = arith.addf %2223, %2256 : vector<4x256xf32>
    %c173_422 = arith.constant 173 : index
    %2258 = memref.load %arg5[%c173_422] : memref<216xf32, #tpu.memory_space<smem>>
    %2259 = vector.extract_strided_slice %2252 {offsets = [1, 0], sizes = [4, 256], strides = [1, 1]} : vector<6x256xf32> to vector<4x256xf32>
    %2260 = vector.broadcast %2258 : f32 to vector<4x256xf32>
    %2261 = arith.mulf %2260, %2259 : vector<4x256xf32>
    %2262 = arith.addf %2235, %2261 : vector<4x256xf32>
    %c182_423 = arith.constant 182 : index
    %2263 = memref.load %arg5[%c182_423] : memref<216xf32, #tpu.memory_space<smem>>
    %2264 = vector.extract_strided_slice %2252 {offsets = [2, 0], sizes = [4, 256], strides = [1, 1]} : vector<6x256xf32> to vector<4x256xf32>
    %2265 = vector.broadcast %2263 : f32 to vector<4x256xf32>
    %2266 = arith.mulf %2265, %2264 : vector<4x256xf32>
    %2267 = arith.addf %2240, %2266 : vector<4x256xf32>
    %2268 = vector.extract_strided_slice %2201 {offsets = [0, 255], sizes = [6, 1], strides = [1, 1]} : vector<6x256xf32> to vector<6x1xf32>
    %2269 = vector.extract_strided_slice %2201 {offsets = [0, 0], sizes = [6, 255], strides = [1, 1]} : vector<6x256xf32> to vector<6x255xf32>
    %2270 = tpu.concatenate %2268, %2269 in 1 : vector<6x1xf32>, vector<6x255xf32> -> vector<6x256xf32>
    %c3_424 = arith.constant 3 : index
    %c0_425 = arith.constant 0 : index
    %c0_426 = arith.constant 0 : index
    %2271 = vector.load %arg2[%c3_424, %c0_425, %c0_426] : memref<9x1x256xf32, #tpu.memory_space<vmem>>, vector<1x1x256xf32>
    %2272 = vector.shape_cast %2271 : vector<1x1x256xf32> to vector<1x256xf32>
    %2273 = vector.broadcast %2272 : vector<1x256xf32> to vector<6x256xf32>
    %2274 = arith.mulf %2270, %2273 : vector<6x256xf32>
    %c165_427 = arith.constant 165 : index
    %2275 = memref.load %arg5[%c165_427] : memref<216xf32, #tpu.memory_space<smem>>
    %2276 = vector.extract_strided_slice %2274 {offsets = [0, 0], sizes = [4, 256], strides = [1, 1]} : vector<6x256xf32> to vector<4x256xf32>
    %2277 = vector.broadcast %2275 : f32 to vector<4x256xf32>
    %2278 = arith.mulf %2277, %2276 : vector<4x256xf32>
    %2279 = arith.addf %2245, %2278 : vector<4x256xf32>
    %c174_428 = arith.constant 174 : index
    %2280 = memref.load %arg5[%c174_428] : memref<216xf32, #tpu.memory_space<smem>>
    %2281 = vector.extract_strided_slice %2274 {offsets = [1, 0], sizes = [4, 256], strides = [1, 1]} : vector<6x256xf32> to vector<4x256xf32>
    %2282 = vector.broadcast %2280 : f32 to vector<4x256xf32>
    %2283 = arith.mulf %2282, %2281 : vector<4x256xf32>
    %2284 = arith.addf %2257, %2283 : vector<4x256xf32>
    %c183_429 = arith.constant 183 : index
    %2285 = memref.load %arg5[%c183_429] : memref<216xf32, #tpu.memory_space<smem>>
    %2286 = vector.extract_strided_slice %2274 {offsets = [2, 0], sizes = [4, 256], strides = [1, 1]} : vector<6x256xf32> to vector<4x256xf32>
    %2287 = vector.broadcast %2285 : f32 to vector<4x256xf32>
    %2288 = arith.mulf %2287, %2286 : vector<4x256xf32>
    %2289 = arith.addf %2262, %2288 : vector<4x256xf32>
    %c166_430 = arith.constant 166 : index
    %2290 = memref.load %arg5[%c166_430] : memref<216xf32, #tpu.memory_space<smem>>
    %2291 = vector.extract_strided_slice %2201 {offsets = [0, 0], sizes = [4, 256], strides = [1, 1]} : vector<6x256xf32> to vector<4x256xf32>
    %2292 = vector.broadcast %2290 : f32 to vector<4x256xf32>
    %2293 = arith.mulf %2292, %2291 : vector<4x256xf32>
    %2294 = arith.addf %2267, %2293 : vector<4x256xf32>
    %c175_431 = arith.constant 175 : index
    %2295 = memref.load %arg5[%c175_431] : memref<216xf32, #tpu.memory_space<smem>>
    %2296 = vector.extract_strided_slice %2201 {offsets = [1, 0], sizes = [4, 256], strides = [1, 1]} : vector<6x256xf32> to vector<4x256xf32>
    %2297 = vector.broadcast %2295 : f32 to vector<4x256xf32>
    %2298 = arith.mulf %2297, %2296 : vector<4x256xf32>
    %2299 = arith.addf %2279, %2298 : vector<4x256xf32>
    %c184_432 = arith.constant 184 : index
    %2300 = memref.load %arg5[%c184_432] : memref<216xf32, #tpu.memory_space<smem>>
    %2301 = vector.extract_strided_slice %2201 {offsets = [2, 0], sizes = [4, 256], strides = [1, 1]} : vector<6x256xf32> to vector<4x256xf32>
    %2302 = vector.broadcast %2300 : f32 to vector<4x256xf32>
    %2303 = arith.mulf %2302, %2301 : vector<4x256xf32>
    %2304 = arith.addf %2284, %2303 : vector<4x256xf32>
    %2305 = vector.extract_strided_slice %2201 {offsets = [0, 1], sizes = [6, 255], strides = [1, 1]} : vector<6x256xf32> to vector<6x255xf32>
    %2306 = vector.extract_strided_slice %2201 {offsets = [0, 0], sizes = [6, 1], strides = [1, 1]} : vector<6x256xf32> to vector<6x1xf32>
    %2307 = tpu.concatenate %2305, %2306 in 1 : vector<6x255xf32>, vector<6x1xf32> -> vector<6x256xf32>
    %c5_433 = arith.constant 5 : index
    %c0_434 = arith.constant 0 : index
    %c0_435 = arith.constant 0 : index
    %2308 = vector.load %arg2[%c5_433, %c0_434, %c0_435] : memref<9x1x256xf32, #tpu.memory_space<vmem>>, vector<1x1x256xf32>
    %2309 = vector.shape_cast %2308 : vector<1x1x256xf32> to vector<1x256xf32>
    %2310 = vector.broadcast %2309 : vector<1x256xf32> to vector<6x256xf32>
    %2311 = arith.mulf %2307, %2310 : vector<6x256xf32>
    %c167_436 = arith.constant 167 : index
    %2312 = memref.load %arg5[%c167_436] : memref<216xf32, #tpu.memory_space<smem>>
    %2313 = vector.extract_strided_slice %2311 {offsets = [0, 0], sizes = [4, 256], strides = [1, 1]} : vector<6x256xf32> to vector<4x256xf32>
    %2314 = vector.broadcast %2312 : f32 to vector<4x256xf32>
    %2315 = arith.mulf %2314, %2313 : vector<4x256xf32>
    %2316 = arith.addf %2289, %2315 : vector<4x256xf32>
    %c176_437 = arith.constant 176 : index
    %2317 = memref.load %arg5[%c176_437] : memref<216xf32, #tpu.memory_space<smem>>
    %2318 = vector.extract_strided_slice %2311 {offsets = [1, 0], sizes = [4, 256], strides = [1, 1]} : vector<6x256xf32> to vector<4x256xf32>
    %2319 = vector.broadcast %2317 : f32 to vector<4x256xf32>
    %2320 = arith.mulf %2319, %2318 : vector<4x256xf32>
    %2321 = arith.addf %2294, %2320 : vector<4x256xf32>
    %c185_438 = arith.constant 185 : index
    %2322 = memref.load %arg5[%c185_438] : memref<216xf32, #tpu.memory_space<smem>>
    %2323 = vector.extract_strided_slice %2311 {offsets = [2, 0], sizes = [4, 256], strides = [1, 1]} : vector<6x256xf32> to vector<4x256xf32>
    %2324 = vector.broadcast %2322 : f32 to vector<4x256xf32>
    %2325 = arith.mulf %2324, %2323 : vector<4x256xf32>
    %2326 = arith.addf %2299, %2325 : vector<4x256xf32>
    %2327 = vector.extract_strided_slice %2201 {offsets = [0, 15], sizes = [6, 241], strides = [1, 1]} : vector<6x256xf32> to vector<6x241xf32>
    %2328 = vector.extract_strided_slice %2201 {offsets = [0, 0], sizes = [6, 15], strides = [1, 1]} : vector<6x256xf32> to vector<6x15xf32>
    %2329 = tpu.concatenate %2327, %2328 in 1 : vector<6x241xf32>, vector<6x15xf32> -> vector<6x256xf32>
    %c6_439 = arith.constant 6 : index
    %c0_440 = arith.constant 0 : index
    %c0_441 = arith.constant 0 : index
    %2330 = vector.load %arg2[%c6_439, %c0_440, %c0_441] : memref<9x1x256xf32, #tpu.memory_space<vmem>>, vector<1x1x256xf32>
    %2331 = vector.shape_cast %2330 : vector<1x1x256xf32> to vector<1x256xf32>
    %2332 = vector.broadcast %2331 : vector<1x256xf32> to vector<6x256xf32>
    %2333 = arith.mulf %2329, %2332 : vector<6x256xf32>
    %c168_442 = arith.constant 168 : index
    %2334 = memref.load %arg5[%c168_442] : memref<216xf32, #tpu.memory_space<smem>>
    %2335 = vector.extract_strided_slice %2333 {offsets = [0, 0], sizes = [4, 256], strides = [1, 1]} : vector<6x256xf32> to vector<4x256xf32>
    %2336 = vector.broadcast %2334 : f32 to vector<4x256xf32>
    %2337 = arith.mulf %2336, %2335 : vector<4x256xf32>
    %2338 = arith.addf %2304, %2337 : vector<4x256xf32>
    %c177_443 = arith.constant 177 : index
    %2339 = memref.load %arg5[%c177_443] : memref<216xf32, #tpu.memory_space<smem>>
    %2340 = vector.extract_strided_slice %2333 {offsets = [1, 0], sizes = [4, 256], strides = [1, 1]} : vector<6x256xf32> to vector<4x256xf32>
    %2341 = vector.broadcast %2339 : f32 to vector<4x256xf32>
    %2342 = arith.mulf %2341, %2340 : vector<4x256xf32>
    %2343 = arith.addf %2316, %2342 : vector<4x256xf32>
    %c186_444 = arith.constant 186 : index
    %2344 = memref.load %arg5[%c186_444] : memref<216xf32, #tpu.memory_space<smem>>
    %2345 = vector.extract_strided_slice %2333 {offsets = [2, 0], sizes = [4, 256], strides = [1, 1]} : vector<6x256xf32> to vector<4x256xf32>
    %2346 = vector.broadcast %2344 : f32 to vector<4x256xf32>
    %2347 = arith.mulf %2346, %2345 : vector<4x256xf32>
    %2348 = arith.addf %2321, %2347 : vector<4x256xf32>
    %2349 = vector.extract_strided_slice %2201 {offsets = [0, 16], sizes = [6, 240], strides = [1, 1]} : vector<6x256xf32> to vector<6x240xf32>
    %2350 = vector.extract_strided_slice %2201 {offsets = [0, 0], sizes = [6, 16], strides = [1, 1]} : vector<6x256xf32> to vector<6x16xf32>
    %2351 = tpu.concatenate %2349, %2350 in 1 : vector<6x240xf32>, vector<6x16xf32> -> vector<6x256xf32>
    %c7_445 = arith.constant 7 : index
    %c0_446 = arith.constant 0 : index
    %c0_447 = arith.constant 0 : index
    %2352 = vector.load %arg2[%c7_445, %c0_446, %c0_447] : memref<9x1x256xf32, #tpu.memory_space<vmem>>, vector<1x1x256xf32>
    %2353 = vector.shape_cast %2352 : vector<1x1x256xf32> to vector<1x256xf32>
    %2354 = vector.broadcast %2353 : vector<1x256xf32> to vector<6x256xf32>
    %2355 = arith.mulf %2351, %2354 : vector<6x256xf32>
    %c169_448 = arith.constant 169 : index
    %2356 = memref.load %arg5[%c169_448] : memref<216xf32, #tpu.memory_space<smem>>
    %2357 = vector.extract_strided_slice %2355 {offsets = [0, 0], sizes = [4, 256], strides = [1, 1]} : vector<6x256xf32> to vector<4x256xf32>
    %2358 = vector.broadcast %2356 : f32 to vector<4x256xf32>
    %2359 = arith.mulf %2358, %2357 : vector<4x256xf32>
    %2360 = arith.addf %2326, %2359 : vector<4x256xf32>
    %c178_449 = arith.constant 178 : index
    %2361 = memref.load %arg5[%c178_449] : memref<216xf32, #tpu.memory_space<smem>>
    %2362 = vector.extract_strided_slice %2355 {offsets = [1, 0], sizes = [4, 256], strides = [1, 1]} : vector<6x256xf32> to vector<4x256xf32>
    %2363 = vector.broadcast %2361 : f32 to vector<4x256xf32>
    %2364 = arith.mulf %2363, %2362 : vector<4x256xf32>
    %2365 = arith.addf %2338, %2364 : vector<4x256xf32>
    %c187_450 = arith.constant 187 : index
    %2366 = memref.load %arg5[%c187_450] : memref<216xf32, #tpu.memory_space<smem>>
    %2367 = vector.extract_strided_slice %2355 {offsets = [2, 0], sizes = [4, 256], strides = [1, 1]} : vector<6x256xf32> to vector<4x256xf32>
    %2368 = vector.broadcast %2366 : f32 to vector<4x256xf32>
    %2369 = arith.mulf %2368, %2367 : vector<4x256xf32>
    %2370 = arith.addf %2343, %2369 : vector<4x256xf32>
    %2371 = vector.extract_strided_slice %2201 {offsets = [0, 17], sizes = [6, 239], strides = [1, 1]} : vector<6x256xf32> to vector<6x239xf32>
    %2372 = vector.extract_strided_slice %2201 {offsets = [0, 0], sizes = [6, 17], strides = [1, 1]} : vector<6x256xf32> to vector<6x17xf32>
    %2373 = tpu.concatenate %2371, %2372 in 1 : vector<6x239xf32>, vector<6x17xf32> -> vector<6x256xf32>
    %c8_451 = arith.constant 8 : index
    %c0_452 = arith.constant 0 : index
    %c0_453 = arith.constant 0 : index
    %2374 = vector.load %arg2[%c8_451, %c0_452, %c0_453] : memref<9x1x256xf32, #tpu.memory_space<vmem>>, vector<1x1x256xf32>
    %2375 = vector.shape_cast %2374 : vector<1x1x256xf32> to vector<1x256xf32>
    %2376 = vector.broadcast %2375 : vector<1x256xf32> to vector<6x256xf32>
    %2377 = arith.mulf %2373, %2376 : vector<6x256xf32>
    %c170_454 = arith.constant 170 : index
    %2378 = memref.load %arg5[%c170_454] : memref<216xf32, #tpu.memory_space<smem>>
    %2379 = vector.extract_strided_slice %2377 {offsets = [0, 0], sizes = [4, 256], strides = [1, 1]} : vector<6x256xf32> to vector<4x256xf32>
    %2380 = vector.broadcast %2378 : f32 to vector<4x256xf32>
    %2381 = arith.mulf %2380, %2379 : vector<4x256xf32>
    %2382 = arith.addf %2348, %2381 : vector<4x256xf32>
    %c179_455 = arith.constant 179 : index
    %2383 = memref.load %arg5[%c179_455] : memref<216xf32, #tpu.memory_space<smem>>
    %2384 = vector.extract_strided_slice %2377 {offsets = [1, 0], sizes = [4, 256], strides = [1, 1]} : vector<6x256xf32> to vector<4x256xf32>
    %2385 = vector.broadcast %2383 : f32 to vector<4x256xf32>
    %2386 = arith.mulf %2385, %2384 : vector<4x256xf32>
    %2387 = arith.addf %2360, %2386 : vector<4x256xf32>
    %c188_456 = arith.constant 188 : index
    %2388 = memref.load %arg5[%c188_456] : memref<216xf32, #tpu.memory_space<smem>>
    %2389 = vector.extract_strided_slice %2377 {offsets = [2, 0], sizes = [4, 256], strides = [1, 1]} : vector<6x256xf32> to vector<4x256xf32>
    %2390 = vector.broadcast %2388 : f32 to vector<4x256xf32>
    %2391 = arith.mulf %2390, %2389 : vector<4x256xf32>
    %2392 = arith.addf %2365, %2391 : vector<4x256xf32>
    %c7_457 = arith.constant 7 : index
    %c0_458 = arith.constant 0 : index
    %c0_459 = arith.constant 0 : index
    %2393 = vector.load %arg8[%c7_457, %c0_458, %c0_459] : memref<8x6x256xf32, #tpu.memory_space<vmem>>, vector<1x6x256xf32>
    %2394 = vector.shape_cast %2393 : vector<1x6x256xf32> to vector<6x256xf32>
    %2395 = vector.extract_strided_slice %2394 {offsets = [0, 239], sizes = [6, 17], strides = [1, 1]} : vector<6x256xf32> to vector<6x17xf32>
    %2396 = vector.extract_strided_slice %2394 {offsets = [0, 0], sizes = [6, 239], strides = [1, 1]} : vector<6x256xf32> to vector<6x239xf32>
    %2397 = tpu.concatenate %2395, %2396 in 1 : vector<6x17xf32>, vector<6x239xf32> -> vector<6x256xf32>
    %c0_460 = arith.constant 0 : index
    %c0_461 = arith.constant 0 : index
    %c0_462 = arith.constant 0 : index
    %2398 = vector.load %arg2[%c0_460, %c0_461, %c0_462] : memref<9x1x256xf32, #tpu.memory_space<vmem>>, vector<1x1x256xf32>
    %2399 = vector.shape_cast %2398 : vector<1x1x256xf32> to vector<1x256xf32>
    %2400 = vector.broadcast %2399 : vector<1x256xf32> to vector<6x256xf32>
    %2401 = arith.mulf %2397, %2400 : vector<6x256xf32>
    %c189_463 = arith.constant 189 : index
    %2402 = memref.load %arg5[%c189_463] : memref<216xf32, #tpu.memory_space<smem>>
    %2403 = vector.extract_strided_slice %2401 {offsets = [0, 0], sizes = [4, 256], strides = [1, 1]} : vector<6x256xf32> to vector<4x256xf32>
    %2404 = vector.broadcast %2402 : f32 to vector<4x256xf32>
    %2405 = arith.mulf %2404, %2403 : vector<4x256xf32>
    %2406 = arith.addf %2370, %2405 : vector<4x256xf32>
    %c198_464 = arith.constant 198 : index
    %2407 = memref.load %arg5[%c198_464] : memref<216xf32, #tpu.memory_space<smem>>
    %2408 = vector.extract_strided_slice %2401 {offsets = [1, 0], sizes = [4, 256], strides = [1, 1]} : vector<6x256xf32> to vector<4x256xf32>
    %2409 = vector.broadcast %2407 : f32 to vector<4x256xf32>
    %2410 = arith.mulf %2409, %2408 : vector<4x256xf32>
    %2411 = arith.addf %2382, %2410 : vector<4x256xf32>
    %c207_465 = arith.constant 207 : index
    %2412 = memref.load %arg5[%c207_465] : memref<216xf32, #tpu.memory_space<smem>>
    %2413 = vector.extract_strided_slice %2401 {offsets = [2, 0], sizes = [4, 256], strides = [1, 1]} : vector<6x256xf32> to vector<4x256xf32>
    %2414 = vector.broadcast %2412 : f32 to vector<4x256xf32>
    %2415 = arith.mulf %2414, %2413 : vector<4x256xf32>
    %2416 = arith.addf %2387, %2415 : vector<4x256xf32>
    %2417 = vector.extract_strided_slice %2394 {offsets = [0, 240], sizes = [6, 16], strides = [1, 1]} : vector<6x256xf32> to vector<6x16xf32>
    %2418 = vector.extract_strided_slice %2394 {offsets = [0, 0], sizes = [6, 240], strides = [1, 1]} : vector<6x256xf32> to vector<6x240xf32>
    %2419 = tpu.concatenate %2417, %2418 in 1 : vector<6x16xf32>, vector<6x240xf32> -> vector<6x256xf32>
    %c1_466 = arith.constant 1 : index
    %c0_467 = arith.constant 0 : index
    %c0_468 = arith.constant 0 : index
    %2420 = vector.load %arg2[%c1_466, %c0_467, %c0_468] : memref<9x1x256xf32, #tpu.memory_space<vmem>>, vector<1x1x256xf32>
    %2421 = vector.shape_cast %2420 : vector<1x1x256xf32> to vector<1x256xf32>
    %2422 = vector.broadcast %2421 : vector<1x256xf32> to vector<6x256xf32>
    %2423 = arith.mulf %2419, %2422 : vector<6x256xf32>
    %c190_469 = arith.constant 190 : index
    %2424 = memref.load %arg5[%c190_469] : memref<216xf32, #tpu.memory_space<smem>>
    %2425 = vector.extract_strided_slice %2423 {offsets = [0, 0], sizes = [4, 256], strides = [1, 1]} : vector<6x256xf32> to vector<4x256xf32>
    %2426 = vector.broadcast %2424 : f32 to vector<4x256xf32>
    %2427 = arith.mulf %2426, %2425 : vector<4x256xf32>
    %2428 = arith.addf %2392, %2427 : vector<4x256xf32>
    %c199_470 = arith.constant 199 : index
    %2429 = memref.load %arg5[%c199_470] : memref<216xf32, #tpu.memory_space<smem>>
    %2430 = vector.extract_strided_slice %2423 {offsets = [1, 0], sizes = [4, 256], strides = [1, 1]} : vector<6x256xf32> to vector<4x256xf32>
    %2431 = vector.broadcast %2429 : f32 to vector<4x256xf32>
    %2432 = arith.mulf %2431, %2430 : vector<4x256xf32>
    %2433 = arith.addf %2406, %2432 : vector<4x256xf32>
    %c208_471 = arith.constant 208 : index
    %2434 = memref.load %arg5[%c208_471] : memref<216xf32, #tpu.memory_space<smem>>
    %2435 = vector.extract_strided_slice %2423 {offsets = [2, 0], sizes = [4, 256], strides = [1, 1]} : vector<6x256xf32> to vector<4x256xf32>
    %2436 = vector.broadcast %2434 : f32 to vector<4x256xf32>
    %2437 = arith.mulf %2436, %2435 : vector<4x256xf32>
    %2438 = arith.addf %2411, %2437 : vector<4x256xf32>
    %2439 = vector.extract_strided_slice %2394 {offsets = [0, 241], sizes = [6, 15], strides = [1, 1]} : vector<6x256xf32> to vector<6x15xf32>
    %2440 = vector.extract_strided_slice %2394 {offsets = [0, 0], sizes = [6, 241], strides = [1, 1]} : vector<6x256xf32> to vector<6x241xf32>
    %2441 = tpu.concatenate %2439, %2440 in 1 : vector<6x15xf32>, vector<6x241xf32> -> vector<6x256xf32>
    %c2_472 = arith.constant 2 : index
    %c0_473 = arith.constant 0 : index
    %c0_474 = arith.constant 0 : index
    %2442 = vector.load %arg2[%c2_472, %c0_473, %c0_474] : memref<9x1x256xf32, #tpu.memory_space<vmem>>, vector<1x1x256xf32>
    %2443 = vector.shape_cast %2442 : vector<1x1x256xf32> to vector<1x256xf32>
    %2444 = vector.broadcast %2443 : vector<1x256xf32> to vector<6x256xf32>
    %2445 = arith.mulf %2441, %2444 : vector<6x256xf32>
    %c191_475 = arith.constant 191 : index
    %2446 = memref.load %arg5[%c191_475] : memref<216xf32, #tpu.memory_space<smem>>
    %2447 = vector.extract_strided_slice %2445 {offsets = [0, 0], sizes = [4, 256], strides = [1, 1]} : vector<6x256xf32> to vector<4x256xf32>
    %2448 = vector.broadcast %2446 : f32 to vector<4x256xf32>
    %2449 = arith.mulf %2448, %2447 : vector<4x256xf32>
    %2450 = arith.addf %2416, %2449 : vector<4x256xf32>
    %c200_476 = arith.constant 200 : index
    %2451 = memref.load %arg5[%c200_476] : memref<216xf32, #tpu.memory_space<smem>>
    %2452 = vector.extract_strided_slice %2445 {offsets = [1, 0], sizes = [4, 256], strides = [1, 1]} : vector<6x256xf32> to vector<4x256xf32>
    %2453 = vector.broadcast %2451 : f32 to vector<4x256xf32>
    %2454 = arith.mulf %2453, %2452 : vector<4x256xf32>
    %2455 = arith.addf %2428, %2454 : vector<4x256xf32>
    %c209_477 = arith.constant 209 : index
    %2456 = memref.load %arg5[%c209_477] : memref<216xf32, #tpu.memory_space<smem>>
    %2457 = vector.extract_strided_slice %2445 {offsets = [2, 0], sizes = [4, 256], strides = [1, 1]} : vector<6x256xf32> to vector<4x256xf32>
    %2458 = vector.broadcast %2456 : f32 to vector<4x256xf32>
    %2459 = arith.mulf %2458, %2457 : vector<4x256xf32>
    %2460 = arith.addf %2433, %2459 : vector<4x256xf32>
    %2461 = vector.extract_strided_slice %2394 {offsets = [0, 255], sizes = [6, 1], strides = [1, 1]} : vector<6x256xf32> to vector<6x1xf32>
    %2462 = vector.extract_strided_slice %2394 {offsets = [0, 0], sizes = [6, 255], strides = [1, 1]} : vector<6x256xf32> to vector<6x255xf32>
    %2463 = tpu.concatenate %2461, %2462 in 1 : vector<6x1xf32>, vector<6x255xf32> -> vector<6x256xf32>
    %c3_478 = arith.constant 3 : index
    %c0_479 = arith.constant 0 : index
    %c0_480 = arith.constant 0 : index
    %2464 = vector.load %arg2[%c3_478, %c0_479, %c0_480] : memref<9x1x256xf32, #tpu.memory_space<vmem>>, vector<1x1x256xf32>
    %2465 = vector.shape_cast %2464 : vector<1x1x256xf32> to vector<1x256xf32>
    %2466 = vector.broadcast %2465 : vector<1x256xf32> to vector<6x256xf32>
    %2467 = arith.mulf %2463, %2466 : vector<6x256xf32>
    %c192_481 = arith.constant 192 : index
    %2468 = memref.load %arg5[%c192_481] : memref<216xf32, #tpu.memory_space<smem>>
    %2469 = vector.extract_strided_slice %2467 {offsets = [0, 0], sizes = [4, 256], strides = [1, 1]} : vector<6x256xf32> to vector<4x256xf32>
    %2470 = vector.broadcast %2468 : f32 to vector<4x256xf32>
    %2471 = arith.mulf %2470, %2469 : vector<4x256xf32>
    %2472 = arith.addf %2438, %2471 : vector<4x256xf32>
    %c201_482 = arith.constant 201 : index
    %2473 = memref.load %arg5[%c201_482] : memref<216xf32, #tpu.memory_space<smem>>
    %2474 = vector.extract_strided_slice %2467 {offsets = [1, 0], sizes = [4, 256], strides = [1, 1]} : vector<6x256xf32> to vector<4x256xf32>
    %2475 = vector.broadcast %2473 : f32 to vector<4x256xf32>
    %2476 = arith.mulf %2475, %2474 : vector<4x256xf32>
    %2477 = arith.addf %2450, %2476 : vector<4x256xf32>
    %c210_483 = arith.constant 210 : index
    %2478 = memref.load %arg5[%c210_483] : memref<216xf32, #tpu.memory_space<smem>>
    %2479 = vector.extract_strided_slice %2467 {offsets = [2, 0], sizes = [4, 256], strides = [1, 1]} : vector<6x256xf32> to vector<4x256xf32>
    %2480 = vector.broadcast %2478 : f32 to vector<4x256xf32>
    %2481 = arith.mulf %2480, %2479 : vector<4x256xf32>
    %2482 = arith.addf %2455, %2481 : vector<4x256xf32>
    %c193_484 = arith.constant 193 : index
    %2483 = memref.load %arg5[%c193_484] : memref<216xf32, #tpu.memory_space<smem>>
    %2484 = vector.extract_strided_slice %2394 {offsets = [0, 0], sizes = [4, 256], strides = [1, 1]} : vector<6x256xf32> to vector<4x256xf32>
    %2485 = vector.broadcast %2483 : f32 to vector<4x256xf32>
    %2486 = arith.mulf %2485, %2484 : vector<4x256xf32>
    %2487 = arith.addf %2460, %2486 : vector<4x256xf32>
    %c202_485 = arith.constant 202 : index
    %2488 = memref.load %arg5[%c202_485] : memref<216xf32, #tpu.memory_space<smem>>
    %2489 = vector.extract_strided_slice %2394 {offsets = [1, 0], sizes = [4, 256], strides = [1, 1]} : vector<6x256xf32> to vector<4x256xf32>
    %2490 = vector.broadcast %2488 : f32 to vector<4x256xf32>
    %2491 = arith.mulf %2490, %2489 : vector<4x256xf32>
    %2492 = arith.addf %2472, %2491 : vector<4x256xf32>
    %c211_486 = arith.constant 211 : index
    %2493 = memref.load %arg5[%c211_486] : memref<216xf32, #tpu.memory_space<smem>>
    %2494 = vector.extract_strided_slice %2394 {offsets = [2, 0], sizes = [4, 256], strides = [1, 1]} : vector<6x256xf32> to vector<4x256xf32>
    %2495 = vector.broadcast %2493 : f32 to vector<4x256xf32>
    %2496 = arith.mulf %2495, %2494 : vector<4x256xf32>
    %2497 = arith.addf %2477, %2496 : vector<4x256xf32>
    %2498 = vector.extract_strided_slice %2394 {offsets = [0, 1], sizes = [6, 255], strides = [1, 1]} : vector<6x256xf32> to vector<6x255xf32>
    %2499 = vector.extract_strided_slice %2394 {offsets = [0, 0], sizes = [6, 1], strides = [1, 1]} : vector<6x256xf32> to vector<6x1xf32>
    %2500 = tpu.concatenate %2498, %2499 in 1 : vector<6x255xf32>, vector<6x1xf32> -> vector<6x256xf32>
    %c5_487 = arith.constant 5 : index
    %c0_488 = arith.constant 0 : index
    %c0_489 = arith.constant 0 : index
    %2501 = vector.load %arg2[%c5_487, %c0_488, %c0_489] : memref<9x1x256xf32, #tpu.memory_space<vmem>>, vector<1x1x256xf32>
    %2502 = vector.shape_cast %2501 : vector<1x1x256xf32> to vector<1x256xf32>
    %2503 = vector.broadcast %2502 : vector<1x256xf32> to vector<6x256xf32>
    %2504 = arith.mulf %2500, %2503 : vector<6x256xf32>
    %c194_490 = arith.constant 194 : index
    %2505 = memref.load %arg5[%c194_490] : memref<216xf32, #tpu.memory_space<smem>>
    %2506 = vector.extract_strided_slice %2504 {offsets = [0, 0], sizes = [4, 256], strides = [1, 1]} : vector<6x256xf32> to vector<4x256xf32>
    %2507 = vector.broadcast %2505 : f32 to vector<4x256xf32>
    %2508 = arith.mulf %2507, %2506 : vector<4x256xf32>
    %2509 = arith.addf %2482, %2508 : vector<4x256xf32>
    %c203_491 = arith.constant 203 : index
    %2510 = memref.load %arg5[%c203_491] : memref<216xf32, #tpu.memory_space<smem>>
    %2511 = vector.extract_strided_slice %2504 {offsets = [1, 0], sizes = [4, 256], strides = [1, 1]} : vector<6x256xf32> to vector<4x256xf32>
    %2512 = vector.broadcast %2510 : f32 to vector<4x256xf32>
    %2513 = arith.mulf %2512, %2511 : vector<4x256xf32>
    %2514 = arith.addf %2487, %2513 : vector<4x256xf32>
    %c212_492 = arith.constant 212 : index
    %2515 = memref.load %arg5[%c212_492] : memref<216xf32, #tpu.memory_space<smem>>
    %2516 = vector.extract_strided_slice %2504 {offsets = [2, 0], sizes = [4, 256], strides = [1, 1]} : vector<6x256xf32> to vector<4x256xf32>
    %2517 = vector.broadcast %2515 : f32 to vector<4x256xf32>
    %2518 = arith.mulf %2517, %2516 : vector<4x256xf32>
    %2519 = arith.addf %2492, %2518 : vector<4x256xf32>
    %2520 = vector.extract_strided_slice %2394 {offsets = [0, 15], sizes = [6, 241], strides = [1, 1]} : vector<6x256xf32> to vector<6x241xf32>
    %2521 = vector.extract_strided_slice %2394 {offsets = [0, 0], sizes = [6, 15], strides = [1, 1]} : vector<6x256xf32> to vector<6x15xf32>
    %2522 = tpu.concatenate %2520, %2521 in 1 : vector<6x241xf32>, vector<6x15xf32> -> vector<6x256xf32>
    %c6_493 = arith.constant 6 : index
    %c0_494 = arith.constant 0 : index
    %c0_495 = arith.constant 0 : index
    %2523 = vector.load %arg2[%c6_493, %c0_494, %c0_495] : memref<9x1x256xf32, #tpu.memory_space<vmem>>, vector<1x1x256xf32>
    %2524 = vector.shape_cast %2523 : vector<1x1x256xf32> to vector<1x256xf32>
    %2525 = vector.broadcast %2524 : vector<1x256xf32> to vector<6x256xf32>
    %2526 = arith.mulf %2522, %2525 : vector<6x256xf32>
    %c195_496 = arith.constant 195 : index
    %2527 = memref.load %arg5[%c195_496] : memref<216xf32, #tpu.memory_space<smem>>
    %2528 = vector.extract_strided_slice %2526 {offsets = [0, 0], sizes = [4, 256], strides = [1, 1]} : vector<6x256xf32> to vector<4x256xf32>
    %2529 = vector.broadcast %2527 : f32 to vector<4x256xf32>
    %2530 = arith.mulf %2529, %2528 : vector<4x256xf32>
    %2531 = arith.addf %2497, %2530 : vector<4x256xf32>
    %c204_497 = arith.constant 204 : index
    %2532 = memref.load %arg5[%c204_497] : memref<216xf32, #tpu.memory_space<smem>>
    %2533 = vector.extract_strided_slice %2526 {offsets = [1, 0], sizes = [4, 256], strides = [1, 1]} : vector<6x256xf32> to vector<4x256xf32>
    %2534 = vector.broadcast %2532 : f32 to vector<4x256xf32>
    %2535 = arith.mulf %2534, %2533 : vector<4x256xf32>
    %2536 = arith.addf %2509, %2535 : vector<4x256xf32>
    %c213_498 = arith.constant 213 : index
    %2537 = memref.load %arg5[%c213_498] : memref<216xf32, #tpu.memory_space<smem>>
    %2538 = vector.extract_strided_slice %2526 {offsets = [2, 0], sizes = [4, 256], strides = [1, 1]} : vector<6x256xf32> to vector<4x256xf32>
    %2539 = vector.broadcast %2537 : f32 to vector<4x256xf32>
    %2540 = arith.mulf %2539, %2538 : vector<4x256xf32>
    %2541 = arith.addf %2514, %2540 : vector<4x256xf32>
    %2542 = vector.extract_strided_slice %2394 {offsets = [0, 16], sizes = [6, 240], strides = [1, 1]} : vector<6x256xf32> to vector<6x240xf32>
    %2543 = vector.extract_strided_slice %2394 {offsets = [0, 0], sizes = [6, 16], strides = [1, 1]} : vector<6x256xf32> to vector<6x16xf32>
    %2544 = tpu.concatenate %2542, %2543 in 1 : vector<6x240xf32>, vector<6x16xf32> -> vector<6x256xf32>
    %c7_499 = arith.constant 7 : index
    %c0_500 = arith.constant 0 : index
    %c0_501 = arith.constant 0 : index
    %2545 = vector.load %arg2[%c7_499, %c0_500, %c0_501] : memref<9x1x256xf32, #tpu.memory_space<vmem>>, vector<1x1x256xf32>
    %2546 = vector.shape_cast %2545 : vector<1x1x256xf32> to vector<1x256xf32>
    %2547 = vector.broadcast %2546 : vector<1x256xf32> to vector<6x256xf32>
    %2548 = arith.mulf %2544, %2547 : vector<6x256xf32>
    %c196_502 = arith.constant 196 : index
    %2549 = memref.load %arg5[%c196_502] : memref<216xf32, #tpu.memory_space<smem>>
    %2550 = vector.extract_strided_slice %2548 {offsets = [0, 0], sizes = [4, 256], strides = [1, 1]} : vector<6x256xf32> to vector<4x256xf32>
    %2551 = vector.broadcast %2549 : f32 to vector<4x256xf32>
    %2552 = arith.mulf %2551, %2550 : vector<4x256xf32>
    %2553 = arith.addf %2519, %2552 : vector<4x256xf32>
    %c205_503 = arith.constant 205 : index
    %2554 = memref.load %arg5[%c205_503] : memref<216xf32, #tpu.memory_space<smem>>
    %2555 = vector.extract_strided_slice %2548 {offsets = [1, 0], sizes = [4, 256], strides = [1, 1]} : vector<6x256xf32> to vector<4x256xf32>
    %2556 = vector.broadcast %2554 : f32 to vector<4x256xf32>
    %2557 = arith.mulf %2556, %2555 : vector<4x256xf32>
    %2558 = arith.addf %2531, %2557 : vector<4x256xf32>
    %c214_504 = arith.constant 214 : index
    %2559 = memref.load %arg5[%c214_504] : memref<216xf32, #tpu.memory_space<smem>>
    %2560 = vector.extract_strided_slice %2548 {offsets = [2, 0], sizes = [4, 256], strides = [1, 1]} : vector<6x256xf32> to vector<4x256xf32>
    %2561 = vector.broadcast %2559 : f32 to vector<4x256xf32>
    %2562 = arith.mulf %2561, %2560 : vector<4x256xf32>
    %2563 = arith.addf %2536, %2562 : vector<4x256xf32>
    %2564 = vector.extract_strided_slice %2394 {offsets = [0, 17], sizes = [6, 239], strides = [1, 1]} : vector<6x256xf32> to vector<6x239xf32>
    %2565 = vector.extract_strided_slice %2394 {offsets = [0, 0], sizes = [6, 17], strides = [1, 1]} : vector<6x256xf32> to vector<6x17xf32>
    %2566 = tpu.concatenate %2564, %2565 in 1 : vector<6x239xf32>, vector<6x17xf32> -> vector<6x256xf32>
    %c8_505 = arith.constant 8 : index
    %c0_506 = arith.constant 0 : index
    %c0_507 = arith.constant 0 : index
    %2567 = vector.load %arg2[%c8_505, %c0_506, %c0_507] : memref<9x1x256xf32, #tpu.memory_space<vmem>>, vector<1x1x256xf32>
    %2568 = vector.shape_cast %2567 : vector<1x1x256xf32> to vector<1x256xf32>
    %2569 = vector.broadcast %2568 : vector<1x256xf32> to vector<6x256xf32>
    %2570 = arith.mulf %2566, %2569 : vector<6x256xf32>
    %c197_508 = arith.constant 197 : index
    %2571 = memref.load %arg5[%c197_508] : memref<216xf32, #tpu.memory_space<smem>>
    %2572 = vector.extract_strided_slice %2570 {offsets = [0, 0], sizes = [4, 256], strides = [1, 1]} : vector<6x256xf32> to vector<4x256xf32>
    %2573 = vector.broadcast %2571 : f32 to vector<4x256xf32>
    %2574 = arith.mulf %2573, %2572 : vector<4x256xf32>
    %2575 = arith.addf %2541, %2574 : vector<4x256xf32>
    %c206_509 = arith.constant 206 : index
    %2576 = memref.load %arg5[%c206_509] : memref<216xf32, #tpu.memory_space<smem>>
    %2577 = vector.extract_strided_slice %2570 {offsets = [1, 0], sizes = [4, 256], strides = [1, 1]} : vector<6x256xf32> to vector<4x256xf32>
    %2578 = vector.broadcast %2576 : f32 to vector<4x256xf32>
    %2579 = arith.mulf %2578, %2577 : vector<4x256xf32>
    %2580 = arith.addf %2553, %2579 : vector<4x256xf32>
    %c215_510 = arith.constant 215 : index
    %2581 = memref.load %arg5[%c215_510] : memref<216xf32, #tpu.memory_space<smem>>
    %2582 = vector.extract_strided_slice %2570 {offsets = [2, 0], sizes = [4, 256], strides = [1, 1]} : vector<6x256xf32> to vector<4x256xf32>
    %2583 = vector.broadcast %2581 : f32 to vector<4x256xf32>
    %2584 = arith.mulf %2583, %2582 : vector<4x256xf32>
    %2585 = arith.addf %2558, %2584 : vector<4x256xf32>
    %2586 = arith.addf %2563, %2575 : vector<4x256xf32>
    %2587 = arith.addf %2586, %2580 : vector<4x256xf32>
    %2588 = arith.addf %2587, %2585 : vector<4x256xf32>
    %2589 = vector.extract_strided_slice %1 {offsets = [1, 0], sizes = [4, 256], strides = [1, 1]} : vector<6x256xf32> to vector<4x256xf32>
    %c0_511 = arith.constant 0 : index
    %2590 = memref.load %arg6[%c0_511] : memref<1xf32, #tpu.memory_space<smem>>
    %2591 = vector.broadcast %2590 : f32 to vector<4x256xf32>
    %2592 = arith.addf %2588, %2591 : vector<4x256xf32>
    %2593 = arith.addf %2592, %2589 : vector<4x256xf32>
    %c0_512 = arith.constant 0 : index
    %c0_513 = arith.constant 0 : index
    %c0_514 = arith.constant 0 : index
    %2594 = vector.load %arg7[%c0_512, %c0_513, %c0_514] : memref<1x4x256xf32, #tpu.memory_space<vmem>>, vector<1x4x256xf32>
    %2595 = vector.shape_cast %2594 : vector<1x4x256xf32> to vector<4x256xf32>
    %2596 = vector.shape_cast %2593 : vector<4x256xf32> to vector<1x4x256xf32>
    tpu.vector_store %arg7[%c0_512, %c0_513, %c0_514], %2596 {strides = array<i32>} : memref<1x4x256xf32, #tpu.memory_space<vmem>>, vector<1x4x256xf32>,
    return
  }
  func.func @transform_0(%arg0: i32) -> (i32, i32, i32) {
    %c0_i32 = arith.constant 0 : i32
    %c0_i32_0 = arith.constant 0 : i32
    %c0_i32_1 = arith.constant 0 : i32
    return %arg0, %c0_i32, %c0_i32_0 : i32, i32, i32
  }
  func.func @transform_1(%arg0: i32) -> (i32, i32, i32) {
    %c0_i32 = arith.constant 0 : i32
    %c0_i32_0 = arith.constant 0 : i32
    %c0_i32_1 = arith.constant 0 : i32
    %c0_i32_2 = arith.constant 0 : i32
    return %c0_i32, %c0_i32_0, %c0_i32_1 : i32, i32, i32
  }
  func.func @transform_2(%arg0: i32) -> i32 {
    %c0_i32 = arith.constant 0 : i32
    %c0_i32_0 = arith.constant 0 : i32
    return %c0_i32 : i32
  }
  func.func @transform_3(%arg0: i32) -> i32 {
    %c0_i32 = arith.constant 0 : i32
    %c0_i32_0 = arith.constant 0 : i32
    return %c0_i32 : i32
  }
  func.func @transform_4(%arg0: i32) -> i32 {
    %c0_i32 = arith.constant 0 : i32
    %c0_i32_0 = arith.constant 0 : i32
    return %c0_i32 : i32
  }
  func.func @transform_5(%arg0: i32) -> i32 {
    %c0_i32 = arith.constant 0 : i32
    %c0_i32_0 = arith.constant 0 : i32
    return %c0_i32 : i32
  }
  func.func @transform_6(%arg0: i32) -> (i32, i32, i32) {
    %c0_i32 = arith.constant 0 : i32
    %c0_i32_0 = arith.constant 0 : i32
    %c0_i32_1 = arith.constant 0 : i32
    return %arg0, %c0_i32, %c0_i32_0 : i32, i32, i32
  }
}

</mosaic_0001>

<llo_original>
// kernel: resblock_3d.1
$region0: #{resblock_3d.1}
  #allocation0 [shape = 'u32[]', space=smem, size = 0x4, offset = 0x4, fixed_abs, tag = 'smem constant byte address 0x4 - core index']
  #allocation1 [shape = 'u32[144,128]{1,0:T(1,128)}', space=vmem, size = 0x12000, scoped, tag = 'internal scratch']
  #allocation2 [shape = 'f32[8,6,256]{2,1,0:T(8,128)}', space=vmem, size = 0x10000, scoped, tag = 'scratch operand']
  #allocation3 [shape = 'f32[1]{0:T(128)S(6)}', space=smem, size = 0x200, scoped, tag = 'scoped memory for resblock_3d.1']
  %s0 = inlined_call_operand.vmem [shape: f32[2,6,256], index: 0, kind: input, shape index: {}]
  %s1 = inlined_call_operand.vmem [shape: f32[9,1,256], index: 1, kind: input, shape index: {}]
  %s2 = inlined_call_operand.vmem [shape: f32[216], index: 2, kind: input, shape index: {}]
  %s3 = inlined_call_operand.vmem [shape: f32[8], index: 3, kind: input, shape index: {}]
  %s4 = inlined_call_operand.vmem [shape: f32[216], index: 4, kind: input, shape index: {}]
  %s5 = inlined_call_operand.<no memory space> [shape: f32[1], index: 5, kind: input, shape index: {}]
  %s6 = inlined_call_operand.vmem [shape: f32[2,4,256], index: 6, kind: output, shape index: {}]
  %s7 = sld [smem:[#allocation0]]
  $region69: #{resblock_3d.1} parent=0
    _
  %s9 = ssub.s32 1, %s7
  %s10 = scalar_select 0, %s9, %s7
  %11 = sst [smem:[#allocation3]] %s5
  $region1: #{resblock_3d.1} parent=0
    #allocation4 [shape = 'u8[1024]{0}', space=smem, size = 0x400, scoped, tag = 'input window, operand 2, single buffered']
    #allocation5 [shape = 's32[2]{0}', space=sflag, size = 0x8, scoped, tag = 'scoped memory for resblock_3d.1']
    #allocation6 [shape = 'u8[512]{0}', space=smem, size = 0x200, scoped, tag = 'input window, operand 3, single buffered']
    #allocation7 [shape = 's32[1]{0}', space=sflag, size = 0x4, scoped, tag = 'scoped memory for resblock_3d.1']
    #allocation8 [shape = 'u8[1024]{0}', space=smem, size = 0x400, scoped, tag = 'input window, operand 4, single buffered']
    %12 = vsyncpa [#allocation5], 0
    %13 = vsyncpa [#allocation7], 0
    loop: start=0, step=1, limit=4
    $region2: #{resblock_3d.1} parent=1 // loop_pre_header
      _
    $region3: #{resblock_3d.1} parent=1 // loop_header
      %s15 = sphi 0, %s19
      %p16 = scmp.ge.s32.totalorder %s15, 4
      %s25 = sphi 0, %s27
      %s28 = sphi 0, %s25
      %s29 = sphi 0, %s28
      %s45 = sphi 0, %s29
      %s49 = sphi 0, %s49
      %s51 = sphi 0, %s49
      %s52 = sphi 0, %s51
      %s66 = sphi 0, %s52
      %s70 = sphi 0, %s70
      %s72 = sphi 0, %s70
      %s73 = sphi 0, %s72
      %s87 = sphi 0, %s73
      %s91 = sphi 0, %s91
      %s93 = sphi 0, %s91
      %s94 = sphi 0, %s93
      %s108 = sphi 0, %s94
      %s112 = sphi 0, %s112
      %s114 = sphi 0, %s112
      %s115 = sphi 0, %s114
      %s129 = sphi 0, %s115
      %s133 = sphi 0, %s133
      %s135 = sphi 0, %s133
      %s136 = sphi 0, %s135
      %s150 = sphi 0, %s136
      %s156 = sphi 0, %s158
      %s159 = sphi 0, %s156
      %s160 = sphi 0, %s159
      %s176 = sphi 0, %s160
    $region4: #{resblock_3d.1} parent=1 // loop_header_branch
      %18 = sbr.rel (%p16) target = $region8
    $region5: #{resblock_3d.1} parent=1 // loop_body
      %s20 = ssub.s32 %s15, 1
      %s21 = ssub.s32 %s15, 2
      %s22 = sadd.s32 %s15, 1
      %s23 = ssub.s32 %s15, %s22
      %p24 = scmp.eq.s32.totalorder %s23, 0
      %s26 = sadd.s32 %s25, 1
      %s27 = scalar_select %p24, %s25, %s26
      %p30 = pneg %p24
      %p31 = scmp.eq.s32.totalorder %s15, 1
      %p32 = por %p30, %p31
      %p33 = scmp.ne.s32.totalorder %s25, %s28
      %p34 = scmp.eq.s32.totalorder %s15, 0
      %p35 = por %p33, %p34
      %p36 = scmp.ne.s32.totalorder %s25, %s28
      %p37 = scmp.eq.s32.totalorder %s20, 1
      %p38 = por %p36, %p37
      %p39 = scmp.ne.s32.totalorder %s28, %s29
      %p40 = scmp.eq.s32.totalorder %s20, 0
      %p41 = por %p39, %p40
      %p42 = scmp.ne.s32.totalorder %s28, %s29
      %p43 = scmp.eq.s32.totalorder %s21, 1
      %p44 = por %p42, %p43
      %p46 = scmp.ne.s32.totalorder %s29, %s45
      %p47 = scmp.eq.s32.totalorder %s21, 0
      %p48 = por %p46, %p47
      %s50 = sadd.s32 %s49, 1
      %p53 = scmp.eq.s32.totalorder %s15, 1
      %p54 = scmp.ne.s32.totalorder %s49, %s51
      %p55 = scmp.eq.s32.totalorder %s15, 0
      %p56 = por %p54, %p55
      %p57 = scmp.ne.s32.totalorder %s49, %s51
      %p58 = scmp.eq.s32.totalorder %s20, 1
      %p59 = por %p57, %p58
      %p60 = scmp.ne.s32.totalorder %s51, %s52
      %p61 = scmp.eq.s32.totalorder %s20, 0
      %p62 = por %p60, %p61
      %p63 = scmp.ne.s32.totalorder %s51, %s52
      %p64 = scmp.eq.s32.totalorder %s21, 1
      %p65 = por %p63, %p64
      %p67 = scmp.ne.s32.totalorder %s52, %s66
      %p68 = scmp.eq.s32.totalorder %s21, 0
      %p69 = por %p67, %p68
      %s71 = sadd.s32 %s70, 1
      %p74 = scmp.eq.s32.totalorder %s15, 1
      %p75 = scmp.ne.s32.totalorder %s70, %s72
      %p76 = scmp.eq.s32.totalorder %s15, 0
      %p77 = por %p75, %p76
      %p78 = scmp.ne.s32.totalorder %s70, %s72
      %p79 = scmp.eq.s32.totalorder %s20, 1
      %p80 = por %p78, %p79
      %p81 = scmp.ne.s32.totalorder %s72, %s73
      %p82 = scmp.eq.s32.totalorder %s20, 0
      %p83 = por %p81, %p82
      %p84 = scmp.ne.s32.totalorder %s72, %s73
      %p85 = scmp.eq.s32.totalorder %s21, 1
      %p86 = por %p84, %p85
      %p88 = scmp.ne.s32.totalorder %s73, %s87
      %p89 = scmp.eq.s32.totalorder %s21, 0
      %p90 = por %p88, %p89
      %s92 = sadd.s32 %s91, 1
      %p95 = scmp.eq.s32.totalorder %s15, 1
      %p96 = scmp.ne.s32.totalorder %s91, %s93
      %p97 = scmp.eq.s32.totalorder %s15, 0
      %p98 = por %p96, %p97
      %p99 = scmp.ne.s32.totalorder %s91, %s93
      %p100 = scmp.eq.s32.totalorder %s20, 1
      %p101 = por %p99, %p100
      %p102 = scmp.ne.s32.totalorder %s93, %s94
      %p103 = scmp.eq.s32.totalorder %s20, 0
      %p104 = por %p102, %p103
      %p105 = scmp.ne.s32.totalorder %s93, %s94
      %p106 = scmp.eq.s32.totalorder %s21, 1
      %p107 = por %p105, %p106
      %p109 = scmp.ne.s32.totalorder %s94, %s108
      %p110 = scmp.eq.s32.totalorder %s21, 0
      %p111 = por %p109, %p110
      %s113 = sadd.s32 %s112, 1
      %p116 = scmp.eq.s32.totalorder %s15, 1
      %p117 = scmp.ne.s32.totalorder %s112, %s114
      %p118 = scmp.eq.s32.totalorder %s15, 0
      %p119 = por %p117, %p118
      %p120 = scmp.ne.s32.totalorder %s112, %s114
      %p121 = scmp.eq.s32.totalorder %s20, 1
      %p122 = por %p120, %p121
      %p123 = scmp.ne.s32.totalorder %s114, %s115
      %p124 = scmp.eq.s32.totalorder %s20, 0
      %p125 = por %p123, %p124
      %p126 = scmp.ne.s32.totalorder %s114, %s115
      %p127 = scmp.eq.s32.totalorder %s21, 1
      %p128 = por %p126, %p127
      %p130 = scmp.ne.s32.totalorder %s115, %s129
      %p131 = scmp.eq.s32.totalorder %s21, 0
      %p132 = por %p130, %p131
      %s134 = sadd.s32 %s133, 1
      %p137 = scmp.eq.s32.totalorder %s15, 1
      %p138 = scmp.ne.s32.totalorder %s133, %s135
      %p139 = scmp.eq.s32.totalorder %s15, 0
      %p140 = por %p138, %p139
      %p141 = scmp.ne.s32.totalorder %s133, %s135
      %p142 = scmp.eq.s32.totalorder %s20, 1
      %p143 = por %p141, %p142
      %p144 = scmp.ne.s32.totalorder %s135, %s136
      %p145 = scmp.eq.s32.totalorder %s20, 0
      %p146 = por %p144, %p145
      %p147 = scmp.ne.s32.totalorder %s135, %s136
      %p148 = scmp.eq.s32.totalorder %s21, 1
      %p149 = por %p147, %p148
      %p151 = scmp.ne.s32.totalorder %s136, %s150
      %p152 = scmp.eq.s32.totalorder %s21, 0
      %p153 = por %p151, %p152
      %s154 = ssub.s32 %s15, %s22
      %p155 = scmp.eq.s32.totalorder %s154, 0
      %s157 = sadd.s32 %s156, 1
      %s158 = scalar_select %p155, %s156, %s157
      %p161 = pneg %p155
      %p162 = scmp.eq.s32.totalorder %s15, 1
      %p163 = por %p161, %p162
      %p164 = scmp.ne.s32.totalorder %s156, %s159
      %p165 = scmp.eq.s32.totalorder %s15, 0
      %p166 = por %p164, %p165
      %p167 = scmp.ne.s32.totalorder %s156, %s159
      %p168 = scmp.eq.s32.totalorder %s20, 1
      %p169 = por %p167, %p168
      %p170 = scmp.ne.s32.totalorder %s159, %s160
      %p171 = scmp.eq.s32.totalorder %s20, 0
      %p172 = por %p170, %p171
      %p173 = scmp.ne.s32.totalorder %s159, %s160
      %p174 = scmp.eq.s32.totalorder %s21, 1
      %p175 = por %p173, %p174
      %p177 = scmp.ne.s32.totalorder %s160, %s176
      %p178 = scmp.eq.s32.totalorder %s21, 0
      %p179 = por %p177, %p178
      %p180 = scmp.le.s32.totalorder 1, %s15
      %p181 = scmp.lt.s32.totalorder %s15, 3
      %p182 = pnand %p180, %p181
      %p183 = pneg %p182
      // Predicated region
      $region9: #{resblock_3d.1} parent=5 // pred_check
        _
      $region10: #{resblock_3d.1} parent=5 // pred_check_branch
        %185 = sbr.rel (%p182) target = $region12
      $region11: #{resblock_3d.1} parent=5 // pred_region
        %s186 = ssub.s32 %s15, 1
        // Predicated region
        $region13: #{resblock_3d.1} parent=11 // pred_check
          %p187 = pneg %p62
        $region14: #{resblock_3d.1} parent=11 // pred_check_branch
          %189 = sbr.rel (%p187) target = $region16
        $region15: #{resblock_3d.1} parent=11 // pred_region
          _
        $region16: #{resblock_3d.1} parent=11 // pred_fallthru
          _
        // Predicated region
        $region17: #{resblock_3d.1} parent=11 // pred_check
          %p190 = pneg %p83
        $region18: #{resblock_3d.1} parent=11 // pred_check_branch
          %192 = sbr.rel (%p190) target = $region20
        $region19: #{resblock_3d.1} parent=11 // pred_region
          %s194 = ssub.s32 32, 32
          %195 = vsyncadd [#allocation5], %s194
          %s197 = sshll.u32 %s2, 4
          %s198 = int_to_ptr.vmem [resolvable:$true] %s197
          %200 = dma.vmem_to_smem %s198, 32, [#allocation4], [#allocation5]
        $region20: #{resblock_3d.1} parent=11 // pred_fallthru
          _
        // Predicated region
        $region21: #{resblock_3d.1} parent=11 // pred_check
          %p201 = pneg %p104
        $region22: #{resblock_3d.1} parent=11 // pred_check_branch
          %203 = sbr.rel (%p201) target = $region24
        $region23: #{resblock_3d.1} parent=11 // pred_region
          %s205 = ssub.s32 16, 16
          %206 = vsyncadd [#allocation7], %s205
          %s208 = sshll.u32 %s3, 4
          %s209 = int_to_ptr.vmem [resolvable:$true] %s208
          %211 = dma.vmem_to_smem %s209, 16, [#allocation6], [#allocation7]
        $region24: #{resblock_3d.1} parent=11 // pred_fallthru
          _
        // Predicated region
        $region25: #{resblock_3d.1} parent=11 // pred_check
          %p212 = pneg %p125
        $region26: #{resblock_3d.1} parent=11 // pred_check_branch
          %214 = sbr.rel (%p212) target = $region28
        $region27: #{resblock_3d.1} parent=11 // pred_region
          %s216 = ssub.s32 32, 32
          %217 = vsyncadd [#allocation7], %s216
          %s219 = sshll.u32 %s4, 4
          %s220 = int_to_ptr.vmem [resolvable:$true] %s219
          %222 = dma.vmem_to_smem %s220, 32, [#allocation8], [#allocation7]
        $region28: #{resblock_3d.1} parent=11 // pred_fallthru
          _
        // Predicated region
        $region29: #{resblock_3d.1} parent=11 // pred_check
          %p223 = pneg %p146
        $region30: #{resblock_3d.1} parent=11 // pred_check_branch
          %225 = sbr.rel (%p223) target = $region32
        $region31: #{resblock_3d.1} parent=11 // pred_region
          _
        $region32: #{resblock_3d.1} parent=11 // pred_fallthru
          _
      $region12: #{resblock_3d.1} parent=5 // pred_fallthru
        _
      %p226 = scmp.lt.s32.totalorder %s15, 2
      // Predicated region
      $region33: #{resblock_3d.1} parent=5 // pred_check
        %p227 = pneg %p226
      $region34: #{resblock_3d.1} parent=5 // pred_check_branch
        %229 = sbr.rel (%p227) target = $region36
      $region35: #{resblock_3d.1} parent=5 // pred_region
        // Predicated region
        $region37: #{resblock_3d.1} parent=35 // pred_check
          %p230 = pneg %p35
        $region38: #{resblock_3d.1} parent=35 // pred_check_branch
          %232 = sbr.rel (%p230) target = $region40
        $region39: #{resblock_3d.1} parent=35 // pred_region
          %p233 = scmp.lt.s32.totalorder %s15, 1
          %s234 = scalar_select %p233, %s15, 1
          %s235 = smul.addr %s234, 2
          %s236 = smul.addr %s235, 8
          %s237 = scalar_lea.vmem %s0, %s236
        $region40: #{resblock_3d.1} parent=35 // pred_fallthru
          _
      $region36: #{resblock_3d.1} parent=5 // pred_fallthru
        _
      %p238 = scmp.le.s32.totalorder 1, %s15
      %p239 = scmp.lt.s32.totalorder %s15, 3
      %p240 = pnand %p238, %p239
      %p241 = pneg %p240
      // Predicated region
      $region41: #{resblock_3d.1} parent=5 // pred_check
        _
      $region42: #{resblock_3d.1} parent=5 // pred_check_branch
        %243 = sbr.rel (%p240) target = $region44
      $region43: #{resblock_3d.1} parent=5 // pred_region
        %s244 = ssub.s32 %s15, 1
        // Predicated region
        $region45: #{resblock_3d.1} parent=43 // pred_check
          %p245 = pneg %p83
        $region46: #{resblock_3d.1} parent=43 // pred_check_branch
          %247 = sbr.rel (%p245) target = $region48
        $region47: #{resblock_3d.1} parent=43 // pred_region
          %248 = dma.done [#allocation5], 32
        $region48: #{resblock_3d.1} parent=43 // pred_fallthru
          _
        // Predicated region
        $region49: #{resblock_3d.1} parent=43 // pred_check
          %p249 = pneg %p104
        $region50: #{resblock_3d.1} parent=43 // pred_check_branch
          %251 = sbr.rel (%p249) target = $region52
        $region51: #{resblock_3d.1} parent=43 // pred_region
          %252 = dma.done [#allocation7], 16
        $region52: #{resblock_3d.1} parent=43 // pred_fallthru
          _
        // Predicated region
        $region53: #{resblock_3d.1} parent=43 // pred_check
          %p253 = pneg %p125
        $region54: #{resblock_3d.1} parent=43 // pred_check_branch
          %255 = sbr.rel (%p253) target = $region56
        $region55: #{resblock_3d.1} parent=43 // pred_region
          %256 = dma.done [#allocation7], 32
        $region56: #{resblock_3d.1} parent=43 // pred_fallthru
          _
        %257 = sfence
        %p258 = scmp.lt.s32.totalorder %s20, 1
        %s259 = scalar_select %p258, %s20, 1
        %s260 = smul.addr %s259, 2
        %s261 = smul.addr %s260, 8
        %s262 = scalar_lea.vmem %s0, %s261
        %p263 = pneg %p41
        %p264 = pneg %p38
        %p265 = pneg %p62
        %p266 = pneg %p59
        %p267 = pneg %p83
        %p268 = pneg %p80
        %p269 = pneg %p104
        %p270 = pneg %p101
        %p271 = pneg %p125
        %p272 = pneg %p122
        %p273 = pneg %p146
        %p274 = pneg %p143
        %p275 = pneg %p172
        %p276 = pneg %p169
        %p277 = scmp.lt.s32.totalorder %s20, 1
        %s278 = scalar_select %p277, %s20, 1
        %s279 = smul.addr %s278, 2
        %s280 = smul.addr %s279, 4
        %s281 = scalar_lea.vmem %s6, %s280
        %p282 = scmp.lt.s32.totalorder %s20, 1
        %s283 = scalar_select %p282, %s20, 1
        %s284 = smul.addr %s283, 2
        %s285 = smul.addr %s284, 8
        %s286 = scalar_lea.vmem %s0, %s285
        %p287 = scmp.lt.s32.totalorder %s20, 1
        %s288 = scalar_select %p287, %s20, 1
        %s289 = smul.addr %s288, 2
        %s290 = smul.addr %s289, 4
        %s291 = scalar_lea.vmem %s6, %s290
        %v292 = vld [vmem:[%s286] sm:$0x3f]
        %v293 = vld [vmem:[%s286 + $0x8] sm:$0x3f]
        %s294 = sld [smem:[#allocation6]]
        %v295 = vstv %s294
        %s296 = sld [smem:[#allocation6 + $0x1]]
        %v297 = vstv %s296
        %s298 = sld [smem:[#allocation6 + $0x2]]
        %v299 = vstv %s298
        %s300 = sld [smem:[#allocation6 + $0x3]]
        %v301 = vstv %s300
        %s302 = sld [smem:[#allocation6 + $0x4]]
        %v303 = vstv %s302
        %s304 = sld [smem:[#allocation6 + $0x5]]
        %v305 = vstv %s304
        %s306 = sld [smem:[#allocation6 + $0x6]]
        %v307 = vstv %s306
        %s308 = sld [smem:[#allocation6 + $0x7]]
        %v309 = vstv %s308
        %311 = vrot.lane.b32.xlu0 %v293, 17
        %v312 = vpop.permute.xlu0 %311
        %315 = vrot.lane.b32.xlu0 %v292, 17
        %v316 = vpop.permute.xlu0 %315
        %vm317 = vcmask 138240
        %v318 = vsel %vm317, %v316, %v312
        %v321 = vsel %vm317, %v312, %v316
        %v322 = vld [vmem:[%s1] sm:$0x3]
        %v324 = vlaneseq
        %v325 = vshrl.u32 %v324, 7
        %v326 = vsub.s32 0, %v325
        %v327 = vrot.slane %v322, %v326
        %v328 = vlaneseq
        %v329 = vshrl.u32 %v328, 7
        %v330 = vsub.s32 1, %v329
        %v331 = vrot.slane %v322, %v330
        %v334 = vmul.f32 %v321, %v327
        %v335 = vmul.f32 %v318, %v331
        %s336 = sld [smem:[#allocation4]]
        %v337 = vstv %s336
        %v338 = vmul.f32 %v337, %v334
        %v339 = vmul.f32 %v337, %v335
        %v340 = vadd.f32 %v295, %v338
        %v341 = vadd.f32 %v295, %v339
        %s342 = sld [smem:[#allocation4 + $0x1b]]
        %v343 = vstv %s342
        %v344 = vmul.f32 %v343, %v334
        %v345 = vmul.f32 %v343, %v335
        %v346 = vadd.f32 %v297, %v344
        %v347 = vadd.f32 %v297, %v345
        %s348 = sld [smem:[#allocation4 + $0x36]]
        %v349 = vstv %s348
        %v350 = vmul.f32 %v349, %v334
        %v351 = vmul.f32 %v349, %v335
        %v352 = vadd.f32 %v299, %v350
        %v353 = vadd.f32 %v299, %v351
        %s354 = sld [smem:[#allocation4 + $0x51]]
        %v355 = vstv %s354
        %v356 = vmul.f32 %v355, %v334
        %v357 = vmul.f32 %v355, %v335
        %v358 = vadd.f32 %v301, %v356
        %v359 = vadd.f32 %v301, %v357
        %s360 = sld [smem:[#allocation4 + $0x6c]]
        %v361 = vstv %s360
        %v362 = vmul.f32 %v361, %v334
        %v363 = vmul.f32 %v361, %v335
        %v364 = vadd.f32 %v303, %v362
        %v365 = vadd.f32 %v303, %v363
        %s366 = sld [smem:[#allocation4 + $0x87]]
        %v367 = vstv %s366
        %v368 = vmul.f32 %v367, %v334
        %v369 = vmul.f32 %v367, %v335
        %v370 = vadd.f32 %v305, %v368
        %v371 = vadd.f32 %v305, %v369
        %s372 = sld [smem:[#allocation4 + $0xa2]]
        %v373 = vstv %s372
        %v374 = vmul.f32 %v373, %v334
        %v375 = vmul.f32 %v373, %v335
        %v376 = vadd.f32 %v307, %v374
        %v377 = vadd.f32 %v307, %v375
        %s378 = sld [smem:[#allocation4 + $0xbd]]
        %v379 = vstv %s378
        %v380 = vmul.f32 %v379, %v334
        %v381 = vmul.f32 %v379, %v335
        %v382 = vadd.f32 %v309, %v380
        %v383 = vadd.f32 %v309, %v381
        %s384 = sld [smem:[#allocation4 + $0x9]]
        %v385 = vstv %s384
        %v386 = vmul.f32 %v385, %v334
        %v387 = vmul.f32 %v385, %v335
        %v390 = vrot.slane %v386, 1
        %v391 = vrot.slane %v387, 1
        %v394 = vadd.f32 %v340, %v390
        %v395 = vadd.f32 %v341, %v391
        %s396 = sld [smem:[#allocation4 + $0x24]]
        %v397 = vstv %s396
        %v398 = vmul.f32 %v397, %v334
        %v399 = vmul.f32 %v397, %v335
        %v402 = vrot.slane %v398, 1
        %v403 = vrot.slane %v399, 1
        %v406 = vadd.f32 %v346, %v402
        %v407 = vadd.f32 %v347, %v403
        %s408 = sld [smem:[#allocation4 + $0x3f]]
        %v409 = vstv %s408
        %v410 = vmul.f32 %v409, %v334
        %v411 = vmul.f32 %v409, %v335
        %v414 = vrot.slane %v410, 1
        %v415 = vrot.slane %v411, 1
        %v418 = vadd.f32 %v352, %v414
        %v419 = vadd.f32 %v353, %v415
        %s420 = sld [smem:[#allocation4 + $0x5a]]
        %v421 = vstv %s420
        %v422 = vmul.f32 %v421, %v334
        %v423 = vmul.f32 %v421, %v335
        %v426 = vrot.slane %v422, 1
        %v427 = vrot.slane %v423, 1
        %v430 = vadd.f32 %v358, %v426
        %v431 = vadd.f32 %v359, %v427
        %s432 = sld [smem:[#allocation4 + $0x75]]
        %v433 = vstv %s432
        %v434 = vmul.f32 %v433, %v334
        %v435 = vmul.f32 %v433, %v335
        %v438 = vrot.slane %v434, 1
        %v439 = vrot.slane %v435, 1
        %v442 = vadd.f32 %v364, %v438
        %v443 = vadd.f32 %v365, %v439
        %s444 = sld [smem:[#allocation4 + $0x90]]
        %v445 = vstv %s444
        %v446 = vmul.f32 %v445, %v334
        %v447 = vmul.f32 %v445, %v335
        %v450 = vrot.slane %v446, 1
        %v451 = vrot.slane %v447, 1
        %v454 = vadd.f32 %v370, %v450
        %v455 = vadd.f32 %v371, %v451
        %s456 = sld [smem:[#allocation4 + $0xab]]
        %v457 = vstv %s456
        %v458 = vmul.f32 %v457, %v334
        %v459 = vmul.f32 %v457, %v335
        %v462 = vrot.slane %v458, 1
        %v463 = vrot.slane %v459, 1
        %v466 = vadd.f32 %v376, %v462
        %v467 = vadd.f32 %v377, %v463
        %s468 = sld [smem:[#allocation4 + $0xc6]]
        %v469 = vstv %s468
        %v470 = vmul.f32 %v469, %v334
        %v471 = vmul.f32 %v469, %v335
        %v474 = vrot.slane %v470, 1
        %v475 = vrot.slane %v471, 1
        %v478 = vadd.f32 %v382, %v474
        %v479 = vadd.f32 %v383, %v475
        %s480 = sld [smem:[#allocation4 + $0x12]]
        %v481 = vstv %s480
        %v482 = vmul.f32 %v481, %v334
        %v483 = vmul.f32 %v481, %v335
        %v486 = vrot.slane %v482, 2
        %v487 = vrot.slane %v483, 2
        %v490 = vadd.f32 %v394, %v486
        %v491 = vadd.f32 %v395, %v487
        %s492 = sld [smem:[#allocation4 + $0x2d]]
        %v493 = vstv %s492
        %v494 = vmul.f32 %v493, %v334
        %v495 = vmul.f32 %v493, %v335
        %v498 = vrot.slane %v494, 2
        %v499 = vrot.slane %v495, 2
        %v502 = vadd.f32 %v406, %v498
        %v503 = vadd.f32 %v407, %v499
        %s504 = sld [smem:[#allocation4 + $0x48]]
        %v505 = vstv %s504
        %v506 = vmul.f32 %v505, %v334
        %v507 = vmul.f32 %v505, %v335
        %v510 = vrot.slane %v506, 2
        %v511 = vrot.slane %v507, 2
        %v514 = vadd.f32 %v418, %v510
        %v515 = vadd.f32 %v419, %v511
        %s516 = sld [smem:[#allocation4 + $0x63]]
        %v517 = vstv %s516
        %v518 = vmul.f32 %v517, %v334
        %v519 = vmul.f32 %v517, %v335
        %v522 = vrot.slane %v518, 2
        %v523 = vrot.slane %v519, 2
        %v526 = vadd.f32 %v430, %v522
        %v527 = vadd.f32 %v431, %v523
        %s528 = sld [smem:[#allocation4 + $0x7e]]
        %v529 = vstv %s528
        %v530 = vmul.f32 %v529, %v334
        %v531 = vmul.f32 %v529, %v335
        %v534 = vrot.slane %v530, 2
        %v535 = vrot.slane %v531, 2
        %v538 = vadd.f32 %v442, %v534
        %v539 = vadd.f32 %v443, %v535
        %s540 = sld [smem:[#allocation4 + $0x99]]
        %v541 = vstv %s540
        %v542 = vmul.f32 %v541, %v334
        %v543 = vmul.f32 %v541, %v335
        %v546 = vrot.slane %v542, 2
        %v547 = vrot.slane %v543, 2
        %v550 = vadd.f32 %v454, %v546
        %v551 = vadd.f32 %v455, %v547
        %s552 = sld [smem:[#allocation4 + $0xb4]]
        %v553 = vstv %s552
        %v554 = vmul.f32 %v553, %v334
        %v555 = vmul.f32 %v553, %v335
        %v558 = vrot.slane %v554, 2
        %v559 = vrot.slane %v555, 2
        %v562 = vadd.f32 %v466, %v558
        %v563 = vadd.f32 %v467, %v559
        %s564 = sld [smem:[#allocation4 + $0xcf]]
        %v565 = vstv %s564
        %v566 = vmul.f32 %v565, %v334
        %v567 = vmul.f32 %v565, %v335
        %v570 = vrot.slane %v566, 2
        %v571 = vrot.slane %v567, 2
        %v574 = vadd.f32 %v478, %v570
        %v575 = vadd.f32 %v479, %v571
        %576 = vrot.lane.b32.xlu0 %v293, 16
        %v577 = vpop.permute.xlu0 %576
        %579 = vrot.lane.b32.xlu0 %v292, 16
        %v580 = vpop.permute.xlu0 %579
        %vm581 = vcmask 130048
        %v582 = vsel %vm581, %v580, %v577
        %v585 = vsel %vm581, %v577, %v580
        %s586 = scalar_lea.vmem %s1, 2
        %v587 = vld [vmem:[%s586] sm:$0x3]
        %v589 = vlaneseq
        %v590 = vshrl.u32 %v589, 7
        %v591 = vsub.s32 0, %v590
        %v592 = vrot.slane %v587, %v591
        %v593 = vlaneseq
        %v594 = vshrl.u32 %v593, 7
        %v595 = vsub.s32 1, %v594
        %v596 = vrot.slane %v587, %v595
        %v599 = vmul.f32 %v585, %v592
        %v600 = vmul.f32 %v582, %v596
        %s601 = sld [smem:[#allocation4 + $0x1]]
        %v602 = vstv %s601
        %v603 = vmul.f32 %v602, %v599
        %v604 = vmul.f32 %v602, %v600
        %v605 = vadd.f32 %v490, %v603
        %v606 = vadd.f32 %v491, %v604
        %s607 = sld [smem:[#allocation4 + $0x1c]]
        %v608 = vstv %s607
        %v609 = vmul.f32 %v608, %v599
        %v610 = vmul.f32 %v608, %v600
        %v611 = vadd.f32 %v502, %v609
        %v612 = vadd.f32 %v503, %v610
        %s613 = sld [smem:[#allocation4 + $0x37]]
        %v614 = vstv %s613
        %v615 = vmul.f32 %v614, %v599
        %v616 = vmul.f32 %v614, %v600
        %v617 = vadd.f32 %v514, %v615
        %v618 = vadd.f32 %v515, %v616
        %s619 = sld [smem:[#allocation4 + $0x52]]
        %v620 = vstv %s619
        %v621 = vmul.f32 %v620, %v599
        %v622 = vmul.f32 %v620, %v600
        %v623 = vadd.f32 %v526, %v621
        %v624 = vadd.f32 %v527, %v622
        %s625 = sld [smem:[#allocation4 + $0x6d]]
        %v626 = vstv %s625
        %v627 = vmul.f32 %v626, %v599
        %v628 = vmul.f32 %v626, %v600
        %v629 = vadd.f32 %v538, %v627
        %v630 = vadd.f32 %v539, %v628
        %s631 = sld [smem:[#allocation4 + $0x88]]
        %v632 = vstv %s631
        %v633 = vmul.f32 %v632, %v599
        %v634 = vmul.f32 %v632, %v600
        %v635 = vadd.f32 %v550, %v633
        %v636 = vadd.f32 %v551, %v634
        %s637 = sld [smem:[#allocation4 + $0xa3]]
        %v638 = vstv %s637
        %v639 = vmul.f32 %v638, %v599
        %v640 = vmul.f32 %v638, %v600
        %v641 = vadd.f32 %v562, %v639
        %v642 = vadd.f32 %v563, %v640
        %s643 = sld [smem:[#allocation4 + $0xbe]]
        %v644 = vstv %s643
        %v645 = vmul.f32 %v644, %v599
        %v646 = vmul.f32 %v644, %v600
        %v647 = vadd.f32 %v574, %v645
        %v648 = vadd.f32 %v575, %v646
        %s649 = sld [smem:[#allocation4 + $0xa]]
        %v650 = vstv %s649
        %v651 = vmul.f32 %v650, %v599
        %v652 = vmul.f32 %v650, %v600
        %v655 = vrot.slane %v651, 1
        %v656 = vrot.slane %v652, 1
        %v659 = vadd.f32 %v605, %v655
        %v660 = vadd.f32 %v606, %v656
        %s661 = sld [smem:[#allocation4 + $0x25]]
        %v662 = vstv %s661
        %v663 = vmul.f32 %v662, %v599
        %v664 = vmul.f32 %v662, %v600
        %v667 = vrot.slane %v663, 1
        %v668 = vrot.slane %v664, 1
        %v671 = vadd.f32 %v611, %v667
        %v672 = vadd.f32 %v612, %v668
        %s673 = sld [smem:[#allocation4 + $0x40]]
        %v674 = vstv %s673
        %v675 = vmul.f32 %v674, %v599
        %v676 = vmul.f32 %v674, %v600
        %v679 = vrot.slane %v675, 1
        %v680 = vrot.slane %v676, 1
        %v683 = vadd.f32 %v617, %v679
        %v684 = vadd.f32 %v618, %v680
        %s685 = sld [smem:[#allocation4 + $0x5b]]
        %v686 = vstv %s685
        %v687 = vmul.f32 %v686, %v599
        %v688 = vmul.f32 %v686, %v600
        %v691 = vrot.slane %v687, 1
        %v692 = vrot.slane %v688, 1
        %v695 = vadd.f32 %v623, %v691
        %v696 = vadd.f32 %v624, %v692
        %s697 = sld [smem:[#allocation4 + $0x76]]
        %v698 = vstv %s697
        %v699 = vmul.f32 %v698, %v599
        %v700 = vmul.f32 %v698, %v600
        %v703 = vrot.slane %v699, 1
        %v704 = vrot.slane %v700, 1
        %v707 = vadd.f32 %v629, %v703
        %v708 = vadd.f32 %v630, %v704
        %s709 = sld [smem:[#allocation4 + $0x91]]
        %v710 = vstv %s709
        %v711 = vmul.f32 %v710, %v599
        %v712 = vmul.f32 %v710, %v600
        %v715 = vrot.slane %v711, 1
        %v716 = vrot.slane %v712, 1
        %v719 = vadd.f32 %v635, %v715
        %v720 = vadd.f32 %v636, %v716
        %s721 = sld [smem:[#allocation4 + $0xac]]
        %v722 = vstv %s721
        %v723 = vmul.f32 %v722, %v599
        %v724 = vmul.f32 %v722, %v600
        %v727 = vrot.slane %v723, 1
        %v728 = vrot.slane %v724, 1
        %v731 = vadd.f32 %v641, %v727
        %v732 = vadd.f32 %v642, %v728
        %s733 = sld [smem:[#allocation4 + $0xc7]]
        %v734 = vstv %s733
        %v735 = vmul.f32 %v734, %v599
        %v736 = vmul.f32 %v734, %v600
        %v739 = vrot.slane %v735, 1
        %v740 = vrot.slane %v736, 1
        %v743 = vadd.f32 %v647, %v739
        %v744 = vadd.f32 %v648, %v740
        %s745 = sld [smem:[#allocation4 + $0x13]]
        %v746 = vstv %s745
        %v747 = vmul.f32 %v746, %v599
        %v748 = vmul.f32 %v746, %v600
        %v751 = vrot.slane %v747, 2
        %v752 = vrot.slane %v748, 2
        %v755 = vadd.f32 %v659, %v751
        %v756 = vadd.f32 %v660, %v752
        %s757 = sld [smem:[#allocation4 + $0x2e]]
        %v758 = vstv %s757
        %v759 = vmul.f32 %v758, %v599
        %v760 = vmul.f32 %v758, %v600
        %v763 = vrot.slane %v759, 2
        %v764 = vrot.slane %v760, 2
        %v767 = vadd.f32 %v671, %v763
        %v768 = vadd.f32 %v672, %v764
        %s769 = sld [smem:[#allocation4 + $0x49]]
        %v770 = vstv %s769
        %v771 = vmul.f32 %v770, %v599
        %v772 = vmul.f32 %v770, %v600
        %v775 = vrot.slane %v771, 2
        %v776 = vrot.slane %v772, 2
        %v779 = vadd.f32 %v683, %v775
        %v780 = vadd.f32 %v684, %v776
        %s781 = sld [smem:[#allocation4 + $0x64]]
        %v782 = vstv %s781
        %v783 = vmul.f32 %v782, %v599
        %v784 = vmul.f32 %v782, %v600
        %v787 = vrot.slane %v783, 2
        %v788 = vrot.slane %v784, 2
        %v791 = vadd.f32 %v695, %v787
        %v792 = vadd.f32 %v696, %v788
        %s793 = sld [smem:[#allocation4 + $0x7f]]
        %v794 = vstv %s793
        %v795 = vmul.f32 %v794, %v599
        %v796 = vmul.f32 %v794, %v600
        %v799 = vrot.slane %v795, 2
        %v800 = vrot.slane %v796, 2
        %v803 = vadd.f32 %v707, %v799
        %v804 = vadd.f32 %v708, %v800
        %s805 = sld [smem:[#allocation4 + $0x9a]]
        %v806 = vstv %s805
        %v807 = vmul.f32 %v806, %v599
        %v808 = vmul.f32 %v806, %v600
        %v811 = vrot.slane %v807, 2
        %v812 = vrot.slane %v808, 2
        %v815 = vadd.f32 %v719, %v811
        %v816 = vadd.f32 %v720, %v812
        %s817 = sld [smem:[#allocation4 + $0xb5]]
        %v818 = vstv %s817
        %v819 = vmul.f32 %v818, %v599
        %v820 = vmul.f32 %v818, %v600
        %v823 = vrot.slane %v819, 2
        %v824 = vrot.slane %v820, 2
        %v827 = vadd.f32 %v731, %v823
        %v828 = vadd.f32 %v732, %v824
        %s829 = sld [smem:[#allocation4 + $0xd0]]
        %v830 = vstv %s829
        %v831 = vmul.f32 %v830, %v599
        %v832 = vmul.f32 %v830, %v600
        %v835 = vrot.slane %v831, 2
        %v836 = vrot.slane %v832, 2
        %v839 = vadd.f32 %v743, %v835
        %v840 = vadd.f32 %v744, %v836
        %841 = vrot.lane.b32.xlu0 %v293, 15
        %v842 = vpop.permute.xlu0 %841
        %844 = vrot.lane.b32.xlu0 %v292, 15
        %v845 = vpop.permute.xlu0 %844
        %vm846 = vcmask 121856
        %v847 = vsel %vm846, %v845, %v842
        %v850 = vsel %vm846, %v842, %v845
        %s851 = scalar_lea.vmem %s1, 4
        %v852 = vld [vmem:[%s851] sm:$0x3]
        %v854 = vlaneseq
        %v855 = vshrl.u32 %v854, 7
        %v856 = vsub.s32 0, %v855
        %v857 = vrot.slane %v852, %v856
        %v858 = vlaneseq
        %v859 = vshrl.u32 %v858, 7
        %v860 = vsub.s32 1, %v859
        %v861 = vrot.slane %v852, %v860
        %v864 = vmul.f32 %v850, %v857
        %v865 = vmul.f32 %v847, %v861
        %s866 = sld [smem:[#allocation4 + $0x2]]
        %v867 = vstv %s866
        %v868 = vmul.f32 %v867, %v864
        %v869 = vmul.f32 %v867, %v865
        %v870 = vadd.f32 %v755, %v868
        %v871 = vadd.f32 %v756, %v869
        %s872 = sld [smem:[#allocation4 + $0x1d]]
        %v873 = vstv %s872
        %v874 = vmul.f32 %v873, %v864
        %v875 = vmul.f32 %v873, %v865
        %v876 = vadd.f32 %v767, %v874
        %v877 = vadd.f32 %v768, %v875
        %s878 = sld [smem:[#allocation4 + $0x38]]
        %v879 = vstv %s878
        %v880 = vmul.f32 %v879, %v864
        %v881 = vmul.f32 %v879, %v865
        %v882 = vadd.f32 %v779, %v880
        %v883 = vadd.f32 %v780, %v881
        %s884 = sld [smem:[#allocation4 + $0x53]]
        %v885 = vstv %s884
        %v886 = vmul.f32 %v885, %v864
        %v887 = vmul.f32 %v885, %v865
        %v888 = vadd.f32 %v791, %v886
        %v889 = vadd.f32 %v792, %v887
        %s890 = sld [smem:[#allocation4 + $0x6e]]
        %v891 = vstv %s890
        %v892 = vmul.f32 %v891, %v864
        %v893 = vmul.f32 %v891, %v865
        %v894 = vadd.f32 %v803, %v892
        %v895 = vadd.f32 %v804, %v893
        %s896 = sld [smem:[#allocation4 + $0x89]]
        %v897 = vstv %s896
        %v898 = vmul.f32 %v897, %v864
        %v899 = vmul.f32 %v897, %v865
        %v900 = vadd.f32 %v815, %v898
        %v901 = vadd.f32 %v816, %v899
        %s902 = sld [smem:[#allocation4 + $0xa4]]
        %v903 = vstv %s902
        %v904 = vmul.f32 %v903, %v864
        %v905 = vmul.f32 %v903, %v865
        %v906 = vadd.f32 %v827, %v904
        %v907 = vadd.f32 %v828, %v905
        %s908 = sld [smem:[#allocation4 + $0xbf]]
        %v909 = vstv %s908
        %v910 = vmul.f32 %v909, %v864
        %v911 = vmul.f32 %v909, %v865
        %v912 = vadd.f32 %v839, %v910
        %v913 = vadd.f32 %v840, %v911
        %s914 = sld [smem:[#allocation4 + $0xb]]
        %v915 = vstv %s914
        %v916 = vmul.f32 %v915, %v864
        %v917 = vmul.f32 %v915, %v865
        %v920 = vrot.slane %v916, 1
        %v921 = vrot.slane %v917, 1
        %v924 = vadd.f32 %v870, %v920
        %v925 = vadd.f32 %v871, %v921
        %s926 = sld [smem:[#allocation4 + $0x26]]
        %v927 = vstv %s926
        %v928 = vmul.f32 %v927, %v864
        %v929 = vmul.f32 %v927, %v865
        %v932 = vrot.slane %v928, 1
        %v933 = vrot.slane %v929, 1
        %v936 = vadd.f32 %v876, %v932
        %v937 = vadd.f32 %v877, %v933
        %s938 = sld [smem:[#allocation4 + $0x41]]
        %v939 = vstv %s938
        %v940 = vmul.f32 %v939, %v864
        %v941 = vmul.f32 %v939, %v865
        %v944 = vrot.slane %v940, 1
        %v945 = vrot.slane %v941, 1
        %v948 = vadd.f32 %v882, %v944
        %v949 = vadd.f32 %v883, %v945
        %s950 = sld [smem:[#allocation4 + $0x5c]]
        %v951 = vstv %s950
        %v952 = vmul.f32 %v951, %v864
        %v953 = vmul.f32 %v951, %v865
        %v956 = vrot.slane %v952, 1
        %v957 = vrot.slane %v953, 1
        %v960 = vadd.f32 %v888, %v956
        %v961 = vadd.f32 %v889, %v957
        %s962 = sld [smem:[#allocation4 + $0x77]]
        %v963 = vstv %s962
        %v964 = vmul.f32 %v963, %v864
        %v965 = vmul.f32 %v963, %v865
        %v968 = vrot.slane %v964, 1
        %v969 = vrot.slane %v965, 1
        %v972 = vadd.f32 %v894, %v968
        %v973 = vadd.f32 %v895, %v969
        %s974 = sld [smem:[#allocation4 + $0x92]]
        %v975 = vstv %s974
        %v976 = vmul.f32 %v975, %v864
        %v977 = vmul.f32 %v975, %v865
        %v980 = vrot.slane %v976, 1
        %v981 = vrot.slane %v977, 1
        %v984 = vadd.f32 %v900, %v980
        %v985 = vadd.f32 %v901, %v981
        %s986 = sld [smem:[#allocation4 + $0xad]]
        %v987 = vstv %s986
        %v988 = vmul.f32 %v987, %v864
        %v989 = vmul.f32 %v987, %v865
        %v992 = vrot.slane %v988, 1
        %v993 = vrot.slane %v989, 1
        %v996 = vadd.f32 %v906, %v992
        %v997 = vadd.f32 %v907, %v993
        %s998 = sld [smem:[#allocation4 + $0xc8]]
        %v999 = vstv %s998
        %v1000 = vmul.f32 %v999, %v864
        %v1001 = vmul.f32 %v999, %v865
        %v1004 = vrot.slane %v1000, 1
        %v1005 = vrot.slane %v1001, 1
        %v1008 = vadd.f32 %v912, %v1004
        %v1009 = vadd.f32 %v913, %v1005
        %s1010 = sld [smem:[#allocation4 + $0x14]]
        %v1011 = vstv %s1010
        %v1012 = vmul.f32 %v1011, %v864
        %v1013 = vmul.f32 %v1011, %v865
        %v1016 = vrot.slane %v1012, 2
        %v1017 = vrot.slane %v1013, 2
        %v1020 = vadd.f32 %v924, %v1016
        %v1021 = vadd.f32 %v925, %v1017
        %s1022 = sld [smem:[#allocation4 + $0x2f]]
        %v1023 = vstv %s1022
        %v1024 = vmul.f32 %v1023, %v864
        %v1025 = vmul.f32 %v1023, %v865
        %v1028 = vrot.slane %v1024, 2
        %v1029 = vrot.slane %v1025, 2
        %v1032 = vadd.f32 %v936, %v1028
        %v1033 = vadd.f32 %v937, %v1029
        %s1034 = sld [smem:[#allocation4 + $0x4a]]
        %v1035 = vstv %s1034
        %v1036 = vmul.f32 %v1035, %v864
        %v1037 = vmul.f32 %v1035, %v865
        %v1040 = vrot.slane %v1036, 2
        %v1041 = vrot.slane %v1037, 2
        %v1044 = vadd.f32 %v948, %v1040
        %v1045 = vadd.f32 %v949, %v1041
        %s1046 = sld [smem:[#allocation4 + $0x65]]
        %v1047 = vstv %s1046
        %v1048 = vmul.f32 %v1047, %v864
        %v1049 = vmul.f32 %v1047, %v865
        %v1052 = vrot.slane %v1048, 2
        %v1053 = vrot.slane %v1049, 2
        %v1056 = vadd.f32 %v960, %v1052
        %v1057 = vadd.f32 %v961, %v1053
        %s1058 = sld [smem:[#allocation4 + $0x80]]
        %v1059 = vstv %s1058
        %v1060 = vmul.f32 %v1059, %v864
        %v1061 = vmul.f32 %v1059, %v865
        %v1064 = vrot.slane %v1060, 2
        %v1065 = vrot.slane %v1061, 2
        %v1068 = vadd.f32 %v972, %v1064
        %v1069 = vadd.f32 %v973, %v1065
        %s1070 = sld [smem:[#allocation4 + $0x9b]]
        %v1071 = vstv %s1070
        %v1072 = vmul.f32 %v1071, %v864
        %v1073 = vmul.f32 %v1071, %v865
        %v1076 = vrot.slane %v1072, 2
        %v1077 = vrot.slane %v1073, 2
        %v1080 = vadd.f32 %v984, %v1076
        %v1081 = vadd.f32 %v985, %v1077
        %s1082 = sld [smem:[#allocation4 + $0xb6]]
        %v1083 = vstv %s1082
        %v1084 = vmul.f32 %v1083, %v864
        %v1085 = vmul.f32 %v1083, %v865
        %v1088 = vrot.slane %v1084, 2
        %v1089 = vrot.slane %v1085, 2
        %v1092 = vadd.f32 %v996, %v1088
        %v1093 = vadd.f32 %v997, %v1089
        %s1094 = sld [smem:[#allocation4 + $0xd1]]
        %v1095 = vstv %s1094
        %v1096 = vmul.f32 %v1095, %v864
        %v1097 = vmul.f32 %v1095, %v865
        %v1100 = vrot.slane %v1096, 2
        %v1101 = vrot.slane %v1097, 2
        %v1104 = vadd.f32 %v1008, %v1100
        %v1105 = vadd.f32 %v1009, %v1101
        %1106 = vrot.lane.b32.xlu0 %v293, 1
        %v1107 = vpop.permute.xlu0 %1106
        %1109 = vrot.lane.b32.xlu0 %v292, 1
        %v1110 = vpop.permute.xlu0 %1109
        %vm1111 = vcmask 7168
        %v1112 = vsel %vm1111, %v1110, %v1107
        %v1115 = vsel %vm1111, %v1107, %v1110
        %s1116 = scalar_lea.vmem %s1, 6
        %v1117 = vld [vmem:[%s1116] sm:$0x3]
        %v1119 = vlaneseq
        %v1120 = vshrl.u32 %v1119, 7
        %v1121 = vsub.s32 0, %v1120
        %v1122 = vrot.slane %v1117, %v1121
        %v1123 = vlaneseq
        %v1124 = vshrl.u32 %v1123, 7
        %v1125 = vsub.s32 1, %v1124
        %v1126 = vrot.slane %v1117, %v1125
        %v1129 = vmul.f32 %v1115, %v1122
        %v1130 = vmul.f32 %v1112, %v1126
        %s1131 = sld [smem:[#allocation4 + $0x3]]
        %v1132 = vstv %s1131
        %v1133 = vmul.f32 %v1132, %v1129
        %v1134 = vmul.f32 %v1132, %v1130
        %v1135 = vadd.f32 %v1020, %v1133
        %v1136 = vadd.f32 %v1021, %v1134
        %s1137 = sld [smem:[#allocation4 + $0x1e]]
        %v1138 = vstv %s1137
        %v1139 = vmul.f32 %v1138, %v1129
        %v1140 = vmul.f32 %v1138, %v1130
        %v1141 = vadd.f32 %v1032, %v1139
        %v1142 = vadd.f32 %v1033, %v1140
        %s1143 = sld [smem:[#allocation4 + $0x39]]
        %v1144 = vstv %s1143
        %v1145 = vmul.f32 %v1144, %v1129
        %v1146 = vmul.f32 %v1144, %v1130
        %v1147 = vadd.f32 %v1044, %v1145
        %v1148 = vadd.f32 %v1045, %v1146
        %s1149 = sld [smem:[#allocation4 + $0x54]]
        %v1150 = vstv %s1149
        %v1151 = vmul.f32 %v1150, %v1129
        %v1152 = vmul.f32 %v1150, %v1130
        %v1153 = vadd.f32 %v1056, %v1151
        %v1154 = vadd.f32 %v1057, %v1152
        %s1155 = sld [smem:[#allocation4 + $0x6f]]
        %v1156 = vstv %s1155
        %v1157 = vmul.f32 %v1156, %v1129
        %v1158 = vmul.f32 %v1156, %v1130
        %v1159 = vadd.f32 %v1068, %v1157
        %v1160 = vadd.f32 %v1069, %v1158
        %s1161 = sld [smem:[#allocation4 + $0x8a]]
        %v1162 = vstv %s1161
        %v1163 = vmul.f32 %v1162, %v1129
        %v1164 = vmul.f32 %v1162, %v1130
        %v1165 = vadd.f32 %v1080, %v1163
        %v1166 = vadd.f32 %v1081, %v1164
        %s1167 = sld [smem:[#allocation4 + $0xa5]]
        %v1168 = vstv %s1167
        %v1169 = vmul.f32 %v1168, %v1129
        %v1170 = vmul.f32 %v1168, %v1130
        %v1171 = vadd.f32 %v1092, %v1169
        %v1172 = vadd.f32 %v1093, %v1170
        %s1173 = sld [smem:[#allocation4 + $0xc0]]
        %v1174 = vstv %s1173
        %v1175 = vmul.f32 %v1174, %v1129
        %v1176 = vmul.f32 %v1174, %v1130
        %v1177 = vadd.f32 %v1104, %v1175
        %v1178 = vadd.f32 %v1105, %v1176
        %s1179 = sld [smem:[#allocation4 + $0xc]]
        %v1180 = vstv %s1179
        %v1181 = vmul.f32 %v1180, %v1129
        %v1182 = vmul.f32 %v1180, %v1130
        %v1185 = vrot.slane %v1181, 1
        %v1186 = vrot.slane %v1182, 1
        %v1189 = vadd.f32 %v1135, %v1185
        %v1190 = vadd.f32 %v1136, %v1186
        %s1191 = sld [smem:[#allocation4 + $0x27]]
        %v1192 = vstv %s1191
        %v1193 = vmul.f32 %v1192, %v1129
        %v1194 = vmul.f32 %v1192, %v1130
        %v1197 = vrot.slane %v1193, 1
        %v1198 = vrot.slane %v1194, 1
        %v1201 = vadd.f32 %v1141, %v1197
        %v1202 = vadd.f32 %v1142, %v1198
        %s1203 = sld [smem:[#allocation4 + $0x42]]
        %v1204 = vstv %s1203
        %v1205 = vmul.f32 %v1204, %v1129
        %v1206 = vmul.f32 %v1204, %v1130
        %v1209 = vrot.slane %v1205, 1
        %v1210 = vrot.slane %v1206, 1
        %v1213 = vadd.f32 %v1147, %v1209
        %v1214 = vadd.f32 %v1148, %v1210
        %s1215 = sld [smem:[#allocation4 + $0x5d]]
        %v1216 = vstv %s1215
        %v1217 = vmul.f32 %v1216, %v1129
        %v1218 = vmul.f32 %v1216, %v1130
        %v1221 = vrot.slane %v1217, 1
        %v1222 = vrot.slane %v1218, 1
        %v1225 = vadd.f32 %v1153, %v1221
        %v1226 = vadd.f32 %v1154, %v1222
        %s1227 = sld [smem:[#allocation4 + $0x78]]
        %v1228 = vstv %s1227
        %v1229 = vmul.f32 %v1228, %v1129
        %v1230 = vmul.f32 %v1228, %v1130
        %v1233 = vrot.slane %v1229, 1
        %v1234 = vrot.slane %v1230, 1
        %v1237 = vadd.f32 %v1159, %v1233
        %v1238 = vadd.f32 %v1160, %v1234
        %s1239 = sld [smem:[#allocation4 + $0x93]]
        %v1240 = vstv %s1239
        %v1241 = vmul.f32 %v1240, %v1129
        %v1242 = vmul.f32 %v1240, %v1130
        %v1245 = vrot.slane %v1241, 1
        %v1246 = vrot.slane %v1242, 1
        %v1249 = vadd.f32 %v1165, %v1245
        %v1250 = vadd.f32 %v1166, %v1246
        %s1251 = sld [smem:[#allocation4 + $0xae]]
        %v1252 = vstv %s1251
        %v1253 = vmul.f32 %v1252, %v1129
        %v1254 = vmul.f32 %v1252, %v1130
        %v1257 = vrot.slane %v1253, 1
        %v1258 = vrot.slane %v1254, 1
        %v1261 = vadd.f32 %v1171, %v1257
        %v1262 = vadd.f32 %v1172, %v1258
        %s1263 = sld [smem:[#allocation4 + $0xc9]]
        %v1264 = vstv %s1263
        %v1265 = vmul.f32 %v1264, %v1129
        %v1266 = vmul.f32 %v1264, %v1130
        %v1269 = vrot.slane %v1265, 1
        %v1270 = vrot.slane %v1266, 1
        %v1273 = vadd.f32 %v1177, %v1269
        %v1274 = vadd.f32 %v1178, %v1270
        %s1275 = sld [smem:[#allocation4 + $0x15]]
        %v1276 = vstv %s1275
        %v1277 = vmul.f32 %v1276, %v1129
        %v1278 = vmul.f32 %v1276, %v1130
        %v1281 = vrot.slane %v1277, 2
        %v1282 = vrot.slane %v1278, 2
        %v1285 = vadd.f32 %v1189, %v1281
        %v1286 = vadd.f32 %v1190, %v1282
        %s1287 = sld [smem:[#allocation4 + $0x30]]
        %v1288 = vstv %s1287
        %v1289 = vmul.f32 %v1288, %v1129
        %v1290 = vmul.f32 %v1288, %v1130
        %v1293 = vrot.slane %v1289, 2
        %v1294 = vrot.slane %v1290, 2
        %v1297 = vadd.f32 %v1201, %v1293
        %v1298 = vadd.f32 %v1202, %v1294
        %s1299 = sld [smem:[#allocation4 + $0x4b]]
        %v1300 = vstv %s1299
        %v1301 = vmul.f32 %v1300, %v1129
        %v1302 = vmul.f32 %v1300, %v1130
        %v1305 = vrot.slane %v1301, 2
        %v1306 = vrot.slane %v1302, 2
        %v1309 = vadd.f32 %v1213, %v1305
        %v1310 = vadd.f32 %v1214, %v1306
        %s1311 = sld [smem:[#allocation4 + $0x66]]
        %v1312 = vstv %s1311
        %v1313 = vmul.f32 %v1312, %v1129
        %v1314 = vmul.f32 %v1312, %v1130
        %v1317 = vrot.slane %v1313, 2
        %v1318 = vrot.slane %v1314, 2
        %v1321 = vadd.f32 %v1225, %v1317
        %v1322 = vadd.f32 %v1226, %v1318
        %s1323 = sld [smem:[#allocation4 + $0x81]]
        %v1324 = vstv %s1323
        %v1325 = vmul.f32 %v1324, %v1129
        %v1326 = vmul.f32 %v1324, %v1130
        %v1329 = vrot.slane %v1325, 2
        %v1330 = vrot.slane %v1326, 2
        %v1333 = vadd.f32 %v1237, %v1329
        %v1334 = vadd.f32 %v1238, %v1330
        %s1335 = sld [smem:[#allocation4 + $0x9c]]
        %v1336 = vstv %s1335
        %v1337 = vmul.f32 %v1336, %v1129
        %v1338 = vmul.f32 %v1336, %v1130
        %v1341 = vrot.slane %v1337, 2
        %v1342 = vrot.slane %v1338, 2
        %v1345 = vadd.f32 %v1249, %v1341
        %v1346 = vadd.f32 %v1250, %v1342
        %s1347 = sld [smem:[#allocation4 + $0xb7]]
        %v1348 = vstv %s1347
        %v1349 = vmul.f32 %v1348, %v1129
        %v1350 = vmul.f32 %v1348, %v1130
        %v1353 = vrot.slane %v1349, 2
        %v1354 = vrot.slane %v1350, 2
        %v1357 = vadd.f32 %v1261, %v1353
        %v1358 = vadd.f32 %v1262, %v1354
        %s1359 = sld [smem:[#allocation4 + $0xd2]]
        %v1360 = vstv %s1359
        %v1361 = vmul.f32 %v1360, %v1129
        %v1362 = vmul.f32 %v1360, %v1130
        %v1365 = vrot.slane %v1361, 2
        %v1366 = vrot.slane %v1362, 2
        %v1369 = vadd.f32 %v1273, %v1365
        %v1370 = vadd.f32 %v1274, %v1366
        %s1371 = sld [smem:[#allocation4 + $0x4]]
        %v1372 = vstv %s1371
        %v1373 = vmul.f32 %v1372, %v292
        %v1374 = vmul.f32 %v1372, %v293
        %v1375 = vadd.f32 %v1285, %v1373
        %v1376 = vadd.f32 %v1286, %v1374
        %s1377 = sld [smem:[#allocation4 + $0x1f]]
        %v1378 = vstv %s1377
        %v1379 = vmul.f32 %v1378, %v292
        %v1380 = vmul.f32 %v1378, %v293
        %v1381 = vadd.f32 %v1297, %v1379
        %v1382 = vadd.f32 %v1298, %v1380
        %s1383 = sld [smem:[#allocation4 + $0x3a]]
        %v1384 = vstv %s1383
        %v1385 = vmul.f32 %v1384, %v292
        %v1386 = vmul.f32 %v1384, %v293
        %v1387 = vadd.f32 %v1309, %v1385
        %v1388 = vadd.f32 %v1310, %v1386
        %s1389 = sld [smem:[#allocation4 + $0x55]]
        %v1390 = vstv %s1389
        %v1391 = vmul.f32 %v1390, %v292
        %v1392 = vmul.f32 %v1390, %v293
        %v1393 = vadd.f32 %v1321, %v1391
        %v1394 = vadd.f32 %v1322, %v1392
        %s1395 = sld [smem:[#allocation4 + $0x70]]
        %v1396 = vstv %s1395
        %v1397 = vmul.f32 %v1396, %v292
        %v1398 = vmul.f32 %v1396, %v293
        %v1399 = vadd.f32 %v1333, %v1397
        %v1400 = vadd.f32 %v1334, %v1398
        %s1401 = sld [smem:[#allocation4 + $0x8b]]
        %v1402 = vstv %s1401
        %v1403 = vmul.f32 %v1402, %v292
        %v1404 = vmul.f32 %v1402, %v293
        %v1405 = vadd.f32 %v1345, %v1403
        %v1406 = vadd.f32 %v1346, %v1404
        %s1407 = sld [smem:[#allocation4 + $0xa6]]
        %v1408 = vstv %s1407
        %v1409 = vmul.f32 %v1408, %v292
        %v1410 = vmul.f32 %v1408, %v293
        %v1411 = vadd.f32 %v1357, %v1409
        %v1412 = vadd.f32 %v1358, %v1410
        %s1413 = sld [smem:[#allocation4 + $0xc1]]
        %v1414 = vstv %s1413
        %v1415 = vmul.f32 %v1414, %v292
        %v1416 = vmul.f32 %v1414, %v293
        %v1417 = vadd.f32 %v1369, %v1415
        %v1418 = vadd.f32 %v1370, %v1416
        %s1419 = sld [smem:[#allocation4 + $0xd]]
        %v1420 = vstv %s1419
        %v1421 = vmul.f32 %v1420, %v292
        %v1422 = vmul.f32 %v1420, %v293
        %v1425 = vrot.slane %v1421, 1
        %v1426 = vrot.slane %v1422, 1
        %v1429 = vadd.f32 %v1375, %v1425
        %v1430 = vadd.f32 %v1376, %v1426
        %s1431 = sld [smem:[#allocation4 + $0x28]]
        %v1432 = vstv %s1431
        %v1433 = vmul.f32 %v1432, %v292
        %v1434 = vmul.f32 %v1432, %v293
        %v1437 = vrot.slane %v1433, 1
        %v1438 = vrot.slane %v1434, 1
        %v1441 = vadd.f32 %v1381, %v1437
        %v1442 = vadd.f32 %v1382, %v1438
        %s1443 = sld [smem:[#allocation4 + $0x43]]
        %v1444 = vstv %s1443
        %v1445 = vmul.f32 %v1444, %v292
        %v1446 = vmul.f32 %v1444, %v293
        %v1449 = vrot.slane %v1445, 1
        %v1450 = vrot.slane %v1446, 1
        %v1453 = vadd.f32 %v1387, %v1449
        %v1454 = vadd.f32 %v1388, %v1450
        %s1455 = sld [smem:[#allocation4 + $0x5e]]
        %v1456 = vstv %s1455
        %v1457 = vmul.f32 %v1456, %v292
        %v1458 = vmul.f32 %v1456, %v293
        %v1461 = vrot.slane %v1457, 1
        %v1462 = vrot.slane %v1458, 1
        %v1465 = vadd.f32 %v1393, %v1461
        %v1466 = vadd.f32 %v1394, %v1462
        %s1467 = sld [smem:[#allocation4 + $0x79]]
        %v1468 = vstv %s1467
        %v1469 = vmul.f32 %v1468, %v292
        %v1470 = vmul.f32 %v1468, %v293
        %v1473 = vrot.slane %v1469, 1
        %v1474 = vrot.slane %v1470, 1
        %v1477 = vadd.f32 %v1399, %v1473
        %v1478 = vadd.f32 %v1400, %v1474
        %s1479 = sld [smem:[#allocation4 + $0x94]]
        %v1480 = vstv %s1479
        %v1481 = vmul.f32 %v1480, %v292
        %v1482 = vmul.f32 %v1480, %v293
        %v1485 = vrot.slane %v1481, 1
        %v1486 = vrot.slane %v1482, 1
        %v1489 = vadd.f32 %v1405, %v1485
        %v1490 = vadd.f32 %v1406, %v1486
        %s1491 = sld [smem:[#allocation4 + $0xaf]]
        %v1492 = vstv %s1491
        %v1493 = vmul.f32 %v1492, %v292
        %v1494 = vmul.f32 %v1492, %v293
        %v1497 = vrot.slane %v1493, 1
        %v1498 = vrot.slane %v1494, 1
        %v1501 = vadd.f32 %v1411, %v1497
        %v1502 = vadd.f32 %v1412, %v1498
        %s1503 = sld [smem:[#allocation4 + $0xca]]
        %v1504 = vstv %s1503
        %v1505 = vmul.f32 %v1504, %v292
        %v1506 = vmul.f32 %v1504, %v293
        %v1509 = vrot.slane %v1505, 1
        %v1510 = vrot.slane %v1506, 1
        %v1513 = vadd.f32 %v1417, %v1509
        %v1514 = vadd.f32 %v1418, %v1510
        %s1515 = sld [smem:[#allocation4 + $0x16]]
        %v1516 = vstv %s1515
        %v1517 = vmul.f32 %v1516, %v292
        %v1518 = vmul.f32 %v1516, %v293
        %v1521 = vrot.slane %v1517, 2
        %v1522 = vrot.slane %v1518, 2
        %v1525 = vadd.f32 %v1429, %v1521
        %v1526 = vadd.f32 %v1430, %v1522
        %s1527 = sld [smem:[#allocation4 + $0x31]]
        %v1528 = vstv %s1527
        %v1529 = vmul.f32 %v1528, %v292
        %v1530 = vmul.f32 %v1528, %v293
        %v1533 = vrot.slane %v1529, 2
        %v1534 = vrot.slane %v1530, 2
        %v1537 = vadd.f32 %v1441, %v1533
        %v1538 = vadd.f32 %v1442, %v1534
        %s1539 = sld [smem:[#allocation4 + $0x4c]]
        %v1540 = vstv %s1539
        %v1541 = vmul.f32 %v1540, %v292
        %v1542 = vmul.f32 %v1540, %v293
        %v1545 = vrot.slane %v1541, 2
        %v1546 = vrot.slane %v1542, 2
        %v1549 = vadd.f32 %v1453, %v1545
        %v1550 = vadd.f32 %v1454, %v1546
        %s1551 = sld [smem:[#allocation4 + $0x67]]
        %v1552 = vstv %s1551
        %v1553 = vmul.f32 %v1552, %v292
        %v1554 = vmul.f32 %v1552, %v293
        %v1557 = vrot.slane %v1553, 2
        %v1558 = vrot.slane %v1554, 2
        %v1561 = vadd.f32 %v1465, %v1557
        %v1562 = vadd.f32 %v1466, %v1558
        %s1563 = sld [smem:[#allocation4 + $0x82]]
        %v1564 = vstv %s1563
        %v1565 = vmul.f32 %v1564, %v292
        %v1566 = vmul.f32 %v1564, %v293
        %v1569 = vrot.slane %v1565, 2
        %v1570 = vrot.slane %v1566, 2
        %v1573 = vadd.f32 %v1477, %v1569
        %v1574 = vadd.f32 %v1478, %v1570
        %s1575 = sld [smem:[#allocation4 + $0x9d]]
        %v1576 = vstv %s1575
        %v1577 = vmul.f32 %v1576, %v292
        %v1578 = vmul.f32 %v1576, %v293
        %v1581 = vrot.slane %v1577, 2
        %v1582 = vrot.slane %v1578, 2
        %v1585 = vadd.f32 %v1489, %v1581
        %v1586 = vadd.f32 %v1490, %v1582
        %s1587 = sld [smem:[#allocation4 + $0xb8]]
        %v1588 = vstv %s1587
        %v1589 = vmul.f32 %v1588, %v292
        %v1590 = vmul.f32 %v1588, %v293
        %v1593 = vrot.slane %v1589, 2
        %v1594 = vrot.slane %v1590, 2
        %v1597 = vadd.f32 %v1501, %v1593
        %v1598 = vadd.f32 %v1502, %v1594
        %s1599 = sld [smem:[#allocation4 + $0xd3]]
        %v1600 = vstv %s1599
        %v1601 = vmul.f32 %v1600, %v292
        %v1602 = vmul.f32 %v1600, %v293
        %v1605 = vrot.slane %v1601, 2
        %v1606 = vrot.slane %v1602, 2
        %v1609 = vadd.f32 %v1513, %v1605
        %v1610 = vadd.f32 %v1514, %v1606
        %1611 = vrot.lane.b32.xlu0 %v292, 127
        %v1612 = vpop.permute.xlu0 %1611
        %1613 = vrot.lane.b32.xlu0 %v293, 127
        %v1614 = vpop.permute.xlu0 %1613
        %vm1615 = vcmask 1039360
        %v1616 = vsel %vm1615, %v1612, %v1614
        %v1620 = vsel %vm1615, %v1614, %v1612
        %s1621 = scalar_lea.vmem %s1, 10
        %v1622 = vld [vmem:[%s1621] sm:$0x3]
        %v1624 = vlaneseq
        %v1625 = vshrl.u32 %v1624, 7
        %v1626 = vsub.s32 0, %v1625
        %v1627 = vrot.slane %v1622, %v1626
        %v1628 = vlaneseq
        %v1629 = vshrl.u32 %v1628, 7
        %v1630 = vsub.s32 1, %v1629
        %v1631 = vrot.slane %v1622, %v1630
        %v1634 = vmul.f32 %v1616, %v1627
        %v1635 = vmul.f32 %v1620, %v1631
        %s1636 = sld [smem:[#allocation4 + $0x5]]
        %v1637 = vstv %s1636
        %v1638 = vmul.f32 %v1637, %v1634
        %v1639 = vmul.f32 %v1637, %v1635
        %v1640 = vadd.f32 %v1525, %v1638
        %v1641 = vadd.f32 %v1526, %v1639
        %s1642 = sld [smem:[#allocation4 + $0x20]]
        %v1643 = vstv %s1642
        %v1644 = vmul.f32 %v1643, %v1634
        %v1645 = vmul.f32 %v1643, %v1635
        %v1646 = vadd.f32 %v1537, %v1644
        %v1647 = vadd.f32 %v1538, %v1645
        %s1648 = sld [smem:[#allocation4 + $0x3b]]
        %v1649 = vstv %s1648
        %v1650 = vmul.f32 %v1649, %v1634
        %v1651 = vmul.f32 %v1649, %v1635
        %v1652 = vadd.f32 %v1549, %v1650
        %v1653 = vadd.f32 %v1550, %v1651
        %s1654 = sld [smem:[#allocation4 + $0x56]]
        %v1655 = vstv %s1654
        %v1656 = vmul.f32 %v1655, %v1634
        %v1657 = vmul.f32 %v1655, %v1635
        %v1658 = vadd.f32 %v1561, %v1656
        %v1659 = vadd.f32 %v1562, %v1657
        %s1660 = sld [smem:[#allocation4 + $0x71]]
        %v1661 = vstv %s1660
        %v1662 = vmul.f32 %v1661, %v1634
        %v1663 = vmul.f32 %v1661, %v1635
        %v1664 = vadd.f32 %v1573, %v1662
        %v1665 = vadd.f32 %v1574, %v1663
        %s1666 = sld [smem:[#allocation4 + $0x8c]]
        %v1667 = vstv %s1666
        %v1668 = vmul.f32 %v1667, %v1634
        %v1669 = vmul.f32 %v1667, %v1635
        %v1670 = vadd.f32 %v1585, %v1668
        %v1671 = vadd.f32 %v1586, %v1669
        %s1672 = sld [smem:[#allocation4 + $0xa7]]
        %v1673 = vstv %s1672
        %v1674 = vmul.f32 %v1673, %v1634
        %v1675 = vmul.f32 %v1673, %v1635
        %v1676 = vadd.f32 %v1597, %v1674
        %v1677 = vadd.f32 %v1598, %v1675
        %s1678 = sld [smem:[#allocation4 + $0xc2]]
        %v1679 = vstv %s1678
        %v1680 = vmul.f32 %v1679, %v1634
        %v1681 = vmul.f32 %v1679, %v1635
        %v1682 = vadd.f32 %v1609, %v1680
        %v1683 = vadd.f32 %v1610, %v1681
        %s1684 = sld [smem:[#allocation4 + $0xe]]
        %v1685 = vstv %s1684
        %v1686 = vmul.f32 %v1685, %v1634
        %v1687 = vmul.f32 %v1685, %v1635
        %v1690 = vrot.slane %v1686, 1
        %v1691 = vrot.slane %v1687, 1
        %v1694 = vadd.f32 %v1640, %v1690
        %v1695 = vadd.f32 %v1641, %v1691
        %s1696 = sld [smem:[#allocation4 + $0x29]]
        %v1697 = vstv %s1696
        %v1698 = vmul.f32 %v1697, %v1634
        %v1699 = vmul.f32 %v1697, %v1635
        %v1702 = vrot.slane %v1698, 1
        %v1703 = vrot.slane %v1699, 1
        %v1706 = vadd.f32 %v1646, %v1702
        %v1707 = vadd.f32 %v1647, %v1703
        %s1708 = sld [smem:[#allocation4 + $0x44]]
        %v1709 = vstv %s1708
        %v1710 = vmul.f32 %v1709, %v1634
        %v1711 = vmul.f32 %v1709, %v1635
        %v1714 = vrot.slane %v1710, 1
        %v1715 = vrot.slane %v1711, 1
        %v1718 = vadd.f32 %v1652, %v1714
        %v1719 = vadd.f32 %v1653, %v1715
        %s1720 = sld [smem:[#allocation4 + $0x5f]]
        %v1721 = vstv %s1720
        %v1722 = vmul.f32 %v1721, %v1634
        %v1723 = vmul.f32 %v1721, %v1635
        %v1726 = vrot.slane %v1722, 1
        %v1727 = vrot.slane %v1723, 1
        %v1730 = vadd.f32 %v1658, %v1726
        %v1731 = vadd.f32 %v1659, %v1727
        %s1732 = sld [smem:[#allocation4 + $0x7a]]
        %v1733 = vstv %s1732
        %v1734 = vmul.f32 %v1733, %v1634
        %v1735 = vmul.f32 %v1733, %v1635
        %v1738 = vrot.slane %v1734, 1
        %v1739 = vrot.slane %v1735, 1
        %v1742 = vadd.f32 %v1664, %v1738
        %v1743 = vadd.f32 %v1665, %v1739
        %s1744 = sld [smem:[#allocation4 + $0x95]]
        %v1745 = vstv %s1744
        %v1746 = vmul.f32 %v1745, %v1634
        %v1747 = vmul.f32 %v1745, %v1635
        %v1750 = vrot.slane %v1746, 1
        %v1751 = vrot.slane %v1747, 1
        %v1754 = vadd.f32 %v1670, %v1750
        %v1755 = vadd.f32 %v1671, %v1751
        %s1756 = sld [smem:[#allocation4 + $0xb0]]
        %v1757 = vstv %s1756
        %v1758 = vmul.f32 %v1757, %v1634
        %v1759 = vmul.f32 %v1757, %v1635
        %v1762 = vrot.slane %v1758, 1
        %v1763 = vrot.slane %v1759, 1
        %v1766 = vadd.f32 %v1676, %v1762
        %v1767 = vadd.f32 %v1677, %v1763
        %s1768 = sld [smem:[#allocation4 + $0xcb]]
        %v1769 = vstv %s1768
        %v1770 = vmul.f32 %v1769, %v1634
        %v1771 = vmul.f32 %v1769, %v1635
        %v1774 = vrot.slane %v1770, 1
        %v1775 = vrot.slane %v1771, 1
        %v1778 = vadd.f32 %v1682, %v1774
        %v1779 = vadd.f32 %v1683, %v1775
        %s1780 = sld [smem:[#allocation4 + $0x17]]
        %v1781 = vstv %s1780
        %v1782 = vmul.f32 %v1781, %v1634
        %v1783 = vmul.f32 %v1781, %v1635
        %v1786 = vrot.slane %v1782, 2
        %v1787 = vrot.slane %v1783, 2
        %v1790 = vadd.f32 %v1694, %v1786
        %v1791 = vadd.f32 %v1695, %v1787
        %s1792 = sld [smem:[#allocation4 + $0x32]]
        %v1793 = vstv %s1792
        %v1794 = vmul.f32 %v1793, %v1634
        %v1795 = vmul.f32 %v1793, %v1635
        %v1798 = vrot.slane %v1794, 2
        %v1799 = vrot.slane %v1795, 2
        %v1802 = vadd.f32 %v1706, %v1798
        %v1803 = vadd.f32 %v1707, %v1799
        %s1804 = sld [smem:[#allocation4 + $0x4d]]
        %v1805 = vstv %s1804
        %v1806 = vmul.f32 %v1805, %v1634
        %v1807 = vmul.f32 %v1805, %v1635
        %v1810 = vrot.slane %v1806, 2
        %v1811 = vrot.slane %v1807, 2
        %v1814 = vadd.f32 %v1718, %v1810
        %v1815 = vadd.f32 %v1719, %v1811
        %s1816 = sld [smem:[#allocation4 + $0x68]]
        %v1817 = vstv %s1816
        %v1818 = vmul.f32 %v1817, %v1634
        %v1819 = vmul.f32 %v1817, %v1635
        %v1822 = vrot.slane %v1818, 2
        %v1823 = vrot.slane %v1819, 2
        %v1826 = vadd.f32 %v1730, %v1822
        %v1827 = vadd.f32 %v1731, %v1823
        %s1828 = sld [smem:[#allocation4 + $0x83]]
        %v1829 = vstv %s1828
        %v1830 = vmul.f32 %v1829, %v1634
        %v1831 = vmul.f32 %v1829, %v1635
        %v1834 = vrot.slane %v1830, 2
        %v1835 = vrot.slane %v1831, 2
        %v1838 = vadd.f32 %v1742, %v1834
        %v1839 = vadd.f32 %v1743, %v1835
        %s1840 = sld [smem:[#allocation4 + $0x9e]]
        %v1841 = vstv %s1840
        %v1842 = vmul.f32 %v1841, %v1634
        %v1843 = vmul.f32 %v1841, %v1635
        %v1846 = vrot.slane %v1842, 2
        %v1847 = vrot.slane %v1843, 2
        %v1850 = vadd.f32 %v1754, %v1846
        %v1851 = vadd.f32 %v1755, %v1847
        %s1852 = sld [smem:[#allocation4 + $0xb9]]
        %v1853 = vstv %s1852
        %v1854 = vmul.f32 %v1853, %v1634
        %v1855 = vmul.f32 %v1853, %v1635
        %v1858 = vrot.slane %v1854, 2
        %v1859 = vrot.slane %v1855, 2
        %v1862 = vadd.f32 %v1766, %v1858
        %v1863 = vadd.f32 %v1767, %v1859
        %s1864 = sld [smem:[#allocation4 + $0xd4]]
        %v1865 = vstv %s1864
        %v1866 = vmul.f32 %v1865, %v1634
        %v1867 = vmul.f32 %v1865, %v1635
        %v1870 = vrot.slane %v1866, 2
        %v1871 = vrot.slane %v1867, 2
        %v1874 = vadd.f32 %v1778, %v1870
        %v1875 = vadd.f32 %v1779, %v1871
        %1876 = vrot.lane.b32.xlu0 %v292, 113
        %v1877 = vpop.permute.xlu0 %1876
        %1878 = vrot.lane.b32.xlu0 %v293, 113
        %v1879 = vpop.permute.xlu0 %1878
        %vm1880 = vcmask 924672
        %v1881 = vsel %vm1880, %v1877, %v1879
        %v1885 = vsel %vm1880, %v1879, %v1877
        %s1886 = scalar_lea.vmem %s1, 12
        %v1887 = vld [vmem:[%s1886] sm:$0x3]
        %v1889 = vlaneseq
        %v1890 = vshrl.u32 %v1889, 7
        %v1891 = vsub.s32 0, %v1890
        %v1892 = vrot.slane %v1887, %v1891
        %v1893 = vlaneseq
        %v1894 = vshrl.u32 %v1893, 7
        %v1895 = vsub.s32 1, %v1894
        %v1896 = vrot.slane %v1887, %v1895
        %v1899 = vmul.f32 %v1881, %v1892
        %v1900 = vmul.f32 %v1885, %v1896
        %s1901 = sld [smem:[#allocation4 + $0x6]]
        %v1902 = vstv %s1901
        %v1903 = vmul.f32 %v1902, %v1899
        %v1904 = vmul.f32 %v1902, %v1900
        %v1905 = vadd.f32 %v1790, %v1903
        %v1906 = vadd.f32 %v1791, %v1904
        %s1907 = sld [smem:[#allocation4 + $0x21]]
        %v1908 = vstv %s1907
        %v1909 = vmul.f32 %v1908, %v1899
        %v1910 = vmul.f32 %v1908, %v1900
        %v1911 = vadd.f32 %v1802, %v1909
        %v1912 = vadd.f32 %v1803, %v1910
        %s1913 = sld [smem:[#allocation4 + $0x3c]]
        %v1914 = vstv %s1913
        %v1915 = vmul.f32 %v1914, %v1899
        %v1916 = vmul.f32 %v1914, %v1900
        %v1917 = vadd.f32 %v1814, %v1915
        %v1918 = vadd.f32 %v1815, %v1916
        %s1919 = sld [smem:[#allocation4 + $0x57]]
        %v1920 = vstv %s1919
        %v1921 = vmul.f32 %v1920, %v1899
        %v1922 = vmul.f32 %v1920, %v1900
        %v1923 = vadd.f32 %v1826, %v1921
        %v1924 = vadd.f32 %v1827, %v1922
        %s1925 = sld [smem:[#allocation4 + $0x72]]
        %v1926 = vstv %s1925
        %v1927 = vmul.f32 %v1926, %v1899
        %v1928 = vmul.f32 %v1926, %v1900
        %v1929 = vadd.f32 %v1838, %v1927
        %v1930 = vadd.f32 %v1839, %v1928
        %s1931 = sld [smem:[#allocation4 + $0x8d]]
        %v1932 = vstv %s1931
        %v1933 = vmul.f32 %v1932, %v1899
        %v1934 = vmul.f32 %v1932, %v1900
        %v1935 = vadd.f32 %v1850, %v1933
        %v1936 = vadd.f32 %v1851, %v1934
        %s1937 = sld [smem:[#allocation4 + $0xa8]]
        %v1938 = vstv %s1937
        %v1939 = vmul.f32 %v1938, %v1899
        %v1940 = vmul.f32 %v1938, %v1900
        %v1941 = vadd.f32 %v1862, %v1939
        %v1942 = vadd.f32 %v1863, %v1940
        %s1943 = sld [smem:[#allocation4 + $0xc3]]
        %v1944 = vstv %s1943
        %v1945 = vmul.f32 %v1944, %v1899
        %v1946 = vmul.f32 %v1944, %v1900
        %v1947 = vadd.f32 %v1874, %v1945
        %v1948 = vadd.f32 %v1875, %v1946
        %s1949 = sld [smem:[#allocation4 + $0xf]]
        %v1950 = vstv %s1949
        %v1951 = vmul.f32 %v1950, %v1899
        %v1952 = vmul.f32 %v1950, %v1900
        %v1955 = vrot.slane %v1951, 1
        %v1956 = vrot.slane %v1952, 1
        %v1959 = vadd.f32 %v1905, %v1955
        %v1960 = vadd.f32 %v1906, %v1956
        %s1961 = sld [smem:[#allocation4 + $0x2a]]
        %v1962 = vstv %s1961
        %v1963 = vmul.f32 %v1962, %v1899
        %v1964 = vmul.f32 %v1962, %v1900
        %v1967 = vrot.slane %v1963, 1
        %v1968 = vrot.slane %v1964, 1
        %v1971 = vadd.f32 %v1911, %v1967
        %v1972 = vadd.f32 %v1912, %v1968
        %s1973 = sld [smem:[#allocation4 + $0x45]]
        %v1974 = vstv %s1973
        %v1975 = vmul.f32 %v1974, %v1899
        %v1976 = vmul.f32 %v1974, %v1900
        %v1979 = vrot.slane %v1975, 1
        %v1980 = vrot.slane %v1976, 1
        %v1983 = vadd.f32 %v1917, %v1979
        %v1984 = vadd.f32 %v1918, %v1980
        %s1985 = sld [smem:[#allocation4 + $0x60]]
        %v1986 = vstv %s1985
        %v1987 = vmul.f32 %v1986, %v1899
        %v1988 = vmul.f32 %v1986, %v1900
        %v1991 = vrot.slane %v1987, 1
        %v1992 = vrot.slane %v1988, 1
        %v1995 = vadd.f32 %v1923, %v1991
        %v1996 = vadd.f32 %v1924, %v1992
        %s1997 = sld [smem:[#allocation4 + $0x7b]]
        %v1998 = vstv %s1997
        %v1999 = vmul.f32 %v1998, %v1899
        %v2000 = vmul.f32 %v1998, %v1900
        %v2003 = vrot.slane %v1999, 1
        %v2004 = vrot.slane %v2000, 1
        %v2007 = vadd.f32 %v1929, %v2003
        %v2008 = vadd.f32 %v1930, %v2004
        %s2009 = sld [smem:[#allocation4 + $0x96]]
        %v2010 = vstv %s2009
        %v2011 = vmul.f32 %v2010, %v1899
        %v2012 = vmul.f32 %v2010, %v1900
        %v2015 = vrot.slane %v2011, 1
        %v2016 = vrot.slane %v2012, 1
        %v2019 = vadd.f32 %v1935, %v2015
        %v2020 = vadd.f32 %v1936, %v2016
        %s2021 = sld [smem:[#allocation4 + $0xb1]]
        %v2022 = vstv %s2021
        %v2023 = vmul.f32 %v2022, %v1899
        %v2024 = vmul.f32 %v2022, %v1900
        %v2027 = vrot.slane %v2023, 1
        %v2028 = vrot.slane %v2024, 1
        %v2031 = vadd.f32 %v1941, %v2027
        %v2032 = vadd.f32 %v1942, %v2028
        %s2033 = sld [smem:[#allocation4 + $0xcc]]
        %v2034 = vstv %s2033
        %v2035 = vmul.f32 %v2034, %v1899
        %v2036 = vmul.f32 %v2034, %v1900
        %v2039 = vrot.slane %v2035, 1
        %v2040 = vrot.slane %v2036, 1
        %v2043 = vadd.f32 %v1947, %v2039
        %v2044 = vadd.f32 %v1948, %v2040
        %s2045 = sld [smem:[#allocation4 + $0x18]]
        %v2046 = vstv %s2045
        %v2047 = vmul.f32 %v2046, %v1899
        %v2048 = vmul.f32 %v2046, %v1900
        %v2051 = vrot.slane %v2047, 2
        %v2052 = vrot.slane %v2048, 2
        %v2055 = vadd.f32 %v1959, %v2051
        %v2056 = vadd.f32 %v1960, %v2052
        %s2057 = sld [smem:[#allocation4 + $0x33]]
        %v2058 = vstv %s2057
        %v2059 = vmul.f32 %v2058, %v1899
        %v2060 = vmul.f32 %v2058, %v1900
        %v2063 = vrot.slane %v2059, 2
        %v2064 = vrot.slane %v2060, 2
        %v2067 = vadd.f32 %v1971, %v2063
        %v2068 = vadd.f32 %v1972, %v2064
        %s2069 = sld [smem:[#allocation4 + $0x4e]]
        %v2070 = vstv %s2069
        %v2071 = vmul.f32 %v2070, %v1899
        %v2072 = vmul.f32 %v2070, %v1900
        %v2075 = vrot.slane %v2071, 2
        %v2076 = vrot.slane %v2072, 2
        %v2079 = vadd.f32 %v1983, %v2075
        %v2080 = vadd.f32 %v1984, %v2076
        %s2081 = sld [smem:[#allocation4 + $0x69]]
        %v2082 = vstv %s2081
        %v2083 = vmul.f32 %v2082, %v1899
        %v2084 = vmul.f32 %v2082, %v1900
        %v2087 = vrot.slane %v2083, 2
        %v2088 = vrot.slane %v2084, 2
        %v2091 = vadd.f32 %v1995, %v2087
        %v2092 = vadd.f32 %v1996, %v2088
        %s2093 = sld [smem:[#allocation4 + $0x84]]
        %v2094 = vstv %s2093
        %v2095 = vmul.f32 %v2094, %v1899
        %v2096 = vmul.f32 %v2094, %v1900
        %v2099 = vrot.slane %v2095, 2
        %v2100 = vrot.slane %v2096, 2
        %v2103 = vadd.f32 %v2007, %v2099
        %v2104 = vadd.f32 %v2008, %v2100
        %s2105 = sld [smem:[#allocation4 + $0x9f]]
        %v2106 = vstv %s2105
        %v2107 = vmul.f32 %v2106, %v1899
        %v2108 = vmul.f32 %v2106, %v1900
        %v2111 = vrot.slane %v2107, 2
        %v2112 = vrot.slane %v2108, 2
        %v2115 = vadd.f32 %v2019, %v2111
        %v2116 = vadd.f32 %v2020, %v2112
        %s2117 = sld [smem:[#allocation4 + $0xba]]
        %v2118 = vstv %s2117
        %v2119 = vmul.f32 %v2118, %v1899
        %v2120 = vmul.f32 %v2118, %v1900
        %v2123 = vrot.slane %v2119, 2
        %v2124 = vrot.slane %v2120, 2
        %v2127 = vadd.f32 %v2031, %v2123
        %v2128 = vadd.f32 %v2032, %v2124
        %s2129 = sld [smem:[#allocation4 + $0xd5]]
        %v2130 = vstv %s2129
        %v2131 = vmul.f32 %v2130, %v1899
        %v2132 = vmul.f32 %v2130, %v1900
        %v2135 = vrot.slane %v2131, 2
        %v2136 = vrot.slane %v2132, 2
        %v2139 = vadd.f32 %v2043, %v2135
        %v2140 = vadd.f32 %v2044, %v2136
        %2141 = vrot.lane.b32.xlu0 %v292, 112
        %v2142 = vpop.permute.xlu0 %2141
        %2143 = vrot.lane.b32.xlu0 %v293, 112
        %v2144 = vpop.permute.xlu0 %2143
        %vm2145 = vcmask 916480
        %v2146 = vsel %vm2145, %v2142, %v2144
        %v2150 = vsel %vm2145, %v2144, %v2142
        %s2151 = scalar_lea.vmem %s1, 14
        %v2152 = vld [vmem:[%s2151] sm:$0x3]
        %v2154 = vlaneseq
        %v2155 = vshrl.u32 %v2154, 7
        %v2156 = vsub.s32 0, %v2155
        %v2157 = vrot.slane %v2152, %v2156
        %v2158 = vlaneseq
        %v2159 = vshrl.u32 %v2158, 7
        %v2160 = vsub.s32 1, %v2159
        %v2161 = vrot.slane %v2152, %v2160
        %v2164 = vmul.f32 %v2146, %v2157
        %v2165 = vmul.f32 %v2150, %v2161
        %s2166 = sld [smem:[#allocation4 + $0x7]]
        %v2167 = vstv %s2166
        %v2168 = vmul.f32 %v2167, %v2164
        %v2169 = vmul.f32 %v2167, %v2165
        %v2170 = vadd.f32 %v2055, %v2168
        %v2171 = vadd.f32 %v2056, %v2169
        %s2172 = sld [smem:[#allocation4 + $0x22]]
        %v2173 = vstv %s2172
        %v2174 = vmul.f32 %v2173, %v2164
        %v2175 = vmul.f32 %v2173, %v2165
        %v2176 = vadd.f32 %v2067, %v2174
        %v2177 = vadd.f32 %v2068, %v2175
        %s2178 = sld [smem:[#allocation4 + $0x3d]]
        %v2179 = vstv %s2178
        %v2180 = vmul.f32 %v2179, %v2164
        %v2181 = vmul.f32 %v2179, %v2165
        %v2182 = vadd.f32 %v2079, %v2180
        %v2183 = vadd.f32 %v2080, %v2181
        %s2184 = sld [smem:[#allocation4 + $0x58]]
        %v2185 = vstv %s2184
        %v2186 = vmul.f32 %v2185, %v2164
        %v2187 = vmul.f32 %v2185, %v2165
        %v2188 = vadd.f32 %v2091, %v2186
        %v2189 = vadd.f32 %v2092, %v2187
        %s2190 = sld [smem:[#allocation4 + $0x73]]
        %v2191 = vstv %s2190
        %v2192 = vmul.f32 %v2191, %v2164
        %v2193 = vmul.f32 %v2191, %v2165
        %v2194 = vadd.f32 %v2103, %v2192
        %v2195 = vadd.f32 %v2104, %v2193
        %s2196 = sld [smem:[#allocation4 + $0x8e]]
        %v2197 = vstv %s2196
        %v2198 = vmul.f32 %v2197, %v2164
        %v2199 = vmul.f32 %v2197, %v2165
        %v2200 = vadd.f32 %v2115, %v2198
        %v2201 = vadd.f32 %v2116, %v2199
        %s2202 = sld [smem:[#allocation4 + $0xa9]]
        %v2203 = vstv %s2202
        %v2204 = vmul.f32 %v2203, %v2164
        %v2205 = vmul.f32 %v2203, %v2165
        %v2206 = vadd.f32 %v2127, %v2204
        %v2207 = vadd.f32 %v2128, %v2205
        %s2208 = sld [smem:[#allocation4 + $0xc4]]
        %v2209 = vstv %s2208
        %v2210 = vmul.f32 %v2209, %v2164
        %v2211 = vmul.f32 %v2209, %v2165
        %v2212 = vadd.f32 %v2139, %v2210
        %v2213 = vadd.f32 %v2140, %v2211
        %s2214 = sld [smem:[#allocation4 + $0x10]]
        %v2215 = vstv %s2214
        %v2216 = vmul.f32 %v2215, %v2164
        %v2217 = vmul.f32 %v2215, %v2165
        %v2220 = vrot.slane %v2216, 1
        %v2221 = vrot.slane %v2217, 1
        %v2224 = vadd.f32 %v2170, %v2220
        %v2225 = vadd.f32 %v2171, %v2221
        %s2226 = sld [smem:[#allocation4 + $0x2b]]
        %v2227 = vstv %s2226
        %v2228 = vmul.f32 %v2227, %v2164
        %v2229 = vmul.f32 %v2227, %v2165
        %v2232 = vrot.slane %v2228, 1
        %v2233 = vrot.slane %v2229, 1
        %v2236 = vadd.f32 %v2176, %v2232
        %v2237 = vadd.f32 %v2177, %v2233
        %s2238 = sld [smem:[#allocation4 + $0x46]]
        %v2239 = vstv %s2238
        %v2240 = vmul.f32 %v2239, %v2164
        %v2241 = vmul.f32 %v2239, %v2165
        %v2244 = vrot.slane %v2240, 1
        %v2245 = vrot.slane %v2241, 1
        %v2248 = vadd.f32 %v2182, %v2244
        %v2249 = vadd.f32 %v2183, %v2245
        %s2250 = sld [smem:[#allocation4 + $0x61]]
        %v2251 = vstv %s2250
        %v2252 = vmul.f32 %v2251, %v2164
        %v2253 = vmul.f32 %v2251, %v2165
        %v2256 = vrot.slane %v2252, 1
        %v2257 = vrot.slane %v2253, 1
        %v2260 = vadd.f32 %v2188, %v2256
        %v2261 = vadd.f32 %v2189, %v2257
        %s2262 = sld [smem:[#allocation4 + $0x7c]]
        %v2263 = vstv %s2262
        %v2264 = vmul.f32 %v2263, %v2164
        %v2265 = vmul.f32 %v2263, %v2165
        %v2268 = vrot.slane %v2264, 1
        %v2269 = vrot.slane %v2265, 1
        %v2272 = vadd.f32 %v2194, %v2268
        %v2273 = vadd.f32 %v2195, %v2269
        %s2274 = sld [smem:[#allocation4 + $0x97]]
        %v2275 = vstv %s2274
        %v2276 = vmul.f32 %v2275, %v2164
        %v2277 = vmul.f32 %v2275, %v2165
        %v2280 = vrot.slane %v2276, 1
        %v2281 = vrot.slane %v2277, 1
        %v2284 = vadd.f32 %v2200, %v2280
        %v2285 = vadd.f32 %v2201, %v2281
        %s2286 = sld [smem:[#allocation4 + $0xb2]]
        %v2287 = vstv %s2286
        %v2288 = vmul.f32 %v2287, %v2164
        %v2289 = vmul.f32 %v2287, %v2165
        %v2292 = vrot.slane %v2288, 1
        %v2293 = vrot.slane %v2289, 1
        %v2296 = vadd.f32 %v2206, %v2292
        %v2297 = vadd.f32 %v2207, %v2293
        %s2298 = sld [smem:[#allocation4 + $0xcd]]
        %v2299 = vstv %s2298
        %v2300 = vmul.f32 %v2299, %v2164
        %v2301 = vmul.f32 %v2299, %v2165
        %v2304 = vrot.slane %v2300, 1
        %v2305 = vrot.slane %v2301, 1
        %v2308 = vadd.f32 %v2212, %v2304
        %v2309 = vadd.f32 %v2213, %v2305
        %s2310 = sld [smem:[#allocation4 + $0x19]]
        %v2311 = vstv %s2310
        %v2312 = vmul.f32 %v2311, %v2164
        %v2313 = vmul.f32 %v2311, %v2165
        %v2316 = vrot.slane %v2312, 2
        %v2317 = vrot.slane %v2313, 2
        %v2320 = vadd.f32 %v2224, %v2316
        %v2321 = vadd.f32 %v2225, %v2317
        %s2322 = sld [smem:[#allocation4 + $0x34]]
        %v2323 = vstv %s2322
        %v2324 = vmul.f32 %v2323, %v2164
        %v2325 = vmul.f32 %v2323, %v2165
        %v2328 = vrot.slane %v2324, 2
        %v2329 = vrot.slane %v2325, 2
        %v2332 = vadd.f32 %v2236, %v2328
        %v2333 = vadd.f32 %v2237, %v2329
        %s2334 = sld [smem:[#allocation4 + $0x4f]]
        %v2335 = vstv %s2334
        %v2336 = vmul.f32 %v2335, %v2164
        %v2337 = vmul.f32 %v2335, %v2165
        %v2340 = vrot.slane %v2336, 2
        %v2341 = vrot.slane %v2337, 2
        %v2344 = vadd.f32 %v2248, %v2340
        %v2345 = vadd.f32 %v2249, %v2341
        %s2346 = sld [smem:[#allocation4 + $0x6a]]
        %v2347 = vstv %s2346
        %v2348 = vmul.f32 %v2347, %v2164
        %v2349 = vmul.f32 %v2347, %v2165
        %v2352 = vrot.slane %v2348, 2
        %v2353 = vrot.slane %v2349, 2
        %v2356 = vadd.f32 %v2260, %v2352
        %v2357 = vadd.f32 %v2261, %v2353
        %s2358 = sld [smem:[#allocation4 + $0x85]]
        %v2359 = vstv %s2358
        %v2360 = vmul.f32 %v2359, %v2164
        %v2361 = vmul.f32 %v2359, %v2165
        %v2364 = vrot.slane %v2360, 2
        %v2365 = vrot.slane %v2361, 2
        %v2368 = vadd.f32 %v2272, %v2364
        %v2369 = vadd.f32 %v2273, %v2365
        %s2370 = sld [smem:[#allocation4 + $0xa0]]
        %v2371 = vstv %s2370
        %v2372 = vmul.f32 %v2371, %v2164
        %v2373 = vmul.f32 %v2371, %v2165
        %v2376 = vrot.slane %v2372, 2
        %v2377 = vrot.slane %v2373, 2
        %v2380 = vadd.f32 %v2284, %v2376
        %v2381 = vadd.f32 %v2285, %v2377
        %s2382 = sld [smem:[#allocation4 + $0xbb]]
        %v2383 = vstv %s2382
        %v2384 = vmul.f32 %v2383, %v2164
        %v2385 = vmul.f32 %v2383, %v2165
        %v2388 = vrot.slane %v2384, 2
        %v2389 = vrot.slane %v2385, 2
        %v2392 = vadd.f32 %v2296, %v2388
        %v2393 = vadd.f32 %v2297, %v2389
        %s2394 = sld [smem:[#allocation4 + $0xd6]]
        %v2395 = vstv %s2394
        %v2396 = vmul.f32 %v2395, %v2164
        %v2397 = vmul.f32 %v2395, %v2165
        %v2400 = vrot.slane %v2396, 2
        %v2401 = vrot.slane %v2397, 2
        %v2404 = vadd.f32 %v2308, %v2400
        %v2405 = vadd.f32 %v2309, %v2401
        %2406 = vrot.lane.b32.xlu0 %v292, 111
        %v2407 = vpop.permute.xlu0 %2406
        %2408 = vrot.lane.b32.xlu0 %v293, 111
        %v2409 = vpop.permute.xlu0 %2408
        %vm2410 = vcmask 908288
        %v2411 = vsel %vm2410, %v2407, %v2409
        %v2415 = vsel %vm2410, %v2409, %v2407
        %s2416 = scalar_lea.vmem %s1, 16
        %v2417 = vld [vmem:[%s2416] sm:$0x3]
        %v2419 = vlaneseq
        %v2420 = vshrl.u32 %v2419, 7
        %v2421 = vsub.s32 0, %v2420
        %v2422 = vrot.slane %v2417, %v2421
        %v2423 = vlaneseq
        %v2424 = vshrl.u32 %v2423, 7
        %v2425 = vsub.s32 1, %v2424
        %v2426 = vrot.slane %v2417, %v2425
        %v2429 = vmul.f32 %v2411, %v2422
        %v2430 = vmul.f32 %v2415, %v2426
        %s2431 = sld [smem:[#allocation4 + $0x8]]
        %v2432 = vstv %s2431
        %v2433 = vmul.f32 %v2432, %v2429
        %v2434 = vmul.f32 %v2432, %v2430
        %v2435 = vadd.f32 %v2320, %v2433
        %v2436 = vadd.f32 %v2321, %v2434
        %s2437 = sld [smem:[#allocation4 + $0x23]]
        %v2438 = vstv %s2437
        %v2439 = vmul.f32 %v2438, %v2429
        %v2440 = vmul.f32 %v2438, %v2430
        %v2441 = vadd.f32 %v2332, %v2439
        %v2442 = vadd.f32 %v2333, %v2440
        %s2443 = sld [smem:[#allocation4 + $0x3e]]
        %v2444 = vstv %s2443
        %v2445 = vmul.f32 %v2444, %v2429
        %v2446 = vmul.f32 %v2444, %v2430
        %v2447 = vadd.f32 %v2344, %v2445
        %v2448 = vadd.f32 %v2345, %v2446
        %s2449 = sld [smem:[#allocation4 + $0x59]]
        %v2450 = vstv %s2449
        %v2451 = vmul.f32 %v2450, %v2429
        %v2452 = vmul.f32 %v2450, %v2430
        %v2453 = vadd.f32 %v2356, %v2451
        %v2454 = vadd.f32 %v2357, %v2452
        %s2455 = sld [smem:[#allocation4 + $0x74]]
        %v2456 = vstv %s2455
        %v2457 = vmul.f32 %v2456, %v2429
        %v2458 = vmul.f32 %v2456, %v2430
        %v2459 = vadd.f32 %v2368, %v2457
        %v2460 = vadd.f32 %v2369, %v2458
        %s2461 = sld [smem:[#allocation4 + $0x8f]]
        %v2462 = vstv %s2461
        %v2463 = vmul.f32 %v2462, %v2429
        %v2464 = vmul.f32 %v2462, %v2430
        %v2465 = vadd.f32 %v2380, %v2463
        %v2466 = vadd.f32 %v2381, %v2464
        %s2467 = sld [smem:[#allocation4 + $0xaa]]
        %v2468 = vstv %s2467
        %v2469 = vmul.f32 %v2468, %v2429
        %v2470 = vmul.f32 %v2468, %v2430
        %v2471 = vadd.f32 %v2392, %v2469
        %v2472 = vadd.f32 %v2393, %v2470
        %s2473 = sld [smem:[#allocation4 + $0xc5]]
        %v2474 = vstv %s2473
        %v2475 = vmul.f32 %v2474, %v2429
        %v2476 = vmul.f32 %v2474, %v2430
        %v2477 = vadd.f32 %v2404, %v2475
        %v2478 = vadd.f32 %v2405, %v2476
        %s2479 = sld [smem:[#allocation4 + $0x11]]
        %v2480 = vstv %s2479
        %v2481 = vmul.f32 %v2480, %v2429
        %v2482 = vmul.f32 %v2480, %v2430
        %v2485 = vrot.slane %v2481, 1
        %v2486 = vrot.slane %v2482, 1
        %v2489 = vadd.f32 %v2435, %v2485
        %v2490 = vadd.f32 %v2436, %v2486
        %s2491 = sld [smem:[#allocation4 + $0x2c]]
        %v2492 = vstv %s2491
        %v2493 = vmul.f32 %v2492, %v2429
        %v2494 = vmul.f32 %v2492, %v2430
        %v2497 = vrot.slane %v2493, 1
        %v2498 = vrot.slane %v2494, 1
        %v2501 = vadd.f32 %v2441, %v2497
        %v2502 = vadd.f32 %v2442, %v2498
        %s2503 = sld [smem:[#allocation4 + $0x47]]
        %v2504 = vstv %s2503
        %v2505 = vmul.f32 %v2504, %v2429
        %v2506 = vmul.f32 %v2504, %v2430
        %v2509 = vrot.slane %v2505, 1
        %v2510 = vrot.slane %v2506, 1
        %v2513 = vadd.f32 %v2447, %v2509
        %v2514 = vadd.f32 %v2448, %v2510
        %s2515 = sld [smem:[#allocation4 + $0x62]]
        %v2516 = vstv %s2515
        %v2517 = vmul.f32 %v2516, %v2429
        %v2518 = vmul.f32 %v2516, %v2430
        %v2521 = vrot.slane %v2517, 1
        %v2522 = vrot.slane %v2518, 1
        %v2525 = vadd.f32 %v2453, %v2521
        %v2526 = vadd.f32 %v2454, %v2522
        %s2527 = sld [smem:[#allocation4 + $0x7d]]
        %v2528 = vstv %s2527
        %v2529 = vmul.f32 %v2528, %v2429
        %v2530 = vmul.f32 %v2528, %v2430
        %v2533 = vrot.slane %v2529, 1
        %v2534 = vrot.slane %v2530, 1
        %v2537 = vadd.f32 %v2459, %v2533
        %v2538 = vadd.f32 %v2460, %v2534
        %s2539 = sld [smem:[#allocation4 + $0x98]]
        %v2540 = vstv %s2539
        %v2541 = vmul.f32 %v2540, %v2429
        %v2542 = vmul.f32 %v2540, %v2430
        %v2545 = vrot.slane %v2541, 1
        %v2546 = vrot.slane %v2542, 1
        %v2549 = vadd.f32 %v2465, %v2545
        %v2550 = vadd.f32 %v2466, %v2546
        %s2551 = sld [smem:[#allocation4 + $0xb3]]
        %v2552 = vstv %s2551
        %v2553 = vmul.f32 %v2552, %v2429
        %v2554 = vmul.f32 %v2552, %v2430
        %v2557 = vrot.slane %v2553, 1
        %v2558 = vrot.slane %v2554, 1
        %v2561 = vadd.f32 %v2471, %v2557
        %v2562 = vadd.f32 %v2472, %v2558
        %s2563 = sld [smem:[#allocation4 + $0xce]]
        %v2564 = vstv %s2563
        %v2565 = vmul.f32 %v2564, %v2429
        %v2566 = vmul.f32 %v2564, %v2430
        %v2569 = vrot.slane %v2565, 1
        %v2570 = vrot.slane %v2566, 1
        %v2573 = vadd.f32 %v2477, %v2569
        %v2574 = vadd.f32 %v2478, %v2570
        %s2575 = sld [smem:[#allocation4 + $0x1a]]
        %v2576 = vstv %s2575
        %v2577 = vmul.f32 %v2576, %v2429
        %v2578 = vmul.f32 %v2576, %v2430
        %v2581 = vrot.slane %v2577, 2
        %v2582 = vrot.slane %v2578, 2
        %v2585 = vadd.f32 %v2489, %v2581
        %v2586 = vadd.f32 %v2490, %v2582
        %s2587 = sld [smem:[#allocation4 + $0x35]]
        %v2588 = vstv %s2587
        %v2589 = vmul.f32 %v2588, %v2429
        %v2590 = vmul.f32 %v2588, %v2430
        %v2593 = vrot.slane %v2589, 2
        %v2594 = vrot.slane %v2590, 2
        %v2597 = vadd.f32 %v2501, %v2593
        %v2598 = vadd.f32 %v2502, %v2594
        %s2599 = sld [smem:[#allocation4 + $0x50]]
        %v2600 = vstv %s2599
        %v2601 = vmul.f32 %v2600, %v2429
        %v2602 = vmul.f32 %v2600, %v2430
        %v2605 = vrot.slane %v2601, 2
        %v2606 = vrot.slane %v2602, 2
        %v2609 = vadd.f32 %v2513, %v2605
        %v2610 = vadd.f32 %v2514, %v2606
        %s2611 = sld [smem:[#allocation4 + $0x6b]]
        %v2612 = vstv %s2611
        %v2613 = vmul.f32 %v2612, %v2429
        %v2614 = vmul.f32 %v2612, %v2430
        %v2617 = vrot.slane %v2613, 2
        %v2618 = vrot.slane %v2614, 2
        %v2621 = vadd.f32 %v2525, %v2617
        %v2622 = vadd.f32 %v2526, %v2618
        %s2623 = sld [smem:[#allocation4 + $0x86]]
        %v2624 = vstv %s2623
        %v2625 = vmul.f32 %v2624, %v2429
        %v2626 = vmul.f32 %v2624, %v2430
        %v2629 = vrot.slane %v2625, 2
        %v2630 = vrot.slane %v2626, 2
        %v2633 = vadd.f32 %v2537, %v2629
        %v2634 = vadd.f32 %v2538, %v2630
        %s2635 = sld [smem:[#allocation4 + $0xa1]]
        %v2636 = vstv %s2635
        %v2637 = vmul.f32 %v2636, %v2429
        %v2638 = vmul.f32 %v2636, %v2430
        %v2641 = vrot.slane %v2637, 2
        %v2642 = vrot.slane %v2638, 2
        %v2645 = vadd.f32 %v2549, %v2641
        %v2646 = vadd.f32 %v2550, %v2642
        %s2647 = sld [smem:[#allocation4 + $0xbc]]
        %v2648 = vstv %s2647
        %v2649 = vmul.f32 %v2648, %v2429
        %v2650 = vmul.f32 %v2648, %v2430
        %v2653 = vrot.slane %v2649, 2
        %v2654 = vrot.slane %v2650, 2
        %v2657 = vadd.f32 %v2561, %v2653
        %v2658 = vadd.f32 %v2562, %v2654
        %s2659 = sld [smem:[#allocation4 + $0xd7]]
        %v2660 = vstv %s2659
        %v2661 = vmul.f32 %v2660, %v2429
        %v2662 = vmul.f32 %v2660, %v2430
        %v2665 = vrot.slane %v2661, 2
        %v2666 = vrot.slane %v2662, 2
        %v2669 = vadd.f32 %v2573, %v2665
        %v2670 = vadd.f32 %v2574, %v2666
        %vm2671 = vcmp.ge.f32.partialorder %v2585, 0.0
        %vm2672 = vcmp.ge.f32.partialorder %v2586, 0.0
        %v2673 = vmul.f32 %v2585, 0.1
        %v2674 = vmul.f32 %v2586, 0.1
        %v2675 = vsel %vm2671, %v2585, %v2673
        %v2676 = vsel %vm2672, %v2586, %v2674
        %v2679 = vrot.slane %v2675, 7
        %v2680 = vrot.slane %v2676, 7
        %vm2683 = vcmask 1040384
        %v2684 = vsel %vm2683, 0.0, %v2679
        %v2685 = vsel %vm2683, 0.0, %v2680
        %vm2686 = vcmask 1044480
        %v2687 = vsel %vm2686, %v2684, 0.0
        %v2688 = vsel %vm2686, %v2685, 0.0
        %2689 = vst [vmem:[#allocation2] sm:$0x3f] %v2687
        %2690 = vst [vmem:[#allocation2 + $0x8] sm:$0x3f] %v2688
        %vm2691 = vcmp.ge.f32.partialorder %v2597, 0.0
        %vm2692 = vcmp.ge.f32.partialorder %v2598, 0.0
        %v2693 = vmul.f32 %v2597, 0.1
        %v2694 = vmul.f32 %v2598, 0.1
        %v2695 = vsel %vm2691, %v2597, %v2693
        %v2696 = vsel %vm2692, %v2598, %v2694
        %v2699 = vrot.slane %v2695, 7
        %v2700 = vrot.slane %v2696, 7
        %v2703 = vsel %vm2683, 0.0, %v2699
        %v2704 = vsel %vm2683, 0.0, %v2700
        %v2705 = vsel %vm2686, %v2703, 0.0
        %v2706 = vsel %vm2686, %v2704, 0.0
        %s2707 = scalar_lea.vmem [#allocation2], 16
        %2708 = vst [vmem:[%s2707] sm:$0x3f] %v2705
        %2709 = vst [vmem:[%s2707 + $0x8] sm:$0x3f] %v2706
        %vm2710 = vcmp.ge.f32.partialorder %v2609, 0.0
        %vm2711 = vcmp.ge.f32.partialorder %v2610, 0.0
        %v2712 = vmul.f32 %v2609, 0.1
        %v2713 = vmul.f32 %v2610, 0.1
        %v2714 = vsel %vm2710, %v2609, %v2712
        %v2715 = vsel %vm2711, %v2610, %v2713
        %v2718 = vrot.slane %v2714, 7
        %v2719 = vrot.slane %v2715, 7
        %v2722 = vsel %vm2683, 0.0, %v2718
        %v2723 = vsel %vm2683, 0.0, %v2719
        %v2724 = vsel %vm2686, %v2722, 0.0
        %v2725 = vsel %vm2686, %v2723, 0.0
        %s2726 = scalar_lea.vmem [#allocation2], 32
        %2727 = vst [vmem:[%s2726] sm:$0x3f] %v2724
        %2728 = vst [vmem:[%s2726 + $0x8] sm:$0x3f] %v2725
        %vm2729 = vcmp.ge.f32.partialorder %v2621, 0.0
        %vm2730 = vcmp.ge.f32.partialorder %v2622, 0.0
        %v2731 = vmul.f32 %v2621, 0.1
        %v2732 = vmul.f32 %v2622, 0.1
        %v2733 = vsel %vm2729, %v2621, %v2731
        %v2734 = vsel %vm2730, %v2622, %v2732
        %v2737 = vrot.slane %v2733, 7
        %v2738 = vrot.slane %v2734, 7
        %v2741 = vsel %vm2683, 0.0, %v2737
        %v2742 = vsel %vm2683, 0.0, %v2738
        %v2743 = vsel %vm2686, %v2741, 0.0
        %v2744 = vsel %vm2686, %v2742, 0.0
        %s2745 = scalar_lea.vmem [#allocation2], 48
        %2746 = vst [vmem:[%s2745] sm:$0x3f] %v2743
        %2747 = vst [vmem:[%s2745 + $0x8] sm:$0x3f] %v2744
        %vm2748 = vcmp.ge.f32.partialorder %v2633, 0.0
        %vm2749 = vcmp.ge.f32.partialorder %v2634, 0.0
        %v2750 = vmul.f32 %v2633, 0.1
        %v2751 = vmul.f32 %v2634, 0.1
        %v2752 = vsel %vm2748, %v2633, %v2750
        %v2753 = vsel %vm2749, %v2634, %v2751
        %v2756 = vrot.slane %v2752, 7
        %v2757 = vrot.slane %v2753, 7
        %v2760 = vsel %vm2683, 0.0, %v2756
        %v2761 = vsel %vm2683, 0.0, %v2757
        %v2762 = vsel %vm2686, %v2760, 0.0
        %v2763 = vsel %vm2686, %v2761, 0.0
        %s2764 = scalar_lea.vmem [#allocation2], 64
        %2765 = vst [vmem:[%s2764] sm:$0x3f] %v2762
        %2766 = vst [vmem:[%s2764 + $0x8] sm:$0x3f] %v2763
        %vm2767 = vcmp.ge.f32.partialorder %v2645, 0.0
        %vm2768 = vcmp.ge.f32.partialorder %v2646, 0.0
        %v2769 = vmul.f32 %v2645, 0.1
        %v2770 = vmul.f32 %v2646, 0.1
        %v2771 = vsel %vm2767, %v2645, %v2769
        %v2772 = vsel %vm2768, %v2646, %v2770
        %v2775 = vrot.slane %v2771, 7
        %v2776 = vrot.slane %v2772, 7
        %v2779 = vsel %vm2683, 0.0, %v2775
        %v2780 = vsel %vm2683, 0.0, %v2776
        %v2781 = vsel %vm2686, %v2779, 0.0
        %v2782 = vsel %vm2686, %v2780, 0.0
        %s2783 = scalar_lea.vmem [#allocation2], 80
        %2784 = vst [vmem:[%s2783] sm:$0x3f] %v2781
        %2785 = vst [vmem:[%s2783 + $0x8] sm:$0x3f] %v2782
        %vm2786 = vcmp.ge.f32.partialorder %v2657, 0.0
        %vm2787 = vcmp.ge.f32.partialorder %v2658, 0.0
        %v2788 = vmul.f32 %v2657, 0.1
        %v2789 = vmul.f32 %v2658, 0.1
        %v2790 = vsel %vm2786, %v2657, %v2788
        %v2791 = vsel %vm2787, %v2658, %v2789
        %v2794 = vrot.slane %v2790, 7
        %v2795 = vrot.slane %v2791, 7
        %v2798 = vsel %vm2683, 0.0, %v2794
        %v2799 = vsel %vm2683, 0.0, %v2795
        %v2800 = vsel %vm2686, %v2798, 0.0
        %v2801 = vsel %vm2686, %v2799, 0.0
        %s2802 = scalar_lea.vmem [#allocation2], 96
        %2803 = vst [vmem:[%s2802] sm:$0x3f] %v2800
        %2804 = vst [vmem:[%s2802 + $0x8] sm:$0x3f] %v2801
        %vm2805 = vcmp.ge.f32.partialorder %v2669, 0.0
        %vm2806 = vcmp.ge.f32.partialorder %v2670, 0.0
        %v2807 = vmul.f32 %v2669, 0.1
        %v2808 = vmul.f32 %v2670, 0.1
        %v2809 = vsel %vm2805, %v2669, %v2807
        %v2810 = vsel %vm2806, %v2670, %v2808
        %v2813 = vrot.slane %v2809, 7
        %v2814 = vrot.slane %v2810, 7
        %v2817 = vsel %vm2683, 0.0, %v2813
        %v2818 = vsel %vm2683, 0.0, %v2814
        %v2819 = vsel %vm2686, %v2817, 0.0
        %v2820 = vsel %vm2686, %v2818, 0.0
        %s2821 = scalar_lea.vmem [#allocation2], 112
        %2822 = vst [vmem:[%s2821] sm:$0x3f] %v2819
        %2823 = vst [vmem:[%s2821 + $0x8] sm:$0x3f] %v2820
        %v2824 = vld [vmem:[#allocation2] sm:$0x3f]
        %v2825 = vld [vmem:[#allocation2 + $0x8] sm:$0x3f]
        %2827 = vrot.lane.b32.xlu0 %v2825, 17
        %v2828 = vpop.permute.xlu0 %2827
        %2831 = vrot.lane.b32.xlu0 %v2824, 17
        %v2832 = vpop.permute.xlu0 %2831
        %v2833 = vsel %vm317, %v2832, %v2828
        %v2836 = vsel %vm317, %v2828, %v2832
        %v2837 = vld [vmem:[%s1] sm:$0x3]
        %v2839 = vlaneseq
        %v2840 = vshrl.u32 %v2839, 7
        %v2841 = vsub.s32 0, %v2840
        %v2842 = vrot.slane %v2837, %v2841
        %v2843 = vlaneseq
        %v2844 = vshrl.u32 %v2843, 7
        %v2845 = vsub.s32 1, %v2844
        %v2846 = vrot.slane %v2837, %v2845
        %v2849 = vmul.f32 %v2836, %v2842
        %v2850 = vmul.f32 %v2833, %v2846
        %s2851 = sld [smem:[#allocation8]]
        %v2852 = vstv %s2851
        %v2853 = vmul.f32 %v2852, %v2849
        %v2854 = vmul.f32 %v2852, %v2850
        %v2855 = vadd.f32 %v2853, 0.0
        %v2856 = vadd.f32 %v2854, 0.0
        %s2857 = sld [smem:[#allocation8 + $0x9]]
        %v2858 = vstv %s2857
        %v2859 = vmul.f32 %v2858, %v2849
        %v2860 = vmul.f32 %v2858, %v2850
        %v2861 = vadd.f32 %v2859, 0.0
        %v2862 = vadd.f32 %v2860, 0.0
        %s2863 = sld [smem:[#allocation8 + $0x12]]
        %v2864 = vstv %s2863
        %v2865 = vmul.f32 %v2864, %v2849
        %v2866 = vmul.f32 %v2864, %v2850
        %v2867 = vadd.f32 %v2865, 0.0
        %v2868 = vadd.f32 %v2866, 0.0
        %2869 = vrot.lane.b32.xlu0 %v2825, 16
        %v2870 = vpop.permute.xlu0 %2869
        %2872 = vrot.lane.b32.xlu0 %v2824, 16
        %v2873 = vpop.permute.xlu0 %2872
        %v2874 = vsel %vm581, %v2873, %v2870
        %v2877 = vsel %vm581, %v2870, %v2873
        %v2878 = vld [vmem:[%s586] sm:$0x3]
        %v2880 = vlaneseq
        %v2881 = vshrl.u32 %v2880, 7
        %v2882 = vsub.s32 0, %v2881
        %v2883 = vrot.slane %v2878, %v2882
        %v2884 = vlaneseq
        %v2885 = vshrl.u32 %v2884, 7
        %v2886 = vsub.s32 1, %v2885
        %v2887 = vrot.slane %v2878, %v2886
        %v2890 = vmul.f32 %v2877, %v2883
        %v2891 = vmul.f32 %v2874, %v2887
        %s2892 = sld [smem:[#allocation8 + $0x1]]
        %v2893 = vstv %s2892
        %v2894 = vmul.f32 %v2893, %v2890
        %v2895 = vmul.f32 %v2893, %v2891
        %v2896 = vadd.f32 %v2894, 0.0
        %v2897 = vadd.f32 %v2895, 0.0
        %s2898 = sld [smem:[#allocation8 + $0xa]]
        %v2899 = vstv %s2898
        %v2900 = vmul.f32 %v2899, %v2890
        %v2901 = vmul.f32 %v2899, %v2891
        %v2904 = vrot.slane %v2900, 1
        %v2905 = vrot.slane %v2901, 1
        %v2908 = vadd.f32 %v2855, %v2904
        %v2909 = vadd.f32 %v2856, %v2905
        %s2910 = sld [smem:[#allocation8 + $0x13]]
        %v2911 = vstv %s2910
        %v2912 = vmul.f32 %v2911, %v2890
        %v2913 = vmul.f32 %v2911, %v2891
        %v2916 = vrot.slane %v2912, 1
        %v2917 = vrot.slane %v2913, 1
        %v2920 = vadd.f32 %v2861, %v2916
        %v2921 = vadd.f32 %v2862, %v2917
        %2922 = vrot.lane.b32.xlu0 %v2825, 15
        %v2923 = vpop.permute.xlu0 %2922
        %2925 = vrot.lane.b32.xlu0 %v2824, 15
        %v2926 = vpop.permute.xlu0 %2925
        %v2927 = vsel %vm846, %v2926, %v2923
        %v2930 = vsel %vm846, %v2923, %v2926
        %v2931 = vld [vmem:[%s851] sm:$0x3]
        %v2933 = vlaneseq
        %v2934 = vshrl.u32 %v2933, 7
        %v2935 = vsub.s32 0, %v2934
        %v2936 = vrot.slane %v2931, %v2935
        %v2937 = vlaneseq
        %v2938 = vshrl.u32 %v2937, 7
        %v2939 = vsub.s32 1, %v2938
        %v2940 = vrot.slane %v2931, %v2939
        %v2943 = vmul.f32 %v2930, %v2936
        %v2944 = vmul.f32 %v2927, %v2940
        %s2945 = sld [smem:[#allocation8 + $0x2]]
        %v2946 = vstv %s2945
        %v2947 = vmul.f32 %v2946, %v2943
        %v2948 = vmul.f32 %v2946, %v2944
        %v2951 = vrot.slane %v2947, 6
        %v2952 = vrot.slane %v2948, 6
        %v2955 = vadd.f32 %v2867, %v2951
        %v2956 = vadd.f32 %v2868, %v2952
        %s2957 = sld [smem:[#allocation8 + $0xb]]
        %v2958 = vstv %s2957
        %v2959 = vmul.f32 %v2958, %v2943
        %v2960 = vmul.f32 %v2958, %v2944
        %v2963 = vrot.slane %v2959, 1
        %v2964 = vrot.slane %v2960, 1
        %v2967 = vadd.f32 %v2896, %v2963
        %v2968 = vadd.f32 %v2897, %v2964
        %s2969 = sld [smem:[#allocation8 + $0x14]]
        %v2970 = vstv %s2969
        %v2971 = vmul.f32 %v2970, %v2943
        %v2972 = vmul.f32 %v2970, %v2944
        %v2975 = vrot.slane %v2971, 2
        %v2976 = vrot.slane %v2972, 2
        %v2979 = vadd.f32 %v2908, %v2975
        %v2980 = vadd.f32 %v2909, %v2976
        %2981 = vrot.lane.b32.xlu0 %v2825, 1
        %v2982 = vpop.permute.xlu0 %2981
        %2984 = vrot.lane.b32.xlu0 %v2824, 1
        %v2985 = vpop.permute.xlu0 %2984
        %v2986 = vsel %vm1111, %v2985, %v2982
        %v2989 = vsel %vm1111, %v2982, %v2985
        %v2990 = vld [vmem:[%s1116] sm:$0x3]
        %v2992 = vlaneseq
        %v2993 = vshrl.u32 %v2992, 7
        %v2994 = vsub.s32 0, %v2993
        %v2995 = vrot.slane %v2990, %v2994
        %v2996 = vlaneseq
        %v2997 = vshrl.u32 %v2996, 7
        %v2998 = vsub.s32 1, %v2997
        %v2999 = vrot.slane %v2990, %v2998
        %v3002 = vmul.f32 %v2989, %v2995
        %v3003 = vmul.f32 %v2986, %v2999
        %s3004 = sld [smem:[#allocation8 + $0x3]]
        %v3005 = vstv %s3004
        %v3006 = vmul.f32 %v3005, %v3002
        %v3007 = vmul.f32 %v3005, %v3003
        %v3010 = vrot.slane %v3006, 7
        %v3011 = vrot.slane %v3007, 7
        %v3014 = vadd.f32 %v2920, %v3010
        %v3015 = vadd.f32 %v2921, %v3011
        %s3016 = sld [smem:[#allocation8 + $0xc]]
        %v3017 = vstv %s3016
        %v3018 = vmul.f32 %v3017, %v3002
        %v3019 = vmul.f32 %v3017, %v3003
        %v3022 = vrot.slane %v3018, 7
        %v3023 = vrot.slane %v3019, 7
        %v3026 = vadd.f32 %v2955, %v3022
        %v3027 = vadd.f32 %v2956, %v3023
        %s3028 = sld [smem:[#allocation8 + $0x15]]
        %v3029 = vstv %s3028
        %v3030 = vmul.f32 %v3029, %v3002
        %v3031 = vmul.f32 %v3029, %v3003
        %v3034 = vrot.slane %v3030, 2
        %v3035 = vrot.slane %v3031, 2
        %v3038 = vadd.f32 %v2967, %v3034
        %v3039 = vadd.f32 %v2968, %v3035
        %s3040 = sld [smem:[#allocation8 + $0x4]]
        %v3041 = vstv %s3040
        %v3042 = vmul.f32 %v3041, %v2824
        %v3043 = vmul.f32 %v3041, %v2825
        %v3044 = vadd.f32 %v2979, %v3042
        %v3045 = vadd.f32 %v2980, %v3043
        %s3046 = sld [smem:[#allocation8 + $0xd]]
        %v3047 = vstv %s3046
        %v3048 = vmul.f32 %v3047, %v2824
        %v3049 = vmul.f32 %v3047, %v2825
        %v3050 = vadd.f32 %v3014, %v3048
        %v3051 = vadd.f32 %v3015, %v3049
        %s3052 = sld [smem:[#allocation8 + $0x16]]
        %v3053 = vstv %s3052
        %v3054 = vmul.f32 %v3053, %v2824
        %v3055 = vmul.f32 %v3053, %v2825
        %v3056 = vadd.f32 %v3026, %v3054
        %v3057 = vadd.f32 %v3027, %v3055
        %3058 = vrot.lane.b32.xlu0 %v2824, 127
        %v3059 = vpop.permute.xlu0 %3058
        %3060 = vrot.lane.b32.xlu0 %v2825, 127
        %v3061 = vpop.permute.xlu0 %3060
        %v3062 = vsel %vm1615, %v3059, %v3061
        %v3066 = vsel %vm1615, %v3061, %v3059
        %v3067 = vld [vmem:[%s1621] sm:$0x3]
        %v3069 = vlaneseq
        %v3070 = vshrl.u32 %v3069, 7
        %v3071 = vsub.s32 0, %v3070
        %v3072 = vrot.slane %v3067, %v3071
        %v3073 = vlaneseq
        %v3074 = vshrl.u32 %v3073, 7
        %v3075 = vsub.s32 1, %v3074
        %v3076 = vrot.slane %v3067, %v3075
        %v3079 = vmul.f32 %v3062, %v3072
        %v3080 = vmul.f32 %v3066, %v3076
        %s3081 = sld [smem:[#allocation8 + $0x5]]
        %v3082 = vstv %s3081
        %v3083 = vmul.f32 %v3082, %v3079
        %v3084 = vmul.f32 %v3082, %v3080
        %v3085 = vadd.f32 %v3038, %v3083
        %v3086 = vadd.f32 %v3039, %v3084
        %s3087 = sld [smem:[#allocation8 + $0xe]]
        %v3088 = vstv %s3087
        %v3089 = vmul.f32 %v3088, %v3079
        %v3090 = vmul.f32 %v3088, %v3080
        %v3093 = vrot.slane %v3089, 1
        %v3094 = vrot.slane %v3090, 1
        %v3097 = vadd.f32 %v3044, %v3093
        %v3098 = vadd.f32 %v3045, %v3094
        %s3099 = sld [smem:[#allocation8 + $0x17]]
        %v3100 = vstv %s3099
        %v3101 = vmul.f32 %v3100, %v3079
        %v3102 = vmul.f32 %v3100, %v3080
        %v3105 = vrot.slane %v3101, 1
        %v3106 = vrot.slane %v3102, 1
        %v3109 = vadd.f32 %v3050, %v3105
        %v3110 = vadd.f32 %v3051, %v3106
        %3111 = vrot.lane.b32.xlu0 %v2824, 113
        %v3112 = vpop.permute.xlu0 %3111
        %3113 = vrot.lane.b32.xlu0 %v2825, 113
        %v3114 = vpop.permute.xlu0 %3113
        %v3115 = vsel %vm1880, %v3112, %v3114
        %v3119 = vsel %vm1880, %v3114, %v3112
        %v3120 = vld [vmem:[%s1886] sm:$0x3]
        %v3122 = vlaneseq
        %v3123 = vshrl.u32 %v3122, 7
        %v3124 = vsub.s32 0, %v3123
        %v3125 = vrot.slane %v3120, %v3124
        %v3126 = vlaneseq
        %v3127 = vshrl.u32 %v3126, 7
        %v3128 = vsub.s32 1, %v3127
        %v3129 = vrot.slane %v3120, %v3128
        %v3132 = vmul.f32 %v3115, %v3125
        %v3133 = vmul.f32 %v3119, %v3129
        %s3134 = sld [smem:[#allocation8 + $0x6]]
        %v3135 = vstv %s3134
        %v3136 = vmul.f32 %v3135, %v3132
        %v3137 = vmul.f32 %v3135, %v3133
        %v3140 = vrot.slane %v3136, 6
        %v3141 = vrot.slane %v3137, 6
        %v3144 = vadd.f32 %v3056, %v3140
        %v3145 = vadd.f32 %v3057, %v3141
        %s3146 = sld [smem:[#allocation8 + $0xf]]
        %v3147 = vstv %s3146
        %v3148 = vmul.f32 %v3147, %v3132
        %v3149 = vmul.f32 %v3147, %v3133
        %v3152 = vrot.slane %v3148, 1
        %v3153 = vrot.slane %v3149, 1
        %v3156 = vadd.f32 %v3085, %v3152
        %v3157 = vadd.f32 %v3086, %v3153
        %s3158 = sld [smem:[#allocation8 + $0x18]]
        %v3159 = vstv %s3158
        %v3160 = vmul.f32 %v3159, %v3132
        %v3161 = vmul.f32 %v3159, %v3133
        %v3164 = vrot.slane %v3160, 2
        %v3165 = vrot.slane %v3161, 2
        %v3168 = vadd.f32 %v3097, %v3164
        %v3169 = vadd.f32 %v3098, %v3165
        %3170 = vrot.lane.b32.xlu0 %v2824, 112
        %v3171 = vpop.permute.xlu0 %3170
        %3172 = vrot.lane.b32.xlu0 %v2825, 112
        %v3173 = vpop.permute.xlu0 %3172
        %v3174 = vsel %vm2145, %v3171, %v3173
        %v3178 = vsel %vm2145, %v3173, %v3171
        %v3179 = vld [vmem:[%s2151] sm:$0x3]
        %v3181 = vlaneseq
        %v3182 = vshrl.u32 %v3181, 7
        %v3183 = vsub.s32 0, %v3182
        %v3184 = vrot.slane %v3179, %v3183
        %v3185 = vlaneseq
        %v3186 = vshrl.u32 %v3185, 7
        %v3187 = vsub.s32 1, %v3186
        %v3188 = vrot.slane %v3179, %v3187
        %v3191 = vmul.f32 %v3174, %v3184
        %v3192 = vmul.f32 %v3178, %v3188
        %s3193 = sld [smem:[#allocation8 + $0x7]]
        %v3194 = vstv %s3193
        %v3195 = vmul.f32 %v3194, %v3191
        %v3196 = vmul.f32 %v3194, %v3192
        %v3199 = vrot.slane %v3195, 7
        %v3200 = vrot.slane %v3196, 7
        %v3203 = vadd.f32 %v3109, %v3199
        %v3204 = vadd.f32 %v3110, %v3200
        %s3205 = sld [smem:[#allocation8 + $0x10]]
        %v3206 = vstv %s3205
        %v3207 = vmul.f32 %v3206, %v3191
        %v3208 = vmul.f32 %v3206, %v3192
        %v3211 = vrot.slane %v3207, 7
        %v3212 = vrot.slane %v3208, 7
        %v3215 = vadd.f32 %v3144, %v3211
        %v3216 = vadd.f32 %v3145, %v3212
        %s3217 = sld [smem:[#allocation8 + $0x19]]
        %v3218 = vstv %s3217
        %v3219 = vmul.f32 %v3218, %v3191
        %v3220 = vmul.f32 %v3218, %v3192
        %v3223 = vrot.slane %v3219, 2
        %v3224 = vrot.slane %v3220, 2
        %v3227 = vadd.f32 %v3156, %v3223
        %v3228 = vadd.f32 %v3157, %v3224
        %3229 = vrot.lane.b32.xlu0 %v2824, 111
        %v3230 = vpop.permute.xlu0 %3229
        %3231 = vrot.lane.b32.xlu0 %v2825, 111
        %v3232 = vpop.permute.xlu0 %3231
        %v3233 = vsel %vm2410, %v3230, %v3232
        %v3237 = vsel %vm2410, %v3232, %v3230
        %v3238 = vld [vmem:[%s2416] sm:$0x3]
        %v3240 = vlaneseq
        %v3241 = vshrl.u32 %v3240, 7
        %v3242 = vsub.s32 0, %v3241
        %v3243 = vrot.slane %v3238, %v3242
        %v3244 = vlaneseq
        %v3245 = vshrl.u32 %v3244, 7
        %v3246 = vsub.s32 1, %v3245
        %v3247 = vrot.slane %v3238, %v3246
        %v3250 = vmul.f32 %v3233, %v3243
        %v3251 = vmul.f32 %v3237, %v3247
        %s3252 = sld [smem:[#allocation8 + $0x8]]
        %v3253 = vstv %s3252
        %v3254 = vmul.f32 %v3253, %v3250
        %v3255 = vmul.f32 %v3253, %v3251
        %v3256 = vadd.f32 %v3168, %v3254
        %v3257 = vadd.f32 %v3169, %v3255
        %s3258 = sld [smem:[#allocation8 + $0x11]]
        %v3259 = vstv %s3258
        %v3260 = vmul.f32 %v3259, %v3250
        %v3261 = vmul.f32 %v3259, %v3251
        %v3262 = vadd.f32 %v3203, %v3260
        %v3263 = vadd.f32 %v3204, %v3261
        %s3264 = sld [smem:[#allocation8 + $0x1a]]
        %v3265 = vstv %s3264
        %v3266 = vmul.f32 %v3265, %v3250
        %v3267 = vmul.f32 %v3265, %v3251
        %v3268 = vadd.f32 %v3215, %v3266
        %v3269 = vadd.f32 %v3216, %v3267
        %v3270 = vld [vmem:[%s2707] sm:$0x3f]
        %v3271 = vld [vmem:[%s2707 + $0x8] sm:$0x3f]
        %3273 = vrot.lane.b32.xlu0 %v3271, 17
        %v3274 = vpop.permute.xlu0 %3273
        %3277 = vrot.lane.b32.xlu0 %v3270, 17
        %v3278 = vpop.permute.xlu0 %3277
        %v3279 = vsel %vm317, %v3278, %v3274
        %v3282 = vsel %vm317, %v3274, %v3278
        %v3283 = vmul.f32 %v3282, %v2842
        %v3284 = vmul.f32 %v3279, %v2846
        %s3285 = sld [smem:[#allocation8 + $0x1b]]
        %v3286 = vstv %s3285
        %v3287 = vmul.f32 %v3286, %v3283
        %v3288 = vmul.f32 %v3286, %v3284
        %v3289 = vadd.f32 %v3227, %v3287
        %v3290 = vadd.f32 %v3228, %v3288
        %s3291 = sld [smem:[#allocation8 + $0x24]]
        %v3292 = vstv %s3291
        %v3293 = vmul.f32 %v3292, %v3283
        %v3294 = vmul.f32 %v3292, %v3284
        %v3297 = vrot.slane %v3293, 1
        %v3298 = vrot.slane %v3294, 1
        %v3301 = vadd.f32 %v3256, %v3297
        %v3302 = vadd.f32 %v3257, %v3298
        %s3303 = sld [smem:[#allocation8 + $0x2d]]
        %v3304 = vstv %s3303
        %v3305 = vmul.f32 %v3304, %v3283
        %v3306 = vmul.f32 %v3304, %v3284
        %v3309 = vrot.slane %v3305, 1
        %v3310 = vrot.slane %v3306, 1
        %v3313 = vadd.f32 %v3262, %v3309
        %v3314 = vadd.f32 %v3263, %v3310
        %3315 = vrot.lane.b32.xlu0 %v3271, 16
        %v3316 = vpop.permute.xlu0 %3315
        %3318 = vrot.lane.b32.xlu0 %v3270, 16
        %v3319 = vpop.permute.xlu0 %3318
        %v3320 = vsel %vm581, %v3319, %v3316
        %v3323 = vsel %vm581, %v3316, %v3319
        %v3324 = vmul.f32 %v3323, %v2883
        %v3325 = vmul.f32 %v3320, %v2887
        %s3326 = sld [smem:[#allocation8 + $0x1c]]
        %v3327 = vstv %s3326
        %v3328 = vmul.f32 %v3327, %v3324
        %v3329 = vmul.f32 %v3327, %v3325
        %v3332 = vrot.slane %v3328, 6
        %v3333 = vrot.slane %v3329, 6
        %v3336 = vadd.f32 %v3268, %v3332
        %v3337 = vadd.f32 %v3269, %v3333
        %s3338 = sld [smem:[#allocation8 + $0x25]]
        %v3339 = vstv %s3338
        %v3340 = vmul.f32 %v3339, %v3324
        %v3341 = vmul.f32 %v3339, %v3325
        %v3344 = vrot.slane %v3340, 1
        %v3345 = vrot.slane %v3341, 1
        %v3348 = vadd.f32 %v3289, %v3344
        %v3349 = vadd.f32 %v3290, %v3345
        %s3350 = sld [smem:[#allocation8 + $0x2e]]
        %v3351 = vstv %s3350
        %v3352 = vmul.f32 %v3351, %v3324
        %v3353 = vmul.f32 %v3351, %v3325
        %v3356 = vrot.slane %v3352, 2
        %v3357 = vrot.slane %v3353, 2
        %v3360 = vadd.f32 %v3301, %v3356
        %v3361 = vadd.f32 %v3302, %v3357
        %3362 = vrot.lane.b32.xlu0 %v3271, 15
        %v3363 = vpop.permute.xlu0 %3362
        %3365 = vrot.lane.b32.xlu0 %v3270, 15
        %v3366 = vpop.permute.xlu0 %3365
        %v3367 = vsel %vm846, %v3366, %v3363
        %v3370 = vsel %vm846, %v3363, %v3366
        %v3371 = vmul.f32 %v3370, %v2936
        %v3372 = vmul.f32 %v3367, %v2940
        %s3373 = sld [smem:[#allocation8 + $0x1d]]
        %v3374 = vstv %s3373
        %v3375 = vmul.f32 %v3374, %v3371
        %v3376 = vmul.f32 %v3374, %v3372
        %v3379 = vrot.slane %v3375, 7
        %v3380 = vrot.slane %v3376, 7
        %v3383 = vadd.f32 %v3313, %v3379
        %v3384 = vadd.f32 %v3314, %v3380
        %s3385 = sld [smem:[#allocation8 + $0x26]]
        %v3386 = vstv %s3385
        %v3387 = vmul.f32 %v3386, %v3371
        %v3388 = vmul.f32 %v3386, %v3372
        %v3391 = vrot.slane %v3387, 7
        %v3392 = vrot.slane %v3388, 7
        %v3395 = vadd.f32 %v3336, %v3391
        %v3396 = vadd.f32 %v3337, %v3392
        %s3397 = sld [smem:[#allocation8 + $0x2f]]
        %v3398 = vstv %s3397
        %v3399 = vmul.f32 %v3398, %v3371
        %v3400 = vmul.f32 %v3398, %v3372
        %v3403 = vrot.slane %v3399, 2
        %v3404 = vrot.slane %v3400, 2
        %v3407 = vadd.f32 %v3348, %v3403
        %v3408 = vadd.f32 %v3349, %v3404
        %3409 = vrot.lane.b32.xlu0 %v3271, 1
        %v3410 = vpop.permute.xlu0 %3409
        %3412 = vrot.lane.b32.xlu0 %v3270, 1
        %v3413 = vpop.permute.xlu0 %3412
        %v3414 = vsel %vm1111, %v3413, %v3410
        %v3417 = vsel %vm1111, %v3410, %v3413
        %v3418 = vmul.f32 %v3417, %v2995
        %v3419 = vmul.f32 %v3414, %v2999
        %s3420 = sld [smem:[#allocation8 + $0x1e]]
        %v3421 = vstv %s3420
        %v3422 = vmul.f32 %v3421, %v3418
        %v3423 = vmul.f32 %v3421, %v3419
        %v3424 = vadd.f32 %v3360, %v3422
        %v3425 = vadd.f32 %v3361, %v3423
        %s3426 = sld [smem:[#allocation8 + $0x27]]
        %v3427 = vstv %s3426
        %v3428 = vmul.f32 %v3427, %v3418
        %v3429 = vmul.f32 %v3427, %v3419
        %v3430 = vadd.f32 %v3383, %v3428
        %v3431 = vadd.f32 %v3384, %v3429
        %s3432 = sld [smem:[#allocation8 + $0x30]]
        %v3433 = vstv %s3432
        %v3434 = vmul.f32 %v3433, %v3418
        %v3435 = vmul.f32 %v3433, %v3419
        %v3436 = vadd.f32 %v3395, %v3434
        %v3437 = vadd.f32 %v3396, %v3435
        %s3438 = sld [smem:[#allocation8 + $0x1f]]
        %v3439 = vstv %s3438
        %v3440 = vmul.f32 %v3439, %v3270
        %v3441 = vmul.f32 %v3439, %v3271
        %v3442 = vadd.f32 %v3407, %v3440
        %v3443 = vadd.f32 %v3408, %v3441
        %s3444 = sld [smem:[#allocation8 + $0x28]]
        %v3445 = vstv %s3444
        %v3446 = vmul.f32 %v3445, %v3270
        %v3447 = vmul.f32 %v3445, %v3271
        %v3450 = vrot.slane %v3446, 1
        %v3451 = vrot.slane %v3447, 1
        %v3454 = vadd.f32 %v3424, %v3450
        %v3455 = vadd.f32 %v3425, %v3451
        %s3456 = sld [smem:[#allocation8 + $0x31]]
        %v3457 = vstv %s3456
        %v3458 = vmul.f32 %v3457, %v3270
        %v3459 = vmul.f32 %v3457, %v3271
        %v3462 = vrot.slane %v3458, 1
        %v3463 = vrot.slane %v3459, 1
        %v3466 = vadd.f32 %v3430, %v3462
        %v3467 = vadd.f32 %v3431, %v3463
        %3468 = vrot.lane.b32.xlu0 %v3270, 127
        %v3469 = vpop.permute.xlu0 %3468
        %3470 = vrot.lane.b32.xlu0 %v3271, 127
        %v3471 = vpop.permute.xlu0 %3470
        %v3472 = vsel %vm1615, %v3469, %v3471
        %v3476 = vsel %vm1615, %v3471, %v3469
        %v3477 = vmul.f32 %v3472, %v3072
        %v3478 = vmul.f32 %v3476, %v3076
        %s3479 = sld [smem:[#allocation8 + $0x20]]
        %v3480 = vstv %s3479
        %v3481 = vmul.f32 %v3480, %v3477
        %v3482 = vmul.f32 %v3480, %v3478
        %v3485 = vrot.slane %v3481, 6
        %v3486 = vrot.slane %v3482, 6
        %v3489 = vadd.f32 %v3436, %v3485
        %v3490 = vadd.f32 %v3437, %v3486
        %s3491 = sld [smem:[#allocation8 + $0x29]]
        %v3492 = vstv %s3491
        %v3493 = vmul.f32 %v3492, %v3477
        %v3494 = vmul.f32 %v3492, %v3478
        %v3497 = vrot.slane %v3493, 1
        %v3498 = vrot.slane %v3494, 1
        %v3501 = vadd.f32 %v3442, %v3497
        %v3502 = vadd.f32 %v3443, %v3498
        %s3503 = sld [smem:[#allocation8 + $0x32]]
        %v3504 = vstv %s3503
        %v3505 = vmul.f32 %v3504, %v3477
        %v3506 = vmul.f32 %v3504, %v3478
        %v3509 = vrot.slane %v3505, 2
        %v3510 = vrot.slane %v3506, 2
        %v3513 = vadd.f32 %v3454, %v3509
        %v3514 = vadd.f32 %v3455, %v3510
        %3515 = vrot.lane.b32.xlu0 %v3270, 113
        %v3516 = vpop.permute.xlu0 %3515
        %3517 = vrot.lane.b32.xlu0 %v3271, 113
        %v3518 = vpop.permute.xlu0 %3517
        %v3519 = vsel %vm1880, %v3516, %v3518
        %v3523 = vsel %vm1880, %v3518, %v3516
        %v3524 = vmul.f32 %v3519, %v3125
        %v3525 = vmul.f32 %v3523, %v3129
        %s3526 = sld [smem:[#allocation8 + $0x21]]
        %v3527 = vstv %s3526
        %v3528 = vmul.f32 %v3527, %v3524
        %v3529 = vmul.f32 %v3527, %v3525
        %v3532 = vrot.slane %v3528, 7
        %v3533 = vrot.slane %v3529, 7
        %v3536 = vadd.f32 %v3466, %v3532
        %v3537 = vadd.f32 %v3467, %v3533
        %s3538 = sld [smem:[#allocation8 + $0x2a]]
        %v3539 = vstv %s3538
        %v3540 = vmul.f32 %v3539, %v3524
        %v3541 = vmul.f32 %v3539, %v3525
        %v3544 = vrot.slane %v3540, 7
        %v3545 = vrot.slane %v3541, 7
        %v3548 = vadd.f32 %v3489, %v3544
        %v3549 = vadd.f32 %v3490, %v3545
        %s3550 = sld [smem:[#allocation8 + $0x33]]
        %v3551 = vstv %s3550
        %v3552 = vmul.f32 %v3551, %v3524
        %v3553 = vmul.f32 %v3551, %v3525
        %v3556 = vrot.slane %v3552, 2
        %v3557 = vrot.slane %v3553, 2
        %v3560 = vadd.f32 %v3501, %v3556
        %v3561 = vadd.f32 %v3502, %v3557
        %3562 = vrot.lane.b32.xlu0 %v3270, 112
        %v3563 = vpop.permute.xlu0 %3562
        %3564 = vrot.lane.b32.xlu0 %v3271, 112
        %v3565 = vpop.permute.xlu0 %3564
        %v3566 = vsel %vm2145, %v3563, %v3565
        %v3570 = vsel %vm2145, %v3565, %v3563
        %v3571 = vmul.f32 %v3566, %v3184
        %v3572 = vmul.f32 %v3570, %v3188
        %s3573 = sld [smem:[#allocation8 + $0x22]]
        %v3574 = vstv %s3573
        %v3575 = vmul.f32 %v3574, %v3571
        %v3576 = vmul.f32 %v3574, %v3572
        %v3577 = vadd.f32 %v3513, %v3575
        %v3578 = vadd.f32 %v3514, %v3576
        %s3579 = sld [smem:[#allocation8 + $0x2b]]
        %v3580 = vstv %s3579
        %v3581 = vmul.f32 %v3580, %v3571
        %v3582 = vmul.f32 %v3580, %v3572
        %v3583 = vadd.f32 %v3536, %v3581
        %v3584 = vadd.f32 %v3537, %v3582
        %s3585 = sld [smem:[#allocation8 + $0x34]]
        %v3586 = vstv %s3585
        %v3587 = vmul.f32 %v3586, %v3571
        %v3588 = vmul.f32 %v3586, %v3572
        %v3589 = vadd.f32 %v3548, %v3587
        %v3590 = vadd.f32 %v3549, %v3588
        %3591 = vrot.lane.b32.xlu0 %v3270, 111
        %v3592 = vpop.permute.xlu0 %3591
        %3593 = vrot.lane.b32.xlu0 %v3271, 111
        %v3594 = vpop.permute.xlu0 %3593
        %v3595 = vsel %vm2410, %v3592, %v3594
        %v3599 = vsel %vm2410, %v3594, %v3592
        %v3600 = vmul.f32 %v3595, %v3243
        %v3601 = vmul.f32 %v3599, %v3247
        %s3602 = sld [smem:[#allocation8 + $0x23]]
        %v3603 = vstv %s3602
        %v3604 = vmul.f32 %v3603, %v3600
        %v3605 = vmul.f32 %v3603, %v3601
        %v3606 = vadd.f32 %v3560, %v3604
        %v3607 = vadd.f32 %v3561, %v3605
        %s3608 = sld [smem:[#allocation8 + $0x2c]]
        %v3609 = vstv %s3608
        %v3610 = vmul.f32 %v3609, %v3600
        %v3611 = vmul.f32 %v3609, %v3601
        %v3614 = vrot.slane %v3610, 1
        %v3615 = vrot.slane %v3611, 1
        %v3618 = vadd.f32 %v3577, %v3614
        %v3619 = vadd.f32 %v3578, %v3615
        %s3620 = sld [smem:[#allocation8 + $0x35]]
        %v3621 = vstv %s3620
        %v3622 = vmul.f32 %v3621, %v3600
        %v3623 = vmul.f32 %v3621, %v3601
        %v3626 = vrot.slane %v3622, 1
        %v3627 = vrot.slane %v3623, 1
        %v3630 = vadd.f32 %v3583, %v3626
        %v3631 = vadd.f32 %v3584, %v3627
        %v3632 = vld [vmem:[%s2726] sm:$0x3f]
        %v3633 = vld [vmem:[%s2726 + $0x8] sm:$0x3f]
        %3635 = vrot.lane.b32.xlu0 %v3633, 17
        %v3636 = vpop.permute.xlu0 %3635
        %3639 = vrot.lane.b32.xlu0 %v3632, 17
        %v3640 = vpop.permute.xlu0 %3639
        %v3641 = vsel %vm317, %v3640, %v3636
        %v3644 = vsel %vm317, %v3636, %v3640
        %v3645 = vmul.f32 %v3644, %v2842
        %v3646 = vmul.f32 %v3641, %v2846
        %s3647 = sld [smem:[#allocation8 + $0x36]]
        %v3648 = vstv %s3647
        %v3649 = vmul.f32 %v3648, %v3645
        %v3650 = vmul.f32 %v3648, %v3646
        %v3653 = vrot.slane %v3649, 6
        %v3654 = vrot.slane %v3650, 6
        %v3657 = vadd.f32 %v3589, %v3653
        %v3658 = vadd.f32 %v3590, %v3654
        %s3659 = sld [smem:[#allocation8 + $0x3f]]
        %v3660 = vstv %s3659
        %v3661 = vmul.f32 %v3660, %v3645
        %v3662 = vmul.f32 %v3660, %v3646
        %v3665 = vrot.slane %v3661, 1
        %v3666 = vrot.slane %v3662, 1
        %v3669 = vadd.f32 %v3606, %v3665
        %v3670 = vadd.f32 %v3607, %v3666
        %s3671 = sld [smem:[#allocation8 + $0x48]]
        %v3672 = vstv %s3671
        %v3673 = vmul.f32 %v3672, %v3645
        %v3674 = vmul.f32 %v3672, %v3646
        %v3677 = vrot.slane %v3673, 2
        %v3678 = vrot.slane %v3674, 2
        %v3681 = vadd.f32 %v3618, %v3677
        %v3682 = vadd.f32 %v3619, %v3678
        %3683 = vrot.lane.b32.xlu0 %v3633, 16
        %v3684 = vpop.permute.xlu0 %3683
        %3686 = vrot.lane.b32.xlu0 %v3632, 16
        %v3687 = vpop.permute.xlu0 %3686
        %v3688 = vsel %vm581, %v3687, %v3684
        %v3691 = vsel %vm581, %v3684, %v3687
        %v3692 = vmul.f32 %v3691, %v2883
        %v3693 = vmul.f32 %v3688, %v2887
        %s3694 = sld [smem:[#allocation8 + $0x37]]
        %v3695 = vstv %s3694
        %v3696 = vmul.f32 %v3695, %v3692
        %v3697 = vmul.f32 %v3695, %v3693
        %v3700 = vrot.slane %v3696, 7
        %v3701 = vrot.slane %v3697, 7
        %v3704 = vadd.f32 %v3630, %v3700
        %v3705 = vadd.f32 %v3631, %v3701
        %s3706 = sld [smem:[#allocation8 + $0x40]]
        %v3707 = vstv %s3706
        %v3708 = vmul.f32 %v3707, %v3692
        %v3709 = vmul.f32 %v3707, %v3693
        %v3712 = vrot.slane %v3708, 7
        %v3713 = vrot.slane %v3709, 7
        %v3716 = vadd.f32 %v3657, %v3712
        %v3717 = vadd.f32 %v3658, %v3713
        %s3718 = sld [smem:[#allocation8 + $0x49]]
        %v3719 = vstv %s3718
        %v3720 = vmul.f32 %v3719, %v3692
        %v3721 = vmul.f32 %v3719, %v3693
        %v3724 = vrot.slane %v3720, 2
        %v3725 = vrot.slane %v3721, 2
        %v3728 = vadd.f32 %v3669, %v3724
        %v3729 = vadd.f32 %v3670, %v3725
        %3730 = vrot.lane.b32.xlu0 %v3633, 15
        %v3731 = vpop.permute.xlu0 %3730
        %3733 = vrot.lane.b32.xlu0 %v3632, 15
        %v3734 = vpop.permute.xlu0 %3733
        %v3735 = vsel %vm846, %v3734, %v3731
        %v3738 = vsel %vm846, %v3731, %v3734
        %v3739 = vmul.f32 %v3738, %v2936
        %v3740 = vmul.f32 %v3735, %v2940
        %s3741 = sld [smem:[#allocation8 + $0x38]]
        %v3742 = vstv %s3741
        %v3743 = vmul.f32 %v3742, %v3739
        %v3744 = vmul.f32 %v3742, %v3740
        %v3745 = vadd.f32 %v3681, %v3743
        %v3746 = vadd.f32 %v3682, %v3744
        %s3747 = sld [smem:[#allocation8 + $0x41]]
        %v3748 = vstv %s3747
        %v3749 = vmul.f32 %v3748, %v3739
        %v3750 = vmul.f32 %v3748, %v3740
        %v3751 = vadd.f32 %v3704, %v3749
        %v3752 = vadd.f32 %v3705, %v3750
        %s3753 = sld [smem:[#allocation8 + $0x4a]]
        %v3754 = vstv %s3753
        %v3755 = vmul.f32 %v3754, %v3739
        %v3756 = vmul.f32 %v3754, %v3740
        %v3757 = vadd.f32 %v3716, %v3755
        %v3758 = vadd.f32 %v3717, %v3756
        %3759 = vrot.lane.b32.xlu0 %v3633, 1
        %v3760 = vpop.permute.xlu0 %3759
        %3762 = vrot.lane.b32.xlu0 %v3632, 1
        %v3763 = vpop.permute.xlu0 %3762
        %v3764 = vsel %vm1111, %v3763, %v3760
        %v3767 = vsel %vm1111, %v3760, %v3763
        %v3768 = vmul.f32 %v3767, %v2995
        %v3769 = vmul.f32 %v3764, %v2999
        %s3770 = sld [smem:[#allocation8 + $0x39]]
        %v3771 = vstv %s3770
        %v3772 = vmul.f32 %v3771, %v3768
        %v3773 = vmul.f32 %v3771, %v3769
        %v3774 = vadd.f32 %v3728, %v3772
        %v3775 = vadd.f32 %v3729, %v3773
        %s3776 = sld [smem:[#allocation8 + $0x42]]
        %v3777 = vstv %s3776
        %v3778 = vmul.f32 %v3777, %v3768
        %v3779 = vmul.f32 %v3777, %v3769
        %v3782 = vrot.slane %v3778, 1
        %v3783 = vrot.slane %v3779, 1
        %v3786 = vadd.f32 %v3745, %v3782
        %v3787 = vadd.f32 %v3746, %v3783
        %s3788 = sld [smem:[#allocation8 + $0x4b]]
        %v3789 = vstv %s3788
        %v3790 = vmul.f32 %v3789, %v3768
        %v3791 = vmul.f32 %v3789, %v3769
        %v3794 = vrot.slane %v3790, 1
        %v3795 = vrot.slane %v3791, 1
        %v3798 = vadd.f32 %v3751, %v3794
        %v3799 = vadd.f32 %v3752, %v3795
        %s3800 = sld [smem:[#allocation8 + $0x3a]]
        %v3801 = vstv %s3800
        %v3802 = vmul.f32 %v3801, %v3632
        %v3803 = vmul.f32 %v3801, %v3633
        %v3806 = vrot.slane %v3802, 6
        %v3807 = vrot.slane %v3803, 6
        %v3810 = vadd.f32 %v3757, %v3806
        %v3811 = vadd.f32 %v3758, %v3807
        %s3812 = sld [smem:[#allocation8 + $0x43]]
        %v3813 = vstv %s3812
        %v3814 = vmul.f32 %v3813, %v3632
        %v3815 = vmul.f32 %v3813, %v3633
        %v3818 = vrot.slane %v3814, 1
        %v3819 = vrot.slane %v3815, 1
        %v3822 = vadd.f32 %v3774, %v3818
        %v3823 = vadd.f32 %v3775, %v3819
        %s3824 = sld [smem:[#allocation8 + $0x4c]]
        %v3825 = vstv %s3824
        %v3826 = vmul.f32 %v3825, %v3632
        %v3827 = vmul.f32 %v3825, %v3633
        %v3830 = vrot.slane %v3826, 2
        %v3831 = vrot.slane %v3827, 2
        %v3834 = vadd.f32 %v3786, %v3830
        %v3835 = vadd.f32 %v3787, %v3831
        %3836 = vrot.lane.b32.xlu0 %v3632, 127
        %v3837 = vpop.permute.xlu0 %3836
        %3838 = vrot.lane.b32.xlu0 %v3633, 127
        %v3839 = vpop.permute.xlu0 %3838
        %v3840 = vsel %vm1615, %v3837, %v3839
        %v3844 = vsel %vm1615, %v3839, %v3837
        %v3845 = vmul.f32 %v3840, %v3072
        %v3846 = vmul.f32 %v3844, %v3076
        %s3847 = sld [smem:[#allocation8 + $0x3b]]
        %v3848 = vstv %s3847
        %v3849 = vmul.f32 %v3848, %v3845
        %v3850 = vmul.f32 %v3848, %v3846
        %v3853 = vrot.slane %v3849, 7
        %v3854 = vrot.slane %v3850, 7
        %v3857 = vadd.f32 %v3798, %v3853
        %v3858 = vadd.f32 %v3799, %v3854
        %s3859 = sld [smem:[#allocation8 + $0x44]]
        %v3860 = vstv %s3859
        %v3861 = vmul.f32 %v3860, %v3845
        %v3862 = vmul.f32 %v3860, %v3846
        %v3865 = vrot.slane %v3861, 7
        %v3866 = vrot.slane %v3862, 7
        %v3869 = vadd.f32 %v3810, %v3865
        %v3870 = vadd.f32 %v3811, %v3866
        %s3871 = sld [smem:[#allocation8 + $0x4d]]
        %v3872 = vstv %s3871
        %v3873 = vmul.f32 %v3872, %v3845
        %v3874 = vmul.f32 %v3872, %v3846
        %v3877 = vrot.slane %v3873, 2
        %v3878 = vrot.slane %v3874, 2
        %v3881 = vadd.f32 %v3822, %v3877
        %v3882 = vadd.f32 %v3823, %v3878
        %3883 = vrot.lane.b32.xlu0 %v3632, 113
        %v3884 = vpop.permute.xlu0 %3883
        %3885 = vrot.lane.b32.xlu0 %v3633, 113
        %v3886 = vpop.permute.xlu0 %3885
        %v3887 = vsel %vm1880, %v3884, %v3886
        %v3891 = vsel %vm1880, %v3886, %v3884
        %v3892 = vmul.f32 %v3887, %v3125
        %v3893 = vmul.f32 %v3891, %v3129
        %s3894 = sld [smem:[#allocation8 + $0x3c]]
        %v3895 = vstv %s3894
        %v3896 = vmul.f32 %v3895, %v3892
        %v3897 = vmul.f32 %v3895, %v3893
        %v3898 = vadd.f32 %v3834, %v3896
        %v3899 = vadd.f32 %v3835, %v3897
        %s3900 = sld [smem:[#allocation8 + $0x45]]
        %v3901 = vstv %s3900
        %v3902 = vmul.f32 %v3901, %v3892
        %v3903 = vmul.f32 %v3901, %v3893
        %v3904 = vadd.f32 %v3857, %v3902
        %v3905 = vadd.f32 %v3858, %v3903
        %s3906 = sld [smem:[#allocation8 + $0x4e]]
        %v3907 = vstv %s3906
        %v3908 = vmul.f32 %v3907, %v3892
        %v3909 = vmul.f32 %v3907, %v3893
        %v3910 = vadd.f32 %v3869, %v3908
        %v3911 = vadd.f32 %v3870, %v3909
        %3912 = vrot.lane.b32.xlu0 %v3632, 112
        %v3913 = vpop.permute.xlu0 %3912
        %3914 = vrot.lane.b32.xlu0 %v3633, 112
        %v3915 = vpop.permute.xlu0 %3914
        %v3916 = vsel %vm2145, %v3913, %v3915
        %v3920 = vsel %vm2145, %v3915, %v3913
        %v3921 = vmul.f32 %v3916, %v3184
        %v3922 = vmul.f32 %v3920, %v3188
        %s3923 = sld [smem:[#allocation8 + $0x3d]]
        %v3924 = vstv %s3923
        %v3925 = vmul.f32 %v3924, %v3921
        %v3926 = vmul.f32 %v3924, %v3922
        %v3927 = vadd.f32 %v3881, %v3925
        %v3928 = vadd.f32 %v3882, %v3926
        %s3929 = sld [smem:[#allocation8 + $0x46]]
        %v3930 = vstv %s3929
        %v3931 = vmul.f32 %v3930, %v3921
        %v3932 = vmul.f32 %v3930, %v3922
        %v3935 = vrot.slane %v3931, 1
        %v3936 = vrot.slane %v3932, 1
        %v3939 = vadd.f32 %v3898, %v3935
        %v3940 = vadd.f32 %v3899, %v3936
        %s3941 = sld [smem:[#allocation8 + $0x4f]]
        %v3942 = vstv %s3941
        %v3943 = vmul.f32 %v3942, %v3921
        %v3944 = vmul.f32 %v3942, %v3922
        %v3947 = vrot.slane %v3943, 1
        %v3948 = vrot.slane %v3944, 1
        %v3951 = vadd.f32 %v3904, %v3947
        %v3952 = vadd.f32 %v3905, %v3948
        %3953 = vrot.lane.b32.xlu0 %v3632, 111
        %v3954 = vpop.permute.xlu0 %3953
        %3955 = vrot.lane.b32.xlu0 %v3633, 111
        %v3956 = vpop.permute.xlu0 %3955
        %v3957 = vsel %vm2410, %v3954, %v3956
        %v3961 = vsel %vm2410, %v3956, %v3954
        %v3962 = vmul.f32 %v3957, %v3243
        %v3963 = vmul.f32 %v3961, %v3247
        %s3964 = sld [smem:[#allocation8 + $0x3e]]
        %v3965 = vstv %s3964
        %v3966 = vmul.f32 %v3965, %v3962
        %v3967 = vmul.f32 %v3965, %v3963
        %v3970 = vrot.slane %v3966, 6
        %v3971 = vrot.slane %v3967, 6
        %v3974 = vadd.f32 %v3910, %v3970
        %v3975 = vadd.f32 %v3911, %v3971
        %s3976 = sld [smem:[#allocation8 + $0x47]]
        %v3977 = vstv %s3976
        %v3978 = vmul.f32 %v3977, %v3962
        %v3979 = vmul.f32 %v3977, %v3963
        %v3982 = vrot.slane %v3978, 1
        %v3983 = vrot.slane %v3979, 1
        %v3986 = vadd.f32 %v3927, %v3982
        %v3987 = vadd.f32 %v3928, %v3983
        %s3988 = sld [smem:[#allocation8 + $0x50]]
        %v3989 = vstv %s3988
        %v3990 = vmul.f32 %v3989, %v3962
        %v3991 = vmul.f32 %v3989, %v3963
        %v3994 = vrot.slane %v3990, 2
        %v3995 = vrot.slane %v3991, 2
        %v3998 = vadd.f32 %v3939, %v3994
        %v3999 = vadd.f32 %v3940, %v3995
        %v4000 = vld [vmem:[%s2745] sm:$0x3f]
        %v4001 = vld [vmem:[%s2745 + $0x8] sm:$0x3f]
        %4003 = vrot.lane.b32.xlu0 %v4001, 17
        %v4004 = vpop.permute.xlu0 %4003
        %4007 = vrot.lane.b32.xlu0 %v4000, 17
        %v4008 = vpop.permute.xlu0 %4007
        %v4009 = vsel %vm317, %v4008, %v4004
        %v4012 = vsel %vm317, %v4004, %v4008
        %v4013 = vmul.f32 %v4012, %v2842
        %v4014 = vmul.f32 %v4009, %v2846
        %s4015 = sld [smem:[#allocation8 + $0x51]]
        %v4016 = vstv %s4015
        %v4017 = vmul.f32 %v4016, %v4013
        %v4018 = vmul.f32 %v4016, %v4014
        %v4021 = vrot.slane %v4017, 7
        %v4022 = vrot.slane %v4018, 7
        %v4025 = vadd.f32 %v3951, %v4021
        %v4026 = vadd.f32 %v3952, %v4022
        %s4027 = sld [smem:[#allocation8 + $0x5a]]
        %v4028 = vstv %s4027
        %v4029 = vmul.f32 %v4028, %v4013
        %v4030 = vmul.f32 %v4028, %v4014
        %v4033 = vrot.slane %v4029, 7
        %v4034 = vrot.slane %v4030, 7
        %v4037 = vadd.f32 %v3974, %v4033
        %v4038 = vadd.f32 %v3975, %v4034
        %s4039 = sld [smem:[#allocation8 + $0x63]]
        %v4040 = vstv %s4039
        %v4041 = vmul.f32 %v4040, %v4013
        %v4042 = vmul.f32 %v4040, %v4014
        %v4045 = vrot.slane %v4041, 2
        %v4046 = vrot.slane %v4042, 2
        %v4049 = vadd.f32 %v3986, %v4045
        %v4050 = vadd.f32 %v3987, %v4046
        %4051 = vrot.lane.b32.xlu0 %v4001, 16
        %v4052 = vpop.permute.xlu0 %4051
        %4054 = vrot.lane.b32.xlu0 %v4000, 16
        %v4055 = vpop.permute.xlu0 %4054
        %v4056 = vsel %vm581, %v4055, %v4052
        %v4059 = vsel %vm581, %v4052, %v4055
        %v4060 = vmul.f32 %v4059, %v2883
        %v4061 = vmul.f32 %v4056, %v2887
        %s4062 = sld [smem:[#allocation8 + $0x52]]
        %v4063 = vstv %s4062
        %v4064 = vmul.f32 %v4063, %v4060
        %v4065 = vmul.f32 %v4063, %v4061
        %v4066 = vadd.f32 %v3998, %v4064
        %v4067 = vadd.f32 %v3999, %v4065
        %s4068 = sld [smem:[#allocation8 + $0x5b]]
        %v4069 = vstv %s4068
        %v4070 = vmul.f32 %v4069, %v4060
        %v4071 = vmul.f32 %v4069, %v4061
        %v4072 = vadd.f32 %v4025, %v4070
        %v4073 = vadd.f32 %v4026, %v4071
        %s4074 = sld [smem:[#allocation8 + $0x64]]
        %v4075 = vstv %s4074
        %v4076 = vmul.f32 %v4075, %v4060
        %v4077 = vmul.f32 %v4075, %v4061
        %v4078 = vadd.f32 %v4037, %v4076
        %v4079 = vadd.f32 %v4038, %v4077
        %4080 = vrot.lane.b32.xlu0 %v4001, 15
        %v4081 = vpop.permute.xlu0 %4080
        %4083 = vrot.lane.b32.xlu0 %v4000, 15
        %v4084 = vpop.permute.xlu0 %4083
        %v4085 = vsel %vm846, %v4084, %v4081
        %v4088 = vsel %vm846, %v4081, %v4084
        %v4089 = vmul.f32 %v4088, %v2936
        %v4090 = vmul.f32 %v4085, %v2940
        %s4091 = sld [smem:[#allocation8 + $0x53]]
        %v4092 = vstv %s4091
        %v4093 = vmul.f32 %v4092, %v4089
        %v4094 = vmul.f32 %v4092, %v4090
        %v4095 = vadd.f32 %v4049, %v4093
        %v4096 = vadd.f32 %v4050, %v4094
        %s4097 = sld [smem:[#allocation8 + $0x5c]]
        %v4098 = vstv %s4097
        %v4099 = vmul.f32 %v4098, %v4089
        %v4100 = vmul.f32 %v4098, %v4090
        %v4103 = vrot.slane %v4099, 1
        %v4104 = vrot.slane %v4100, 1
        %v4107 = vadd.f32 %v4066, %v4103
        %v4108 = vadd.f32 %v4067, %v4104
        %s4109 = sld [smem:[#allocation8 + $0x65]]
        %v4110 = vstv %s4109
        %v4111 = vmul.f32 %v4110, %v4089
        %v4112 = vmul.f32 %v4110, %v4090
        %v4115 = vrot.slane %v4111, 1
        %v4116 = vrot.slane %v4112, 1
        %v4119 = vadd.f32 %v4072, %v4115
        %v4120 = vadd.f32 %v4073, %v4116
        %4121 = vrot.lane.b32.xlu0 %v4001, 1
        %v4122 = vpop.permute.xlu0 %4121
        %4124 = vrot.lane.b32.xlu0 %v4000, 1
        %v4125 = vpop.permute.xlu0 %4124
        %v4126 = vsel %vm1111, %v4125, %v4122
        %v4129 = vsel %vm1111, %v4122, %v4125
        %v4130 = vmul.f32 %v4129, %v2995
        %v4131 = vmul.f32 %v4126, %v2999
        %s4132 = sld [smem:[#allocation8 + $0x54]]
        %v4133 = vstv %s4132
        %v4134 = vmul.f32 %v4133, %v4130
        %v4135 = vmul.f32 %v4133, %v4131
        %v4138 = vrot.slane %v4134, 6
        %v4139 = vrot.slane %v4135, 6
        %v4142 = vadd.f32 %v4078, %v4138
        %v4143 = vadd.f32 %v4079, %v4139
        %s4144 = sld [smem:[#allocation8 + $0x5d]]
        %v4145 = vstv %s4144
        %v4146 = vmul.f32 %v4145, %v4130
        %v4147 = vmul.f32 %v4145, %v4131
        %v4150 = vrot.slane %v4146, 1
        %v4151 = vrot.slane %v4147, 1
        %v4154 = vadd.f32 %v4095, %v4150
        %v4155 = vadd.f32 %v4096, %v4151
        %s4156 = sld [smem:[#allocation8 + $0x66]]
        %v4157 = vstv %s4156
        %v4158 = vmul.f32 %v4157, %v4130
        %v4159 = vmul.f32 %v4157, %v4131
        %v4162 = vrot.slane %v4158, 2
        %v4163 = vrot.slane %v4159, 2
        %v4166 = vadd.f32 %v4107, %v4162
        %v4167 = vadd.f32 %v4108, %v4163
        %s4168 = sld [smem:[#allocation8 + $0x55]]
        %v4169 = vstv %s4168
        %v4170 = vmul.f32 %v4169, %v4000
        %v4171 = vmul.f32 %v4169, %v4001
        %v4174 = vrot.slane %v4170, 7
        %v4175 = vrot.slane %v4171, 7
        %v4178 = vadd.f32 %v4119, %v4174
        %v4179 = vadd.f32 %v4120, %v4175
        %s4180 = sld [smem:[#allocation8 + $0x5e]]
        %v4181 = vstv %s4180
        %v4182 = vmul.f32 %v4181, %v4000
        %v4183 = vmul.f32 %v4181, %v4001
        %v4186 = vrot.slane %v4182, 7
        %v4187 = vrot.slane %v4183, 7
        %v4190 = vadd.f32 %v4142, %v4186
        %v4191 = vadd.f32 %v4143, %v4187
        %s4192 = sld [smem:[#allocation8 + $0x67]]
        %v4193 = vstv %s4192
        %v4194 = vmul.f32 %v4193, %v4000
        %v4195 = vmul.f32 %v4193, %v4001
        %v4198 = vrot.slane %v4194, 2
        %v4199 = vrot.slane %v4195, 2
        %v4202 = vadd.f32 %v4154, %v4198
        %v4203 = vadd.f32 %v4155, %v4199
        %4204 = vrot.lane.b32.xlu0 %v4000, 127
        %v4205 = vpop.permute.xlu0 %4204
        %4206 = vrot.lane.b32.xlu0 %v4001, 127
        %v4207 = vpop.permute.xlu0 %4206
        %v4208 = vsel %vm1615, %v4205, %v4207
        %v4212 = vsel %vm1615, %v4207, %v4205
        %v4213 = vmul.f32 %v4208, %v3072
        %v4214 = vmul.f32 %v4212, %v3076
        %s4215 = sld [smem:[#allocation8 + $0x56]]
        %v4216 = vstv %s4215
        %v4217 = vmul.f32 %v4216, %v4213
        %v4218 = vmul.f32 %v4216, %v4214
        %v4219 = vadd.f32 %v4166, %v4217
        %v4220 = vadd.f32 %v4167, %v4218
        %s4221 = sld [smem:[#allocation8 + $0x5f]]
        %v4222 = vstv %s4221
        %v4223 = vmul.f32 %v4222, %v4213
        %v4224 = vmul.f32 %v4222, %v4214
        %v4225 = vadd.f32 %v4178, %v4223
        %v4226 = vadd.f32 %v4179, %v4224
        %s4227 = sld [smem:[#allocation8 + $0x68]]
        %v4228 = vstv %s4227
        %v4229 = vmul.f32 %v4228, %v4213
        %v4230 = vmul.f32 %v4228, %v4214
        %v4231 = vadd.f32 %v4190, %v4229
        %v4232 = vadd.f32 %v4191, %v4230
        %4233 = vrot.lane.b32.xlu0 %v4000, 113
        %v4234 = vpop.permute.xlu0 %4233
        %4235 = vrot.lane.b32.xlu0 %v4001, 113
        %v4236 = vpop.permute.xlu0 %4235
        %v4237 = vsel %vm1880, %v4234, %v4236
        %v4241 = vsel %vm1880, %v4236, %v4234
        %v4242 = vmul.f32 %v4237, %v3125
        %v4243 = vmul.f32 %v4241, %v3129
        %s4244 = sld [smem:[#allocation8 + $0x57]]
        %v4245 = vstv %s4244
        %v4246 = vmul.f32 %v4245, %v4242
        %v4247 = vmul.f32 %v4245, %v4243
        %v4248 = vadd.f32 %v4202, %v4246
        %v4249 = vadd.f32 %v4203, %v4247
        %s4250 = sld [smem:[#allocation8 + $0x60]]
        %v4251 = vstv %s4250
        %v4252 = vmul.f32 %v4251, %v4242
        %v4253 = vmul.f32 %v4251, %v4243
        %v4256 = vrot.slane %v4252, 1
        %v4257 = vrot.slane %v4253, 1
        %v4260 = vadd.f32 %v4219, %v4256
        %v4261 = vadd.f32 %v4220, %v4257
        %s4262 = sld [smem:[#allocation8 + $0x69]]
        %v4263 = vstv %s4262
        %v4264 = vmul.f32 %v4263, %v4242
        %v4265 = vmul.f32 %v4263, %v4243
        %v4268 = vrot.slane %v4264, 1
        %v4269 = vrot.slane %v4265, 1
        %v4272 = vadd.f32 %v4225, %v4268
        %v4273 = vadd.f32 %v4226, %v4269
        %4274 = vrot.lane.b32.xlu0 %v4000, 112
        %v4275 = vpop.permute.xlu0 %4274
        %4276 = vrot.lane.b32.xlu0 %v4001, 112
        %v4277 = vpop.permute.xlu0 %4276
        %v4278 = vsel %vm2145, %v4275, %v4277
        %v4282 = vsel %vm2145, %v4277, %v4275
        %v4283 = vmul.f32 %v4278, %v3184
        %v4284 = vmul.f32 %v4282, %v3188
        %s4285 = sld [smem:[#allocation8 + $0x58]]
        %v4286 = vstv %s4285
        %v4287 = vmul.f32 %v4286, %v4283
        %v4288 = vmul.f32 %v4286, %v4284
        %v4291 = vrot.slane %v4287, 6
        %v4292 = vrot.slane %v4288, 6
        %v4295 = vadd.f32 %v4231, %v4291
        %v4296 = vadd.f32 %v4232, %v4292
        %s4297 = sld [smem:[#allocation8 + $0x61]]
        %v4298 = vstv %s4297
        %v4299 = vmul.f32 %v4298, %v4283
        %v4300 = vmul.f32 %v4298, %v4284
        %v4303 = vrot.slane %v4299, 1
        %v4304 = vrot.slane %v4300, 1
        %v4307 = vadd.f32 %v4248, %v4303
        %v4308 = vadd.f32 %v4249, %v4304
        %s4309 = sld [smem:[#allocation8 + $0x6a]]
        %v4310 = vstv %s4309
        %v4311 = vmul.f32 %v4310, %v4283
        %v4312 = vmul.f32 %v4310, %v4284
        %v4315 = vrot.slane %v4311, 2
        %v4316 = vrot.slane %v4312, 2
        %v4319 = vadd.f32 %v4260, %v4315
        %v4320 = vadd.f32 %v4261, %v4316
        %4321 = vrot.lane.b32.xlu0 %v4000, 111
        %v4322 = vpop.permute.xlu0 %4321
        %4323 = vrot.lane.b32.xlu0 %v4001, 111
        %v4324 = vpop.permute.xlu0 %4323
        %v4325 = vsel %vm2410, %v4322, %v4324
        %v4329 = vsel %vm2410, %v4324, %v4322
        %v4330 = vmul.f32 %v4325, %v3243
        %v4331 = vmul.f32 %v4329, %v3247
        %s4332 = sld [smem:[#allocation8 + $0x59]]
        %v4333 = vstv %s4332
        %v4334 = vmul.f32 %v4333, %v4330
        %v4335 = vmul.f32 %v4333, %v4331
        %v4338 = vrot.slane %v4334, 7
        %v4339 = vrot.slane %v4335, 7
        %v4342 = vadd.f32 %v4272, %v4338
        %v4343 = vadd.f32 %v4273, %v4339
        %s4344 = sld [smem:[#allocation8 + $0x62]]
        %v4345 = vstv %s4344
        %v4346 = vmul.f32 %v4345, %v4330
        %v4347 = vmul.f32 %v4345, %v4331
        %v4350 = vrot.slane %v4346, 7
        %v4351 = vrot.slane %v4347, 7
        %v4354 = vadd.f32 %v4295, %v4350
        %v4355 = vadd.f32 %v4296, %v4351
        %s4356 = sld [smem:[#allocation8 + $0x6b]]
        %v4357 = vstv %s4356
        %v4358 = vmul.f32 %v4357, %v4330
        %v4359 = vmul.f32 %v4357, %v4331
        %v4362 = vrot.slane %v4358, 2
        %v4363 = vrot.slane %v4359, 2
        %v4366 = vadd.f32 %v4307, %v4362
        %v4367 = vadd.f32 %v4308, %v4363
        %v4368 = vld [vmem:[%s2764] sm:$0x3f]
        %v4369 = vld [vmem:[%s2764 + $0x8] sm:$0x3f]
        %4371 = vrot.lane.b32.xlu0 %v4369, 17
        %v4372 = vpop.permute.xlu0 %4371
        %4375 = vrot.lane.b32.xlu0 %v4368, 17
        %v4376 = vpop.permute.xlu0 %4375
        %v4377 = vsel %vm317, %v4376, %v4372
        %v4380 = vsel %vm317, %v4372, %v4376
        %v4381 = vmul.f32 %v4380, %v2842
        %v4382 = vmul.f32 %v4377, %v2846
        %s4383 = sld [smem:[#allocation8 + $0x6c]]
        %v4384 = vstv %s4383
        %v4385 = vmul.f32 %v4384, %v4381
        %v4386 = vmul.f32 %v4384, %v4382
        %v4387 = vadd.f32 %v4319, %v4385
        %v4388 = vadd.f32 %v4320, %v4386
        %s4389 = sld [smem:[#allocation8 + $0x75]]
        %v4390 = vstv %s4389
        %v4391 = vmul.f32 %v4390, %v4381
        %v4392 = vmul.f32 %v4390, %v4382
        %v4393 = vadd.f32 %v4342, %v4391
        %v4394 = vadd.f32 %v4343, %v4392
        %s4395 = sld [smem:[#allocation8 + $0x7e]]
        %v4396 = vstv %s4395
        %v4397 = vmul.f32 %v4396, %v4381
        %v4398 = vmul.f32 %v4396, %v4382
        %v4399 = vadd.f32 %v4354, %v4397
        %v4400 = vadd.f32 %v4355, %v4398
        %4401 = vrot.lane.b32.xlu0 %v4369, 16
        %v4402 = vpop.permute.xlu0 %4401
        %4404 = vrot.lane.b32.xlu0 %v4368, 16
        %v4405 = vpop.permute.xlu0 %4404
        %v4406 = vsel %vm581, %v4405, %v4402
        %v4409 = vsel %vm581, %v4402, %v4405
        %v4410 = vmul.f32 %v4409, %v2883
        %v4411 = vmul.f32 %v4406, %v2887
        %s4412 = sld [smem:[#allocation8 + $0x6d]]
        %v4413 = vstv %s4412
        %v4414 = vmul.f32 %v4413, %v4410
        %v4415 = vmul.f32 %v4413, %v4411
        %v4416 = vadd.f32 %v4366, %v4414
        %v4417 = vadd.f32 %v4367, %v4415
        %s4418 = sld [smem:[#allocation8 + $0x76]]
        %v4419 = vstv %s4418
        %v4420 = vmul.f32 %v4419, %v4410
        %v4421 = vmul.f32 %v4419, %v4411
        %v4424 = vrot.slane %v4420, 1
        %v4425 = vrot.slane %v4421, 1
        %v4428 = vadd.f32 %v4387, %v4424
        %v4429 = vadd.f32 %v4388, %v4425
        %s4430 = sld [smem:[#allocation8 + $0x7f]]
        %v4431 = vstv %s4430
        %v4432 = vmul.f32 %v4431, %v4410
        %v4433 = vmul.f32 %v4431, %v4411
        %v4436 = vrot.slane %v4432, 1
        %v4437 = vrot.slane %v4433, 1
        %v4440 = vadd.f32 %v4393, %v4436
        %v4441 = vadd.f32 %v4394, %v4437
        %4442 = vrot.lane.b32.xlu0 %v4369, 15
        %v4443 = vpop.permute.xlu0 %4442
        %4445 = vrot.lane.b32.xlu0 %v4368, 15
        %v4446 = vpop.permute.xlu0 %4445
        %v4447 = vsel %vm846, %v4446, %v4443
        %v4450 = vsel %vm846, %v4443, %v4446
        %v4451 = vmul.f32 %v4450, %v2936
        %v4452 = vmul.f32 %v4447, %v2940
        %s4453 = sld [smem:[#allocation8 + $0x6e]]
        %v4454 = vstv %s4453
        %v4455 = vmul.f32 %v4454, %v4451
        %v4456 = vmul.f32 %v4454, %v4452
        %v4459 = vrot.slane %v4455, 6
        %v4460 = vrot.slane %v4456, 6
        %v4463 = vadd.f32 %v4399, %v4459
        %v4464 = vadd.f32 %v4400, %v4460
        %s4465 = sld [smem:[#allocation8 + $0x77]]
        %v4466 = vstv %s4465
        %v4467 = vmul.f32 %v4466, %v4451
        %v4468 = vmul.f32 %v4466, %v4452
        %v4471 = vrot.slane %v4467, 1
        %v4472 = vrot.slane %v4468, 1
        %v4475 = vadd.f32 %v4416, %v4471
        %v4476 = vadd.f32 %v4417, %v4472
        %s4477 = sld [smem:[#allocation8 + $0x80]]
        %v4478 = vstv %s4477
        %v4479 = vmul.f32 %v4478, %v4451
        %v4480 = vmul.f32 %v4478, %v4452
        %v4483 = vrot.slane %v4479, 2
        %v4484 = vrot.slane %v4480, 2
        %v4487 = vadd.f32 %v4428, %v4483
        %v4488 = vadd.f32 %v4429, %v4484
        %4489 = vrot.lane.b32.xlu0 %v4369, 1
        %v4490 = vpop.permute.xlu0 %4489
        %4492 = vrot.lane.b32.xlu0 %v4368, 1
        %v4493 = vpop.permute.xlu0 %4492
        %v4494 = vsel %vm1111, %v4493, %v4490
        %v4497 = vsel %vm1111, %v4490, %v4493
        %v4498 = vmul.f32 %v4497, %v2995
        %v4499 = vmul.f32 %v4494, %v2999
        %s4500 = sld [smem:[#allocation8 + $0x6f]]
        %v4501 = vstv %s4500
        %v4502 = vmul.f32 %v4501, %v4498
        %v4503 = vmul.f32 %v4501, %v4499
        %v4506 = vrot.slane %v4502, 7
        %v4507 = vrot.slane %v4503, 7
        %v4510 = vadd.f32 %v4440, %v4506
        %v4511 = vadd.f32 %v4441, %v4507
        %s4512 = sld [smem:[#allocation8 + $0x78]]
        %v4513 = vstv %s4512
        %v4514 = vmul.f32 %v4513, %v4498
        %v4515 = vmul.f32 %v4513, %v4499
        %v4518 = vrot.slane %v4514, 7
        %v4519 = vrot.slane %v4515, 7
        %v4522 = vadd.f32 %v4463, %v4518
        %v4523 = vadd.f32 %v4464, %v4519
        %s4524 = sld [smem:[#allocation8 + $0x81]]
        %v4525 = vstv %s4524
        %v4526 = vmul.f32 %v4525, %v4498
        %v4527 = vmul.f32 %v4525, %v4499
        %v4530 = vrot.slane %v4526, 2
        %v4531 = vrot.slane %v4527, 2
        %v4534 = vadd.f32 %v4475, %v4530
        %v4535 = vadd.f32 %v4476, %v4531
        %s4536 = sld [smem:[#allocation8 + $0x70]]
        %v4537 = vstv %s4536
        %v4538 = vmul.f32 %v4537, %v4368
        %v4539 = vmul.f32 %v4537, %v4369
        %v4540 = vadd.f32 %v4487, %v4538
        %v4541 = vadd.f32 %v4488, %v4539
        %s4542 = sld [smem:[#allocation8 + $0x79]]
        %v4543 = vstv %s4542
        %v4544 = vmul.f32 %v4543, %v4368
        %v4545 = vmul.f32 %v4543, %v4369
        %v4546 = vadd.f32 %v4510, %v4544
        %v4547 = vadd.f32 %v4511, %v4545
        %s4548 = sld [smem:[#allocation8 + $0x82]]
        %v4549 = vstv %s4548
        %v4550 = vmul.f32 %v4549, %v4368
        %v4551 = vmul.f32 %v4549, %v4369
        %v4552 = vadd.f32 %v4522, %v4550
        %v4553 = vadd.f32 %v4523, %v4551
        %4554 = vrot.lane.b32.xlu0 %v4368, 127
        %v4555 = vpop.permute.xlu0 %4554
        %4556 = vrot.lane.b32.xlu0 %v4369, 127
        %v4557 = vpop.permute.xlu0 %4556
        %v4558 = vsel %vm1615, %v4555, %v4557
        %v4562 = vsel %vm1615, %v4557, %v4555
        %v4563 = vmul.f32 %v4558, %v3072
        %v4564 = vmul.f32 %v4562, %v3076
        %s4565 = sld [smem:[#allocation8 + $0x71]]
        %v4566 = vstv %s4565
        %v4567 = vmul.f32 %v4566, %v4563
        %v4568 = vmul.f32 %v4566, %v4564
        %v4569 = vadd.f32 %v4534, %v4567
        %v4570 = vadd.f32 %v4535, %v4568
        %s4571 = sld [smem:[#allocation8 + $0x7a]]
        %v4572 = vstv %s4571
        %v4573 = vmul.f32 %v4572, %v4563
        %v4574 = vmul.f32 %v4572, %v4564
        %v4577 = vrot.slane %v4573, 1
        %v4578 = vrot.slane %v4574, 1
        %v4581 = vadd.f32 %v4540, %v4577
        %v4582 = vadd.f32 %v4541, %v4578
        %s4583 = sld [smem:[#allocation8 + $0x83]]
        %v4584 = vstv %s4583
        %v4585 = vmul.f32 %v4584, %v4563
        %v4586 = vmul.f32 %v4584, %v4564
        %v4589 = vrot.slane %v4585, 1
        %v4590 = vrot.slane %v4586, 1
        %v4593 = vadd.f32 %v4546, %v4589
        %v4594 = vadd.f32 %v4547, %v4590
        %4595 = vrot.lane.b32.xlu0 %v4368, 113
        %v4596 = vpop.permute.xlu0 %4595
        %4597 = vrot.lane.b32.xlu0 %v4369, 113
        %v4598 = vpop.permute.xlu0 %4597
        %v4599 = vsel %vm1880, %v4596, %v4598
        %v4603 = vsel %vm1880, %v4598, %v4596
        %v4604 = vmul.f32 %v4599, %v3125
        %v4605 = vmul.f32 %v4603, %v3129
        %s4606 = sld [smem:[#allocation8 + $0x72]]
        %v4607 = vstv %s4606
        %v4608 = vmul.f32 %v4607, %v4604
        %v4609 = vmul.f32 %v4607, %v4605
        %v4612 = vrot.slane %v4608, 6
        %v4613 = vrot.slane %v4609, 6
        %v4616 = vadd.f32 %v4552, %v4612
        %v4617 = vadd.f32 %v4553, %v4613
        %s4618 = sld [smem:[#allocation8 + $0x7b]]
        %v4619 = vstv %s4618
        %v4620 = vmul.f32 %v4619, %v4604
        %v4621 = vmul.f32 %v4619, %v4605
        %v4624 = vrot.slane %v4620, 1
        %v4625 = vrot.slane %v4621, 1
        %v4628 = vadd.f32 %v4569, %v4624
        %v4629 = vadd.f32 %v4570, %v4625
        %s4630 = sld [smem:[#allocation8 + $0x84]]
        %v4631 = vstv %s4630
        %v4632 = vmul.f32 %v4631, %v4604
        %v4633 = vmul.f32 %v4631, %v4605
        %v4636 = vrot.slane %v4632, 2
        %v4637 = vrot.slane %v4633, 2
        %v4640 = vadd.f32 %v4581, %v4636
        %v4641 = vadd.f32 %v4582, %v4637
        %4642 = vrot.lane.b32.xlu0 %v4368, 112
        %v4643 = vpop.permute.xlu0 %4642
        %4644 = vrot.lane.b32.xlu0 %v4369, 112
        %v4645 = vpop.permute.xlu0 %4644
        %v4646 = vsel %vm2145, %v4643, %v4645
        %v4650 = vsel %vm2145, %v4645, %v4643
        %v4651 = vmul.f32 %v4646, %v3184
        %v4652 = vmul.f32 %v4650, %v3188
        %s4653 = sld [smem:[#allocation8 + $0x73]]
        %v4654 = vstv %s4653
        %v4655 = vmul.f32 %v4654, %v4651
        %v4656 = vmul.f32 %v4654, %v4652
        %v4659 = vrot.slane %v4655, 7
        %v4660 = vrot.slane %v4656, 7
        %v4663 = vadd.f32 %v4593, %v4659
        %v4664 = vadd.f32 %v4594, %v4660
        %s4665 = sld [smem:[#allocation8 + $0x7c]]
        %v4666 = vstv %s4665
        %v4667 = vmul.f32 %v4666, %v4651
        %v4668 = vmul.f32 %v4666, %v4652
        %v4671 = vrot.slane %v4667, 7
        %v4672 = vrot.slane %v4668, 7
        %v4675 = vadd.f32 %v4616, %v4671
        %v4676 = vadd.f32 %v4617, %v4672
        %s4677 = sld [smem:[#allocation8 + $0x85]]
        %v4678 = vstv %s4677
        %v4679 = vmul.f32 %v4678, %v4651
        %v4680 = vmul.f32 %v4678, %v4652
        %v4683 = vrot.slane %v4679, 2
        %v4684 = vrot.slane %v4680, 2
        %v4687 = vadd.f32 %v4628, %v4683
        %v4688 = vadd.f32 %v4629, %v4684
        %4689 = vrot.lane.b32.xlu0 %v4368, 111
        %v4690 = vpop.permute.xlu0 %4689
        %4691 = vrot.lane.b32.xlu0 %v4369, 111
        %v4692 = vpop.permute.xlu0 %4691
        %v4693 = vsel %vm2410, %v4690, %v4692
        %v4697 = vsel %vm2410, %v4692, %v4690
        %v4698 = vmul.f32 %v4693, %v3243
        %v4699 = vmul.f32 %v4697, %v3247
        %s4700 = sld [smem:[#allocation8 + $0x74]]
        %v4701 = vstv %s4700
        %v4702 = vmul.f32 %v4701, %v4698
        %v4703 = vmul.f32 %v4701, %v4699
        %v4704 = vadd.f32 %v4640, %v4702
        %v4705 = vadd.f32 %v4641, %v4703
        %s4706 = sld [smem:[#allocation8 + $0x7d]]
        %v4707 = vstv %s4706
        %v4708 = vmul.f32 %v4707, %v4698
        %v4709 = vmul.f32 %v4707, %v4699
        %v4710 = vadd.f32 %v4663, %v4708
        %v4711 = vadd.f32 %v4664, %v4709
        %s4712 = sld [smem:[#allocation8 + $0x86]]
        %v4713 = vstv %s4712
        %v4714 = vmul.f32 %v4713, %v4698
        %v4715 = vmul.f32 %v4713, %v4699
        %v4716 = vadd.f32 %v4675, %v4714
        %v4717 = vadd.f32 %v4676, %v4715
        %v4718 = vld [vmem:[%s2783] sm:$0x3f]
        %v4719 = vld [vmem:[%s2783 + $0x8] sm:$0x3f]
        %4721 = vrot.lane.b32.xlu0 %v4719, 17
        %v4722 = vpop.permute.xlu0 %4721
        %4725 = vrot.lane.b32.xlu0 %v4718, 17
        %v4726 = vpop.permute.xlu0 %4725
        %v4727 = vsel %vm317, %v4726, %v4722
        %v4730 = vsel %vm317, %v4722, %v4726
        %v4731 = vmul.f32 %v4730, %v2842
        %v4732 = vmul.f32 %v4727, %v2846
        %s4733 = sld [smem:[#allocation8 + $0x87]]
        %v4734 = vstv %s4733
        %v4735 = vmul.f32 %v4734, %v4731
        %v4736 = vmul.f32 %v4734, %v4732
        %v4737 = vadd.f32 %v4687, %v4735
        %v4738 = vadd.f32 %v4688, %v4736
        %s4739 = sld [smem:[#allocation8 + $0x90]]
        %v4740 = vstv %s4739
        %v4741 = vmul.f32 %v4740, %v4731
        %v4742 = vmul.f32 %v4740, %v4732
        %v4745 = vrot.slane %v4741, 1
        %v4746 = vrot.slane %v4742, 1
        %v4749 = vadd.f32 %v4704, %v4745
        %v4750 = vadd.f32 %v4705, %v4746
        %s4751 = sld [smem:[#allocation8 + $0x99]]
        %v4752 = vstv %s4751
        %v4753 = vmul.f32 %v4752, %v4731
        %v4754 = vmul.f32 %v4752, %v4732
        %v4757 = vrot.slane %v4753, 1
        %v4758 = vrot.slane %v4754, 1
        %v4761 = vadd.f32 %v4710, %v4757
        %v4762 = vadd.f32 %v4711, %v4758
        %4763 = vrot.lane.b32.xlu0 %v4719, 16
        %v4764 = vpop.permute.xlu0 %4763
        %4766 = vrot.lane.b32.xlu0 %v4718, 16
        %v4767 = vpop.permute.xlu0 %4766
        %v4768 = vsel %vm581, %v4767, %v4764
        %v4771 = vsel %vm581, %v4764, %v4767
        %v4772 = vmul.f32 %v4771, %v2883
        %v4773 = vmul.f32 %v4768, %v2887
        %s4774 = sld [smem:[#allocation8 + $0x88]]
        %v4775 = vstv %s4774
        %v4776 = vmul.f32 %v4775, %v4772
        %v4777 = vmul.f32 %v4775, %v4773
        %v4780 = vrot.slane %v4776, 6
        %v4781 = vrot.slane %v4777, 6
        %v4784 = vadd.f32 %v4716, %v4780
        %v4785 = vadd.f32 %v4717, %v4781
        %s4786 = sld [smem:[#allocation8 + $0x91]]
        %v4787 = vstv %s4786
        %v4788 = vmul.f32 %v4787, %v4772
        %v4789 = vmul.f32 %v4787, %v4773
        %v4792 = vrot.slane %v4788, 1
        %v4793 = vrot.slane %v4789, 1
        %v4796 = vadd.f32 %v4737, %v4792
        %v4797 = vadd.f32 %v4738, %v4793
        %s4798 = sld [smem:[#allocation8 + $0x9a]]
        %v4799 = vstv %s4798
        %v4800 = vmul.f32 %v4799, %v4772
        %v4801 = vmul.f32 %v4799, %v4773
        %v4804 = vrot.slane %v4800, 2
        %v4805 = vrot.slane %v4801, 2
        %v4808 = vadd.f32 %v4749, %v4804
        %v4809 = vadd.f32 %v4750, %v4805
        %4810 = vrot.lane.b32.xlu0 %v4719, 15
        %v4811 = vpop.permute.xlu0 %4810
        %4813 = vrot.lane.b32.xlu0 %v4718, 15
        %v4814 = vpop.permute.xlu0 %4813
        %v4815 = vsel %vm846, %v4814, %v4811
        %v4818 = vsel %vm846, %v4811, %v4814
        %v4819 = vmul.f32 %v4818, %v2936
        %v4820 = vmul.f32 %v4815, %v2940
        %s4821 = sld [smem:[#allocation8 + $0x89]]
        %v4822 = vstv %s4821
        %v4823 = vmul.f32 %v4822, %v4819
        %v4824 = vmul.f32 %v4822, %v4820
        %v4827 = vrot.slane %v4823, 7
        %v4828 = vrot.slane %v4824, 7
        %v4831 = vadd.f32 %v4761, %v4827
        %v4832 = vadd.f32 %v4762, %v4828
        %s4833 = sld [smem:[#allocation8 + $0x92]]
        %v4834 = vstv %s4833
        %v4835 = vmul.f32 %v4834, %v4819
        %v4836 = vmul.f32 %v4834, %v4820
        %v4839 = vrot.slane %v4835, 7
        %v4840 = vrot.slane %v4836, 7
        %v4843 = vadd.f32 %v4784, %v4839
        %v4844 = vadd.f32 %v4785, %v4840
        %s4845 = sld [smem:[#allocation8 + $0x9b]]
        %v4846 = vstv %s4845
        %v4847 = vmul.f32 %v4846, %v4819
        %v4848 = vmul.f32 %v4846, %v4820
        %v4851 = vrot.slane %v4847, 2
        %v4852 = vrot.slane %v4848, 2
        %v4855 = vadd.f32 %v4796, %v4851
        %v4856 = vadd.f32 %v4797, %v4852
        %4857 = vrot.lane.b32.xlu0 %v4719, 1
        %v4858 = vpop.permute.xlu0 %4857
        %4860 = vrot.lane.b32.xlu0 %v4718, 1
        %v4861 = vpop.permute.xlu0 %4860
        %v4862 = vsel %vm1111, %v4861, %v4858
        %v4865 = vsel %vm1111, %v4858, %v4861
        %v4866 = vmul.f32 %v4865, %v2995
        %v4867 = vmul.f32 %v4862, %v2999
        %s4868 = sld [smem:[#allocation8 + $0x8a]]
        %v4869 = vstv %s4868
        %v4870 = vmul.f32 %v4869, %v4866
        %v4871 = vmul.f32 %v4869, %v4867
        %v4872 = vadd.f32 %v4808, %v4870
        %v4873 = vadd.f32 %v4809, %v4871
        %s4874 = sld [smem:[#allocation8 + $0x93]]
        %v4875 = vstv %s4874
        %v4876 = vmul.f32 %v4875, %v4866
        %v4877 = vmul.f32 %v4875, %v4867
        %v4878 = vadd.f32 %v4831, %v4876
        %v4879 = vadd.f32 %v4832, %v4877
        %s4880 = sld [smem:[#allocation8 + $0x9c]]
        %v4881 = vstv %s4880
        %v4882 = vmul.f32 %v4881, %v4866
        %v4883 = vmul.f32 %v4881, %v4867
        %v4884 = vadd.f32 %v4843, %v4882
        %v4885 = vadd.f32 %v4844, %v4883
        %s4886 = sld [smem:[#allocation8 + $0x8b]]
        %v4887 = vstv %s4886
        %v4888 = vmul.f32 %v4887, %v4718
        %v4889 = vmul.f32 %v4887, %v4719
        %v4890 = vadd.f32 %v4855, %v4888
        %v4891 = vadd.f32 %v4856, %v4889
        %s4892 = sld [smem:[#allocation8 + $0x94]]
        %v4893 = vstv %s4892
        %v4894 = vmul.f32 %v4893, %v4718
        %v4895 = vmul.f32 %v4893, %v4719
        %v4898 = vrot.slane %v4894, 1
        %v4899 = vrot.slane %v4895, 1
        %v4902 = vadd.f32 %v4872, %v4898
        %v4903 = vadd.f32 %v4873, %v4899
        %s4904 = sld [smem:[#allocation8 + $0x9d]]
        %v4905 = vstv %s4904
        %v4906 = vmul.f32 %v4905, %v4718
        %v4907 = vmul.f32 %v4905, %v4719
        %v4910 = vrot.slane %v4906, 1
        %v4911 = vrot.slane %v4907, 1
        %v4914 = vadd.f32 %v4878, %v4910
        %v4915 = vadd.f32 %v4879, %v4911
        %4916 = vrot.lane.b32.xlu0 %v4718, 127
        %v4917 = vpop.permute.xlu0 %4916
        %4918 = vrot.lane.b32.xlu0 %v4719, 127
        %v4919 = vpop.permute.xlu0 %4918
        %v4920 = vsel %vm1615, %v4917, %v4919
        %v4924 = vsel %vm1615, %v4919, %v4917
        %v4925 = vmul.f32 %v4920, %v3072
        %v4926 = vmul.f32 %v4924, %v3076
        %s4927 = sld [smem:[#allocation8 + $0x8c]]
        %v4928 = vstv %s4927
        %v4929 = vmul.f32 %v4928, %v4925
        %v4930 = vmul.f32 %v4928, %v4926
        %v4933 = vrot.slane %v4929, 6
        %v4934 = vrot.slane %v4930, 6
        %v4937 = vadd.f32 %v4884, %v4933
        %v4938 = vadd.f32 %v4885, %v4934
        %s4939 = sld [smem:[#allocation8 + $0x95]]
        %v4940 = vstv %s4939
        %v4941 = vmul.f32 %v4940, %v4925
        %v4942 = vmul.f32 %v4940, %v4926
        %v4945 = vrot.slane %v4941, 1
        %v4946 = vrot.slane %v4942, 1
        %v4949 = vadd.f32 %v4890, %v4945
        %v4950 = vadd.f32 %v4891, %v4946
        %s4951 = sld [smem:[#allocation8 + $0x9e]]
        %v4952 = vstv %s4951
        %v4953 = vmul.f32 %v4952, %v4925
        %v4954 = vmul.f32 %v4952, %v4926
        %v4957 = vrot.slane %v4953, 2
        %v4958 = vrot.slane %v4954, 2
        %v4961 = vadd.f32 %v4902, %v4957
        %v4962 = vadd.f32 %v4903, %v4958
        %4963 = vrot.lane.b32.xlu0 %v4718, 113
        %v4964 = vpop.permute.xlu0 %4963
        %4965 = vrot.lane.b32.xlu0 %v4719, 113
        %v4966 = vpop.permute.xlu0 %4965
        %v4967 = vsel %vm1880, %v4964, %v4966
        %v4971 = vsel %vm1880, %v4966, %v4964
        %v4972 = vmul.f32 %v4967, %v3125
        %v4973 = vmul.f32 %v4971, %v3129
        %s4974 = sld [smem:[#allocation8 + $0x8d]]
        %v4975 = vstv %s4974
        %v4976 = vmul.f32 %v4975, %v4972
        %v4977 = vmul.f32 %v4975, %v4973
        %v4980 = vrot.slane %v4976, 7
        %v4981 = vrot.slane %v4977, 7
        %v4984 = vadd.f32 %v4914, %v4980
        %v4985 = vadd.f32 %v4915, %v4981
        %s4986 = sld [smem:[#allocation8 + $0x96]]
        %v4987 = vstv %s4986
        %v4988 = vmul.f32 %v4987, %v4972
        %v4989 = vmul.f32 %v4987, %v4973
        %v4992 = vrot.slane %v4988, 7
        %v4993 = vrot.slane %v4989, 7
        %v4996 = vadd.f32 %v4937, %v4992
        %v4997 = vadd.f32 %v4938, %v4993
        %s4998 = sld [smem:[#allocation8 + $0x9f]]
        %v4999 = vstv %s4998
        %v5000 = vmul.f32 %v4999, %v4972
        %v5001 = vmul.f32 %v4999, %v4973
        %v5004 = vrot.slane %v5000, 2
        %v5005 = vrot.slane %v5001, 2
        %v5008 = vadd.f32 %v4949, %v5004
        %v5009 = vadd.f32 %v4950, %v5005
        %5010 = vrot.lane.b32.xlu0 %v4718, 112
        %v5011 = vpop.permute.xlu0 %5010
        %5012 = vrot.lane.b32.xlu0 %v4719, 112
        %v5013 = vpop.permute.xlu0 %5012
        %v5014 = vsel %vm2145, %v5011, %v5013
        %v5018 = vsel %vm2145, %v5013, %v5011
        %v5019 = vmul.f32 %v5014, %v3184
        %v5020 = vmul.f32 %v5018, %v3188
        %s5021 = sld [smem:[#allocation8 + $0x8e]]
        %v5022 = vstv %s5021
        %v5023 = vmul.f32 %v5022, %v5019
        %v5024 = vmul.f32 %v5022, %v5020
        %v5025 = vadd.f32 %v4961, %v5023
        %v5026 = vadd.f32 %v4962, %v5024
        %s5027 = sld [smem:[#allocation8 + $0x97]]
        %v5028 = vstv %s5027
        %v5029 = vmul.f32 %v5028, %v5019
        %v5030 = vmul.f32 %v5028, %v5020
        %v5031 = vadd.f32 %v4984, %v5029
        %v5032 = vadd.f32 %v4985, %v5030
        %s5033 = sld [smem:[#allocation8 + $0xa0]]
        %v5034 = vstv %s5033
        %v5035 = vmul.f32 %v5034, %v5019
        %v5036 = vmul.f32 %v5034, %v5020
        %v5037 = vadd.f32 %v4996, %v5035
        %v5038 = vadd.f32 %v4997, %v5036
        %5039 = vrot.lane.b32.xlu0 %v4718, 111
        %v5040 = vpop.permute.xlu0 %5039
        %5041 = vrot.lane.b32.xlu0 %v4719, 111
        %v5042 = vpop.permute.xlu0 %5041
        %v5043 = vsel %vm2410, %v5040, %v5042
        %v5047 = vsel %vm2410, %v5042, %v5040
        %v5048 = vmul.f32 %v5043, %v3243
        %v5049 = vmul.f32 %v5047, %v3247
        %s5050 = sld [smem:[#allocation8 + $0x8f]]
        %v5051 = vstv %s5050
        %v5052 = vmul.f32 %v5051, %v5048
        %v5053 = vmul.f32 %v5051, %v5049
        %v5054 = vadd.f32 %v5008, %v5052
        %v5055 = vadd.f32 %v5009, %v5053
        %s5056 = sld [smem:[#allocation8 + $0x98]]
        %v5057 = vstv %s5056
        %v5058 = vmul.f32 %v5057, %v5048
        %v5059 = vmul.f32 %v5057, %v5049
        %v5062 = vrot.slane %v5058, 1
        %v5063 = vrot.slane %v5059, 1
        %v5066 = vadd.f32 %v5025, %v5062
        %v5067 = vadd.f32 %v5026, %v5063
        %s5068 = sld [smem:[#allocation8 + $0xa1]]
        %v5069 = vstv %s5068
        %v5070 = vmul.f32 %v5069, %v5048
        %v5071 = vmul.f32 %v5069, %v5049
        %v5074 = vrot.slane %v5070, 1
        %v5075 = vrot.slane %v5071, 1
        %v5078 = vadd.f32 %v5031, %v5074
        %v5079 = vadd.f32 %v5032, %v5075
        %v5080 = vld [vmem:[%s2802] sm:$0x3f]
        %v5081 = vld [vmem:[%s2802 + $0x8] sm:$0x3f]
        %5083 = vrot.lane.b32.xlu0 %v5081, 17
        %v5084 = vpop.permute.xlu0 %5083
        %5087 = vrot.lane.b32.xlu0 %v5080, 17
        %v5088 = vpop.permute.xlu0 %5087
        %v5089 = vsel %vm317, %v5088, %v5084
        %v5092 = vsel %vm317, %v5084, %v5088
        %v5093 = vmul.f32 %v5092, %v2842
        %v5094 = vmul.f32 %v5089, %v2846
        %s5095 = sld [smem:[#allocation8 + $0xa2]]
        %v5096 = vstv %s5095
        %v5097 = vmul.f32 %v5096, %v5093
        %v5098 = vmul.f32 %v5096, %v5094
        %v5101 = vrot.slane %v5097, 6
        %v5102 = vrot.slane %v5098, 6
        %v5105 = vadd.f32 %v5037, %v5101
        %v5106 = vadd.f32 %v5038, %v5102
        %s5107 = sld [smem:[#allocation8 + $0xab]]
        %v5108 = vstv %s5107
        %v5109 = vmul.f32 %v5108, %v5093
        %v5110 = vmul.f32 %v5108, %v5094
        %v5113 = vrot.slane %v5109, 1
        %v5114 = vrot.slane %v5110, 1
        %v5117 = vadd.f32 %v5054, %v5113
        %v5118 = vadd.f32 %v5055, %v5114
        %s5119 = sld [smem:[#allocation8 + $0xb4]]
        %v5120 = vstv %s5119
        %v5121 = vmul.f32 %v5120, %v5093
        %v5122 = vmul.f32 %v5120, %v5094
        %v5125 = vrot.slane %v5121, 2
        %v5126 = vrot.slane %v5122, 2
        %v5129 = vadd.f32 %v5066, %v5125
        %v5130 = vadd.f32 %v5067, %v5126
        %5131 = vrot.lane.b32.xlu0 %v5081, 16
        %v5132 = vpop.permute.xlu0 %5131
        %5134 = vrot.lane.b32.xlu0 %v5080, 16
        %v5135 = vpop.permute.xlu0 %5134
        %v5136 = vsel %vm581, %v5135, %v5132
        %v5139 = vsel %vm581, %v5132, %v5135
        %v5140 = vmul.f32 %v5139, %v2883
        %v5141 = vmul.f32 %v5136, %v2887
        %s5142 = sld [smem:[#allocation8 + $0xa3]]
        %v5143 = vstv %s5142
        %v5144 = vmul.f32 %v5143, %v5140
        %v5145 = vmul.f32 %v5143, %v5141
        %v5148 = vrot.slane %v5144, 7
        %v5149 = vrot.slane %v5145, 7
        %v5152 = vadd.f32 %v5078, %v5148
        %v5153 = vadd.f32 %v5079, %v5149
        %s5154 = sld [smem:[#allocation8 + $0xac]]
        %v5155 = vstv %s5154
        %v5156 = vmul.f32 %v5155, %v5140
        %v5157 = vmul.f32 %v5155, %v5141
        %v5160 = vrot.slane %v5156, 7
        %v5161 = vrot.slane %v5157, 7
        %v5164 = vadd.f32 %v5105, %v5160
        %v5165 = vadd.f32 %v5106, %v5161
        %s5166 = sld [smem:[#allocation8 + $0xb5]]
        %v5167 = vstv %s5166
        %v5168 = vmul.f32 %v5167, %v5140
        %v5169 = vmul.f32 %v5167, %v5141
        %v5172 = vrot.slane %v5168, 2
        %v5173 = vrot.slane %v5169, 2
        %v5176 = vadd.f32 %v5117, %v5172
        %v5177 = vadd.f32 %v5118, %v5173
        %5178 = vrot.lane.b32.xlu0 %v5081, 15
        %v5179 = vpop.permute.xlu0 %5178
        %5181 = vrot.lane.b32.xlu0 %v5080, 15
        %v5182 = vpop.permute.xlu0 %5181
        %v5183 = vsel %vm846, %v5182, %v5179
        %v5186 = vsel %vm846, %v5179, %v5182
        %v5187 = vmul.f32 %v5186, %v2936
        %v5188 = vmul.f32 %v5183, %v2940
        %s5189 = sld [smem:[#allocation8 + $0xa4]]
        %v5190 = vstv %s5189
        %v5191 = vmul.f32 %v5190, %v5187
        %v5192 = vmul.f32 %v5190, %v5188
        %v5193 = vadd.f32 %v5129, %v5191
        %v5194 = vadd.f32 %v5130, %v5192
        %s5195 = sld [smem:[#allocation8 + $0xad]]
        %v5196 = vstv %s5195
        %v5197 = vmul.f32 %v5196, %v5187
        %v5198 = vmul.f32 %v5196, %v5188
        %v5199 = vadd.f32 %v5152, %v5197
        %v5200 = vadd.f32 %v5153, %v5198
        %s5201 = sld [smem:[#allocation8 + $0xb6]]
        %v5202 = vstv %s5201
        %v5203 = vmul.f32 %v5202, %v5187
        %v5204 = vmul.f32 %v5202, %v5188
        %v5205 = vadd.f32 %v5164, %v5203
        %v5206 = vadd.f32 %v5165, %v5204
        %5207 = vrot.lane.b32.xlu0 %v5081, 1
        %v5208 = vpop.permute.xlu0 %5207
        %5210 = vrot.lane.b32.xlu0 %v5080, 1
        %v5211 = vpop.permute.xlu0 %5210
        %v5212 = vsel %vm1111, %v5211, %v5208
        %v5215 = vsel %vm1111, %v5208, %v5211
        %v5216 = vmul.f32 %v5215, %v2995
        %v5217 = vmul.f32 %v5212, %v2999
        %s5218 = sld [smem:[#allocation8 + $0xa5]]
        %v5219 = vstv %s5218
        %v5220 = vmul.f32 %v5219, %v5216
        %v5221 = vmul.f32 %v5219, %v5217
        %v5222 = vadd.f32 %v5176, %v5220
        %v5223 = vadd.f32 %v5177, %v5221
        %s5224 = sld [smem:[#allocation8 + $0xae]]
        %v5225 = vstv %s5224
        %v5226 = vmul.f32 %v5225, %v5216
        %v5227 = vmul.f32 %v5225, %v5217
        %v5230 = vrot.slane %v5226, 1
        %v5231 = vrot.slane %v5227, 1
        %v5234 = vadd.f32 %v5193, %v5230
        %v5235 = vadd.f32 %v5194, %v5231
        %s5236 = sld [smem:[#allocation8 + $0xb7]]
        %v5237 = vstv %s5236
        %v5238 = vmul.f32 %v5237, %v5216
        %v5239 = vmul.f32 %v5237, %v5217
        %v5242 = vrot.slane %v5238, 1
        %v5243 = vrot.slane %v5239, 1
        %v5246 = vadd.f32 %v5199, %v5242
        %v5247 = vadd.f32 %v5200, %v5243
        %s5248 = sld [smem:[#allocation8 + $0xa6]]
        %v5249 = vstv %s5248
        %v5250 = vmul.f32 %v5249, %v5080
        %v5251 = vmul.f32 %v5249, %v5081
        %v5254 = vrot.slane %v5250, 6
        %v5255 = vrot.slane %v5251, 6
        %v5258 = vadd.f32 %v5205, %v5254
        %v5259 = vadd.f32 %v5206, %v5255
        %s5260 = sld [smem:[#allocation8 + $0xaf]]
        %v5261 = vstv %s5260
        %v5262 = vmul.f32 %v5261, %v5080
        %v5263 = vmul.f32 %v5261, %v5081
        %v5266 = vrot.slane %v5262, 1
        %v5267 = vrot.slane %v5263, 1
        %v5270 = vadd.f32 %v5222, %v5266
        %v5271 = vadd.f32 %v5223, %v5267
        %s5272 = sld [smem:[#allocation8 + $0xb8]]
        %v5273 = vstv %s5272
        %v5274 = vmul.f32 %v5273, %v5080
        %v5275 = vmul.f32 %v5273, %v5081
        %v5278 = vrot.slane %v5274, 2
        %v5279 = vrot.slane %v5275, 2
        %v5282 = vadd.f32 %v5234, %v5278
        %v5283 = vadd.f32 %v5235, %v5279
        %5284 = vrot.lane.b32.xlu0 %v5080, 127
        %v5285 = vpop.permute.xlu0 %5284
        %5286 = vrot.lane.b32.xlu0 %v5081, 127
        %v5287 = vpop.permute.xlu0 %5286
        %v5288 = vsel %vm1615, %v5285, %v5287
        %v5292 = vsel %vm1615, %v5287, %v5285
        %v5293 = vmul.f32 %v5288, %v3072
        %v5294 = vmul.f32 %v5292, %v3076
        %s5295 = sld [smem:[#allocation8 + $0xa7]]
        %v5296 = vstv %s5295
        %v5297 = vmul.f32 %v5296, %v5293
        %v5298 = vmul.f32 %v5296, %v5294
        %v5301 = vrot.slane %v5297, 7
        %v5302 = vrot.slane %v5298, 7
        %v5305 = vadd.f32 %v5246, %v5301
        %v5306 = vadd.f32 %v5247, %v5302
        %s5307 = sld [smem:[#allocation8 + $0xb0]]
        %v5308 = vstv %s5307
        %v5309 = vmul.f32 %v5308, %v5293
        %v5310 = vmul.f32 %v5308, %v5294
        %v5313 = vrot.slane %v5309, 7
        %v5314 = vrot.slane %v5310, 7
        %v5317 = vadd.f32 %v5258, %v5313
        %v5318 = vadd.f32 %v5259, %v5314
        %s5319 = sld [smem:[#allocation8 + $0xb9]]
        %v5320 = vstv %s5319
        %v5321 = vmul.f32 %v5320, %v5293
        %v5322 = vmul.f32 %v5320, %v5294
        %v5325 = vrot.slane %v5321, 2
        %v5326 = vrot.slane %v5322, 2
        %v5329 = vadd.f32 %v5270, %v5325
        %v5330 = vadd.f32 %v5271, %v5326
        %5331 = vrot.lane.b32.xlu0 %v5080, 113
        %v5332 = vpop.permute.xlu0 %5331
        %5333 = vrot.lane.b32.xlu0 %v5081, 113
        %v5334 = vpop.permute.xlu0 %5333
        %v5335 = vsel %vm1880, %v5332, %v5334
        %v5339 = vsel %vm1880, %v5334, %v5332
        %v5340 = vmul.f32 %v5335, %v3125
        %v5341 = vmul.f32 %v5339, %v3129
        %s5342 = sld [smem:[#allocation8 + $0xa8]]
        %v5343 = vstv %s5342
        %v5344 = vmul.f32 %v5343, %v5340
        %v5345 = vmul.f32 %v5343, %v5341
        %v5346 = vadd.f32 %v5282, %v5344
        %v5347 = vadd.f32 %v5283, %v5345
        %s5348 = sld [smem:[#allocation8 + $0xb1]]
        %v5349 = vstv %s5348
        %v5350 = vmul.f32 %v5349, %v5340
        %v5351 = vmul.f32 %v5349, %v5341
        %v5352 = vadd.f32 %v5305, %v5350
        %v5353 = vadd.f32 %v5306, %v5351
        %s5354 = sld [smem:[#allocation8 + $0xba]]
        %v5355 = vstv %s5354
        %v5356 = vmul.f32 %v5355, %v5340
        %v5357 = vmul.f32 %v5355, %v5341
        %v5358 = vadd.f32 %v5317, %v5356
        %v5359 = vadd.f32 %v5318, %v5357
        %5360 = vrot.lane.b32.xlu0 %v5080, 112
        %v5361 = vpop.permute.xlu0 %5360
        %5362 = vrot.lane.b32.xlu0 %v5081, 112
        %v5363 = vpop.permute.xlu0 %5362
        %v5364 = vsel %vm2145, %v5361, %v5363
        %v5368 = vsel %vm2145, %v5363, %v5361
        %v5369 = vmul.f32 %v5364, %v3184
        %v5370 = vmul.f32 %v5368, %v3188
        %s5371 = sld [smem:[#allocation8 + $0xa9]]
        %v5372 = vstv %s5371
        %v5373 = vmul.f32 %v5372, %v5369
        %v5374 = vmul.f32 %v5372, %v5370
        %v5375 = vadd.f32 %v5329, %v5373
        %v5376 = vadd.f32 %v5330, %v5374
        %s5377 = sld [smem:[#allocation8 + $0xb2]]
        %v5378 = vstv %s5377
        %v5379 = vmul.f32 %v5378, %v5369
        %v5380 = vmul.f32 %v5378, %v5370
        %v5383 = vrot.slane %v5379, 1
        %v5384 = vrot.slane %v5380, 1
        %v5387 = vadd.f32 %v5346, %v5383
        %v5388 = vadd.f32 %v5347, %v5384
        %s5389 = sld [smem:[#allocation8 + $0xbb]]
        %v5390 = vstv %s5389
        %v5391 = vmul.f32 %v5390, %v5369
        %v5392 = vmul.f32 %v5390, %v5370
        %v5395 = vrot.slane %v5391, 1
        %v5396 = vrot.slane %v5392, 1
        %v5399 = vadd.f32 %v5352, %v5395
        %v5400 = vadd.f32 %v5353, %v5396
        %5401 = vrot.lane.b32.xlu0 %v5080, 111
        %v5402 = vpop.permute.xlu0 %5401
        %5403 = vrot.lane.b32.xlu0 %v5081, 111
        %v5404 = vpop.permute.xlu0 %5403
        %v5405 = vsel %vm2410, %v5402, %v5404
        %v5409 = vsel %vm2410, %v5404, %v5402
        %v5410 = vmul.f32 %v5405, %v3243
        %v5411 = vmul.f32 %v5409, %v3247
        %s5412 = sld [smem:[#allocation8 + $0xaa]]
        %v5413 = vstv %s5412
        %v5414 = vmul.f32 %v5413, %v5410
        %v5415 = vmul.f32 %v5413, %v5411
        %v5418 = vrot.slane %v5414, 6
        %v5419 = vrot.slane %v5415, 6
        %v5422 = vadd.f32 %v5358, %v5418
        %v5423 = vadd.f32 %v5359, %v5419
        %s5424 = sld [smem:[#allocation8 + $0xb3]]
        %v5425 = vstv %s5424
        %v5426 = vmul.f32 %v5425, %v5410
        %v5427 = vmul.f32 %v5425, %v5411
        %v5430 = vrot.slane %v5426, 1
        %v5431 = vrot.slane %v5427, 1
        %v5434 = vadd.f32 %v5375, %v5430
        %v5435 = vadd.f32 %v5376, %v5431
        %s5436 = sld [smem:[#allocation8 + $0xbc]]
        %v5437 = vstv %s5436
        %v5438 = vmul.f32 %v5437, %v5410
        %v5439 = vmul.f32 %v5437, %v5411
        %v5442 = vrot.slane %v5438, 2
        %v5443 = vrot.slane %v5439, 2
        %v5446 = vadd.f32 %v5387, %v5442
        %v5447 = vadd.f32 %v5388, %v5443
        %v5448 = vld [vmem:[%s2821] sm:$0x3f]
        %v5449 = vld [vmem:[%s2821 + $0x8] sm:$0x3f]
        %5451 = vrot.lane.b32.xlu0 %v5449, 17
        %v5452 = vpop.permute.xlu0 %5451
        %5455 = vrot.lane.b32.xlu0 %v5448, 17
        %v5456 = vpop.permute.xlu0 %5455
        %v5457 = vsel %vm317, %v5456, %v5452
        %v5460 = vsel %vm317, %v5452, %v5456
        %v5461 = vmul.f32 %v5460, %v2842
        %v5462 = vmul.f32 %v5457, %v2846
        %s5463 = sld [smem:[#allocation8 + $0xbd]]
        %v5464 = vstv %s5463
        %v5465 = vmul.f32 %v5464, %v5461
        %v5466 = vmul.f32 %v5464, %v5462
        %v5469 = vrot.slane %v5465, 7
        %v5470 = vrot.slane %v5466, 7
        %v5473 = vadd.f32 %v5399, %v5469
        %v5474 = vadd.f32 %v5400, %v5470
        %s5475 = sld [smem:[#allocation8 + $0xc6]]
        %v5476 = vstv %s5475
        %v5477 = vmul.f32 %v5476, %v5461
        %v5478 = vmul.f32 %v5476, %v5462
        %v5481 = vrot.slane %v5477, 7
        %v5482 = vrot.slane %v5478, 7
        %v5485 = vadd.f32 %v5422, %v5481
        %v5486 = vadd.f32 %v5423, %v5482
        %s5487 = sld [smem:[#allocation8 + $0xcf]]
        %v5488 = vstv %s5487
        %v5489 = vmul.f32 %v5488, %v5461
        %v5490 = vmul.f32 %v5488, %v5462
        %v5493 = vrot.slane %v5489, 2
        %v5494 = vrot.slane %v5490, 2
        %v5497 = vadd.f32 %v5434, %v5493
        %v5498 = vadd.f32 %v5435, %v5494
        %5499 = vrot.lane.b32.xlu0 %v5449, 16
        %v5500 = vpop.permute.xlu0 %5499
        %5502 = vrot.lane.b32.xlu0 %v5448, 16
        %v5503 = vpop.permute.xlu0 %5502
        %v5504 = vsel %vm581, %v5503, %v5500
        %v5507 = vsel %vm581, %v5500, %v5503
        %v5508 = vmul.f32 %v5507, %v2883
        %v5509 = vmul.f32 %v5504, %v2887
        %s5510 = sld [smem:[#allocation8 + $0xbe]]
        %v5511 = vstv %s5510
        %v5512 = vmul.f32 %v5511, %v5508
        %v5513 = vmul.f32 %v5511, %v5509
        %v5514 = vadd.f32 %v5446, %v5512
        %v5515 = vadd.f32 %v5447, %v5513
        %s5516 = sld [smem:[#allocation8 + $0xc7]]
        %v5517 = vstv %s5516
        %v5518 = vmul.f32 %v5517, %v5508
        %v5519 = vmul.f32 %v5517, %v5509
        %v5520 = vadd.f32 %v5473, %v5518
        %v5521 = vadd.f32 %v5474, %v5519
        %s5522 = sld [smem:[#allocation8 + $0xd0]]
        %v5523 = vstv %s5522
        %v5524 = vmul.f32 %v5523, %v5508
        %v5525 = vmul.f32 %v5523, %v5509
        %v5526 = vadd.f32 %v5485, %v5524
        %v5527 = vadd.f32 %v5486, %v5525
        %5528 = vrot.lane.b32.xlu0 %v5449, 15
        %v5529 = vpop.permute.xlu0 %5528
        %5531 = vrot.lane.b32.xlu0 %v5448, 15
        %v5532 = vpop.permute.xlu0 %5531
        %v5533 = vsel %vm846, %v5532, %v5529
        %v5536 = vsel %vm846, %v5529, %v5532
        %v5537 = vmul.f32 %v5536, %v2936
        %v5538 = vmul.f32 %v5533, %v2940
        %s5539 = sld [smem:[#allocation8 + $0xbf]]
        %v5540 = vstv %s5539
        %v5541 = vmul.f32 %v5540, %v5537
        %v5542 = vmul.f32 %v5540, %v5538
        %v5543 = vadd.f32 %v5497, %v5541
        %v5544 = vadd.f32 %v5498, %v5542
        %s5545 = sld [smem:[#allocation8 + $0xc8]]
        %v5546 = vstv %s5545
        %v5547 = vmul.f32 %v5546, %v5537
        %v5548 = vmul.f32 %v5546, %v5538
        %v5551 = vrot.slane %v5547, 1
        %v5552 = vrot.slane %v5548, 1
        %v5555 = vadd.f32 %v5514, %v5551
        %v5556 = vadd.f32 %v5515, %v5552
        %s5557 = sld [smem:[#allocation8 + $0xd1]]
        %v5558 = vstv %s5557
        %v5559 = vmul.f32 %v5558, %v5537
        %v5560 = vmul.f32 %v5558, %v5538
        %v5563 = vrot.slane %v5559, 1
        %v5564 = vrot.slane %v5560, 1
        %v5567 = vadd.f32 %v5520, %v5563
        %v5568 = vadd.f32 %v5521, %v5564
        %5569 = vrot.lane.b32.xlu0 %v5449, 1
        %v5570 = vpop.permute.xlu0 %5569
        %5572 = vrot.lane.b32.xlu0 %v5448, 1
        %v5573 = vpop.permute.xlu0 %5572
        %v5574 = vsel %vm1111, %v5573, %v5570
        %v5577 = vsel %vm1111, %v5570, %v5573
        %v5578 = vmul.f32 %v5577, %v2995
        %v5579 = vmul.f32 %v5574, %v2999
        %s5580 = sld [smem:[#allocation8 + $0xc0]]
        %v5581 = vstv %s5580
        %v5582 = vmul.f32 %v5581, %v5578
        %v5583 = vmul.f32 %v5581, %v5579
        %v5586 = vrot.slane %v5582, 6
        %v5587 = vrot.slane %v5583, 6
        %v5590 = vadd.f32 %v5526, %v5586
        %v5591 = vadd.f32 %v5527, %v5587
        %s5592 = sld [smem:[#allocation8 + $0xc9]]
        %v5593 = vstv %s5592
        %v5594 = vmul.f32 %v5593, %v5578
        %v5595 = vmul.f32 %v5593, %v5579
        %v5598 = vrot.slane %v5594, 1
        %v5599 = vrot.slane %v5595, 1
        %v5602 = vadd.f32 %v5543, %v5598
        %v5603 = vadd.f32 %v5544, %v5599
        %s5604 = sld [smem:[#allocation8 + $0xd2]]
        %v5605 = vstv %s5604
        %v5606 = vmul.f32 %v5605, %v5578
        %v5607 = vmul.f32 %v5605, %v5579
        %v5610 = vrot.slane %v5606, 2
        %v5611 = vrot.slane %v5607, 2
        %v5614 = vadd.f32 %v5555, %v5610
        %v5615 = vadd.f32 %v5556, %v5611
        %s5616 = sld [smem:[#allocation8 + $0xc1]]
        %v5617 = vstv %s5616
        %v5618 = vmul.f32 %v5617, %v5448
        %v5619 = vmul.f32 %v5617, %v5449
        %v5622 = vrot.slane %v5618, 7
        %v5623 = vrot.slane %v5619, 7
        %v5626 = vadd.f32 %v5567, %v5622
        %v5627 = vadd.f32 %v5568, %v5623
        %s5628 = sld [smem:[#allocation8 + $0xca]]
        %v5629 = vstv %s5628
        %v5630 = vmul.f32 %v5629, %v5448
        %v5631 = vmul.f32 %v5629, %v5449
        %v5634 = vrot.slane %v5630, 7
        %v5635 = vrot.slane %v5631, 7
        %v5638 = vadd.f32 %v5590, %v5634
        %v5639 = vadd.f32 %v5591, %v5635
        %s5640 = sld [smem:[#allocation8 + $0xd3]]
        %v5641 = vstv %s5640
        %v5642 = vmul.f32 %v5641, %v5448
        %v5643 = vmul.f32 %v5641, %v5449
        %v5646 = vrot.slane %v5642, 2
        %v5647 = vrot.slane %v5643, 2
        %v5650 = vadd.f32 %v5602, %v5646
        %v5651 = vadd.f32 %v5603, %v5647
        %5652 = vrot.lane.b32.xlu0 %v5448, 127
        %v5653 = vpop.permute.xlu0 %5652
        %5654 = vrot.lane.b32.xlu0 %v5449, 127
        %v5655 = vpop.permute.xlu0 %5654
        %v5656 = vsel %vm1615, %v5653, %v5655
        %v5660 = vsel %vm1615, %v5655, %v5653
        %v5661 = vmul.f32 %v5656, %v3072
        %v5662 = vmul.f32 %v5660, %v3076
        %s5663 = sld [smem:[#allocation8 + $0xc2]]
        %v5664 = vstv %s5663
        %v5665 = vmul.f32 %v5664, %v5661
        %v5666 = vmul.f32 %v5664, %v5662
        %v5667 = vadd.f32 %v5614, %v5665
        %v5668 = vadd.f32 %v5615, %v5666
        %s5669 = sld [smem:[#allocation8 + $0xcb]]
        %v5670 = vstv %s5669
        %v5671 = vmul.f32 %v5670, %v5661
        %v5672 = vmul.f32 %v5670, %v5662
        %v5673 = vadd.f32 %v5626, %v5671
        %v5674 = vadd.f32 %v5627, %v5672
        %s5675 = sld [smem:[#allocation8 + $0xd4]]
        %v5676 = vstv %s5675
        %v5677 = vmul.f32 %v5676, %v5661
        %v5678 = vmul.f32 %v5676, %v5662
        %v5679 = vadd.f32 %v5638, %v5677
        %v5680 = vadd.f32 %v5639, %v5678
        %5681 = vrot.lane.b32.xlu0 %v5448, 113
        %v5682 = vpop.permute.xlu0 %5681
        %5683 = vrot.lane.b32.xlu0 %v5449, 113
        %v5684 = vpop.permute.xlu0 %5683
        %v5685 = vsel %vm1880, %v5682, %v5684
        %v5689 = vsel %vm1880, %v5684, %v5682
        %v5690 = vmul.f32 %v5685, %v3125
        %v5691 = vmul.f32 %v5689, %v3129
        %s5692 = sld [smem:[#allocation8 + $0xc3]]
        %v5693 = vstv %s5692
        %v5694 = vmul.f32 %v5693, %v5690
        %v5695 = vmul.f32 %v5693, %v5691
        %v5696 = vadd.f32 %v5650, %v5694
        %v5697 = vadd.f32 %v5651, %v5695
        %s5698 = sld [smem:[#allocation8 + $0xcc]]
        %v5699 = vstv %s5698
        %v5700 = vmul.f32 %v5699, %v5690
        %v5701 = vmul.f32 %v5699, %v5691
        %v5704 = vrot.slane %v5700, 1
        %v5705 = vrot.slane %v5701, 1
        %v5708 = vadd.f32 %v5667, %v5704
        %v5709 = vadd.f32 %v5668, %v5705
        %s5710 = sld [smem:[#allocation8 + $0xd5]]
        %v5711 = vstv %s5710
        %v5712 = vmul.f32 %v5711, %v5690
        %v5713 = vmul.f32 %v5711, %v5691
        %v5716 = vrot.slane %v5712, 1
        %v5717 = vrot.slane %v5713, 1
        %v5720 = vadd.f32 %v5673, %v5716
        %v5721 = vadd.f32 %v5674, %v5717
        %5722 = vrot.lane.b32.xlu0 %v5448, 112
        %v5723 = vpop.permute.xlu0 %5722
        %5724 = vrot.lane.b32.xlu0 %v5449, 112
        %v5725 = vpop.permute.xlu0 %5724
        %v5726 = vsel %vm2145, %v5723, %v5725
        %v5730 = vsel %vm2145, %v5725, %v5723
        %v5731 = vmul.f32 %v5726, %v3184
        %v5732 = vmul.f32 %v5730, %v3188
        %s5733 = sld [smem:[#allocation8 + $0xc4]]
        %v5734 = vstv %s5733
        %v5735 = vmul.f32 %v5734, %v5731
        %v5736 = vmul.f32 %v5734, %v5732
        %v5739 = vrot.slane %v5735, 6
        %v5740 = vrot.slane %v5736, 6
        %v5743 = vadd.f32 %v5679, %v5739
        %v5744 = vadd.f32 %v5680, %v5740
        %s5745 = sld [smem:[#allocation8 + $0xcd]]
        %v5746 = vstv %s5745
        %v5747 = vmul.f32 %v5746, %v5731
        %v5748 = vmul.f32 %v5746, %v5732
        %v5751 = vrot.slane %v5747, 1
        %v5752 = vrot.slane %v5748, 1
        %v5755 = vadd.f32 %v5696, %v5751
        %v5756 = vadd.f32 %v5697, %v5752
        %s5757 = sld [smem:[#allocation8 + $0xd6]]
        %v5758 = vstv %s5757
        %v5759 = vmul.f32 %v5758, %v5731
        %v5760 = vmul.f32 %v5758, %v5732
        %v5763 = vrot.slane %v5759, 2
        %v5764 = vrot.slane %v5760, 2
        %v5767 = vadd.f32 %v5708, %v5763
        %v5768 = vadd.f32 %v5709, %v5764
        %5769 = vrot.lane.b32.xlu0 %v5448, 111
        %v5770 = vpop.permute.xlu0 %5769
        %5771 = vrot.lane.b32.xlu0 %v5449, 111
        %v5772 = vpop.permute.xlu0 %5771
        %v5773 = vsel %vm2410, %v5770, %v5772
        %v5777 = vsel %vm2410, %v5772, %v5770
        %v5778 = vmul.f32 %v5773, %v3243
        %v5779 = vmul.f32 %v5777, %v3247
        %s5780 = sld [smem:[#allocation8 + $0xc5]]
        %v5781 = vstv %s5780
        %v5782 = vmul.f32 %v5781, %v5778
        %v5783 = vmul.f32 %v5781, %v5779
        %v5786 = vrot.slane %v5782, 7
        %v5787 = vrot.slane %v5783, 7
        %v5790 = vadd.f32 %v5720, %v5786
        %v5791 = vadd.f32 %v5721, %v5787
        %s5792 = sld [smem:[#allocation8 + $0xce]]
        %v5793 = vstv %s5792
        %v5794 = vmul.f32 %v5793, %v5778
        %v5795 = vmul.f32 %v5793, %v5779
        %v5798 = vrot.slane %v5794, 7
        %v5799 = vrot.slane %v5795, 7
        %v5802 = vadd.f32 %v5743, %v5798
        %v5803 = vadd.f32 %v5744, %v5799
        %s5804 = sld [smem:[#allocation8 + $0xd7]]
        %v5805 = vstv %s5804
        %v5806 = vmul.f32 %v5805, %v5778
        %v5807 = vmul.f32 %v5805, %v5779
        %v5810 = vrot.slane %v5806, 2
        %v5811 = vrot.slane %v5807, 2
        %v5814 = vadd.f32 %v5755, %v5810
        %v5815 = vadd.f32 %v5756, %v5811
        %v5818 = vrot.slane %v5790, 1
        %v5819 = vrot.slane %v5791, 1
        %v5822 = vadd.f32 %v5767, %v5818
        %v5823 = vadd.f32 %v5768, %v5819
        %v5826 = vrot.slane %v5802, 2
        %v5827 = vrot.slane %v5803, 2
        %v5830 = vadd.f32 %v5822, %v5826
        %v5831 = vadd.f32 %v5823, %v5827
        %v5832 = vadd.f32 %v5830, %v5814
        %v5833 = vadd.f32 %v5831, %v5815
        %s5834 = sld [smem:[#allocation3]]
        %v5835 = vstv %s5834
        %v5836 = vadd.f32 %v5832, %v5835
        %v5837 = vadd.f32 %v5833, %v5835
        %v5838 = vrot.slane %v292, 1
        %v5839 = vrot.slane %v293, 1
        %v5842 = vadd.f32 %v5836, %v5838
        %v5843 = vadd.f32 %v5837, %v5839
        %v5846 = vcombine.low %v5842, %v5843
        %5848 = vst [vmem:[%s291] sm:$0xff] %v5846
        %p5849 = scmp.lt.s32.totalorder %s20, 1
        %s5850 = scalar_select %p5849, %s20, 1
        %s5851 = smul.addr %s5850, 2
        %s5852 = smul.addr %s5851, 4
        %s5853 = scalar_lea.vmem %s6, %s5852
        // Predicated region
        $region57: #{resblock_3d.1} parent=43 // pred_check
          %p5854 = pneg %p169
        $region58: #{resblock_3d.1} parent=43 // pred_check_branch
          %5856 = sbr.rel (%p5854) target = $region60
        $region59: #{resblock_3d.1} parent=43 // pred_region
          _
        $region60: #{resblock_3d.1} parent=43 // pred_fallthru
          _
      $region44: #{resblock_3d.1} parent=5 // pred_fallthru
        _
      %p5857 = scmp.le.s32.totalorder 2, %s15
      // Predicated region
      $region61: #{resblock_3d.1} parent=5 // pred_check
        %p5858 = pneg %p5857
      $region62: #{resblock_3d.1} parent=5 // pred_check_branch
        %5860 = sbr.rel (%p5858) target = $region64
      $region63: #{resblock_3d.1} parent=5 // pred_region
        %s5861 = ssub.s32 %s15, 2
        // Predicated region
        $region65: #{resblock_3d.1} parent=63 // pred_check
          %p5862 = pneg %p175
        $region66: #{resblock_3d.1} parent=63 // pred_check_branch
          %5864 = sbr.rel (%p5862) target = $region68
        $region67: #{resblock_3d.1} parent=63 // pred_region
          %p5865 = scmp.lt.s32.totalorder %s21, 1
          %s5866 = scalar_select %p5865, %s21, 1
          %s5867 = smul.addr %s5866, 2
          %s5868 = smul.addr %s5867, 4
          %s5869 = scalar_lea.vmem %s6, %s5868
        $region68: #{resblock_3d.1} parent=63 // pred_fallthru
          _
      $region64: #{resblock_3d.1} parent=5 // pred_fallthru
        _
    $region6: #{resblock_3d.1} parent=1 // loop_footer
      %s19 = sadd.s32 1, %s15
    $region7: #{resblock_3d.1} parent=1 // loop_footer_branch
      %14 = sbr.rel target = $region3
    $region8: #{resblock_3d.1} parent=1 // loop_exit
      _
    %5870 = vsyncpa [#allocation5], 1
    %s5871 = scalar_lea.sflag [#allocation5], 1
    %5872 = vsyncpa %s5871, 1
    %5873 = vsyncpa [#allocation7], 1

</llo_original>
